<compile_context>
chip_gen: v7x
topology: tpu7x:2x2x1
jax: 0.10.0
libtpu: 0.0.40
codegen_flags: <defaults>
</compile_context>

<pallas_src>
import jax
import jax.numpy as jnp
import numpy as np
from jax.experimental import pallas as pl
from jax.experimental.pallas import tpu as pltpu

DIM_EMB = 232      # self.dim_embedding_key (true GRU hidden size)
H_PAD = 256        # hidden size padded to a multiple of 128 lanes
CH_OUT = 16        # Conv1d out channels
PAST_LEN = 8       # self.past_len
FUTURE_LEN = 12    # hyperparams['prediction_horizon']
OUT_PAD = 32       # both decoder output widths (24, 16) padded to a common width


# ----------------------------- Pallas kernels -----------------------------

def st_encoder_kernel(x_ref, wc_ref, bc_ref, wih_ref, bih_ref,
                      whh_ref, bhh_ref, h_ref, xg_ref):
    """x_ref: (T*B, 6) time-major im2col windows; h_ref out: (B, 256).

    All input-dependent work (conv-as-matmul + input gate projections) is
    hoisted out of the serial recurrence; the loop only does the h-dependent
    fused matmul + gate nonlinearities.
    """
    TB = x_ref.shape[0]
    B, HP = h_ref.shape
    T = TB // B

    # Conv1d(k=3, p=1) as matmul + ReLU, all timesteps at once.
    xe = jnp.maximum(
        jnp.dot(x_ref[...], wc_ref[...], preferred_element_type=jnp.float32)
        + bc_ref[...], 0.0)                                             # (T*B, 16)
    # Input projections for all gates [r|z|n], all timesteps (off critical path).
    xg_ref[...] = (jnp.dot(xe, wih_ref[...], preferred_element_type=jnp.float32)
                   + bih_ref[...])                                      # (T*B, 3*HP)

    whh = whh_ref[...]                                                  # (HP, 3*HP)
    bhh = bhh_ref[...]                                                  # (1, 3*HP)

    def step(t, h):
        xg = xg_ref[pl.ds(t * B, B), :]                                 # (B, 3*HP)
        hg = jnp.dot(h, whh, preferred_element_type=jnp.float32) + bhh  # (B, 3*HP)
        r = jax.nn.sigmoid(xg[:, 0:HP] + hg[:, 0:HP])
        z = jax.nn.sigmoid(xg[:, HP:2 * HP] + hg[:, HP:2 * HP])
        n = jnp.tanh(xg[:, 2 * HP:3 * HP] + r * hg[:, 2 * HP:3 * HP])
        return (1.0 - z) * n + z * h

    h0 = jnp.zeros((B, HP), dtype=jnp.float32)
    h_ref[...] = jax.lax.fori_loop(0, T, step, h0, unroll=True)


def dual_mlp_kernel(x_ref, w1_ref, b1_ref, w2_ref, b2_ref, w3_ref, b3_ref,
                    w4_ref, b4_ref, o_ref):
    """One of the two stacked 4-layer MLPs (grid axis selects the decoder).

    Weights are bf16 (halves HBM traffic); activations are cast to bf16 for
    the MXU and accumulated in f32 via preferred_element_type.
    """
    a = x_ref[...].astype(jnp.bfloat16)
    a = jnp.maximum(
        jnp.dot(a, w1_ref[...], preferred_element_type=jnp.float32) + b1_ref[...], 0.0)
    a = jnp.maximum(
        jnp.dot(a.astype(jnp.bfloat16), w2_ref[...],
                preferred_element_type=jnp.float32) + b2_ref[...], 0.0)
    a = jnp.maximum(
        jnp.dot(a.astype(jnp.bfloat16), w3_ref[...],
                preferred_element_type=jnp.float32) + b3_ref[...], 0.0)
    o_ref[...] = (jnp.dot(a.astype(jnp.bfloat16), w4_ref[...],
                          preferred_element_type=jnp.float32) + b4_ref[...])


# ----------------------------- wrappers -----------------------------

def _im2col(X):
    """X: (b, T, 2) -> (T*b, 6) time-major, k-major windows for Conv1d(k=3, p=1)."""
    b, T, _ = X.shape
    Xpad = jnp.pad(X, ((0, 0), (1, 1), (0, 0)))
    idx = jnp.arange(T)[:, None] + jnp.arange(3)[None, :]       # (T, 3)
    windows = Xpad[:, idx, :]                                   # (b, T, 3, 2)
    return jnp.transpose(windows.reshape(b, T, 6), (1, 0, 2)).reshape(T * b, 6)


def st_encoder_pallas(X, p):
    b, T, _ = X.shape
    x_flat = _im2col(X)                                         # (T*b, 6)
    args = (x_flat, p['wc'], p['bc'], p['wih'], p['bih'], p['whh'], p['bhh'])
    flops = (2 * T * b * (6 * CH_OUT + CH_OUT * 3 * H_PAD)
             + 2 * T * b * H_PAD * 3 * H_PAD)
    bytes_accessed = sum(int(a.size) * 4 for a in args) + b * H_PAD * 4
    return pl.pallas_call(
        st_encoder_kernel,
        out_shape=jax.ShapeDtypeStruct((b, H_PAD), jnp.float32),
        in_specs=[pl.BlockSpec(memory_space=pltpu.MemorySpace.VMEM)] * len(args),
        out_specs=pl.BlockSpec(memory_space=pltpu.MemorySpace.VMEM),
        scratch_shapes=[pltpu.VMEM((T * b, 3 * H_PAD), jnp.float32)],
        cost_estimate=pl.CostEstimate(flops=flops,
                                      transcendentals=T * b * 3 * H_PAD,
                                      bytes_accessed=bytes_accessed),
    )(*args)


def dual_decoder_pallas(h, dp):
    """Run both decoder MLPs in a single pallas_call (grid=(2,), 'parallel')."""
    b = h.shape[0]
    names = ('w1', 'b1', 'w2', 'b2', 'w3', 'b3', 'w4', 'b4')
    args = (h,) + tuple(dp[n] for n in names)

    in_specs = [pl.BlockSpec((b, H_PAD), lambda d: (0, 0))]
    for n in names:
        in_specs.append(
            pl.BlockSpec((None,) + tuple(dp[n].shape[1:]), lambda d: (d, 0, 0)))

    flops = 0
    bytes_accessed = int(h.size) * 4 + 2 * b * OUT_PAD * 4
    for i in range(1, 5):
        w, bias = dp[f'w{i}'], dp[f'b{i}']
        flops += 2 * 2 * b * int(w.shape[1]) * int(w.shape[2])
        bytes_accessed += int(w.size) * 2 + int(bias.size) * 4

    return pl.pallas_call(
        dual_mlp_kernel,
        out_shape=jax.ShapeDtypeStruct((2, b, OUT_PAD), jnp.float32),
        grid=(2,),
        in_specs=in_specs,
        out_specs=pl.BlockSpec((None, b, OUT_PAD), lambda d: (d, 0, 0)),
        compiler_params=pltpu.CompilerParams(dimension_semantics=("parallel",)),
        cost_estimate=pl.CostEstimate(flops=flops, transcendentals=0,
                                      bytes_accessed=bytes_accessed),
    )(*args)


def model_encdec_re_forward(future, params):
    """future: (b, future_len, 2) -> (prediction (b, future_len, 2),
                                      reconstruction (b, past_len, 2))."""
    b = future.shape[0]
    norm_fut_state = st_encoder_pallas(future, params['norm_fut_encoder'])   # (b, 256)
    out = dual_decoder_pallas(norm_fut_state, params['decoders'])            # (2, b, 32)
    prediction = out[0, :, :FUTURE_LEN * 2].reshape(b, -1, 2)
    reconstruction = out[1, :, :PAST_LEN * 2].reshape(-1, PAST_LEN, 2)
    return prediction, reconstruction


# ----------------------------- parameter init -----------------------------

def _kaiming(key, shape, fan_in):
    return (jnp.sqrt(2.0 / fan_in) * jax.random.normal(key, shape)).astype(jnp.float32)


def init_st_encoder(key):
    ks = jax.random.split(key, 3)
    # Conv1d weight (out=16, in=2, k=3), kaiming normal; bias zeros (reset_parameters)
    w_conv = _kaiming(ks[0], (CH_OUT, 2, 3), fan_in=2 * 3)
    wc = jnp.transpose(w_conv, (2, 1, 0)).reshape(6, CH_OUT)    # (k*cin, cout), k-major
    bc = jnp.zeros((1, CH_OUT), jnp.float32)
    # GRU weights (3H, in) with gate order [r, z, n]; biases zero
    w_ih = _kaiming(ks[1], (3 * DIM_EMB, CH_OUT), fan_in=CH_OUT)
    w_hh = _kaiming(ks[2], (3 * DIM_EMB, DIM_EMB), fan_in=DIM_EMB)
    b_ih = jnp.zeros((3 * DIM_EMB,), jnp.float32)
    b_hh = jnp.zeros((3 * DIM_EMB,), jnp.float32)

    # Kernel layout: gates concatenated along the lane axis, each padded 232->256
    # so slices [0:256] / [256:512] / [512:768] are lane-aligned.  Padded rows /
    # cols are zero, which keeps the padded hidden entries exactly zero.
    H, HP = DIM_EMB, H_PAD
    wih_cat = jnp.zeros((CH_OUT, 3 * HP), jnp.float32)
    whh_cat = jnp.zeros((HP, 3 * HP), jnp.float32)
    bih_cat = jnp.zeros((1, 3 * HP), jnp.float32)
    bhh_cat = jnp.zeros((1, 3 * HP), jnp.float32)
    for g in range(3):
        wih_cat = wih_cat.at[:, g * HP:g * HP + H].set(w_ih[g * H:(g + 1) * H].T)
        whh_cat = whh_cat.at[:H, g * HP:g * HP + H].set(w_hh[g * H:(g + 1) * H].T)
        bih_cat = bih_cat.at[0, g * HP:g * HP + H].set(b_ih[g * H:(g + 1) * H])
        bhh_cat = bhh_cat.at[0, g * HP:g * HP + H].set(b_hh[g * H:(g + 1) * H])

    kernel_p = dict(wc=wc, bc=bc, wih=wih_cat, bih=bih_cat, whh=whh_cat, bhh=bhh_cat)
    ref_p = dict(wc=wc, bc=bc, w_ih=w_ih, w_hh=w_hh, b_ih=b_ih, b_hh=b_hh)
    return kernel_p, ref_p


def init_mlp(key, in_dim, out_dim, hidden=(1024, 512, 1024)):
    dims = [in_dim] + list(hidden) + [out_dim]
    keys = jax.random.split(key, 2 * (len(dims) - 1))
    p = {}
    for i in range(len(dims) - 1):
        bound = 1.0 / np.sqrt(dims[i])
        w = (bound * jax.random.normal(keys[2 * i], (dims[i], dims[i + 1]))).astype(jnp.float32)
        # pre-round to bf16 so the f32 reference uses the same weight values the kernel sees
        p[f'w{i + 1}'] = w.astype(jnp.bfloat16).astype(jnp.float32)
        p[f'b{i + 1}'] = (0.01 * jax.random.normal(keys[2 * i + 1], (1, dims[i + 1]))).astype(jnp.float32)
    return p


def pack_dual_decoders(dec_p, decx_p):
    """Stack both decoders into (2, in, out) tensors; pad layer-1 input 232->256
    and layer-4 output -> OUT_PAD with zeros; weights -> bf16, biases stay f32."""
    packed = {}
    for i in range(1, 5):
        w_a, w_b = dec_p[f'w{i}'], decx_p[f'w{i}']
        b_a, b_b = dec_p[f'b{i}'], decx_p[f'b{i}']
        if i == 1:
            w_a = jnp.pad(w_a, ((0, H_PAD - DIM_EMB), (0, 0)))
            w_b = jnp.pad(w_b, ((0, H_PAD - DIM_EMB), (0, 0)))
        if i == 4:
            w_a = jnp.pad(w_a, ((0, 0), (0, OUT_PAD - w_a.shape[1])))
            w_b = jnp.pad(w_b, ((0, 0), (0, OUT_PAD - w_b.shape[1])))
            b_a = jnp.pad(b_a, ((0, 0), (0, OUT_PAD - b_a.shape[1])))
            b_b = jnp.pad(b_b, ((0, 0), (0, OUT_PAD - b_b.shape[1])))
        packed[f'w{i}'] = jnp.stack([w_a, w_b]).astype(jnp.bfloat16)
        packed[f'b{i}'] = jnp.stack([b_a, b_b]).astype(jnp.float32)
    return packed


# ----------------------------- pure-JAX reference -----------------------------

def _st_encoder_ref(X, rp):
    b, T, _ = X.shape
    x = _im2col(X).reshape(T, b, 6)                             # (T, b, 6)
    xe = jax.nn.relu(x @ rp['wc'] + rp['bc'][0])                # (T, b, 16)
    H = DIM_EMB
    wir, wiz, win = [rp['w_ih'][g * H:(g + 1) * H].T for g in range(3)]
    whr, whz, whn = [rp['w_hh'][g * H:(g + 1) * H].T for g in range(3)]
    bir, biz, binn = [rp['b_ih'][g * H:(g + 1) * H] for g in range(3)]
    bhr, bhz, bhn = [rp['b_hh'][g * H:(g + 1) * H] for g in range(3)]

    def step(h, x_t):
        r = jax.nn.sigmoid(x_t @ wir + bir + h @ whr + bhr)
        z = jax.nn.sigmoid(x_t @ wiz + biz + h @ whz + bhz)
        n = jnp.tanh(x_t @ win + binn + r * (h @ whn + bhn))
        return (1.0 - z) * n + z * h, None

    h0 = jnp.zeros((b, H), jnp.float32)
    h, _ = jax.lax.scan(step, h0, xe)
    return h


def _mlp_ref(x, p):
    a = jax.nn.relu(x @ p['w1'] + p['b1'][0])
    a = jax.nn.relu(a @ p['w2'] + p['b2'][0])
    a = jax.nn.relu(a @ p['w3'] + p['b3'][0])
    return a @ p['w4'] + p['b4'][0]


def _forward_ref(future, ref_params):
    b = future.shape[0]
    h = _st_encoder_ref(future, ref_params['norm_fut_encoder'])
    pred = _mlp_ref(h, ref_params['decoder']).reshape(b, -1, 2)
    recon = _mlp_ref(h, ref_params['decoder_x']).reshape(-1, PAST_LEN, 2)
    return pred, recon


# ----------------------------- main -----------------------------

if __name__ == "__main__":
    key = jax.random.PRNGKey(0)
    k_in, k_enc, k_dec, k_decx = jax.random.split(key, 4)

    batch = 2
    future = jax.random.normal(k_in, (batch, FUTURE_LEN, 2), dtype=jnp.float32)

    enc_kernel_p, enc_ref_p = init_st_encoder(k_enc)
    dec_p = init_mlp(k_dec, DIM_EMB, FUTURE_LEN * 2)
    decx_p = init_mlp(k_decx, DIM_EMB, PAST_LEN * 2)

    params = {
        'norm_fut_encoder': enc_kernel_p,
        'decoders': pack_dual_decoders(dec_p, decx_p),
    }
    ref_params = {
        'norm_fut_encoder': enc_ref_p,
        'decoder': dec_p,
        'decoder_x': decx_p,
    }
    # TODO(synk): norm_past_encoder, res_past_encoder, decoder_2, decoder_2_x are
    # defined in __init__ but unused in forward(), so they are not materialized.

    fwd = jax.jit(model_encdec_re_forward)
    prediction, reconstruction = fwd(future, params)
    jax.block_until_ready((prediction, reconstruction))

    assert prediction.shape == (batch, FUTURE_LEN, 2)
    assert reconstruction.shape == (batch, PAST_LEN, 2)
    assert bool(jnp.all(jnp.isfinite(prediction))) and bool(jnp.all(jnp.isfinite(reconstruction)))

    pred_ref, recon_ref = _forward_ref(future, ref_params)
    np.testing.assert_allclose(np.asarray(prediction), np.asarray(pred_ref), rtol=2e-2, atol=2e-2)
    np.testing.assert_allclose(np.asarray(reconstruction), np.asarray(recon_ref), rtol=2e-2, atol=2e-2)

    print("KERNEL_OK")
</pallas_src>

<mosaic_0001>
module attributes {stable_mosaic.version = 11 : i64} {
  func.func @st_encoder_kernel(%arg0: memref<24x6xf32, #tpu.memory_space<vmem>>, %arg1: memref<6x16xf32, #tpu.memory_space<vmem>>, %arg2: memref<1x16xf32, #tpu.memory_space<vmem>>, %arg3: memref<16x768xf32, #tpu.memory_space<vmem>>, %arg4: memref<1x768xf32, #tpu.memory_space<vmem>>, %arg5: memref<256x768xf32, #tpu.memory_space<vmem>>, %arg6: memref<1x768xf32, #tpu.memory_space<vmem>>, %arg7: memref<2x256xf32, #tpu.memory_space<vmem>>, %arg8: memref<24x768xf32, #tpu.memory_space<vmem>>) attributes {dimension_semantics = [], scalar_prefetch = 0 : i64, scratch_operands = 1 : i64, tpu.core_type = #tpu.core_type<tc>} {
    %c0 = arith.constant 0 : index
    %c0_0 = arith.constant 0 : index
    %0 = vector.load %arg0[%c0, %c0_0] : memref<24x6xf32, #tpu.memory_space<vmem>>, vector<24x6xf32>
    %c0_1 = arith.constant 0 : index
    %c0_2 = arith.constant 0 : index
    %1 = vector.load %arg1[%c0_1, %c0_2] : memref<6x16xf32, #tpu.memory_space<vmem>>, vector<6x16xf32>
    %cst = arith.constant dense<0.000000e+00> : vector<24x16xf32>
    %2 = tpu.matmul %0, %1, %cst {dimension_numbers = #tpu.dot_dimension_numbers<[1], [0], [0], [1], [0, 0, 1, 1], [], []>} : vector<24x6xf32>, vector<6x16xf32>, vector<24x16xf32> -> vector<24x16xf32>
    %c0_3 = arith.constant 0 : index
    %c0_4 = arith.constant 0 : index
    %3 = vector.load %arg2[%c0_3, %c0_4] : memref<1x16xf32, #tpu.memory_space<vmem>>, vector<1x16xf32>
    %4 = vector.broadcast %3 : vector<1x16xf32> to vector<24x16xf32>
    %5 = arith.addf %2, %4 : vector<24x16xf32>
    %cst_5 = arith.constant 0.000000e+00 : f32
    %6 = vector.broadcast %cst_5 : f32 to vector<24x16xf32>
    %7 = arith.maximumf %5, %6 : vector<24x16xf32>
    %c0_6 = arith.constant 0 : index
    %c0_7 = arith.constant 0 : index
    %8 = vector.load %arg3[%c0_6, %c0_7] : memref<16x768xf32, #tpu.memory_space<vmem>>, vector<16x768xf32>
    %cst_8 = arith.constant dense<0.000000e+00> : vector<24x768xf32>
    %9 = tpu.matmul %7, %8, %cst_8 {dimension_numbers = #tpu.dot_dimension_numbers<[1], [0], [0], [1], [0, 0, 1, 1], [], []>} : vector<24x16xf32>, vector<16x768xf32>, vector<24x768xf32> -> vector<24x768xf32>
    %c0_9 = arith.constant 0 : index
    %c0_10 = arith.constant 0 : index
    %10 = vector.load %arg4[%c0_9, %c0_10] : memref<1x768xf32, #tpu.memory_space<vmem>>, vector<1x768xf32>
    %11 = vector.broadcast %10 : vector<1x768xf32> to vector<24x768xf32>
    %12 = arith.addf %9, %11 : vector<24x768xf32>
    %c0_11 = arith.constant 0 : index
    %c0_12 = arith.constant 0 : index
    %13 = vector.load %arg8[%c0_11, %c0_12] : memref<24x768xf32, #tpu.memory_space<vmem>>, vector<24x768xf32>
    tpu.vector_store %arg8[%c0_11, %c0_12], %12 {strides = array<i32>} : memref<24x768xf32, #tpu.memory_space<vmem>>, vector<24x768xf32>,
    %c0_13 = arith.constant 0 : index
    %c0_14 = arith.constant 0 : index
    %14 = vector.load %arg5[%c0_13, %c0_14] : memref<256x768xf32, #tpu.memory_space<vmem>>, vector<256x768xf32>
    %c0_15 = arith.constant 0 : index
    %c0_16 = arith.constant 0 : index
    %15 = vector.load %arg6[%c0_15, %c0_16] : memref<1x768xf32, #tpu.memory_space<vmem>>, vector<1x768xf32>
    %cst_17 = arith.constant 0.000000e+00 : f32
    %16 = vector.broadcast %cst_17 : f32 to vector<2x256xf32>
    %c0_i32 = arith.constant 0 : i32
    %c2_i32 = arith.constant 2 : i32
    %17 = arith.muli %c0_i32, %c2_i32 : i32
    %18 = arith.index_cast %17 : i32 to index
    %c0_18 = arith.constant 0 : index
    %19 = vector.load %arg8[%18, %c0_18] : memref<24x768xf32, #tpu.memory_space<vmem>>, vector<2x768xf32>
    %cst_19 = arith.constant dense<0.000000e+00> : vector<2x768xf32>
    %20 = tpu.matmul %16, %14, %cst_19 {dimension_numbers = #tpu.dot_dimension_numbers<[1], [0], [0], [1], [0, 0, 1, 1], [], []>} : vector<2x256xf32>, vector<256x768xf32>, vector<2x768xf32> -> vector<2x768xf32>
    %21 = vector.broadcast %15 : vector<1x768xf32> to vector<2x768xf32>
    %22 = arith.addf %20, %21 : vector<2x768xf32>
    %23 = vector.extract_strided_slice %19 {offsets = [0, 0], sizes = [2, 256], strides = [1, 1]} : vector<2x768xf32> to vector<2x256xf32>
    %24 = vector.extract_strided_slice %22 {offsets = [0, 0], sizes = [2, 256], strides = [1, 1]} : vector<2x768xf32> to vector<2x256xf32>
    %25 = arith.addf %23, %24 : vector<2x256xf32>
    %26 = arith.negf %25 : vector<2x256xf32>
    %27 = math.exp %26 : vector<2x256xf32>
    %cst_20 = arith.constant 1.000000e+00 : f32
    %28 = vector.broadcast %cst_20 : f32 to vector<2x256xf32>
    %29 = arith.addf %28, %27 : vector<2x256xf32>
    %30 = arith.divf %28, %29 : vector<2x256xf32>
    %31 = vector.extract_strided_slice %19 {offsets = [0, 256], sizes = [2, 256], strides = [1, 1]} : vector<2x768xf32> to vector<2x256xf32>
    %32 = vector.extract_strided_slice %22 {offsets = [0, 256], sizes = [2, 256], strides = [1, 1]} : vector<2x768xf32> to vector<2x256xf32>
    %33 = arith.addf %31, %32 : vector<2x256xf32>
    %34 = arith.negf %33 : vector<2x256xf32>
    %35 = math.exp %34 : vector<2x256xf32>
    %cst_21 = arith.constant 1.000000e+00 : f32
    %36 = vector.broadcast %cst_21 : f32 to vector<2x256xf32>
    %37 = arith.addf %36, %35 : vector<2x256xf32>
    %38 = arith.divf %36, %37 : vector<2x256xf32>
    %39 = vector.extract_strided_slice %19 {offsets = [0, 512], sizes = [2, 256], strides = [1, 1]} : vector<2x768xf32> to vector<2x256xf32>
    %40 = vector.extract_strided_slice %22 {offsets = [0, 512], sizes = [2, 256], strides = [1, 1]} : vector<2x768xf32> to vector<2x256xf32>
    %41 = arith.mulf %30, %40 : vector<2x256xf32>
    %42 = arith.addf %39, %41 : vector<2x256xf32>
    %43 = math.tanh %42 : vector<2x256xf32>
    %cst_22 = arith.constant 1.000000e+00 : f32
    %44 = vector.broadcast %cst_22 : f32 to vector<2x256xf32>
    %45 = arith.subf %44, %38 : vector<2x256xf32>
    %46 = arith.mulf %45, %43 : vector<2x256xf32>
    %47 = arith.mulf %38, %16 : vector<2x256xf32>
    %48 = arith.addf %46, %47 : vector<2x256xf32>
    %c1_i32 = arith.constant 1 : i32
    %c2_i32_23 = arith.constant 2 : i32
    %49 = arith.muli %c1_i32, %c2_i32_23 : i32
    %50 = arith.index_cast %49 : i32 to index
    %c0_24 = arith.constant 0 : index
    %51 = vector.load %arg8[%50, %c0_24] : memref<24x768xf32, #tpu.memory_space<vmem>>, vector<2x768xf32>
    %cst_25 = arith.constant dense<0.000000e+00> : vector<2x768xf32>
    %52 = tpu.matmul %48, %14, %cst_25 {dimension_numbers = #tpu.dot_dimension_numbers<[1], [0], [0], [1], [0, 0, 1, 1], [], []>} : vector<2x256xf32>, vector<256x768xf32>, vector<2x768xf32> -> vector<2x768xf32>
    %53 = vector.broadcast %15 : vector<1x768xf32> to vector<2x768xf32>
    %54 = arith.addf %52, %53 : vector<2x768xf32>
    %55 = vector.extract_strided_slice %51 {offsets = [0, 0], sizes = [2, 256], strides = [1, 1]} : vector<2x768xf32> to vector<2x256xf32>
    %56 = vector.extract_strided_slice %54 {offsets = [0, 0], sizes = [2, 256], strides = [1, 1]} : vector<2x768xf32> to vector<2x256xf32>
    %57 = arith.addf %55, %56 : vector<2x256xf32>
    %58 = arith.negf %57 : vector<2x256xf32>
    %59 = math.exp %58 : vector<2x256xf32>
    %cst_26 = arith.constant 1.000000e+00 : f32
    %60 = vector.broadcast %cst_26 : f32 to vector<2x256xf32>
    %61 = arith.addf %60, %59 : vector<2x256xf32>
    %62 = arith.divf %60, %61 : vector<2x256xf32>
    %63 = vector.extract_strided_slice %51 {offsets = [0, 256], sizes = [2, 256], strides = [1, 1]} : vector<2x768xf32> to vector<2x256xf32>
    %64 = vector.extract_strided_slice %54 {offsets = [0, 256], sizes = [2, 256], strides = [1, 1]} : vector<2x768xf32> to vector<2x256xf32>
    %65 = arith.addf %63, %64 : vector<2x256xf32>
    %66 = arith.negf %65 : vector<2x256xf32>
    %67 = math.exp %66 : vector<2x256xf32>
    %cst_27 = arith.constant 1.000000e+00 : f32
    %68 = vector.broadcast %cst_27 : f32 to vector<2x256xf32>
    %69 = arith.addf %68, %67 : vector<2x256xf32>
    %70 = arith.divf %68, %69 : vector<2x256xf32>
    %71 = vector.extract_strided_slice %51 {offsets = [0, 512], sizes = [2, 256], strides = [1, 1]} : vector<2x768xf32> to vector<2x256xf32>
    %72 = vector.extract_strided_slice %54 {offsets = [0, 512], sizes = [2, 256], strides = [1, 1]} : vector<2x768xf32> to vector<2x256xf32>
    %73 = arith.mulf %62, %72 : vector<2x256xf32>
    %74 = arith.addf %71, %73 : vector<2x256xf32>
    %75 = math.tanh %74 : vector<2x256xf32>
    %cst_28 = arith.constant 1.000000e+00 : f32
    %76 = vector.broadcast %cst_28 : f32 to vector<2x256xf32>
    %77 = arith.subf %76, %70 : vector<2x256xf32>
    %78 = arith.mulf %77, %75 : vector<2x256xf32>
    %79 = arith.mulf %70, %48 : vector<2x256xf32>
    %80 = arith.addf %78, %79 : vector<2x256xf32>
    %c2_i32_29 = arith.constant 2 : i32
    %c2_i32_30 = arith.constant 2 : i32
    %81 = arith.muli %c2_i32_29, %c2_i32_30 : i32
    %82 = arith.index_cast %81 : i32 to index
    %c0_31 = arith.constant 0 : index
    %83 = vector.load %arg8[%82, %c0_31] : memref<24x768xf32, #tpu.memory_space<vmem>>, vector<2x768xf32>
    %cst_32 = arith.constant dense<0.000000e+00> : vector<2x768xf32>
    %84 = tpu.matmul %80, %14, %cst_32 {dimension_numbers = #tpu.dot_dimension_numbers<[1], [0], [0], [1], [0, 0, 1, 1], [], []>} : vector<2x256xf32>, vector<256x768xf32>, vector<2x768xf32> -> vector<2x768xf32>
    %85 = vector.broadcast %15 : vector<1x768xf32> to vector<2x768xf32>
    %86 = arith.addf %84, %85 : vector<2x768xf32>
    %87 = vector.extract_strided_slice %83 {offsets = [0, 0], sizes = [2, 256], strides = [1, 1]} : vector<2x768xf32> to vector<2x256xf32>
    %88 = vector.extract_strided_slice %86 {offsets = [0, 0], sizes = [2, 256], strides = [1, 1]} : vector<2x768xf32> to vector<2x256xf32>
    %89 = arith.addf %87, %88 : vector<2x256xf32>
    %90 = arith.negf %89 : vector<2x256xf32>
    %91 = math.exp %90 : vector<2x256xf32>
    %cst_33 = arith.constant 1.000000e+00 : f32
    %92 = vector.broadcast %cst_33 : f32 to vector<2x256xf32>
    %93 = arith.addf %92, %91 : vector<2x256xf32>
    %94 = arith.divf %92, %93 : vector<2x256xf32>
    %95 = vector.extract_strided_slice %83 {offsets = [0, 256], sizes = [2, 256], strides = [1, 1]} : vector<2x768xf32> to vector<2x256xf32>
    %96 = vector.extract_strided_slice %86 {offsets = [0, 256], sizes = [2, 256], strides = [1, 1]} : vector<2x768xf32> to vector<2x256xf32>
    %97 = arith.addf %95, %96 : vector<2x256xf32>
    %98 = arith.negf %97 : vector<2x256xf32>
    %99 = math.exp %98 : vector<2x256xf32>
    %cst_34 = arith.constant 1.000000e+00 : f32
    %100 = vector.broadcast %cst_34 : f32 to vector<2x256xf32>
    %101 = arith.addf %100, %99 : vector<2x256xf32>
    %102 = arith.divf %100, %101 : vector<2x256xf32>
    %103 = vector.extract_strided_slice %83 {offsets = [0, 512], sizes = [2, 256], strides = [1, 1]} : vector<2x768xf32> to vector<2x256xf32>
    %104 = vector.extract_strided_slice %86 {offsets = [0, 512], sizes = [2, 256], strides = [1, 1]} : vector<2x768xf32> to vector<2x256xf32>
    %105 = arith.mulf %94, %104 : vector<2x256xf32>
    %106 = arith.addf %103, %105 : vector<2x256xf32>
    %107 = math.tanh %106 : vector<2x256xf32>
    %cst_35 = arith.constant 1.000000e+00 : f32
    %108 = vector.broadcast %cst_35 : f32 to vector<2x256xf32>
    %109 = arith.subf %108, %102 : vector<2x256xf32>
    %110 = arith.mulf %109, %107 : vector<2x256xf32>
    %111 = arith.mulf %102, %80 : vector<2x256xf32>
    %112 = arith.addf %110, %111 : vector<2x256xf32>
    %c3_i32 = arith.constant 3 : i32
    %c2_i32_36 = arith.constant 2 : i32
    %113 = arith.muli %c3_i32, %c2_i32_36 : i32
    %114 = arith.index_cast %113 : i32 to index
    %c0_37 = arith.constant 0 : index
    %115 = vector.load %arg8[%114, %c0_37] : memref<24x768xf32, #tpu.memory_space<vmem>>, vector<2x768xf32>
    %cst_38 = arith.constant dense<0.000000e+00> : vector<2x768xf32>
    %116 = tpu.matmul %112, %14, %cst_38 {dimension_numbers = #tpu.dot_dimension_numbers<[1], [0], [0], [1], [0, 0, 1, 1], [], []>} : vector<2x256xf32>, vector<256x768xf32>, vector<2x768xf32> -> vector<2x768xf32>
    %117 = vector.broadcast %15 : vector<1x768xf32> to vector<2x768xf32>
    %118 = arith.addf %116, %117 : vector<2x768xf32>
    %119 = vector.extract_strided_slice %115 {offsets = [0, 0], sizes = [2, 256], strides = [1, 1]} : vector<2x768xf32> to vector<2x256xf32>
    %120 = vector.extract_strided_slice %118 {offsets = [0, 0], sizes = [2, 256], strides = [1, 1]} : vector<2x768xf32> to vector<2x256xf32>
    %121 = arith.addf %119, %120 : vector<2x256xf32>
    %122 = arith.negf %121 : vector<2x256xf32>
    %123 = math.exp %122 : vector<2x256xf32>
    %cst_39 = arith.constant 1.000000e+00 : f32
    %124 = vector.broadcast %cst_39 : f32 to vector<2x256xf32>
    %125 = arith.addf %124, %123 : vector<2x256xf32>
    %126 = arith.divf %124, %125 : vector<2x256xf32>
    %127 = vector.extract_strided_slice %115 {offsets = [0, 256], sizes = [2, 256], strides = [1, 1]} : vector<2x768xf32> to vector<2x256xf32>
    %128 = vector.extract_strided_slice %118 {offsets = [0, 256], sizes = [2, 256], strides = [1, 1]} : vector<2x768xf32> to vector<2x256xf32>
    %129 = arith.addf %127, %128 : vector<2x256xf32>
    %130 = arith.negf %129 : vector<2x256xf32>
    %131 = math.exp %130 : vector<2x256xf32>
    %cst_40 = arith.constant 1.000000e+00 : f32
    %132 = vector.broadcast %cst_40 : f32 to vector<2x256xf32>
    %133 = arith.addf %132, %131 : vector<2x256xf32>
    %134 = arith.divf %132, %133 : vector<2x256xf32>
    %135 = vector.extract_strided_slice %115 {offsets = [0, 512], sizes = [2, 256], strides = [1, 1]} : vector<2x768xf32> to vector<2x256xf32>
    %136 = vector.extract_strided_slice %118 {offsets = [0, 512], sizes = [2, 256], strides = [1, 1]} : vector<2x768xf32> to vector<2x256xf32>
    %137 = arith.mulf %126, %136 : vector<2x256xf32>
    %138 = arith.addf %135, %137 : vector<2x256xf32>
    %139 = math.tanh %138 : vector<2x256xf32>
    %cst_41 = arith.constant 1.000000e+00 : f32
    %140 = vector.broadcast %cst_41 : f32 to vector<2x256xf32>
    %141 = arith.subf %140, %134 : vector<2x256xf32>
    %142 = arith.mulf %141, %139 : vector<2x256xf32>
    %143 = arith.mulf %134, %112 : vector<2x256xf32>
    %144 = arith.addf %142, %143 : vector<2x256xf32>
    %c4_i32 = arith.constant 4 : i32
    %c2_i32_42 = arith.constant 2 : i32
    %145 = arith.muli %c4_i32, %c2_i32_42 : i32
    %146 = arith.index_cast %145 : i32 to index
    %c0_43 = arith.constant 0 : index
    %147 = vector.load %arg8[%146, %c0_43] : memref<24x768xf32, #tpu.memory_space<vmem>>, vector<2x768xf32>
    %cst_44 = arith.constant dense<0.000000e+00> : vector<2x768xf32>
    %148 = tpu.matmul %144, %14, %cst_44 {dimension_numbers = #tpu.dot_dimension_numbers<[1], [0], [0], [1], [0, 0, 1, 1], [], []>} : vector<2x256xf32>, vector<256x768xf32>, vector<2x768xf32> -> vector<2x768xf32>
    %149 = vector.broadcast %15 : vector<1x768xf32> to vector<2x768xf32>
    %150 = arith.addf %148, %149 : vector<2x768xf32>
    %151 = vector.extract_strided_slice %147 {offsets = [0, 0], sizes = [2, 256], strides = [1, 1]} : vector<2x768xf32> to vector<2x256xf32>
    %152 = vector.extract_strided_slice %150 {offsets = [0, 0], sizes = [2, 256], strides = [1, 1]} : vector<2x768xf32> to vector<2x256xf32>
    %153 = arith.addf %151, %152 : vector<2x256xf32>
    %154 = arith.negf %153 : vector<2x256xf32>
    %155 = math.exp %154 : vector<2x256xf32>
    %cst_45 = arith.constant 1.000000e+00 : f32
    %156 = vector.broadcast %cst_45 : f32 to vector<2x256xf32>
    %157 = arith.addf %156, %155 : vector<2x256xf32>
    %158 = arith.divf %156, %157 : vector<2x256xf32>
    %159 = vector.extract_strided_slice %147 {offsets = [0, 256], sizes = [2, 256], strides = [1, 1]} : vector<2x768xf32> to vector<2x256xf32>
    %160 = vector.extract_strided_slice %150 {offsets = [0, 256], sizes = [2, 256], strides = [1, 1]} : vector<2x768xf32> to vector<2x256xf32>
    %161 = arith.addf %159, %160 : vector<2x256xf32>
    %162 = arith.negf %161 : vector<2x256xf32>
    %163 = math.exp %162 : vector<2x256xf32>
    %cst_46 = arith.constant 1.000000e+00 : f32
    %164 = vector.broadcast %cst_46 : f32 to vector<2x256xf32>
    %165 = arith.addf %164, %163 : vector<2x256xf32>
    %166 = arith.divf %164, %165 : vector<2x256xf32>
    %167 = vector.extract_strided_slice %147 {offsets = [0, 512], sizes = [2, 256], strides = [1, 1]} : vector<2x768xf32> to vector<2x256xf32>
    %168 = vector.extract_strided_slice %150 {offsets = [0, 512], sizes = [2, 256], strides = [1, 1]} : vector<2x768xf32> to vector<2x256xf32>
    %169 = arith.mulf %158, %168 : vector<2x256xf32>
    %170 = arith.addf %167, %169 : vector<2x256xf32>
    %171 = math.tanh %170 : vector<2x256xf32>
    %cst_47 = arith.constant 1.000000e+00 : f32
    %172 = vector.broadcast %cst_47 : f32 to vector<2x256xf32>
    %173 = arith.subf %172, %166 : vector<2x256xf32>
    %174 = arith.mulf %173, %171 : vector<2x256xf32>
    %175 = arith.mulf %166, %144 : vector<2x256xf32>
    %176 = arith.addf %174, %175 : vector<2x256xf32>
    %c5_i32 = arith.constant 5 : i32
    %c2_i32_48 = arith.constant 2 : i32
    %177 = arith.muli %c5_i32, %c2_i32_48 : i32
    %178 = arith.index_cast %177 : i32 to index
    %c0_49 = arith.constant 0 : index
    %179 = vector.load %arg8[%178, %c0_49] : memref<24x768xf32, #tpu.memory_space<vmem>>, vector<2x768xf32>
    %cst_50 = arith.constant dense<0.000000e+00> : vector<2x768xf32>
    %180 = tpu.matmul %176, %14, %cst_50 {dimension_numbers = #tpu.dot_dimension_numbers<[1], [0], [0], [1], [0, 0, 1, 1], [], []>} : vector<2x256xf32>, vector<256x768xf32>, vector<2x768xf32> -> vector<2x768xf32>
    %181 = vector.broadcast %15 : vector<1x768xf32> to vector<2x768xf32>
    %182 = arith.addf %180, %181 : vector<2x768xf32>
    %183 = vector.extract_strided_slice %179 {offsets = [0, 0], sizes = [2, 256], strides = [1, 1]} : vector<2x768xf32> to vector<2x256xf32>
    %184 = vector.extract_strided_slice %182 {offsets = [0, 0], sizes = [2, 256], strides = [1, 1]} : vector<2x768xf32> to vector<2x256xf32>
    %185 = arith.addf %183, %184 : vector<2x256xf32>
    %186 = arith.negf %185 : vector<2x256xf32>
    %187 = math.exp %186 : vector<2x256xf32>
    %cst_51 = arith.constant 1.000000e+00 : f32
    %188 = vector.broadcast %cst_51 : f32 to vector<2x256xf32>
    %189 = arith.addf %188, %187 : vector<2x256xf32>
    %190 = arith.divf %188, %189 : vector<2x256xf32>
    %191 = vector.extract_strided_slice %179 {offsets = [0, 256], sizes = [2, 256], strides = [1, 1]} : vector<2x768xf32> to vector<2x256xf32>
    %192 = vector.extract_strided_slice %182 {offsets = [0, 256], sizes = [2, 256], strides = [1, 1]} : vector<2x768xf32> to vector<2x256xf32>
    %193 = arith.addf %191, %192 : vector<2x256xf32>
    %194 = arith.negf %193 : vector<2x256xf32>
    %195 = math.exp %194 : vector<2x256xf32>
    %cst_52 = arith.constant 1.000000e+00 : f32
    %196 = vector.broadcast %cst_52 : f32 to vector<2x256xf32>
    %197 = arith.addf %196, %195 : vector<2x256xf32>
    %198 = arith.divf %196, %197 : vector<2x256xf32>
    %199 = vector.extract_strided_slice %179 {offsets = [0, 512], sizes = [2, 256], strides = [1, 1]} : vector<2x768xf32> to vector<2x256xf32>
    %200 = vector.extract_strided_slice %182 {offsets = [0, 512], sizes = [2, 256], strides = [1, 1]} : vector<2x768xf32> to vector<2x256xf32>
    %201 = arith.mulf %190, %200 : vector<2x256xf32>
    %202 = arith.addf %199, %201 : vector<2x256xf32>
    %203 = math.tanh %202 : vector<2x256xf32>
    %cst_53 = arith.constant 1.000000e+00 : f32
    %204 = vector.broadcast %cst_53 : f32 to vector<2x256xf32>
    %205 = arith.subf %204, %198 : vector<2x256xf32>
    %206 = arith.mulf %205, %203 : vector<2x256xf32>
    %207 = arith.mulf %198, %176 : vector<2x256xf32>
    %208 = arith.addf %206, %207 : vector<2x256xf32>
    %c6_i32 = arith.constant 6 : i32
    %c2_i32_54 = arith.constant 2 : i32
    %209 = arith.muli %c6_i32, %c2_i32_54 : i32
    %210 = arith.index_cast %209 : i32 to index
    %c0_55 = arith.constant 0 : index
    %211 = vector.load %arg8[%210, %c0_55] : memref<24x768xf32, #tpu.memory_space<vmem>>, vector<2x768xf32>
    %cst_56 = arith.constant dense<0.000000e+00> : vector<2x768xf32>
    %212 = tpu.matmul %208, %14, %cst_56 {dimension_numbers = #tpu.dot_dimension_numbers<[1], [0], [0], [1], [0, 0, 1, 1], [], []>} : vector<2x256xf32>, vector<256x768xf32>, vector<2x768xf32> -> vector<2x768xf32>
    %213 = vector.broadcast %15 : vector<1x768xf32> to vector<2x768xf32>
    %214 = arith.addf %212, %213 : vector<2x768xf32>
    %215 = vector.extract_strided_slice %211 {offsets = [0, 0], sizes = [2, 256], strides = [1, 1]} : vector<2x768xf32> to vector<2x256xf32>
    %216 = vector.extract_strided_slice %214 {offsets = [0, 0], sizes = [2, 256], strides = [1, 1]} : vector<2x768xf32> to vector<2x256xf32>
    %217 = arith.addf %215, %216 : vector<2x256xf32>
    %218 = arith.negf %217 : vector<2x256xf32>
    %219 = math.exp %218 : vector<2x256xf32>
    %cst_57 = arith.constant 1.000000e+00 : f32
    %220 = vector.broadcast %cst_57 : f32 to vector<2x256xf32>
    %221 = arith.addf %220, %219 : vector<2x256xf32>
    %222 = arith.divf %220, %221 : vector<2x256xf32>
    %223 = vector.extract_strided_slice %211 {offsets = [0, 256], sizes = [2, 256], strides = [1, 1]} : vector<2x768xf32> to vector<2x256xf32>
    %224 = vector.extract_strided_slice %214 {offsets = [0, 256], sizes = [2, 256], strides = [1, 1]} : vector<2x768xf32> to vector<2x256xf32>
    %225 = arith.addf %223, %224 : vector<2x256xf32>
    %226 = arith.negf %225 : vector<2x256xf32>
    %227 = math.exp %226 : vector<2x256xf32>
    %cst_58 = arith.constant 1.000000e+00 : f32
    %228 = vector.broadcast %cst_58 : f32 to vector<2x256xf32>
    %229 = arith.addf %228, %227 : vector<2x256xf32>
    %230 = arith.divf %228, %229 : vector<2x256xf32>
    %231 = vector.extract_strided_slice %211 {offsets = [0, 512], sizes = [2, 256], strides = [1, 1]} : vector<2x768xf32> to vector<2x256xf32>
    %232 = vector.extract_strided_slice %214 {offsets = [0, 512], sizes = [2, 256], strides = [1, 1]} : vector<2x768xf32> to vector<2x256xf32>
    %233 = arith.mulf %222, %232 : vector<2x256xf32>
    %234 = arith.addf %231, %233 : vector<2x256xf32>
    %235 = math.tanh %234 : vector<2x256xf32>
    %cst_59 = arith.constant 1.000000e+00 : f32
    %236 = vector.broadcast %cst_59 : f32 to vector<2x256xf32>
    %237 = arith.subf %236, %230 : vector<2x256xf32>
    %238 = arith.mulf %237, %235 : vector<2x256xf32>
    %239 = arith.mulf %230, %208 : vector<2x256xf32>
    %240 = arith.addf %238, %239 : vector<2x256xf32>
    %c7_i32 = arith.constant 7 : i32
    %c2_i32_60 = arith.constant 2 : i32
    %241 = arith.muli %c7_i32, %c2_i32_60 : i32
    %242 = arith.index_cast %241 : i32 to index
    %c0_61 = arith.constant 0 : index
    %243 = vector.load %arg8[%242, %c0_61] : memref<24x768xf32, #tpu.memory_space<vmem>>, vector<2x768xf32>
    %cst_62 = arith.constant dense<0.000000e+00> : vector<2x768xf32>
    %244 = tpu.matmul %240, %14, %cst_62 {dimension_numbers = #tpu.dot_dimension_numbers<[1], [0], [0], [1], [0, 0, 1, 1], [], []>} : vector<2x256xf32>, vector<256x768xf32>, vector<2x768xf32> -> vector<2x768xf32>
    %245 = vector.broadcast %15 : vector<1x768xf32> to vector<2x768xf32>
    %246 = arith.addf %244, %245 : vector<2x768xf32>
    %247 = vector.extract_strided_slice %243 {offsets = [0, 0], sizes = [2, 256], strides = [1, 1]} : vector<2x768xf32> to vector<2x256xf32>
    %248 = vector.extract_strided_slice %246 {offsets = [0, 0], sizes = [2, 256], strides = [1, 1]} : vector<2x768xf32> to vector<2x256xf32>
    %249 = arith.addf %247, %248 : vector<2x256xf32>
    %250 = arith.negf %249 : vector<2x256xf32>
    %251 = math.exp %250 : vector<2x256xf32>
    %cst_63 = arith.constant 1.000000e+00 : f32
    %252 = vector.broadcast %cst_63 : f32 to vector<2x256xf32>
    %253 = arith.addf %252, %251 : vector<2x256xf32>
    %254 = arith.divf %252, %253 : vector<2x256xf32>
    %255 = vector.extract_strided_slice %243 {offsets = [0, 256], sizes = [2, 256], strides = [1, 1]} : vector<2x768xf32> to vector<2x256xf32>
    %256 = vector.extract_strided_slice %246 {offsets = [0, 256], sizes = [2, 256], strides = [1, 1]} : vector<2x768xf32> to vector<2x256xf32>
    %257 = arith.addf %255, %256 : vector<2x256xf32>
    %258 = arith.negf %257 : vector<2x256xf32>
    %259 = math.exp %258 : vector<2x256xf32>
    %cst_64 = arith.constant 1.000000e+00 : f32
    %260 = vector.broadcast %cst_64 : f32 to vector<2x256xf32>
    %261 = arith.addf %260, %259 : vector<2x256xf32>
    %262 = arith.divf %260, %261 : vector<2x256xf32>
    %263 = vector.extract_strided_slice %243 {offsets = [0, 512], sizes = [2, 256], strides = [1, 1]} : vector<2x768xf32> to vector<2x256xf32>
    %264 = vector.extract_strided_slice %246 {offsets = [0, 512], sizes = [2, 256], strides = [1, 1]} : vector<2x768xf32> to vector<2x256xf32>
    %265 = arith.mulf %254, %264 : vector<2x256xf32>
    %266 = arith.addf %263, %265 : vector<2x256xf32>
    %267 = math.tanh %266 : vector<2x256xf32>
    %cst_65 = arith.constant 1.000000e+00 : f32
    %268 = vector.broadcast %cst_65 : f32 to vector<2x256xf32>
    %269 = arith.subf %268, %262 : vector<2x256xf32>
    %270 = arith.mulf %269, %267 : vector<2x256xf32>
    %271 = arith.mulf %262, %240 : vector<2x256xf32>
    %272 = arith.addf %270, %271 : vector<2x256xf32>
    %c8_i32 = arith.constant 8 : i32
    %c2_i32_66 = arith.constant 2 : i32
    %273 = arith.muli %c8_i32, %c2_i32_66 : i32
    %274 = arith.index_cast %273 : i32 to index
    %c0_67 = arith.constant 0 : index
    %275 = vector.load %arg8[%274, %c0_67] : memref<24x768xf32, #tpu.memory_space<vmem>>, vector<2x768xf32>
    %cst_68 = arith.constant dense<0.000000e+00> : vector<2x768xf32>
    %276 = tpu.matmul %272, %14, %cst_68 {dimension_numbers = #tpu.dot_dimension_numbers<[1], [0], [0], [1], [0, 0, 1, 1], [], []>} : vector<2x256xf32>, vector<256x768xf32>, vector<2x768xf32> -> vector<2x768xf32>
    %277 = vector.broadcast %15 : vector<1x768xf32> to vector<2x768xf32>
    %278 = arith.addf %276, %277 : vector<2x768xf32>
    %279 = vector.extract_strided_slice %275 {offsets = [0, 0], sizes = [2, 256], strides = [1, 1]} : vector<2x768xf32> to vector<2x256xf32>
    %280 = vector.extract_strided_slice %278 {offsets = [0, 0], sizes = [2, 256], strides = [1, 1]} : vector<2x768xf32> to vector<2x256xf32>
    %281 = arith.addf %279, %280 : vector<2x256xf32>
    %282 = arith.negf %281 : vector<2x256xf32>
    %283 = math.exp %282 : vector<2x256xf32>
    %cst_69 = arith.constant 1.000000e+00 : f32
    %284 = vector.broadcast %cst_69 : f32 to vector<2x256xf32>
    %285 = arith.addf %284, %283 : vector<2x256xf32>
    %286 = arith.divf %284, %285 : vector<2x256xf32>
    %287 = vector.extract_strided_slice %275 {offsets = [0, 256], sizes = [2, 256], strides = [1, 1]} : vector<2x768xf32> to vector<2x256xf32>
    %288 = vector.extract_strided_slice %278 {offsets = [0, 256], sizes = [2, 256], strides = [1, 1]} : vector<2x768xf32> to vector<2x256xf32>
    %289 = arith.addf %287, %288 : vector<2x256xf32>
    %290 = arith.negf %289 : vector<2x256xf32>
    %291 = math.exp %290 : vector<2x256xf32>
    %cst_70 = arith.constant 1.000000e+00 : f32
    %292 = vector.broadcast %cst_70 : f32 to vector<2x256xf32>
    %293 = arith.addf %292, %291 : vector<2x256xf32>
    %294 = arith.divf %292, %293 : vector<2x256xf32>
    %295 = vector.extract_strided_slice %275 {offsets = [0, 512], sizes = [2, 256], strides = [1, 1]} : vector<2x768xf32> to vector<2x256xf32>
    %296 = vector.extract_strided_slice %278 {offsets = [0, 512], sizes = [2, 256], strides = [1, 1]} : vector<2x768xf32> to vector<2x256xf32>
    %297 = arith.mulf %286, %296 : vector<2x256xf32>
    %298 = arith.addf %295, %297 : vector<2x256xf32>
    %299 = math.tanh %298 : vector<2x256xf32>
    %cst_71 = arith.constant 1.000000e+00 : f32
    %300 = vector.broadcast %cst_71 : f32 to vector<2x256xf32>
    %301 = arith.subf %300, %294 : vector<2x256xf32>
    %302 = arith.mulf %301, %299 : vector<2x256xf32>
    %303 = arith.mulf %294, %272 : vector<2x256xf32>
    %304 = arith.addf %302, %303 : vector<2x256xf32>
    %c9_i32 = arith.constant 9 : i32
    %c2_i32_72 = arith.constant 2 : i32
    %305 = arith.muli %c9_i32, %c2_i32_72 : i32
    %306 = arith.index_cast %305 : i32 to index
    %c0_73 = arith.constant 0 : index
    %307 = vector.load %arg8[%306, %c0_73] : memref<24x768xf32, #tpu.memory_space<vmem>>, vector<2x768xf32>
    %cst_74 = arith.constant dense<0.000000e+00> : vector<2x768xf32>
    %308 = tpu.matmul %304, %14, %cst_74 {dimension_numbers = #tpu.dot_dimension_numbers<[1], [0], [0], [1], [0, 0, 1, 1], [], []>} : vector<2x256xf32>, vector<256x768xf32>, vector<2x768xf32> -> vector<2x768xf32>
    %309 = vector.broadcast %15 : vector<1x768xf32> to vector<2x768xf32>
    %310 = arith.addf %308, %309 : vector<2x768xf32>
    %311 = vector.extract_strided_slice %307 {offsets = [0, 0], sizes = [2, 256], strides = [1, 1]} : vector<2x768xf32> to vector<2x256xf32>
    %312 = vector.extract_strided_slice %310 {offsets = [0, 0], sizes = [2, 256], strides = [1, 1]} : vector<2x768xf32> to vector<2x256xf32>
    %313 = arith.addf %311, %312 : vector<2x256xf32>
    %314 = arith.negf %313 : vector<2x256xf32>
    %315 = math.exp %314 : vector<2x256xf32>
    %cst_75 = arith.constant 1.000000e+00 : f32
    %316 = vector.broadcast %cst_75 : f32 to vector<2x256xf32>
    %317 = arith.addf %316, %315 : vector<2x256xf32>
    %318 = arith.divf %316, %317 : vector<2x256xf32>
    %319 = vector.extract_strided_slice %307 {offsets = [0, 256], sizes = [2, 256], strides = [1, 1]} : vector<2x768xf32> to vector<2x256xf32>
    %320 = vector.extract_strided_slice %310 {offsets = [0, 256], sizes = [2, 256], strides = [1, 1]} : vector<2x768xf32> to vector<2x256xf32>
    %321 = arith.addf %319, %320 : vector<2x256xf32>
    %322 = arith.negf %321 : vector<2x256xf32>
    %323 = math.exp %322 : vector<2x256xf32>
    %cst_76 = arith.constant 1.000000e+00 : f32
    %324 = vector.broadcast %cst_76 : f32 to vector<2x256xf32>
    %325 = arith.addf %324, %323 : vector<2x256xf32>
    %326 = arith.divf %324, %325 : vector<2x256xf32>
    %327 = vector.extract_strided_slice %307 {offsets = [0, 512], sizes = [2, 256], strides = [1, 1]} : vector<2x768xf32> to vector<2x256xf32>
    %328 = vector.extract_strided_slice %310 {offsets = [0, 512], sizes = [2, 256], strides = [1, 1]} : vector<2x768xf32> to vector<2x256xf32>
    %329 = arith.mulf %318, %328 : vector<2x256xf32>
    %330 = arith.addf %327, %329 : vector<2x256xf32>
    %331 = math.tanh %330 : vector<2x256xf32>
    %cst_77 = arith.constant 1.000000e+00 : f32
    %332 = vector.broadcast %cst_77 : f32 to vector<2x256xf32>
    %333 = arith.subf %332, %326 : vector<2x256xf32>
    %334 = arith.mulf %333, %331 : vector<2x256xf32>
    %335 = arith.mulf %326, %304 : vector<2x256xf32>
    %336 = arith.addf %334, %335 : vector<2x256xf32>
    %c10_i32 = arith.constant 10 : i32
    %c2_i32_78 = arith.constant 2 : i32
    %337 = arith.muli %c10_i32, %c2_i32_78 : i32
    %338 = arith.index_cast %337 : i32 to index
    %c0_79 = arith.constant 0 : index
    %339 = vector.load %arg8[%338, %c0_79] : memref<24x768xf32, #tpu.memory_space<vmem>>, vector<2x768xf32>
    %cst_80 = arith.constant dense<0.000000e+00> : vector<2x768xf32>
    %340 = tpu.matmul %336, %14, %cst_80 {dimension_numbers = #tpu.dot_dimension_numbers<[1], [0], [0], [1], [0, 0, 1, 1], [], []>} : vector<2x256xf32>, vector<256x768xf32>, vector<2x768xf32> -> vector<2x768xf32>
    %341 = vector.broadcast %15 : vector<1x768xf32> to vector<2x768xf32>
    %342 = arith.addf %340, %341 : vector<2x768xf32>
    %343 = vector.extract_strided_slice %339 {offsets = [0, 0], sizes = [2, 256], strides = [1, 1]} : vector<2x768xf32> to vector<2x256xf32>
    %344 = vector.extract_strided_slice %342 {offsets = [0, 0], sizes = [2, 256], strides = [1, 1]} : vector<2x768xf32> to vector<2x256xf32>
    %345 = arith.addf %343, %344 : vector<2x256xf32>
    %346 = arith.negf %345 : vector<2x256xf32>
    %347 = math.exp %346 : vector<2x256xf32>
    %cst_81 = arith.constant 1.000000e+00 : f32
    %348 = vector.broadcast %cst_81 : f32 to vector<2x256xf32>
    %349 = arith.addf %348, %347 : vector<2x256xf32>
    %350 = arith.divf %348, %349 : vector<2x256xf32>
    %351 = vector.extract_strided_slice %339 {offsets = [0, 256], sizes = [2, 256], strides = [1, 1]} : vector<2x768xf32> to vector<2x256xf32>
    %352 = vector.extract_strided_slice %342 {offsets = [0, 256], sizes = [2, 256], strides = [1, 1]} : vector<2x768xf32> to vector<2x256xf32>
    %353 = arith.addf %351, %352 : vector<2x256xf32>
    %354 = arith.negf %353 : vector<2x256xf32>
    %355 = math.exp %354 : vector<2x256xf32>
    %cst_82 = arith.constant 1.000000e+00 : f32
    %356 = vector.broadcast %cst_82 : f32 to vector<2x256xf32>
    %357 = arith.addf %356, %355 : vector<2x256xf32>
    %358 = arith.divf %356, %357 : vector<2x256xf32>
    %359 = vector.extract_strided_slice %339 {offsets = [0, 512], sizes = [2, 256], strides = [1, 1]} : vector<2x768xf32> to vector<2x256xf32>
    %360 = vector.extract_strided_slice %342 {offsets = [0, 512], sizes = [2, 256], strides = [1, 1]} : vector<2x768xf32> to vector<2x256xf32>
    %361 = arith.mulf %350, %360 : vector<2x256xf32>
    %362 = arith.addf %359, %361 : vector<2x256xf32>
    %363 = math.tanh %362 : vector<2x256xf32>
    %cst_83 = arith.constant 1.000000e+00 : f32
    %364 = vector.broadcast %cst_83 : f32 to vector<2x256xf32>
    %365 = arith.subf %364, %358 : vector<2x256xf32>
    %366 = arith.mulf %365, %363 : vector<2x256xf32>
    %367 = arith.mulf %358, %336 : vector<2x256xf32>
    %368 = arith.addf %366, %367 : vector<2x256xf32>
    %c11_i32 = arith.constant 11 : i32
    %c2_i32_84 = arith.constant 2 : i32
    %369 = arith.muli %c11_i32, %c2_i32_84 : i32
    %370 = arith.index_cast %369 : i32 to index
    %c0_85 = arith.constant 0 : index
    %371 = vector.load %arg8[%370, %c0_85] : memref<24x768xf32, #tpu.memory_space<vmem>>, vector<2x768xf32>
    %cst_86 = arith.constant dense<0.000000e+00> : vector<2x768xf32>
    %372 = tpu.matmul %368, %14, %cst_86 {dimension_numbers = #tpu.dot_dimension_numbers<[1], [0], [0], [1], [0, 0, 1, 1], [], []>} : vector<2x256xf32>, vector<256x768xf32>, vector<2x768xf32> -> vector<2x768xf32>
    %373 = vector.broadcast %15 : vector<1x768xf32> to vector<2x768xf32>
    %374 = arith.addf %372, %373 : vector<2x768xf32>
    %375 = vector.extract_strided_slice %371 {offsets = [0, 0], sizes = [2, 256], strides = [1, 1]} : vector<2x768xf32> to vector<2x256xf32>
    %376 = vector.extract_strided_slice %374 {offsets = [0, 0], sizes = [2, 256], strides = [1, 1]} : vector<2x768xf32> to vector<2x256xf32>
    %377 = arith.addf %375, %376 : vector<2x256xf32>
    %378 = arith.negf %377 : vector<2x256xf32>
    %379 = math.exp %378 : vector<2x256xf32>
    %cst_87 = arith.constant 1.000000e+00 : f32
    %380 = vector.broadcast %cst_87 : f32 to vector<2x256xf32>
    %381 = arith.addf %380, %379 : vector<2x256xf32>
    %382 = arith.divf %380, %381 : vector<2x256xf32>
    %383 = vector.extract_strided_slice %371 {offsets = [0, 256], sizes = [2, 256], strides = [1, 1]} : vector<2x768xf32> to vector<2x256xf32>
    %384 = vector.extract_strided_slice %374 {offsets = [0, 256], sizes = [2, 256], strides = [1, 1]} : vector<2x768xf32> to vector<2x256xf32>
    %385 = arith.addf %383, %384 : vector<2x256xf32>
    %386 = arith.negf %385 : vector<2x256xf32>
    %387 = math.exp %386 : vector<2x256xf32>
    %cst_88 = arith.constant 1.000000e+00 : f32
    %388 = vector.broadcast %cst_88 : f32 to vector<2x256xf32>
    %389 = arith.addf %388, %387 : vector<2x256xf32>
    %390 = arith.divf %388, %389 : vector<2x256xf32>
    %391 = vector.extract_strided_slice %371 {offsets = [0, 512], sizes = [2, 256], strides = [1, 1]} : vector<2x768xf32> to vector<2x256xf32>
    %392 = vector.extract_strided_slice %374 {offsets = [0, 512], sizes = [2, 256], strides = [1, 1]} : vector<2x768xf32> to vector<2x256xf32>
    %393 = arith.mulf %382, %392 : vector<2x256xf32>
    %394 = arith.addf %391, %393 : vector<2x256xf32>
    %395 = math.tanh %394 : vector<2x256xf32>
    %cst_89 = arith.constant 1.000000e+00 : f32
    %396 = vector.broadcast %cst_89 : f32 to vector<2x256xf32>
    %397 = arith.subf %396, %390 : vector<2x256xf32>
    %398 = arith.mulf %397, %395 : vector<2x256xf32>
    %399 = arith.mulf %390, %368 : vector<2x256xf32>
    %400 = arith.addf %398, %399 : vector<2x256xf32>
    %c12_i32 = arith.constant 12 : i32
    %c0_90 = arith.constant 0 : index
    %c0_91 = arith.constant 0 : index
    %401 = vector.load %arg7[%c0_90, %c0_91] : memref<2x256xf32, #tpu.memory_space<vmem>>, vector<2x256xf32>
    tpu.vector_store %arg7[%c0_90, %c0_91], %400 {strides = array<i32>} : memref<2x256xf32, #tpu.memory_space<vmem>>, vector<2x256xf32>,
    return
  }
}

module attributes {stable_mosaic.version = 11 : i64} {
  func.func @dual_mlp_kernel(%arg0: i32, %arg1: memref<2x256xf32, #tpu.memory_space<vmem>>, %arg2: memref<1x256x1024xbf16, #tpu.memory_space<vmem>>, %arg3: memref<1x1x1024xf32, #tpu.memory_space<vmem>>, %arg4: memref<1x1024x512xbf16, #tpu.memory_space<vmem>>, %arg5: memref<1x1x512xf32, #tpu.memory_space<vmem>>, %arg6: memref<1x512x1024xbf16, #tpu.memory_space<vmem>>, %arg7: memref<1x1x1024xf32, #tpu.memory_space<vmem>>, %arg8: memref<1x1024x32xbf16, #tpu.memory_space<vmem>>, %arg9: memref<1x1x32xf32, #tpu.memory_space<vmem>>, %arg10: memref<1x2x32xf32, #tpu.memory_space<vmem>>) attributes {dimension_semantics = [#tpu.dimension_semantics<parallel>], iteration_bounds = array<i64: 2>, scalar_prefetch = 0 : i64, scratch_operands = 0 : i64, tpu.core_type = #tpu.core_type<tc>, window_params = [{pipeline_mode = #tpu.pipeline_mode<synchronous>, transform_indices = @transform_0, window_bounds = array<i64: 2, 256>}, {transform_indices = @transform_1, window_bounds = array<i64: 1, 256, 1024>}, {transform_indices = @transform_2, window_bounds = array<i64: 1, 1, 1024>}, {transform_indices = @transform_3, window_bounds = array<i64: 1, 1024, 512>}, {transform_indices = @transform_4, window_bounds = array<i64: 1, 1, 512>}, {transform_indices = @transform_5, window_bounds = array<i64: 1, 512, 1024>}, {transform_indices = @transform_6, window_bounds = array<i64: 1, 1, 1024>}, {transform_indices = @transform_7, window_bounds = array<i64: 1, 1024, 32>}, {transform_indices = @transform_8, window_bounds = array<i64: 1, 1, 32>}, {transform_indices = @transform_9, window_bounds = array<i64: 1, 2, 32>}]} {
    %c0 = arith.constant 0 : index
    %c0_0 = arith.constant 0 : index
    %0 = vector.load %arg1[%c0, %c0_0] : memref<2x256xf32, #tpu.memory_space<vmem>>, vector<2x256xf32>
    %1 = arith.truncf %0 : vector<2x256xf32> to vector<2x256xbf16>
    %c0_1 = arith.constant 0 : index
    %c0_2 = arith.constant 0 : index
    %c0_3 = arith.constant 0 : index
    %2 = vector.load %arg2[%c0_1, %c0_2, %c0_3] : memref<1x256x1024xbf16, #tpu.memory_space<vmem>>, vector<1x256x1024xbf16>
    %3 = vector.shape_cast %2 : vector<1x256x1024xbf16> to vector<256x1024xbf16>
    %cst = arith.constant dense<0.000000e+00> : vector<2x1024xf32>
    %4 = tpu.matmul %1, %3, %cst {dimension_numbers = #tpu.dot_dimension_numbers<[1], [0], [0], [1], [0, 0, 1, 1], [], []>} : vector<2x256xbf16>, vector<256x1024xbf16>, vector<2x1024xf32> -> vector<2x1024xf32>
    %c0_4 = arith.constant 0 : index
    %c0_5 = arith.constant 0 : index
    %c0_6 = arith.constant 0 : index
    %5 = vector.load %arg3[%c0_4, %c0_5, %c0_6] : memref<1x1x1024xf32, #tpu.memory_space<vmem>>, vector<1x1x1024xf32>
    %6 = vector.shape_cast %5 : vector<1x1x1024xf32> to vector<1x1024xf32>
    %7 = vector.broadcast %6 : vector<1x1024xf32> to vector<2x1024xf32>
    %8 = arith.addf %4, %7 : vector<2x1024xf32>
    %cst_7 = arith.constant 0.000000e+00 : f32
    %9 = vector.broadcast %cst_7 : f32 to vector<2x1024xf32>
    %10 = arith.maximumf %8, %9 : vector<2x1024xf32>
    %11 = arith.truncf %10 : vector<2x1024xf32> to vector<2x1024xbf16>
    %c0_8 = arith.constant 0 : index
    %c0_9 = arith.constant 0 : index
    %c0_10 = arith.constant 0 : index
    %12 = vector.load %arg4[%c0_8, %c0_9, %c0_10] : memref<1x1024x512xbf16, #tpu.memory_space<vmem>>, vector<1x1024x512xbf16>
    %13 = vector.shape_cast %12 : vector<1x1024x512xbf16> to vector<1024x512xbf16>
    %cst_11 = arith.constant dense<0.000000e+00> : vector<2x512xf32>
    %14 = tpu.matmul %11, %13, %cst_11 {dimension_numbers = #tpu.dot_dimension_numbers<[1], [0], [0], [1], [0, 0, 1, 1], [], []>} : vector<2x1024xbf16>, vector<1024x512xbf16>, vector<2x512xf32> -> vector<2x512xf32>
    %c0_12 = arith.constant 0 : index
    %c0_13 = arith.constant 0 : index
    %c0_14 = arith.constant 0 : index
    %15 = vector.load %arg5[%c0_12, %c0_13, %c0_14] : memref<1x1x512xf32, #tpu.memory_space<vmem>>, vector<1x1x512xf32>
    %16 = vector.shape_cast %15 : vector<1x1x512xf32> to vector<1x512xf32>
    %17 = vector.broadcast %16 : vector<1x512xf32> to vector<2x512xf32>
    %18 = arith.addf %14, %17 : vector<2x512xf32>
    %cst_15 = arith.constant 0.000000e+00 : f32
    %19 = vector.broadcast %cst_15 : f32 to vector<2x512xf32>
    %20 = arith.maximumf %18, %19 : vector<2x512xf32>
    %21 = arith.truncf %20 : vector<2x512xf32> to vector<2x512xbf16>
    %c0_16 = arith.constant 0 : index
    %c0_17 = arith.constant 0 : index
    %c0_18 = arith.constant 0 : index
    %22 = vector.load %arg6[%c0_16, %c0_17, %c0_18] : memref<1x512x1024xbf16, #tpu.memory_space<vmem>>, vector<1x512x1024xbf16>
    %23 = vector.shape_cast %22 : vector<1x512x1024xbf16> to vector<512x1024xbf16>
    %cst_19 = arith.constant dense<0.000000e+00> : vector<2x1024xf32>
    %24 = tpu.matmul %21, %23, %cst_19 {dimension_numbers = #tpu.dot_dimension_numbers<[1], [0], [0], [1], [0, 0, 1, 1], [], []>} : vector<2x512xbf16>, vector<512x1024xbf16>, vector<2x1024xf32> -> vector<2x1024xf32>
    %c0_20 = arith.constant 0 : index
    %c0_21 = arith.constant 0 : index
    %c0_22 = arith.constant 0 : index
    %25 = vector.load %arg7[%c0_20, %c0_21, %c0_22] : memref<1x1x1024xf32, #tpu.memory_space<vmem>>, vector<1x1x1024xf32>
    %26 = vector.shape_cast %25 : vector<1x1x1024xf32> to vector<1x1024xf32>
    %27 = vector.broadcast %26 : vector<1x1024xf32> to vector<2x1024xf32>
    %28 = arith.addf %24, %27 : vector<2x1024xf32>
    %cst_23 = arith.constant 0.000000e+00 : f32
    %29 = vector.broadcast %cst_23 : f32 to vector<2x1024xf32>
    %30 = arith.maximumf %28, %29 : vector<2x1024xf32>
    %31 = arith.truncf %30 : vector<2x1024xf32> to vector<2x1024xbf16>
    %c0_24 = arith.constant 0 : index
    %c0_25 = arith.constant 0 : index
    %c0_26 = arith.constant 0 : index
    %32 = vector.load %arg8[%c0_24, %c0_25, %c0_26] : memref<1x1024x32xbf16, #tpu.memory_space<vmem>>, vector<1x1024x32xbf16>
    %33 = vector.shape_cast %32 : vector<1x1024x32xbf16> to vector<1024x32xbf16>
    %cst_27 = arith.constant dense<0.000000e+00> : vector<2x32xf32>
    %34 = tpu.matmul %31, %33, %cst_27 {dimension_numbers = #tpu.dot_dimension_numbers<[1], [0], [0], [1], [0, 0, 1, 1], [], []>} : vector<2x1024xbf16>, vector<1024x32xbf16>, vector<2x32xf32> -> vector<2x32xf32>
    %c0_28 = arith.constant 0 : index
    %c0_29 = arith.constant 0 : index
    %c0_30 = arith.constant 0 : index
    %35 = vector.load %arg9[%c0_28, %c0_29, %c0_30] : memref<1x1x32xf32, #tpu.memory_space<vmem>>, vector<1x1x32xf32>
    %36 = vector.shape_cast %35 : vector<1x1x32xf32> to vector<1x32xf32>
    %37 = vector.broadcast %36 : vector<1x32xf32> to vector<2x32xf32>
    %38 = arith.addf %34, %37 : vector<2x32xf32>
    %c0_31 = arith.constant 0 : index
    %c0_32 = arith.constant 0 : index
    %c0_33 = arith.constant 0 : index
    %39 = vector.load %arg10[%c0_31, %c0_32, %c0_33] : memref<1x2x32xf32, #tpu.memory_space<vmem>>, vector<1x2x32xf32>
    %40 = vector.shape_cast %39 : vector<1x2x32xf32> to vector<2x32xf32>
    %41 = vector.shape_cast %38 : vector<2x32xf32> to vector<1x2x32xf32>
    tpu.vector_store %arg10[%c0_31, %c0_32, %c0_33], %41 {strides = array<i32>} : memref<1x2x32xf32, #tpu.memory_space<vmem>>, vector<1x2x32xf32>,
    return
  }
  func.func @transform_0(%arg0: i32) -> (i32, i32) {
    %c0_i32 = arith.constant 0 : i32
    %c0_i32_0 = arith.constant 0 : i32
    %c0_i32_1 = arith.constant 0 : i32
    return %c0_i32, %c0_i32_0 : i32, i32
  }
  func.func @transform_1(%arg0: i32) -> (i32, i32, i32) {
    %c0_i32 = arith.constant 0 : i32
    %c0_i32_0 = arith.constant 0 : i32
    %c0_i32_1 = arith.constant 0 : i32
    return %arg0, %c0_i32, %c0_i32_0 : i32, i32, i32
  }
  func.func @transform_2(%arg0: i32) -> (i32, i32, i32) {
    %c0_i32 = arith.constant 0 : i32
    %c0_i32_0 = arith.constant 0 : i32
    %c0_i32_1 = arith.constant 0 : i32
    return %arg0, %c0_i32, %c0_i32_0 : i32, i32, i32
  }
  func.func @transform_3(%arg0: i32) -> (i32, i32, i32) {
    %c0_i32 = arith.constant 0 : i32
    %c0_i32_0 = arith.constant 0 : i32
    %c0_i32_1 = arith.constant 0 : i32
    return %arg0, %c0_i32, %c0_i32_0 : i32, i32, i32
  }
  func.func @transform_4(%arg0: i32) -> (i32, i32, i32) {
    %c0_i32 = arith.constant 0 : i32
    %c0_i32_0 = arith.constant 0 : i32
    %c0_i32_1 = arith.constant 0 : i32
    return %arg0, %c0_i32, %c0_i32_0 : i32, i32, i32
  }
  func.func @transform_5(%arg0: i32) -> (i32, i32, i32) {
    %c0_i32 = arith.constant 0 : i32
    %c0_i32_0 = arith.constant 0 : i32
    %c0_i32_1 = arith.constant 0 : i32
    return %arg0, %c0_i32, %c0_i32_0 : i32, i32, i32
  }
  func.func @transform_6(%arg0: i32) -> (i32, i32, i32) {
    %c0_i32 = arith.constant 0 : i32
    %c0_i32_0 = arith.constant 0 : i32
    %c0_i32_1 = arith.constant 0 : i32
    return %arg0, %c0_i32, %c0_i32_0 : i32, i32, i32
  }
  func.func @transform_7(%arg0: i32) -> (i32, i32, i32) {
    %c0_i32 = arith.constant 0 : i32
    %c0_i32_0 = arith.constant 0 : i32
    %c0_i32_1 = arith.constant 0 : i32
    return %arg0, %c0_i32, %c0_i32_0 : i32, i32, i32
  }
  func.func @transform_8(%arg0: i32) -> (i32, i32, i32) {
    %c0_i32 = arith.constant 0 : i32
    %c0_i32_0 = arith.constant 0 : i32
    %c0_i32_1 = arith.constant 0 : i32
    return %arg0, %c0_i32, %c0_i32_0 : i32, i32, i32
  }
  func.func @transform_9(%arg0: i32) -> (i32, i32, i32) {
    %c0_i32 = arith.constant 0 : i32
    %c0_i32_0 = arith.constant 0 : i32
    %c0_i32_1 = arith.constant 0 : i32
    return %arg0, %c0_i32, %c0_i32_0 : i32, i32, i32
  }
}

</mosaic_0001>

<llo_original>
// kernel: squeeze.3
$region0: #{squeeze.3}
  %s0 = inlined_call_operand.vmem [shape: f32[1,2,16], index: 0, kind: input, shape index: {}]
  %s1 = inlined_call_operand.vmem [shape: f32[2,8,2], index: 1, kind: output, shape index: {}]
  $region1: #{squeeze.3} parent=0
    #allocation0 [shape = 'u8[4096]{0}', space=vmem, size = 0x1000, scoped, tag = 'scoped mem for input reshape']
    %s3 = sshllo.u32 0, 2
    %v4 = vld [vmem:[%s0] sm:%s3]
    %5 = vst [vmem:[#allocation0] sm:%s3] %v4
    %v6 = vld [vmem:[#allocation0] sm:$0x3]
    %vm7 = vcmask 15360
    %8 = vst.msk [vmem:[%s1] ss:$8 sm:$0x3] %vm7, %v6
    %v9 = vld [vmem:[#allocation0] sm:$0x3]
    %10 = vrot.lane.b32.xlu0 %v9, 126
    %v11 = vpop.permute.xlu0 %10
    %vm12 = vcmask 15360
    %s13 = scalar_lea.vmem %s1, 1
    %14 = vst.msk [vmem:[%s13] ss:$8 sm:$0x3] %vm12, %v11
    %v15 = vld [vmem:[#allocation0] sm:$0x3]
    %16 = vrot.lane.b32.xlu0 %v15, 124
    %v17 = vpop.permute.xlu0 %16
    %vm18 = vcmask 15360
    %s19 = scalar_lea.vmem %s1, 2
    %20 = vst.msk [vmem:[%s19] ss:$8 sm:$0x3] %vm18, %v17
    %v21 = vld [vmem:[#allocation0] sm:$0x3]
    %22 = vrot.lane.b32.xlu0 %v21, 122
    %v23 = vpop.permute.xlu0 %22
    %vm24 = vcmask 15360
    %s25 = scalar_lea.vmem %s1, 3
    %26 = vst.msk [vmem:[%s25] ss:$8 sm:$0x3] %vm24, %v23
    %v27 = vld [vmem:[#allocation0] sm:$0x3]
    %28 = vrot.lane.b32.xlu0 %v27, 120
    %v29 = vpop.permute.xlu0 %28
    %vm30 = vcmask 15360
    %s31 = scalar_lea.vmem %s1, 4
    %32 = vst.msk [vmem:[%s31] ss:$8 sm:$0x3] %vm30, %v29
    %v33 = vld [vmem:[#allocation0] sm:$0x3]
    %34 = vrot.lane.b32.xlu0 %v33, 118
    %v35 = vpop.permute.xlu0 %34
    %vm36 = vcmask 15360
    %s37 = scalar_lea.vmem %s1, 5
    %38 = vst.msk [vmem:[%s37] ss:$8 sm:$0x3] %vm36, %v35
    %v39 = vld [vmem:[#allocation0] sm:$0x3]
    %40 = vrot.lane.b32.xlu0 %v39, 116
    %v41 = vpop.permute.xlu0 %40
    %vm42 = vcmask 15360
    %s43 = scalar_lea.vmem %s1, 6
    %44 = vst.msk [vmem:[%s43] ss:$8 sm:$0x3] %vm42, %v41
    %v45 = vld [vmem:[#allocation0] sm:$0x3]
    %46 = vrot.lane.b32.xlu0 %v45, 114
    %v47 = vpop.permute.xlu0 %46
    %vm48 = vcmask 15360
    %s49 = scalar_lea.vmem %s1, 7
    %50 = vst.msk [vmem:[%s49] ss:$8 sm:$0x3] %vm48, %v47

// kernel: squeeze.2
$region0: #{squeeze.2}
  %s0 = inlined_call_operand.vmem [shape: f32[1,2,24], index: 0, kind: input, shape index: {}]
  %s1 = inlined_call_operand.vmem [shape: f32[2,12,2], index: 1, kind: output, shape index: {}]
  $region1: #{squeeze.2} parent=0
    #allocation0 [shape = 'u8[4096]{0}', space=vmem, size = 0x1000, scoped, tag = 'scoped mem for input reshape']
    %s3 = sshllo.u32 0, 2
    %v4 = vld [vmem:[%s0] sm:%s3]
    %5 = vst [vmem:[#allocation0] sm:%s3] %v4
    %v6 = vld [vmem:[#allocation0] sm:$0x3]
    %vm7 = vcmask 15360
    %8 = vst.msk [vmem:[%s1] ss:$16 sm:$0x3] %vm7, %v6
    %v9 = vld [vmem:[#allocation0] sm:$0x3]
    %10 = vrot.lane.b32.xlu0 %v9, 126
    %v11 = vpop.permute.xlu0 %10
    %vm12 = vcmask 15360
    %s13 = scalar_lea.vmem %s1, 1
    %14 = vst.msk [vmem:[%s13] ss:$16 sm:$0x3] %vm12, %v11
    %v15 = vld [vmem:[#allocation0] sm:$0x3]
    %16 = vrot.lane.b32.xlu0 %v15, 124
    %v17 = vpop.permute.xlu0 %16
    %vm18 = vcmask 15360
    %s19 = scalar_lea.vmem %s1, 2
    %20 = vst.msk [vmem:[%s19] ss:$16 sm:$0x3] %vm18, %v17
    %v21 = vld [vmem:[#allocation0] sm:$0x3]
    %22 = vrot.lane.b32.xlu0 %v21, 122
    %v23 = vpop.permute.xlu0 %22
    %vm24 = vcmask 15360
    %s25 = scalar_lea.vmem %s1, 3
    %26 = vst.msk [vmem:[%s25] ss:$16 sm:$0x3] %vm24, %v23
    %v27 = vld [vmem:[#allocation0] sm:$0x3]
    %28 = vrot.lane.b32.xlu0 %v27, 120
    %v29 = vpop.permute.xlu0 %28
    %vm30 = vcmask 15360
    %s31 = scalar_lea.vmem %s1, 4
    %32 = vst.msk [vmem:[%s31] ss:$16 sm:$0x3] %vm30, %v29
    %v33 = vld [vmem:[#allocation0] sm:$0x3]
    %34 = vrot.lane.b32.xlu0 %v33, 118
    %v35 = vpop.permute.xlu0 %34
    %vm36 = vcmask 15360
    %s37 = scalar_lea.vmem %s1, 5
    %38 = vst.msk [vmem:[%s37] ss:$16 sm:$0x3] %vm36, %v35
    %v39 = vld [vmem:[#allocation0] sm:$0x3]
    %40 = vrot.lane.b32.xlu0 %v39, 116
    %v41 = vpop.permute.xlu0 %40
    %vm42 = vcmask 15360
    %s43 = scalar_lea.vmem %s1, 6
    %44 = vst.msk [vmem:[%s43] ss:$16 sm:$0x3] %vm42, %v41
    %v45 = vld [vmem:[#allocation0] sm:$0x3]
    %46 = vrot.lane.b32.xlu0 %v45, 114
    %v47 = vpop.permute.xlu0 %46
    %vm48 = vcmask 15360
    %s49 = scalar_lea.vmem %s1, 7
    %50 = vst.msk [vmem:[%s49] ss:$16 sm:$0x3] %vm48, %v47
    %v51 = vld [vmem:[#allocation0] sm:$0x3]
    %52 = vrot.lane.b32.xlu0 %v51, 112
    %v53 = vpop.permute.xlu0 %52
    %vm54 = vcmask 15360
    %s55 = scalar_lea.vmem %s1, 8
    %56 = vst.msk [vmem:[%s55] ss:$16 sm:$0x3] %vm54, %v53
    %v57 = vld [vmem:[#allocation0] sm:$0x3]
    %58 = vrot.lane.b32.xlu0 %v57, 110
    %v59 = vpop.permute.xlu0 %58
    %vm60 = vcmask 15360
    %s61 = scalar_lea.vmem %s1, 9
    %62 = vst.msk [vmem:[%s61] ss:$16 sm:$0x3] %vm60, %v59
    %v63 = vld [vmem:[#allocation0] sm:$0x3]
    %64 = vrot.lane.b32.xlu0 %v63, 108
    %v65 = vpop.permute.xlu0 %64
    %vm66 = vcmask 15360
    %s67 = scalar_lea.vmem %s1, 10
    %68 = vst.msk [vmem:[%s67] ss:$16 sm:$0x3] %vm66, %v65
    %v69 = vld [vmem:[#allocation0] sm:$0x3]
    %70 = vrot.lane.b32.xlu0 %v69, 106
    %v71 = vpop.permute.xlu0 %70
    %vm72 = vcmask 15360
    %s73 = scalar_lea.vmem %s1, 11
    %74 = vst.msk [vmem:[%s73] ss:$16 sm:$0x3] %vm72, %v71

// kernel: model_encdec_re_forward.2
$region0: #{model_encdec_re_forward.2}
  #allocation0 [shape = 'u32[]', space=smem, size = 0x4, offset = 0x4, fixed_abs, tag = 'smem constant byte address 0x4 - core index']
  #allocation1 [shape = 'u32[144,128]{1,0:T(1,128)}', space=vmem, size = 0x12000, scoped, tag = 'internal scratch']
  #allocation2 [shape = 'f32[24,768]{1,0:T(8,128)}', space=vmem, size = 0x12000, scoped, tag = 'scratch operand']
  %s0 = inlined_call_operand.vmem [shape: f32[24,6], index: 0, kind: input, shape index: {}]
  %s1 = inlined_call_operand.hbm [shape: f32[6,16], index: 1, kind: input, shape index: {}]
  %s2 = inlined_call_operand.hbm [shape: f32[1,16], index: 2, kind: input, shape index: {}]
  %s3 = inlined_call_operand.hbm [shape: f32[16,768], index: 3, kind: input, shape index: {}]
  %s4 = inlined_call_operand.hbm [shape: f32[1,768], index: 4, kind: input, shape index: {}]
  %s5 = inlined_call_operand.hbm [shape: f32[256,768], index: 5, kind: input, shape index: {}]
  %s6 = inlined_call_operand.hbm [shape: f32[1,768], index: 6, kind: input, shape index: {}]
  %s7 = inlined_call_operand.vmem [shape: f32[2,256], index: 7, kind: output, shape index: {}]
  %s8 = sld [smem:[#allocation0]]
  $region62: #{model_encdec_re_forward.2} parent=0
    _
  %s10 = ssub.s32 1, %s8
  %s11 = scalar_select 0, %s10, %s8
  $region1: #{model_encdec_re_forward.2} parent=0
    #allocation3 [shape = 'u8[4096]{0}', space=vmem, size = 0x1000, scoped, tag = 'input window, operand 1, single buffered']
    #allocation4 [shape = 's32[1]{0}', space=sflag, size = 0x4, scoped, tag = 'scoped memory for model_encdec_re_forward.2']
    #allocation5 [shape = 'u8[512]{0}', space=vmem, size = 0x400, scoped, tag = 'input window, operand 2, single buffered']
    #allocation6 [shape = 's32[1]{0}', space=sflag, size = 0x4, scoped, tag = 'scoped memory for model_encdec_re_forward.2']
    #allocation7 [shape = 'u8[49152]{0}', space=vmem, size = 0xc000, scoped, tag = 'input window, operand 3, single buffered']
    #allocation8 [shape = 'u8[3072]{0}', space=vmem, size = 0xc00, scoped, tag = 'input window, operand 4, single buffered']
    #allocation9 [shape = 's32[1]{0}', space=sflag, size = 0x4, scoped, tag = 'scoped memory for model_encdec_re_forward.2']
    #allocation10 [shape = 'u8[786432]{0}', space=vmem, size = 0xc0000, scoped, tag = 'input window, operand 5, single buffered']
    #allocation11 [shape = 'u8[3072]{0}', space=vmem, size = 0xc00, scoped, tag = 'input window, operand 6, single buffered']
    #allocation12 [shape = 's32[1]{0}', space=sflag, size = 0x4, scoped, tag = 'scoped memory for model_encdec_re_forward.2']
    %12 = vsyncpa [#allocation4], 0
    %13 = vsyncpa [#allocation6], 0
    %14 = vsyncpa [#allocation9], 0
    %15 = vsyncpa [#allocation12], 0
    // Predicated region
    $region2: #{model_encdec_re_forward.2} parent=1 // pred_check
      _
    $region3: #{model_encdec_re_forward.2} parent=1 // pred_check_branch
      %17 = sbr.rel (0) target = $region5
    $region4: #{model_encdec_re_forward.2} parent=1 // pred_region
      _
    $region5: #{model_encdec_re_forward.2} parent=1 // pred_fallthru
      _
    // Predicated region
    $region6: #{model_encdec_re_forward.2} parent=1 // pred_check
      _
    $region7: #{model_encdec_re_forward.2} parent=1 // pred_check_branch
      %19 = sbr.rel (0) target = $region9
    $region8: #{model_encdec_re_forward.2} parent=1 // pred_region
      %s21 = ssub.s32 128, 128
      %22 = vsyncadd [#allocation4], %s21
      %s24 = sshll.u32 [#allocation3], 4
      %s25 = int_to_ptr.vmem [resolvable:$true] %s24
      %27 = dma.hbm_to_vmem [thread:$0]  %s1, 128, %s25, [#allocation4]
    $region9: #{model_encdec_re_forward.2} parent=1 // pred_fallthru
      _
    // Predicated region
    $region10: #{model_encdec_re_forward.2} parent=1 // pred_check
      _
    $region11: #{model_encdec_re_forward.2} parent=1 // pred_check_branch
      %29 = sbr.rel (0) target = $region13
    $region12: #{model_encdec_re_forward.2} parent=1 // pred_region
      %s31 = ssub.s32 16, 16
      %32 = vsyncadd [#allocation6], %s31
      %s34 = sshll.u32 [#allocation5], 4
      %s35 = int_to_ptr.vmem [resolvable:$true] %s34
      %37 = dma.hbm_to_vmem [thread:$0]  %s2, 16, %s35, [#allocation6]
    $region13: #{model_encdec_re_forward.2} parent=1 // pred_fallthru
      _
    // Predicated region
    $region14: #{model_encdec_re_forward.2} parent=1 // pred_check
      _
    $region15: #{model_encdec_re_forward.2} parent=1 // pred_check_branch
      %39 = sbr.rel (0) target = $region17
    $region16: #{model_encdec_re_forward.2} parent=1 // pred_region
      %s41 = ssub.s32 1536, 1536
      %42 = vsyncadd [#allocation6], %s41
      %s43 = sshll.u32 [#allocation7], 4
      %s44 = int_to_ptr.vmem [resolvable:$true] %s43
      %49 = dma.hbm_to_vmem [thread:$0]  %s3, 1536, %s44, [#allocation6], 768, 768, 48
    $region17: #{model_encdec_re_forward.2} parent=1 // pred_fallthru
      _
    // Predicated region
    $region18: #{model_encdec_re_forward.2} parent=1 // pred_check
      _
    $region19: #{model_encdec_re_forward.2} parent=1 // pred_check_branch
      %51 = sbr.rel (0) target = $region21
    $region20: #{model_encdec_re_forward.2} parent=1 // pred_region
      %s53 = ssub.s32 96, 96
      %54 = vsyncadd [#allocation9], %s53
      %s56 = sshll.u32 [#allocation8], 4
      %s57 = int_to_ptr.vmem [resolvable:$true] %s56
      %59 = dma.hbm_to_vmem [thread:$0]  %s4, 96, %s57, [#allocation9]
    $region21: #{model_encdec_re_forward.2} parent=1 // pred_fallthru
      _
    // Predicated region
    $region22: #{model_encdec_re_forward.2} parent=1 // pred_check
      _
    $region23: #{model_encdec_re_forward.2} parent=1 // pred_check_branch
      %61 = sbr.rel (0) target = $region25
    $region24: #{model_encdec_re_forward.2} parent=1 // pred_region
      %s63 = ssub.s32 24576, 24576
      %64 = vsyncadd [#allocation9], %s63
      %s65 = sshll.u32 [#allocation10], 4
      %s66 = int_to_ptr.vmem [resolvable:$true] %s65
      %71 = dma.hbm_to_vmem [thread:$0]  %s5, 24576, %s66, [#allocation9], 768, 768, 48
    $region25: #{model_encdec_re_forward.2} parent=1 // pred_fallthru
      _
    // Predicated region
    $region26: #{model_encdec_re_forward.2} parent=1 // pred_check
      _
    $region27: #{model_encdec_re_forward.2} parent=1 // pred_check_branch
      %73 = sbr.rel (0) target = $region29
    $region28: #{model_encdec_re_forward.2} parent=1 // pred_region
      %s75 = ssub.s32 96, 96
      %76 = vsyncadd [#allocation12], %s75
      %s78 = sshll.u32 [#allocation11], 4
      %s79 = int_to_ptr.vmem [resolvable:$true] %s78
      %81 = dma.hbm_to_vmem [thread:$0]  %s6, 96, %s79, [#allocation12]
    $region29: #{model_encdec_re_forward.2} parent=1 // pred_fallthru
      _
    // Predicated region
    $region30: #{model_encdec_re_forward.2} parent=1 // pred_check
      _
    $region31: #{model_encdec_re_forward.2} parent=1 // pred_check_branch
      %83 = sbr.rel (0) target = $region33
    $region32: #{model_encdec_re_forward.2} parent=1 // pred_region
      %84 = dma.done [#allocation4], 128
    $region33: #{model_encdec_re_forward.2} parent=1 // pred_fallthru
      _
    // Predicated region
    $region34: #{model_encdec_re_forward.2} parent=1 // pred_check
      _
    $region35: #{model_encdec_re_forward.2} parent=1 // pred_check_branch
      %86 = sbr.rel (0) target = $region37
    $region36: #{model_encdec_re_forward.2} parent=1 // pred_region
      %87 = dma.done [#allocation6], 16
    $region37: #{model_encdec_re_forward.2} parent=1 // pred_fallthru
      _
    // Predicated region
    $region38: #{model_encdec_re_forward.2} parent=1 // pred_check
      _
    $region39: #{model_encdec_re_forward.2} parent=1 // pred_check_branch
      %89 = sbr.rel (0) target = $region41
    $region40: #{model_encdec_re_forward.2} parent=1 // pred_region
      %90 = dma.done [#allocation6], 1536
    $region41: #{model_encdec_re_forward.2} parent=1 // pred_fallthru
      _
    // Predicated region
    $region42: #{model_encdec_re_forward.2} parent=1 // pred_check
      _
    $region43: #{model_encdec_re_forward.2} parent=1 // pred_check_branch
      %92 = sbr.rel (0) target = $region45
    $region44: #{model_encdec_re_forward.2} parent=1 // pred_region
      %93 = dma.done [#allocation9], 96
    $region45: #{model_encdec_re_forward.2} parent=1 // pred_fallthru
      _
    // Predicated region
    $region46: #{model_encdec_re_forward.2} parent=1 // pred_check
      _
    $region47: #{model_encdec_re_forward.2} parent=1 // pred_check_branch
      %95 = sbr.rel (0) target = $region49
    $region48: #{model_encdec_re_forward.2} parent=1 // pred_region
      %96 = dma.done [#allocation9], 24576
    $region49: #{model_encdec_re_forward.2} parent=1 // pred_fallthru
      _
    // Predicated region
    $region50: #{model_encdec_re_forward.2} parent=1 // pred_check
      _
    $region51: #{model_encdec_re_forward.2} parent=1 // pred_check_branch
      %98 = sbr.rel (0) target = $region53
    $region52: #{model_encdec_re_forward.2} parent=1 // pred_region
      %99 = dma.done [#allocation12], 96
    $region53: #{model_encdec_re_forward.2} parent=1 // pred_fallthru
      _
    %v100 = vld [vmem:[%s0] sm:$0xff]
    %v101 = vld [vmem:[%s0 + $0x8] sm:$0xff]
    %v102 = vld [vmem:[%s0 + $0x10] sm:$0xff]
    %v103 = vld [vmem:[#allocation3] sm:$0x3f]
    %v104 = vld [vmem:[#allocation5] sm:$0x1]
    %v106 = vlaneseq
    %v107 = vshrl.u32 %v106, 7
    %v108 = vsub.s32 0, %v107
    %v109 = vrot.slane %v104, %v108
    %vm111 = vcmask 48128
    %v113 = vsel %vm111, %v100, 0
    %v116 = vsel %vm111, %v101, 0
    %v119 = vsel %vm111, %v102, 0
    %vm121 = vcmask 1045504
    %v123 = vsel %vm121, %v103, 0
    %125 = vmatprep.subr.mxu0 0.0
    %126 = vmatpush1.msra.mxu0 %v123
    %127 = vmatprep.subr.mxu0 0.0
    %128 = vmatpush1.msra.mxu0 0.0
    %129 = vmatprep.subr.mxu0 0.0
    %130 = vmatpush1.msra.mxu0 0.0
    %131 = vmatprep.subr.mxu0 0.0
    %132 = vmatpush1.msra.mxu0 0.0
    %133 = vmatprep.subr.mxu0 0.0
    %134 = vmatpush1.msra.mxu0 0.0
    %135 = vmatprep.subr.mxu0 0.0
    %136 = vmatpush1.msra.mxu0 0.0
    %137 = vmatprep.subr.mxu0 0.0
    %138 = vmatpush1.msra.mxu0 0.0
    %139 = vmatprep.subr.mxu0 0.0
    %140 = vmatpush1.msra.mxu0 0.0
    %141 = vmatprep.subr.mxu0 0.0
    %142 = vmatpush1.msra.mxu0 0.0
    %143 = vmatprep.subr.mxu0 0.0
    %144 = vmatpush1.msra.mxu0 0.0
    %145 = vmatprep.subr.mxu0 0.0
    %146 = vmatpush1.msra.mxu0 0.0
    %147 = vmatprep.subr.mxu0 0.0
    %148 = vmatpush1.msra.mxu0 0.0
    %149 = vmatprep.subr.mxu0 0.0
    %150 = vmatpush1.msra.mxu0 0.0
    %151 = vmatprep.subr.mxu0 0.0
    %152 = vmatpush1.msra.mxu0 0.0
    %153 = vmatprep.subr.mxu0 0.0
    %154 = vmatpush1.msra.mxu0 0.0
    %155 = vmatprep.subr.mxu0 0.0
    %156 = vmatpush1.msra.mxu0 0.0
    %157 = vmatprep.subr.mxu0 0.0
    %158 = vmatpush1.msra.mxu0 0.0
    %159 = vmatprep.subr.mxu0 0.0
    %160 = vmatpush1.msra.mxu0 0.0
    %161 = vmatprep.subr.mxu0 0.0
    %162 = vmatpush1.msra.mxu0 0.0
    %163 = vmatprep.subr.mxu0 0.0
    %164 = vmatpush1.msra.mxu0 0.0
    %165 = vmatprep.subr.mxu0 0.0
    %166 = vmatpush1.msra.mxu0 0.0
    %167 = vmatprep.subr.mxu0 0.0
    %168 = vmatpush1.msra.mxu0 0.0
    %169 = vmatprep.subr.mxu0 0.0
    %170 = vmatpush1.msra.mxu0 0.0
    %171 = vmatprep.subr.mxu0 0.0
    %172 = vmatpush1.msra.mxu0 0.0
    %173 = vmatprep.subr.mxu0 0.0
    %174 = vmatpush1.msra.mxu0 0.0
    %175 = vmatprep.subr.mxu0 0.0
    %176 = vmatpush1.msra.mxu0 0.0
    %177 = vmatprep.subr.mxu0 0.0
    %178 = vmatpush1.msra.mxu0 0.0
    %179 = vmatprep.subr.mxu0 0.0
    %180 = vmatpush1.msra.mxu0 0.0
    %181 = vmatprep.subr.mxu0 0.0
    %182 = vmatpush1.msra.mxu0 0.0
    %183 = vmatprep.subr.mxu0 0.0
    %184 = vmatpush1.msra.mxu0 0.0
    %185 = vmatprep.subr.mxu0 0.0
    %186 = vmatpush1.msra.mxu0 0.0
    %187 = vmatprep.subr.mxu0 0.0
    %188 = vmatpush1.msra.mxu0 0.0
    %189 = vmatprep.mubr.f32.mxu0 0.0
    %190 = vmatmul.mubr.f32.gmra.mrb[0].mxu0 %v113
    %v191 = vpop.f32.mrb[0].mxu0
    %v192 = vadd.f32 %v109, %v191
    %v193 = vpop.f32.mrb[0].mxu0
    %194 = vmatprep.mubr.f32.mxu0 0.0
    %195 = vmatmul.mubr.f32.gmra.mrb[0].mxu0 %v116
    %v196 = vpop.f32.mrb[0].mxu0
    %v197 = vadd.f32 %v109, %v196
    %v198 = vpop.f32.mrb[0].mxu0
    %199 = vmatprep.mubr.f32.mxu0 0.0
    %200 = vmatmul.mubr.f32.gmra.mrb[0].mxu0 %v119
    %v201 = vpop.f32.mrb[0].mxu0
    %v202 = vadd.f32 %v109, %v201
    %v203 = vpop.f32.mrb[0].mxu0
    %204 = vdwg.mxu0
    %v205 = vmax.f32 %v192, 0.0
    %v206 = vmax.f32 %v197, 0.0
    %v207 = vmax.f32 %v202, 0.0
    %v208 = vld [vmem:[#allocation7] sm:$0xff]
    %v209 = vld [vmem:[#allocation7 + $0x8] sm:$0xff]
    %v210 = vld [vmem:[#allocation7 + $0x10] sm:$0xff]
    %v211 = vld [vmem:[#allocation7 + $0x18] sm:$0xff]
    %v212 = vld [vmem:[#allocation7 + $0x20] sm:$0xff]
    %v213 = vld [vmem:[#allocation7 + $0x28] sm:$0xff]
    %v214 = vld [vmem:[#allocation7 + $0x30] sm:$0xff]
    %v215 = vld [vmem:[#allocation7 + $0x38] sm:$0xff]
    %v216 = vld [vmem:[#allocation7 + $0x40] sm:$0xff]
    %v217 = vld [vmem:[#allocation7 + $0x48] sm:$0xff]
    %v218 = vld [vmem:[#allocation7 + $0x50] sm:$0xff]
    %v219 = vld [vmem:[#allocation7 + $0x58] sm:$0xff]
    %v220 = vld [vmem:[#allocation8] sm:$0x3f]
    %v222 = vlaneseq
    %v223 = vshrl.u32 %v222, 7
    %v224 = vsub.s32 0, %v223
    %v225 = vrot.slane %v220, %v224
    %v226 = vlaneseq
    %v227 = vshrl.u32 %v226, 7
    %v228 = vsub.s32 1, %v227
    %v229 = vrot.slane %v220, %v228
    %v230 = vlaneseq
    %v231 = vshrl.u32 %v230, 7
    %v232 = vsub.s32 2, %v231
    %v233 = vrot.slane %v220, %v232
    %v234 = vlaneseq
    %v235 = vshrl.u32 %v234, 7
    %v236 = vsub.s32 3, %v235
    %v237 = vrot.slane %v220, %v236
    %v238 = vlaneseq
    %v239 = vshrl.u32 %v238, 7
    %v240 = vsub.s32 4, %v239
    %v241 = vrot.slane %v220, %v240
    %v242 = vlaneseq
    %v243 = vshrl.u32 %v242, 7
    %v244 = vsub.s32 5, %v243
    %v245 = vrot.slane %v220, %v244
    %vm252 = vcmask 130048
    %v254 = vsel %vm252, %v205, 0
    %v257 = vsel %vm252, %v206, 0
    %v260 = vsel %vm252, %v207, 0
    %262 = vmatprep.subr.mxu0 %v209
    %263 = vmatpush1.msra.mxu0 %v208
    %264 = vmatprep.subr.mxu0 %v215
    %265 = vmatpush1.msra.mxu0 %v214
    %266 = vmatprep.subr.mxu0 0.0
    %267 = vmatpush1.msra.mxu0 0.0
    %268 = vmatprep.subr.mxu0 0.0
    %269 = vmatpush1.msra.mxu0 0.0
    %270 = vmatprep.subr.mxu0 0.0
    %271 = vmatpush1.msra.mxu0 0.0
    %272 = vmatprep.subr.mxu0 0.0
    %273 = vmatpush1.msra.mxu0 0.0
    %274 = vmatprep.subr.mxu0 0.0
    %275 = vmatpush1.msra.mxu0 0.0
    %276 = vmatprep.subr.mxu0 0.0
    %277 = vmatpush1.msra.mxu0 0.0
    %278 = vmatprep.subr.mxu0 0.0
    %279 = vmatpush1.msra.mxu0 0.0
    %280 = vmatprep.subr.mxu0 0.0
    %281 = vmatpush1.msra.mxu0 0.0
    %282 = vmatprep.subr.mxu0 0.0
    %283 = vmatpush1.msra.mxu0 0.0
    %284 = vmatprep.subr.mxu0 0.0
    %285 = vmatpush1.msra.mxu0 0.0
    %286 = vmatprep.subr.mxu0 0.0
    %287 = vmatpush1.msra.mxu0 0.0
    %288 = vmatprep.subr.mxu0 0.0
    %289 = vmatpush1.msra.mxu0 0.0
    %290 = vmatprep.subr.mxu0 0.0
    %291 = vmatpush1.msra.mxu0 0.0
    %292 = vmatprep.subr.mxu0 0.0
    %293 = vmatpush1.msra.mxu0 0.0
    %294 = vmatprep.subr.mxu0 0.0
    %295 = vmatpush1.msra.mxu0 0.0
    %296 = vmatprep.subr.mxu0 0.0
    %297 = vmatpush1.msra.mxu0 0.0
    %298 = vmatprep.subr.mxu0 0.0
    %299 = vmatpush1.msra.mxu0 0.0
    %300 = vmatprep.subr.mxu0 0.0
    %301 = vmatpush1.msra.mxu0 0.0
    %302 = vmatprep.subr.mxu0 0.0
    %303 = vmatpush1.msra.mxu0 0.0
    %304 = vmatprep.subr.mxu0 0.0
    %305 = vmatpush1.msra.mxu0 0.0
    %306 = vmatprep.subr.mxu0 0.0
    %307 = vmatpush1.msra.mxu0 0.0
    %308 = vmatprep.subr.mxu0 0.0
    %309 = vmatpush1.msra.mxu0 0.0
    %310 = vmatprep.subr.mxu0 0.0
    %311 = vmatpush1.msra.mxu0 0.0
    %312 = vmatprep.subr.mxu0 0.0
    %313 = vmatpush1.msra.mxu0 0.0
    %314 = vmatprep.subr.mxu0 0.0
    %315 = vmatpush1.msra.mxu0 0.0
    %316 = vmatprep.subr.mxu0 0.0
    %317 = vmatpush1.msra.mxu0 0.0
    %318 = vmatprep.subr.mxu0 0.0
    %319 = vmatpush1.msra.mxu0 0.0
    %320 = vmatprep.subr.mxu0 0.0
    %321 = vmatpush1.msra.mxu0 0.0
    %322 = vmatprep.subr.mxu0 0.0
    %323 = vmatpush1.msra.mxu0 0.0
    %324 = vmatprep.subr.mxu0 0.0
    %325 = vmatpush1.msra.mxu0 0.0
    %326 = vmatprep.mubr.f32.mxu0 0.0
    %327 = vmatmul.mubr.f32.gmra.mrb[0].mxu0 %v254
    %v328 = vpop.f32.mrb[0].mxu0
    %v329 = vadd.f32 %v225, %v328
    %v330 = vpop.f32.mrb[0].mxu0
    %v331 = vadd.f32 %v229, %v330
    %332 = vmatprep.mubr.f32.mxu0 0.0
    %333 = vmatmul.mubr.f32.gmra.mrb[0].mxu0 %v257
    %v334 = vpop.f32.mrb[0].mxu0
    %v335 = vadd.f32 %v225, %v334
    %v336 = vpop.f32.mrb[0].mxu0
    %v337 = vadd.f32 %v229, %v336
    %338 = vmatprep.mubr.f32.mxu0 0.0
    %339 = vmatmul.mubr.f32.gmra.mrb[0].mxu0 %v260
    %v340 = vpop.f32.mrb[0].mxu0
    %v341 = vadd.f32 %v225, %v340
    %v342 = vpop.f32.mrb[0].mxu0
    %v343 = vadd.f32 %v229, %v342
    %344 = vdwg.mxu0
    %345 = vmatprep.subr.mxu0 %v211
    %346 = vmatpush1.msra.mxu0 %v210
    %347 = vmatprep.subr.mxu0 %v217
    %348 = vmatpush1.msra.mxu0 %v216
    %349 = vmatprep.subr.mxu0 0.0
    %350 = vmatpush1.msra.mxu0 0.0
    %351 = vmatprep.subr.mxu0 0.0
    %352 = vmatpush1.msra.mxu0 0.0
    %353 = vmatprep.subr.mxu0 0.0
    %354 = vmatpush1.msra.mxu0 0.0
    %355 = vmatprep.subr.mxu0 0.0
    %356 = vmatpush1.msra.mxu0 0.0
    %357 = vmatprep.subr.mxu0 0.0
    %358 = vmatpush1.msra.mxu0 0.0
    %359 = vmatprep.subr.mxu0 0.0
    %360 = vmatpush1.msra.mxu0 0.0
    %361 = vmatprep.subr.mxu0 0.0
    %362 = vmatpush1.msra.mxu0 0.0
    %363 = vmatprep.subr.mxu0 0.0
    %364 = vmatpush1.msra.mxu0 0.0
    %365 = vmatprep.subr.mxu0 0.0
    %366 = vmatpush1.msra.mxu0 0.0
    %367 = vmatprep.subr.mxu0 0.0
    %368 = vmatpush1.msra.mxu0 0.0
    %369 = vmatprep.subr.mxu0 0.0
    %370 = vmatpush1.msra.mxu0 0.0
    %371 = vmatprep.subr.mxu0 0.0
    %372 = vmatpush1.msra.mxu0 0.0
    %373 = vmatprep.subr.mxu0 0.0
    %374 = vmatpush1.msra.mxu0 0.0
    %375 = vmatprep.subr.mxu0 0.0
    %376 = vmatpush1.msra.mxu0 0.0
    %377 = vmatprep.subr.mxu0 0.0
    %378 = vmatpush1.msra.mxu0 0.0
    %379 = vmatprep.subr.mxu0 0.0
    %380 = vmatpush1.msra.mxu0 0.0
    %381 = vmatprep.subr.mxu0 0.0
    %382 = vmatpush1.msra.mxu0 0.0
    %383 = vmatprep.subr.mxu0 0.0
    %384 = vmatpush1.msra.mxu0 0.0
    %385 = vmatprep.subr.mxu0 0.0
    %386 = vmatpush1.msra.mxu0 0.0
    %387 = vmatprep.subr.mxu0 0.0
    %388 = vmatpush1.msra.mxu0 0.0
    %389 = vmatprep.subr.mxu0 0.0
    %390 = vmatpush1.msra.mxu0 0.0
    %391 = vmatprep.subr.mxu0 0.0
    %392 = vmatpush1.msra.mxu0 0.0
    %393 = vmatprep.subr.mxu0 0.0
    %394 = vmatpush1.msra.mxu0 0.0
    %395 = vmatprep.subr.mxu0 0.0
    %396 = vmatpush1.msra.mxu0 0.0
    %397 = vmatprep.subr.mxu0 0.0
    %398 = vmatpush1.msra.mxu0 0.0
    %399 = vmatprep.subr.mxu0 0.0
    %400 = vmatpush1.msra.mxu0 0.0
    %401 = vmatprep.subr.mxu0 0.0
    %402 = vmatpush1.msra.mxu0 0.0
    %403 = vmatprep.subr.mxu0 0.0
    %404 = vmatpush1.msra.mxu0 0.0
    %405 = vmatprep.subr.mxu0 0.0
    %406 = vmatpush1.msra.mxu0 0.0
    %407 = vmatprep.subr.mxu0 0.0
    %408 = vmatpush1.msra.mxu0 0.0
    %409 = vmatprep.mubr.f32.mxu0 0.0
    %410 = vmatmul.mubr.f32.gmra.mrb[0].mxu0 %v254
    %v411 = vpop.f32.mrb[0].mxu0
    %v412 = vadd.f32 %v233, %v411
    %v413 = vpop.f32.mrb[0].mxu0
    %v414 = vadd.f32 %v237, %v413
    %415 = vmatprep.mubr.f32.mxu0 0.0
    %416 = vmatmul.mubr.f32.gmra.mrb[0].mxu0 %v257
    %v417 = vpop.f32.mrb[0].mxu0
    %v418 = vadd.f32 %v233, %v417
    %v419 = vpop.f32.mrb[0].mxu0
    %v420 = vadd.f32 %v237, %v419
    %421 = vmatprep.mubr.f32.mxu0 0.0
    %422 = vmatmul.mubr.f32.gmra.mrb[0].mxu0 %v260
    %v423 = vpop.f32.mrb[0].mxu0
    %v424 = vadd.f32 %v233, %v423
    %v425 = vpop.f32.mrb[0].mxu0
    %v426 = vadd.f32 %v237, %v425
    %427 = vdwg.mxu0
    %428 = vmatprep.subr.mxu0 %v213
    %429 = vmatpush1.msra.mxu0 %v212
    %430 = vmatprep.subr.mxu0 %v219
    %431 = vmatpush1.msra.mxu0 %v218
    %432 = vmatprep.subr.mxu0 0.0
    %433 = vmatpush1.msra.mxu0 0.0
    %434 = vmatprep.subr.mxu0 0.0
    %435 = vmatpush1.msra.mxu0 0.0
    %436 = vmatprep.subr.mxu0 0.0
    %437 = vmatpush1.msra.mxu0 0.0
    %438 = vmatprep.subr.mxu0 0.0
    %439 = vmatpush1.msra.mxu0 0.0
    %440 = vmatprep.subr.mxu0 0.0
    %441 = vmatpush1.msra.mxu0 0.0
    %442 = vmatprep.subr.mxu0 0.0
    %443 = vmatpush1.msra.mxu0 0.0
    %444 = vmatprep.subr.mxu0 0.0
    %445 = vmatpush1.msra.mxu0 0.0
    %446 = vmatprep.subr.mxu0 0.0
    %447 = vmatpush1.msra.mxu0 0.0
    %448 = vmatprep.subr.mxu0 0.0
    %449 = vmatpush1.msra.mxu0 0.0
    %450 = vmatprep.subr.mxu0 0.0
    %451 = vmatpush1.msra.mxu0 0.0
    %452 = vmatprep.subr.mxu0 0.0
    %453 = vmatpush1.msra.mxu0 0.0
    %454 = vmatprep.subr.mxu0 0.0
    %455 = vmatpush1.msra.mxu0 0.0
    %456 = vmatprep.subr.mxu0 0.0
    %457 = vmatpush1.msra.mxu0 0.0
    %458 = vmatprep.subr.mxu0 0.0
    %459 = vmatpush1.msra.mxu0 0.0
    %460 = vmatprep.subr.mxu0 0.0
    %461 = vmatpush1.msra.mxu0 0.0
    %462 = vmatprep.subr.mxu0 0.0
    %463 = vmatpush1.msra.mxu0 0.0
    %464 = vmatprep.subr.mxu0 0.0
    %465 = vmatpush1.msra.mxu0 0.0
    %466 = vmatprep.subr.mxu0 0.0
    %467 = vmatpush1.msra.mxu0 0.0
    %468 = vmatprep.subr.mxu0 0.0
    %469 = vmatpush1.msra.mxu0 0.0
    %470 = vmatprep.subr.mxu0 0.0
    %471 = vmatpush1.msra.mxu0 0.0
    %472 = vmatprep.subr.mxu0 0.0
    %473 = vmatpush1.msra.mxu0 0.0
    %474 = vmatprep.subr.mxu0 0.0
    %475 = vmatpush1.msra.mxu0 0.0
    %476 = vmatprep.subr.mxu0 0.0
    %477 = vmatpush1.msra.mxu0 0.0
    %478 = vmatprep.subr.mxu0 0.0
    %479 = vmatpush1.msra.mxu0 0.0
    %480 = vmatprep.subr.mxu0 0.0
    %481 = vmatpush1.msra.mxu0 0.0
    %482 = vmatprep.subr.mxu0 0.0
    %483 = vmatpush1.msra.mxu0 0.0
    %484 = vmatprep.subr.mxu0 0.0
    %485 = vmatpush1.msra.mxu0 0.0
    %486 = vmatprep.subr.mxu0 0.0
    %487 = vmatpush1.msra.mxu0 0.0
    %488 = vmatprep.subr.mxu0 0.0
    %489 = vmatpush1.msra.mxu0 0.0
    %490 = vmatprep.subr.mxu0 0.0
    %491 = vmatpush1.msra.mxu0 0.0
    %492 = vmatprep.mubr.f32.mxu0 0.0
    %493 = vmatmul.mubr.f32.gmra.mrb[0].mxu0 %v254
    %v494 = vpop.f32.mrb[0].mxu0
    %v495 = vadd.f32 %v241, %v494
    %v496 = vpop.f32.mrb[0].mxu0
    %v497 = vadd.f32 %v245, %v496
    %498 = vmatprep.mubr.f32.mxu0 0.0
    %499 = vmatmul.mubr.f32.gmra.mrb[0].mxu0 %v257
    %v500 = vpop.f32.mrb[0].mxu0
    %v501 = vadd.f32 %v241, %v500
    %v502 = vpop.f32.mrb[0].mxu0
    %v503 = vadd.f32 %v245, %v502
    %504 = vmatprep.mubr.f32.mxu0 0.0
    %505 = vmatmul.mubr.f32.gmra.mrb[0].mxu0 %v260
    %v506 = vpop.f32.mrb[0].mxu0
    %v507 = vadd.f32 %v241, %v506
    %v508 = vpop.f32.mrb[0].mxu0
    %v509 = vadd.f32 %v245, %v508
    %510 = vdwg.mxu0
    %511 = vst [vmem:[#allocation2] sm:$0xff] %v329
    %512 = vst [vmem:[#allocation2 + $0x8] sm:$0xff] %v331
    %513 = vst [vmem:[#allocation2 + $0x10] sm:$0xff] %v412
    %514 = vst [vmem:[#allocation2 + $0x18] sm:$0xff] %v414
    %515 = vst [vmem:[#allocation2 + $0x20] sm:$0xff] %v495
    %516 = vst [vmem:[#allocation2 + $0x28] sm:$0xff] %v497
    %517 = vst [vmem:[#allocation2 + $0x30] sm:$0xff] %v335
    %518 = vst [vmem:[#allocation2 + $0x38] sm:$0xff] %v337
    %519 = vst [vmem:[#allocation2 + $0x40] sm:$0xff] %v418
    %520 = vst [vmem:[#allocation2 + $0x48] sm:$0xff] %v420
    %521 = vst [vmem:[#allocation2 + $0x50] sm:$0xff] %v501
    %522 = vst [vmem:[#allocation2 + $0x58] sm:$0xff] %v503
    %523 = vst [vmem:[#allocation2 + $0x60] sm:$0xff] %v341
    %524 = vst [vmem:[#allocation2 + $0x68] sm:$0xff] %v343
    %525 = vst [vmem:[#allocation2 + $0x70] sm:$0xff] %v424
    %526 = vst [vmem:[#allocation2 + $0x78] sm:$0xff] %v426
    %527 = vst [vmem:[#allocation2 + $0x80] sm:$0xff] %v507
    %528 = vst [vmem:[#allocation2 + $0x88] sm:$0xff] %v509
    %v529 = vld [vmem:[#allocation10] sm:$0xff]
    %v530 = vld [vmem:[#allocation10 + $0x8] sm:$0xff]
    %v531 = vld [vmem:[#allocation10 + $0x10] sm:$0xff]
    %v532 = vld [vmem:[#allocation10 + $0x18] sm:$0xff]
    %v533 = vld [vmem:[#allocation10 + $0x20] sm:$0xff]
    %v534 = vld [vmem:[#allocation10 + $0x28] sm:$0xff]
    %v535 = vld [vmem:[#allocation10 + $0x30] sm:$0xff]
    %v536 = vld [vmem:[#allocation10 + $0x38] sm:$0xff]
    %v537 = vld [vmem:[#allocation10 + $0x40] sm:$0xff]
    %v538 = vld [vmem:[#allocation10 + $0x48] sm:$0xff]
    %v539 = vld [vmem:[#allocation10 + $0x50] sm:$0xff]
    %v540 = vld [vmem:[#allocation10 + $0x58] sm:$0xff]
    %v541 = vld [vmem:[#allocation10 + $0x60] sm:$0xff]
    %v542 = vld [vmem:[#allocation10 + $0x68] sm:$0xff]
    %v543 = vld [vmem:[#allocation10 + $0x70] sm:$0xff]
    %v544 = vld [vmem:[#allocation10 + $0x78] sm:$0xff]
    %v545 = vld [vmem:[#allocation10 + $0x80] sm:$0xff]
    %v546 = vld [vmem:[#allocation10 + $0x88] sm:$0xff]
    %v547 = vld [vmem:[#allocation10 + $0x90] sm:$0xff]
    %v548 = vld [vmem:[#allocation10 + $0x98] sm:$0xff]
    %v549 = vld [vmem:[#allocation10 + $0xa0] sm:$0xff]
    %v550 = vld [vmem:[#allocation10 + $0xa8] sm:$0xff]
    %v551 = vld [vmem:[#allocation10 + $0xb0] sm:$0xff]
    %v552 = vld [vmem:[#allocation10 + $0xb8] sm:$0xff]
    %v553 = vld [vmem:[#allocation10 + $0xc0] sm:$0xff]
    %v554 = vld [vmem:[#allocation10 + $0xc8] sm:$0xff]
    %v555 = vld [vmem:[#allocation10 + $0xd0] sm:$0xff]
    %v556 = vld [vmem:[#allocation10 + $0xd8] sm:$0xff]
    %v557 = vld [vmem:[#allocation10 + $0xe0] sm:$0xff]
    %v558 = vld [vmem:[#allocation10 + $0xe8] sm:$0xff]
    %v559 = vld [vmem:[#allocation10 + $0xf0] sm:$0xff]
    %v560 = vld [vmem:[#allocation10 + $0xf8] sm:$0xff]
    %v561 = vld [vmem:[#allocation10 + $0x100] sm:$0xff]
    %v562 = vld [vmem:[#allocation10 + $0x108] sm:$0xff]
    %v563 = vld [vmem:[#allocation10 + $0x110] sm:$0xff]
    %v564 = vld [vmem:[#allocation10 + $0x118] sm:$0xff]
    %v565 = vld [vmem:[#allocation10 + $0x120] sm:$0xff]
    %v566 = vld [vmem:[#allocation10 + $0x128] sm:$0xff]
    %v567 = vld [vmem:[#allocation10 + $0x130] sm:$0xff]
    %v568 = vld [vmem:[#allocation10 + $0x138] sm:$0xff]
    %v569 = vld [vmem:[#allocation10 + $0x140] sm:$0xff]
    %v570 = vld [vmem:[#allocation10 + $0x148] sm:$0xff]
    %v571 = vld [vmem:[#allocation10 + $0x150] sm:$0xff]
    %v572 = vld [vmem:[#allocation10 + $0x158] sm:$0xff]
    %v573 = vld [vmem:[#allocation10 + $0x160] sm:$0xff]
    %v574 = vld [vmem:[#allocation10 + $0x168] sm:$0xff]
    %v575 = vld [vmem:[#allocation10 + $0x170] sm:$0xff]
    %v576 = vld [vmem:[#allocation10 + $0x178] sm:$0xff]
    %v577 = vld [vmem:[#allocation10 + $0x180] sm:$0xff]
    %v578 = vld [vmem:[#allocation10 + $0x188] sm:$0xff]
    %v579 = vld [vmem:[#allocation10 + $0x190] sm:$0xff]
    %v580 = vld [vmem:[#allocation10 + $0x198] sm:$0xff]
    %v581 = vld [vmem:[#allocation10 + $0x1a0] sm:$0xff]
    %v582 = vld [vmem:[#allocation10 + $0x1a8] sm:$0xff]
    %v583 = vld [vmem:[#allocation10 + $0x1b0] sm:$0xff]
    %v584 = vld [vmem:[#allocation10 + $0x1b8] sm:$0xff]
    %v585 = vld [vmem:[#allocation10 + $0x1c0] sm:$0xff]
    %v586 = vld [vmem:[#allocation10 + $0x1c8] sm:$0xff]
    %v587 = vld [vmem:[#allocation10 + $0x1d0] sm:$0xff]
    %v588 = vld [vmem:[#allocation10 + $0x1d8] sm:$0xff]
    %v589 = vld [vmem:[#allocation10 + $0x1e0] sm:$0xff]
    %v590 = vld [vmem:[#allocation10 + $0x1e8] sm:$0xff]
    %v591 = vld [vmem:[#allocation10 + $0x1f0] sm:$0xff]
    %v592 = vld [vmem:[#allocation10 + $0x1f8] sm:$0xff]
    %v593 = vld [vmem:[#allocation10 + $0x200] sm:$0xff]
    %v594 = vld [vmem:[#allocation10 + $0x208] sm:$0xff]
    %v595 = vld [vmem:[#allocation10 + $0x210] sm:$0xff]
    %v596 = vld [vmem:[#allocation10 + $0x218] sm:$0xff]
    %v597 = vld [vmem:[#allocation10 + $0x220] sm:$0xff]
    %v598 = vld [vmem:[#allocation10 + $0x228] sm:$0xff]
    %v599 = vld [vmem:[#allocation10 + $0x230] sm:$0xff]
    %v600 = vld [vmem:[#allocation10 + $0x238] sm:$0xff]
    %v601 = vld [vmem:[#allocation10 + $0x240] sm:$0xff]
    %v602 = vld [vmem:[#allocation10 + $0x248] sm:$0xff]
    %v603 = vld [vmem:[#allocation10 + $0x250] sm:$0xff]
    %v604 = vld [vmem:[#allocation10 + $0x258] sm:$0xff]
    %v605 = vld [vmem:[#allocation10 + $0x260] sm:$0xff]
    %v606 = vld [vmem:[#allocation10 + $0x268] sm:$0xff]
    %v607 = vld [vmem:[#allocation10 + $0x270] sm:$0xff]
    %v608 = vld [vmem:[#allocation10 + $0x278] sm:$0xff]
    %v609 = vld [vmem:[#allocation10 + $0x280] sm:$0xff]
    %v610 = vld [vmem:[#allocation10 + $0x288] sm:$0xff]
    %v611 = vld [vmem:[#allocation10 + $0x290] sm:$0xff]
    %v612 = vld [vmem:[#allocation10 + $0x298] sm:$0xff]
    %v613 = vld [vmem:[#allocation10 + $0x2a0] sm:$0xff]
    %v614 = vld [vmem:[#allocation10 + $0x2a8] sm:$0xff]
    %v615 = vld [vmem:[#allocation10 + $0x2b0] sm:$0xff]
    %v616 = vld [vmem:[#allocation10 + $0x2b8] sm:$0xff]
    %v617 = vld [vmem:[#allocation10 + $0x2c0] sm:$0xff]
    %v618 = vld [vmem:[#allocation10 + $0x2c8] sm:$0xff]
    %v619 = vld [vmem:[#allocation10 + $0x2d0] sm:$0xff]
    %v620 = vld [vmem:[#allocation10 + $0x2d8] sm:$0xff]
    %v621 = vld [vmem:[#allocation10 + $0x2e0] sm:$0xff]
    %v622 = vld [vmem:[#allocation10 + $0x2e8] sm:$0xff]
    %v623 = vld [vmem:[#allocation10 + $0x2f0] sm:$0xff]
    %v624 = vld [vmem:[#allocation10 + $0x2f8] sm:$0xff]
    %v625 = vld [vmem:[#allocation10 + $0x300] sm:$0xff]
    %v626 = vld [vmem:[#allocation10 + $0x308] sm:$0xff]
    %v627 = vld [vmem:[#allocation10 + $0x310] sm:$0xff]
    %v628 = vld [vmem:[#allocation10 + $0x318] sm:$0xff]
    %v629 = vld [vmem:[#allocation10 + $0x320] sm:$0xff]
    %v630 = vld [vmem:[#allocation10 + $0x328] sm:$0xff]
    %v631 = vld [vmem:[#allocation10 + $0x330] sm:$0xff]
    %v632 = vld [vmem:[#allocation10 + $0x338] sm:$0xff]
    %v633 = vld [vmem:[#allocation10 + $0x340] sm:$0xff]
    %v634 = vld [vmem:[#allocation10 + $0x348] sm:$0xff]
    %v635 = vld [vmem:[#allocation10 + $0x350] sm:$0xff]
    %v636 = vld [vmem:[#allocation10 + $0x358] sm:$0xff]
    %v637 = vld [vmem:[#allocation10 + $0x360] sm:$0xff]
    %v638 = vld [vmem:[#allocation10 + $0x368] sm:$0xff]
    %v639 = vld [vmem:[#allocation10 + $0x370] sm:$0xff]
    %v640 = vld [vmem:[#allocation10 + $0x378] sm:$0xff]
    %v641 = vld [vmem:[#allocation10 + $0x380] sm:$0xff]
    %v642 = vld [vmem:[#allocation10 + $0x388] sm:$0xff]
    %v643 = vld [vmem:[#allocation10 + $0x390] sm:$0xff]
    %v644 = vld [vmem:[#allocation10 + $0x398] sm:$0xff]
    %v645 = vld [vmem:[#allocation10 + $0x3a0] sm:$0xff]
    %v646 = vld [vmem:[#allocation10 + $0x3a8] sm:$0xff]
    %v647 = vld [vmem:[#allocation10 + $0x3b0] sm:$0xff]
    %v648 = vld [vmem:[#allocation10 + $0x3b8] sm:$0xff]
    %v649 = vld [vmem:[#allocation10 + $0x3c0] sm:$0xff]
    %v650 = vld [vmem:[#allocation10 + $0x3c8] sm:$0xff]
    %v651 = vld [vmem:[#allocation10 + $0x3d0] sm:$0xff]
    %v652 = vld [vmem:[#allocation10 + $0x3d8] sm:$0xff]
    %v653 = vld [vmem:[#allocation10 + $0x3e0] sm:$0xff]
    %v654 = vld [vmem:[#allocation10 + $0x3e8] sm:$0xff]
    %v655 = vld [vmem:[#allocation10 + $0x3f0] sm:$0xff]
    %v656 = vld [vmem:[#allocation10 + $0x3f8] sm:$0xff]
    %v657 = vld [vmem:[#allocation10 + $0x400] sm:$0xff]
    %v658 = vld [vmem:[#allocation10 + $0x408] sm:$0xff]
    %v659 = vld [vmem:[#allocation10 + $0x410] sm:$0xff]
    %v660 = vld [vmem:[#allocation10 + $0x418] sm:$0xff]
    %v661 = vld [vmem:[#allocation10 + $0x420] sm:$0xff]
    %v662 = vld [vmem:[#allocation10 + $0x428] sm:$0xff]
    %v663 = vld [vmem:[#allocation10 + $0x430] sm:$0xff]
    %v664 = vld [vmem:[#allocation10 + $0x438] sm:$0xff]
    %v665 = vld [vmem:[#allocation10 + $0x440] sm:$0xff]
    %v666 = vld [vmem:[#allocation10 + $0x448] sm:$0xff]
    %v667 = vld [vmem:[#allocation10 + $0x450] sm:$0xff]
    %v668 = vld [vmem:[#allocation10 + $0x458] sm:$0xff]
    %v669 = vld [vmem:[#allocation10 + $0x460] sm:$0xff]
    %v670 = vld [vmem:[#allocation10 + $0x468] sm:$0xff]
    %v671 = vld [vmem:[#allocation10 + $0x470] sm:$0xff]
    %v672 = vld [vmem:[#allocation10 + $0x478] sm:$0xff]
    %v673 = vld [vmem:[#allocation10 + $0x480] sm:$0xff]
    %v674 = vld [vmem:[#allocation10 + $0x488] sm:$0xff]
    %v675 = vld [vmem:[#allocation10 + $0x490] sm:$0xff]
    %v676 = vld [vmem:[#allocation10 + $0x498] sm:$0xff]
    %v677 = vld [vmem:[#allocation10 + $0x4a0] sm:$0xff]
    %v678 = vld [vmem:[#allocation10 + $0x4a8] sm:$0xff]
    %v679 = vld [vmem:[#allocation10 + $0x4b0] sm:$0xff]
    %v680 = vld [vmem:[#allocation10 + $0x4b8] sm:$0xff]
    %v681 = vld [vmem:[#allocation10 + $0x4c0] sm:$0xff]
    %v682 = vld [vmem:[#allocation10 + $0x4c8] sm:$0xff]
    %v683 = vld [vmem:[#allocation10 + $0x4d0] sm:$0xff]
    %v684 = vld [vmem:[#allocation10 + $0x4d8] sm:$0xff]
    %v685 = vld [vmem:[#allocation10 + $0x4e0] sm:$0xff]
    %v686 = vld [vmem:[#allocation10 + $0x4e8] sm:$0xff]
    %v687 = vld [vmem:[#allocation10 + $0x4f0] sm:$0xff]
    %v688 = vld [vmem:[#allocation10 + $0x4f8] sm:$0xff]
    %v689 = vld [vmem:[#allocation10 + $0x500] sm:$0xff]
    %v690 = vld [vmem:[#allocation10 + $0x508] sm:$0xff]
    %v691 = vld [vmem:[#allocation10 + $0x510] sm:$0xff]
    %v692 = vld [vmem:[#allocation10 + $0x518] sm:$0xff]
    %v693 = vld [vmem:[#allocation10 + $0x520] sm:$0xff]
    %v694 = vld [vmem:[#allocation10 + $0x528] sm:$0xff]
    %v695 = vld [vmem:[#allocation10 + $0x530] sm:$0xff]
    %v696 = vld [vmem:[#allocation10 + $0x538] sm:$0xff]
    %v697 = vld [vmem:[#allocation10 + $0x540] sm:$0xff]
    %v698 = vld [vmem:[#allocation10 + $0x548] sm:$0xff]
    %v699 = vld [vmem:[#allocation10 + $0x550] sm:$0xff]
    %v700 = vld [vmem:[#allocation10 + $0x558] sm:$0xff]
    %v701 = vld [vmem:[#allocation10 + $0x560] sm:$0xff]
    %v702 = vld [vmem:[#allocation10 + $0x568] sm:$0xff]
    %v703 = vld [vmem:[#allocation10 + $0x570] sm:$0xff]
    %v704 = vld [vmem:[#allocation10 + $0x578] sm:$0xff]
    %v705 = vld [vmem:[#allocation10 + $0x580] sm:$0xff]
    %v706 = vld [vmem:[#allocation10 + $0x588] sm:$0xff]
    %v707 = vld [vmem:[#allocation10 + $0x590] sm:$0xff]
    %v708 = vld [vmem:[#allocation10 + $0x598] sm:$0xff]
    %v709 = vld [vmem:[#allocation10 + $0x5a0] sm:$0xff]
    %v710 = vld [vmem:[#allocation10 + $0x5a8] sm:$0xff]
    %v711 = vld [vmem:[#allocation10 + $0x5b0] sm:$0xff]
    %v712 = vld [vmem:[#allocation10 + $0x5b8] sm:$0xff]
    %v713 = vld [vmem:[#allocation10 + $0x5c0] sm:$0xff]
    %v714 = vld [vmem:[#allocation10 + $0x5c8] sm:$0xff]
    %v715 = vld [vmem:[#allocation10 + $0x5d0] sm:$0xff]
    %v716 = vld [vmem:[#allocation10 + $0x5d8] sm:$0xff]
    %v717 = vld [vmem:[#allocation10 + $0x5e0] sm:$0xff]
    %v718 = vld [vmem:[#allocation10 + $0x5e8] sm:$0xff]
    %v719 = vld [vmem:[#allocation10 + $0x5f0] sm:$0xff]
    %v720 = vld [vmem:[#allocation10 + $0x5f8] sm:$0xff]
    %v721 = vld [vmem:[#allocation11] sm:$0x3f]
    %v722 = vld [vmem:[#allocation2] sm:$0x3]
    %v723 = vld [vmem:[#allocation2 + $0x8] sm:$0x3]
    %v724 = vld [vmem:[#allocation2 + $0x10] sm:$0x3]
    %v725 = vld [vmem:[#allocation2 + $0x18] sm:$0x3]
    %v726 = vld [vmem:[#allocation2 + $0x20] sm:$0x3]
    %v727 = vld [vmem:[#allocation2 + $0x28] sm:$0x3]
    %v729 = vlaneseq
    %v730 = vshrl.u32 %v729, 7
    %v731 = vsub.s32 0, %v730
    %v732 = vrot.slane %v721, %v731
    %v733 = vlaneseq
    %v734 = vshrl.u32 %v733, 7
    %v735 = vsub.s32 1, %v734
    %v736 = vrot.slane %v721, %v735
    %v737 = vlaneseq
    %v738 = vshrl.u32 %v737, 7
    %v739 = vsub.s32 2, %v738
    %v740 = vrot.slane %v721, %v739
    %v741 = vlaneseq
    %v742 = vshrl.u32 %v741, 7
    %v743 = vsub.s32 3, %v742
    %v744 = vrot.slane %v721, %v743
    %v745 = vlaneseq
    %v746 = vshrl.u32 %v745, 7
    %v747 = vsub.s32 4, %v746
    %v748 = vrot.slane %v721, %v747
    %v749 = vlaneseq
    %v750 = vshrl.u32 %v749, 7
    %v751 = vsub.s32 5, %v750
    %v752 = vrot.slane %v721, %v751
    %759 = vmatprep.subr.mxu0 %v530
    %760 = vmatpush1.msra.mxu0 %v529
    %761 = vmatprep.subr.mxu0 %v536
    %762 = vmatpush1.msra.mxu0 %v535
    %763 = vmatprep.subr.mxu0 %v542
    %764 = vmatpush1.msra.mxu0 %v541
    %765 = vmatprep.subr.mxu0 %v548
    %766 = vmatpush1.msra.mxu0 %v547
    %767 = vmatprep.subr.mxu0 %v554
    %768 = vmatpush1.msra.mxu0 %v553
    %769 = vmatprep.subr.mxu0 %v560
    %770 = vmatpush1.msra.mxu0 %v559
    %771 = vmatprep.subr.mxu0 %v566
    %772 = vmatpush1.msra.mxu0 %v565
    %773 = vmatprep.subr.mxu0 %v572
    %774 = vmatpush1.msra.mxu0 %v571
    %775 = vmatprep.subr.mxu0 %v578
    %776 = vmatpush1.msra.mxu0 %v577
    %777 = vmatprep.subr.mxu0 %v584
    %778 = vmatpush1.msra.mxu0 %v583
    %779 = vmatprep.subr.mxu0 %v590
    %780 = vmatpush1.msra.mxu0 %v589
    %781 = vmatprep.subr.mxu0 %v596
    %782 = vmatpush1.msra.mxu0 %v595
    %783 = vmatprep.subr.mxu0 %v602
    %784 = vmatpush1.msra.mxu0 %v601
    %785 = vmatprep.subr.mxu0 %v608
    %786 = vmatpush1.msra.mxu0 %v607
    %787 = vmatprep.subr.mxu0 %v614
    %788 = vmatpush1.msra.mxu0 %v613
    %789 = vmatprep.subr.mxu0 %v620
    %790 = vmatpush1.msra.mxu0 %v619
    %791 = vmatprep.subr.mxu0 %v626
    %792 = vmatpush1.msra.mxu0 %v625
    %793 = vmatprep.subr.mxu0 %v632
    %794 = vmatpush1.msra.mxu0 %v631
    %795 = vmatprep.subr.mxu0 %v638
    %796 = vmatpush1.msra.mxu0 %v637
    %797 = vmatprep.subr.mxu0 %v644
    %798 = vmatpush1.msra.mxu0 %v643
    %799 = vmatprep.subr.mxu0 %v650
    %800 = vmatpush1.msra.mxu0 %v649
    %801 = vmatprep.subr.mxu0 %v656
    %802 = vmatpush1.msra.mxu0 %v655
    %803 = vmatprep.subr.mxu0 %v662
    %804 = vmatpush1.msra.mxu0 %v661
    %805 = vmatprep.subr.mxu0 %v668
    %806 = vmatpush1.msra.mxu0 %v667
    %807 = vmatprep.subr.mxu0 %v674
    %808 = vmatpush1.msra.mxu0 %v673
    %809 = vmatprep.subr.mxu0 %v680
    %810 = vmatpush1.msra.mxu0 %v679
    %811 = vmatprep.subr.mxu0 %v686
    %812 = vmatpush1.msra.mxu0 %v685
    %813 = vmatprep.subr.mxu0 %v692
    %814 = vmatpush1.msra.mxu0 %v691
    %815 = vmatprep.subr.mxu0 %v698
    %816 = vmatpush1.msra.mxu0 %v697
    %817 = vmatprep.subr.mxu0 %v704
    %818 = vmatpush1.msra.mxu0 %v703
    %819 = vmatprep.subr.mxu0 %v710
    %820 = vmatpush1.msra.mxu0 %v709
    %821 = vmatprep.subr.mxu0 %v716
    %822 = vmatpush1.msra.mxu0 %v715
    %823 = vmatprep.mubr.f32.mxu0 0.0
    %824 = vmatmul.mubr.f32.gmra.mrb[0].mxu0 0.0
    %v825 = vpop.f32.mrb[0].mxu0
    %v826 = vadd.f32 %v732, %v825
    %v827 = vpop.f32.mrb[0].mxu0
    %v828 = vadd.f32 %v736, %v827
    %829 = vdwg.mxu0
    %830 = vmatprep.subr.mxu0 %v532
    %831 = vmatpush1.msra.mxu0 %v531
    %832 = vmatprep.subr.mxu0 %v538
    %833 = vmatpush1.msra.mxu0 %v537
    %834 = vmatprep.subr.mxu0 %v544
    %835 = vmatpush1.msra.mxu0 %v543
    %836 = vmatprep.subr.mxu0 %v550
    %837 = vmatpush1.msra.mxu0 %v549
    %838 = vmatprep.subr.mxu0 %v556
    %839 = vmatpush1.msra.mxu0 %v555
    %840 = vmatprep.subr.mxu0 %v562
    %841 = vmatpush1.msra.mxu0 %v561
    %842 = vmatprep.subr.mxu0 %v568
    %843 = vmatpush1.msra.mxu0 %v567
    %844 = vmatprep.subr.mxu0 %v574
    %845 = vmatpush1.msra.mxu0 %v573
    %846 = vmatprep.subr.mxu0 %v580
    %847 = vmatpush1.msra.mxu0 %v579
    %848 = vmatprep.subr.mxu0 %v586
    %849 = vmatpush1.msra.mxu0 %v585
    %850 = vmatprep.subr.mxu0 %v592
    %851 = vmatpush1.msra.mxu0 %v591
    %852 = vmatprep.subr.mxu0 %v598
    %853 = vmatpush1.msra.mxu0 %v597
    %854 = vmatprep.subr.mxu0 %v604
    %855 = vmatpush1.msra.mxu0 %v603
    %856 = vmatprep.subr.mxu0 %v610
    %857 = vmatpush1.msra.mxu0 %v609
    %858 = vmatprep.subr.mxu0 %v616
    %859 = vmatpush1.msra.mxu0 %v615
    %860 = vmatprep.subr.mxu0 %v622
    %861 = vmatpush1.msra.mxu0 %v621
    %862 = vmatprep.subr.mxu0 %v628
    %863 = vmatpush1.msra.mxu0 %v627
    %864 = vmatprep.subr.mxu0 %v634
    %865 = vmatpush1.msra.mxu0 %v633
    %866 = vmatprep.subr.mxu0 %v640
    %867 = vmatpush1.msra.mxu0 %v639
    %868 = vmatprep.subr.mxu0 %v646
    %869 = vmatpush1.msra.mxu0 %v645
    %870 = vmatprep.subr.mxu0 %v652
    %871 = vmatpush1.msra.mxu0 %v651
    %872 = vmatprep.subr.mxu0 %v658
    %873 = vmatpush1.msra.mxu0 %v657
    %874 = vmatprep.subr.mxu0 %v664
    %875 = vmatpush1.msra.mxu0 %v663
    %876 = vmatprep.subr.mxu0 %v670
    %877 = vmatpush1.msra.mxu0 %v669
    %878 = vmatprep.subr.mxu0 %v676
    %879 = vmatpush1.msra.mxu0 %v675
    %880 = vmatprep.subr.mxu0 %v682
    %881 = vmatpush1.msra.mxu0 %v681
    %882 = vmatprep.subr.mxu0 %v688
    %883 = vmatpush1.msra.mxu0 %v687
    %884 = vmatprep.subr.mxu0 %v694
    %885 = vmatpush1.msra.mxu0 %v693
    %886 = vmatprep.subr.mxu0 %v700
    %887 = vmatpush1.msra.mxu0 %v699
    %888 = vmatprep.subr.mxu0 %v706
    %889 = vmatpush1.msra.mxu0 %v705
    %890 = vmatprep.subr.mxu0 %v712
    %891 = vmatpush1.msra.mxu0 %v711
    %892 = vmatprep.subr.mxu0 %v718
    %893 = vmatpush1.msra.mxu0 %v717
    %894 = vmatprep.mubr.f32.mxu0 0.0
    %895 = vmatmul.mubr.f32.gmra.mrb[0].mxu0 0.0
    %v896 = vpop.f32.mrb[0].mxu0
    %v897 = vadd.f32 %v740, %v896
    %v898 = vpop.f32.mrb[0].mxu0
    %v899 = vadd.f32 %v744, %v898
    %900 = vdwg.mxu0
    %901 = vmatprep.subr.mxu0 %v534
    %902 = vmatpush1.msra.mxu0 %v533
    %903 = vmatprep.subr.mxu0 %v540
    %904 = vmatpush1.msra.mxu0 %v539
    %905 = vmatprep.subr.mxu0 %v546
    %906 = vmatpush1.msra.mxu0 %v545
    %907 = vmatprep.subr.mxu0 %v552
    %908 = vmatpush1.msra.mxu0 %v551
    %909 = vmatprep.subr.mxu0 %v558
    %910 = vmatpush1.msra.mxu0 %v557
    %911 = vmatprep.subr.mxu0 %v564
    %912 = vmatpush1.msra.mxu0 %v563
    %913 = vmatprep.subr.mxu0 %v570
    %914 = vmatpush1.msra.mxu0 %v569
    %915 = vmatprep.subr.mxu0 %v576
    %916 = vmatpush1.msra.mxu0 %v575
    %917 = vmatprep.subr.mxu0 %v582
    %918 = vmatpush1.msra.mxu0 %v581
    %919 = vmatprep.subr.mxu0 %v588
    %920 = vmatpush1.msra.mxu0 %v587
    %921 = vmatprep.subr.mxu0 %v594
    %922 = vmatpush1.msra.mxu0 %v593
    %923 = vmatprep.subr.mxu0 %v600
    %924 = vmatpush1.msra.mxu0 %v599
    %925 = vmatprep.subr.mxu0 %v606
    %926 = vmatpush1.msra.mxu0 %v605
    %927 = vmatprep.subr.mxu0 %v612
    %928 = vmatpush1.msra.mxu0 %v611
    %929 = vmatprep.subr.mxu0 %v618
    %930 = vmatpush1.msra.mxu0 %v617
    %931 = vmatprep.subr.mxu0 %v624
    %932 = vmatpush1.msra.mxu0 %v623
    %933 = vmatprep.subr.mxu0 %v630
    %934 = vmatpush1.msra.mxu0 %v629
    %935 = vmatprep.subr.mxu0 %v636
    %936 = vmatpush1.msra.mxu0 %v635
    %937 = vmatprep.subr.mxu0 %v642
    %938 = vmatpush1.msra.mxu0 %v641
    %939 = vmatprep.subr.mxu0 %v648
    %940 = vmatpush1.msra.mxu0 %v647
    %941 = vmatprep.subr.mxu0 %v654
    %942 = vmatpush1.msra.mxu0 %v653
    %943 = vmatprep.subr.mxu0 %v660
    %944 = vmatpush1.msra.mxu0 %v659
    %945 = vmatprep.subr.mxu0 %v666
    %946 = vmatpush1.msra.mxu0 %v665
    %947 = vmatprep.subr.mxu0 %v672
    %948 = vmatpush1.msra.mxu0 %v671
    %949 = vmatprep.subr.mxu0 %v678
    %950 = vmatpush1.msra.mxu0 %v677
    %951 = vmatprep.subr.mxu0 %v684
    %952 = vmatpush1.msra.mxu0 %v683
    %953 = vmatprep.subr.mxu0 %v690
    %954 = vmatpush1.msra.mxu0 %v689
    %955 = vmatprep.subr.mxu0 %v696
    %956 = vmatpush1.msra.mxu0 %v695
    %957 = vmatprep.subr.mxu0 %v702
    %958 = vmatpush1.msra.mxu0 %v701
    %959 = vmatprep.subr.mxu0 %v708
    %960 = vmatpush1.msra.mxu0 %v707
    %961 = vmatprep.subr.mxu0 %v714
    %962 = vmatpush1.msra.mxu0 %v713
    %963 = vmatprep.subr.mxu0 %v720
    %964 = vmatpush1.msra.mxu0 %v719
    %965 = vmatprep.mubr.f32.mxu0 0.0
    %966 = vmatmul.mubr.f32.gmra.mrb[0].mxu0 0.0
    %v967 = vpop.f32.mrb[0].mxu0
    %v968 = vadd.f32 %v748, %v967
    %v969 = vpop.f32.mrb[0].mxu0
    %v970 = vadd.f32 %v752, %v969
    %971 = vdwg.mxu0
    %v972 = vadd.f32 %v722, %v826
    %v973 = vadd.f32 %v723, %v828
    %v974 = vxor.u32 %v972, 2147483648
    %v975 = vxor.u32 %v973, 2147483648
    %v976 = vmul.f32 %v974, 1.442695
    %v977 = vpow.pop %v976
    %v978 = vmul.f32 %v975, 1.442695
    %v979 = vpow.pop %v978
    %v980 = vadd.f32 %v977, 1.0
    %v981 = vadd.f32 %v979, 1.0
    %v982 = vrcp.pop %v980
    %v983 = vmul.f32 1.0, %v982
    %v984 = vrcp.pop %v981
    %v985 = vmul.f32 1.0, %v984
    %v986 = vadd.f32 %v724, %v897
    %v987 = vadd.f32 %v725, %v899
    %v988 = vxor.u32 %v986, 2147483648
    %v989 = vxor.u32 %v987, 2147483648
    %v990 = vmul.f32 %v988, 1.442695
    %v991 = vpow.pop %v990
    %v992 = vmul.f32 %v989, 1.442695
    %v993 = vpow.pop %v992
    %v994 = vadd.f32 %v991, 1.0
    %v995 = vadd.f32 %v993, 1.0
    %v996 = vrcp.pop %v994
    %v997 = vmul.f32 1.0, %v996
    %v998 = vrcp.pop %v995
    %v999 = vmul.f32 1.0, %v998
    %v1000 = vmul.f32 %v983, %v968
    %v1001 = vmul.f32 %v985, %v970
    %v1002 = vadd.f32 %v726, %v1000
    %v1003 = vadd.f32 %v727, %v1001
    %v1004 = vtanh.pop %v1002
    %v1005 = vtanh.pop %v1003
    %v1006 = vsub.f32 1.0, %v997
    %v1007 = vsub.f32 1.0, %v999
    %v1008 = vmul.f32 %v1006, %v1004
    %v1009 = vmul.f32 %v1007, %v1005
    %v1010 = vmul.f32 %v997, 0.0
    %v1011 = vmul.f32 %v999, 0.0
    %v1012 = vadd.f32 %v1008, %v1010
    %v1013 = vadd.f32 %v1009, %v1011
    %v1014 = vld [vmem:[#allocation2] sm:$0xc]
    %v1015 = vld [vmem:[#allocation2 + $0x8] sm:$0xc]
    %v1016 = vld [vmem:[#allocation2 + $0x10] sm:$0xc]
    %v1017 = vld [vmem:[#allocation2 + $0x18] sm:$0xc]
    %v1018 = vld [vmem:[#allocation2 + $0x20] sm:$0xc]
    %v1019 = vld [vmem:[#allocation2 + $0x28] sm:$0xc]
    %1020 = vmatprep.subr.mxu0 %v530
    %1021 = vmatpush1.msra.mxu0 %v529
    %1022 = vmatprep.subr.mxu0 %v536
    %1023 = vmatpush1.msra.mxu0 %v535
    %1024 = vmatprep.subr.mxu0 %v542
    %1025 = vmatpush1.msra.mxu0 %v541
    %1026 = vmatprep.subr.mxu0 %v548
    %1027 = vmatpush1.msra.mxu0 %v547
    %1028 = vmatprep.subr.mxu0 %v554
    %1029 = vmatpush1.msra.mxu0 %v553
    %1030 = vmatprep.subr.mxu0 %v560
    %1031 = vmatpush1.msra.mxu0 %v559
    %1032 = vmatprep.subr.mxu0 %v566
    %1033 = vmatpush1.msra.mxu0 %v565
    %1034 = vmatprep.subr.mxu0 %v572
    %1035 = vmatpush1.msra.mxu0 %v571
    %1036 = vmatprep.subr.mxu0 %v578
    %1037 = vmatpush1.msra.mxu0 %v577
    %1038 = vmatprep.subr.mxu0 %v584
    %1039 = vmatpush1.msra.mxu0 %v583
    %1040 = vmatprep.subr.mxu0 %v590
    %1041 = vmatpush1.msra.mxu0 %v589
    %1042 = vmatprep.subr.mxu0 %v596
    %1043 = vmatpush1.msra.mxu0 %v595
    %1044 = vmatprep.subr.mxu0 %v602
    %1045 = vmatpush1.msra.mxu0 %v601
    %1046 = vmatprep.subr.mxu0 %v608
    %1047 = vmatpush1.msra.mxu0 %v607
    %1048 = vmatprep.subr.mxu0 %v614
    %1049 = vmatpush1.msra.mxu0 %v613
    %1050 = vmatprep.subr.mxu0 %v620
    %1051 = vmatpush1.msra.mxu0 %v619
    %1052 = vmatprep.subr.mxu0 %v626
    %1053 = vmatpush1.msra.mxu0 %v625
    %1054 = vmatprep.subr.mxu0 %v632
    %1055 = vmatpush1.msra.mxu0 %v631
    %1056 = vmatprep.subr.mxu0 %v638
    %1057 = vmatpush1.msra.mxu0 %v637
    %1058 = vmatprep.subr.mxu0 %v644
    %1059 = vmatpush1.msra.mxu0 %v643
    %1060 = vmatprep.subr.mxu0 %v650
    %1061 = vmatpush1.msra.mxu0 %v649
    %1062 = vmatprep.subr.mxu0 %v656
    %1063 = vmatpush1.msra.mxu0 %v655
    %1064 = vmatprep.subr.mxu0 %v662
    %1065 = vmatpush1.msra.mxu0 %v661
    %1066 = vmatprep.subr.mxu0 %v668
    %1067 = vmatpush1.msra.mxu0 %v667
    %1068 = vmatprep.subr.mxu0 %v674
    %1069 = vmatpush1.msra.mxu0 %v673
    %1070 = vmatprep.subr.mxu0 %v680
    %1071 = vmatpush1.msra.mxu0 %v679
    %1072 = vmatprep.subr.mxu0 %v686
    %1073 = vmatpush1.msra.mxu0 %v685
    %1074 = vmatprep.subr.mxu0 %v692
    %1075 = vmatpush1.msra.mxu0 %v691
    %1076 = vmatprep.subr.mxu0 %v698
    %1077 = vmatpush1.msra.mxu0 %v697
    %1078 = vmatprep.subr.mxu0 %v704
    %1079 = vmatpush1.msra.mxu0 %v703
    %1080 = vmatprep.subr.mxu0 %v710
    %1081 = vmatpush1.msra.mxu0 %v709
    %1082 = vmatprep.subr.mxu0 %v716
    %1083 = vmatpush1.msra.mxu0 %v715
    %1084 = vmatprep.mubr.f32.mxu0 %v1013
    %1085 = vmatmul.mubr.f32.gmra.mrb[0].mxu0 %v1012
    %v1086 = vpop.f32.mrb[0].mxu0
    %v1087 = vadd.f32 %v732, %v1086
    %v1088 = vpop.f32.mrb[0].mxu0
    %v1089 = vadd.f32 %v736, %v1088
    %1090 = vdwg.mxu0
    %1091 = vmatprep.subr.mxu0 %v532
    %1092 = vmatpush1.msra.mxu0 %v531
    %1093 = vmatprep.subr.mxu0 %v538
    %1094 = vmatpush1.msra.mxu0 %v537
    %1095 = vmatprep.subr.mxu0 %v544
    %1096 = vmatpush1.msra.mxu0 %v543
    %1097 = vmatprep.subr.mxu0 %v550
    %1098 = vmatpush1.msra.mxu0 %v549
    %1099 = vmatprep.subr.mxu0 %v556
    %1100 = vmatpush1.msra.mxu0 %v555
    %1101 = vmatprep.subr.mxu0 %v562
    %1102 = vmatpush1.msra.mxu0 %v561
    %1103 = vmatprep.subr.mxu0 %v568
    %1104 = vmatpush1.msra.mxu0 %v567
    %1105 = vmatprep.subr.mxu0 %v574
    %1106 = vmatpush1.msra.mxu0 %v573
    %1107 = vmatprep.subr.mxu0 %v580
    %1108 = vmatpush1.msra.mxu0 %v579
    %1109 = vmatprep.subr.mxu0 %v586
    %1110 = vmatpush1.msra.mxu0 %v585
    %1111 = vmatprep.subr.mxu0 %v592
    %1112 = vmatpush1.msra.mxu0 %v591
    %1113 = vmatprep.subr.mxu0 %v598
    %1114 = vmatpush1.msra.mxu0 %v597
    %1115 = vmatprep.subr.mxu0 %v604
    %1116 = vmatpush1.msra.mxu0 %v603
    %1117 = vmatprep.subr.mxu0 %v610
    %1118 = vmatpush1.msra.mxu0 %v609
    %1119 = vmatprep.subr.mxu0 %v616
    %1120 = vmatpush1.msra.mxu0 %v615
    %1121 = vmatprep.subr.mxu0 %v622
    %1122 = vmatpush1.msra.mxu0 %v621
    %1123 = vmatprep.subr.mxu0 %v628
    %1124 = vmatpush1.msra.mxu0 %v627
    %1125 = vmatprep.subr.mxu0 %v634
    %1126 = vmatpush1.msra.mxu0 %v633
    %1127 = vmatprep.subr.mxu0 %v640
    %1128 = vmatpush1.msra.mxu0 %v639
    %1129 = vmatprep.subr.mxu0 %v646
    %1130 = vmatpush1.msra.mxu0 %v645
    %1131 = vmatprep.subr.mxu0 %v652
    %1132 = vmatpush1.msra.mxu0 %v651
    %1133 = vmatprep.subr.mxu0 %v658
    %1134 = vmatpush1.msra.mxu0 %v657
    %1135 = vmatprep.subr.mxu0 %v664
    %1136 = vmatpush1.msra.mxu0 %v663
    %1137 = vmatprep.subr.mxu0 %v670
    %1138 = vmatpush1.msra.mxu0 %v669
    %1139 = vmatprep.subr.mxu0 %v676
    %1140 = vmatpush1.msra.mxu0 %v675
    %1141 = vmatprep.subr.mxu0 %v682
    %1142 = vmatpush1.msra.mxu0 %v681
    %1143 = vmatprep.subr.mxu0 %v688
    %1144 = vmatpush1.msra.mxu0 %v687
    %1145 = vmatprep.subr.mxu0 %v694
    %1146 = vmatpush1.msra.mxu0 %v693
    %1147 = vmatprep.subr.mxu0 %v700
    %1148 = vmatpush1.msra.mxu0 %v699
    %1149 = vmatprep.subr.mxu0 %v706
    %1150 = vmatpush1.msra.mxu0 %v705
    %1151 = vmatprep.subr.mxu0 %v712
    %1152 = vmatpush1.msra.mxu0 %v711
    %1153 = vmatprep.subr.mxu0 %v718
    %1154 = vmatpush1.msra.mxu0 %v717
    %1155 = vmatprep.mubr.f32.mxu0 %v1013
    %1156 = vmatmul.mubr.f32.gmra.mrb[0].mxu0 %v1012
    %v1157 = vpop.f32.mrb[0].mxu0
    %v1158 = vadd.f32 %v740, %v1157
    %v1159 = vpop.f32.mrb[0].mxu0
    %v1160 = vadd.f32 %v744, %v1159
    %1161 = vdwg.mxu0
    %1162 = vmatprep.subr.mxu0 %v534
    %1163 = vmatpush1.msra.mxu0 %v533
    %1164 = vmatprep.subr.mxu0 %v540
    %1165 = vmatpush1.msra.mxu0 %v539
    %1166 = vmatprep.subr.mxu0 %v546
    %1167 = vmatpush1.msra.mxu0 %v545
    %1168 = vmatprep.subr.mxu0 %v552
    %1169 = vmatpush1.msra.mxu0 %v551
    %1170 = vmatprep.subr.mxu0 %v558
    %1171 = vmatpush1.msra.mxu0 %v557
    %1172 = vmatprep.subr.mxu0 %v564
    %1173 = vmatpush1.msra.mxu0 %v563
    %1174 = vmatprep.subr.mxu0 %v570
    %1175 = vmatpush1.msra.mxu0 %v569
    %1176 = vmatprep.subr.mxu0 %v576
    %1177 = vmatpush1.msra.mxu0 %v575
    %1178 = vmatprep.subr.mxu0 %v582
    %1179 = vmatpush1.msra.mxu0 %v581
    %1180 = vmatprep.subr.mxu0 %v588
    %1181 = vmatpush1.msra.mxu0 %v587
    %1182 = vmatprep.subr.mxu0 %v594
    %1183 = vmatpush1.msra.mxu0 %v593
    %1184 = vmatprep.subr.mxu0 %v600
    %1185 = vmatpush1.msra.mxu0 %v599
    %1186 = vmatprep.subr.mxu0 %v606
    %1187 = vmatpush1.msra.mxu0 %v605
    %1188 = vmatprep.subr.mxu0 %v612
    %1189 = vmatpush1.msra.mxu0 %v611
    %1190 = vmatprep.subr.mxu0 %v618
    %1191 = vmatpush1.msra.mxu0 %v617
    %1192 = vmatprep.subr.mxu0 %v624
    %1193 = vmatpush1.msra.mxu0 %v623
    %1194 = vmatprep.subr.mxu0 %v630
    %1195 = vmatpush1.msra.mxu0 %v629
    %1196 = vmatprep.subr.mxu0 %v636
    %1197 = vmatpush1.msra.mxu0 %v635
    %1198 = vmatprep.subr.mxu0 %v642
    %1199 = vmatpush1.msra.mxu0 %v641
    %1200 = vmatprep.subr.mxu0 %v648
    %1201 = vmatpush1.msra.mxu0 %v647
    %1202 = vmatprep.subr.mxu0 %v654
    %1203 = vmatpush1.msra.mxu0 %v653
    %1204 = vmatprep.subr.mxu0 %v660
    %1205 = vmatpush1.msra.mxu0 %v659
    %1206 = vmatprep.subr.mxu0 %v666
    %1207 = vmatpush1.msra.mxu0 %v665
    %1208 = vmatprep.subr.mxu0 %v672
    %1209 = vmatpush1.msra.mxu0 %v671
    %1210 = vmatprep.subr.mxu0 %v678
    %1211 = vmatpush1.msra.mxu0 %v677
    %1212 = vmatprep.subr.mxu0 %v684
    %1213 = vmatpush1.msra.mxu0 %v683
    %1214 = vmatprep.subr.mxu0 %v690
    %1215 = vmatpush1.msra.mxu0 %v689
    %1216 = vmatprep.subr.mxu0 %v696
    %1217 = vmatpush1.msra.mxu0 %v695
    %1218 = vmatprep.subr.mxu0 %v702
    %1219 = vmatpush1.msra.mxu0 %v701
    %1220 = vmatprep.subr.mxu0 %v708
    %1221 = vmatpush1.msra.mxu0 %v707
    %1222 = vmatprep.subr.mxu0 %v714
    %1223 = vmatpush1.msra.mxu0 %v713
    %1224 = vmatprep.subr.mxu0 %v720
    %1225 = vmatpush1.msra.mxu0 %v719
    %1226 = vmatprep.mubr.f32.mxu0 %v1013
    %1227 = vmatmul.mubr.f32.gmra.mrb[0].mxu0 %v1012
    %v1228 = vpop.f32.mrb[0].mxu0
    %v1229 = vadd.f32 %v748, %v1228
    %v1230 = vpop.f32.mrb[0].mxu0
    %v1231 = vadd.f32 %v752, %v1230
    %1232 = vdwg.mxu0
    %v1235 = vrot.slane %v1087, 6
    %v1236 = vrot.slane %v1089, 6
    %v1239 = vadd.f32 %v1014, %v1235
    %v1240 = vadd.f32 %v1015, %v1236
    %v1241 = vxor.u32 %v1239, 2147483648
    %v1242 = vxor.u32 %v1240, 2147483648
    %v1243 = vmul.f32 %v1241, 1.442695
    %v1244 = vpow.pop %v1243
    %v1245 = vmul.f32 %v1242, 1.442695
    %v1246 = vpow.pop %v1245
    %v1247 = vadd.f32 %v1244, 1.0
    %v1248 = vadd.f32 %v1246, 1.0
    %v1249 = vrcp.pop %v1247
    %v1250 = vmul.f32 1.0, %v1249
    %v1251 = vrcp.pop %v1248
    %v1252 = vmul.f32 1.0, %v1251
    %v1255 = vrot.slane %v1158, 6
    %v1256 = vrot.slane %v1160, 6
    %v1259 = vadd.f32 %v1016, %v1255
    %v1260 = vadd.f32 %v1017, %v1256
    %v1261 = vxor.u32 %v1259, 2147483648
    %v1262 = vxor.u32 %v1260, 2147483648
    %v1263 = vmul.f32 %v1261, 1.442695
    %v1264 = vpow.pop %v1263
    %v1265 = vmul.f32 %v1262, 1.442695
    %v1266 = vpow.pop %v1265
    %v1267 = vadd.f32 %v1264, 1.0
    %v1268 = vadd.f32 %v1266, 1.0
    %v1269 = vrcp.pop %v1267
    %v1270 = vmul.f32 1.0, %v1269
    %v1271 = vrcp.pop %v1268
    %v1272 = vmul.f32 1.0, %v1271
    %v1275 = vrot.slane %v1229, 6
    %v1276 = vrot.slane %v1231, 6
    %v1279 = vmul.f32 %v1250, %v1275
    %v1280 = vmul.f32 %v1252, %v1276
    %v1281 = vadd.f32 %v1018, %v1279
    %v1282 = vadd.f32 %v1019, %v1280
    %v1283 = vtanh.pop %v1281
    %v1284 = vtanh.pop %v1282
    %v1285 = vsub.f32 1.0, %v1270
    %v1286 = vsub.f32 1.0, %v1272
    %v1287 = vmul.f32 %v1285, %v1283
    %v1288 = vmul.f32 %v1286, %v1284
    %v1291 = vrot.slane %v1012, 6
    %v1292 = vrot.slane %v1013, 6
    %v1295 = vmul.f32 %v1270, %v1291
    %v1296 = vmul.f32 %v1272, %v1292
    %v1297 = vadd.f32 %v1287, %v1295
    %v1298 = vadd.f32 %v1288, %v1296
    %v1299 = vld [vmem:[#allocation2] sm:$0x30]
    %v1300 = vld [vmem:[#allocation2 + $0x8] sm:$0x30]
    %v1301 = vld [vmem:[#allocation2 + $0x10] sm:$0x30]
    %v1302 = vld [vmem:[#allocation2 + $0x18] sm:$0x30]
    %v1303 = vld [vmem:[#allocation2 + $0x20] sm:$0x30]
    %v1304 = vld [vmem:[#allocation2 + $0x28] sm:$0x30]
    %v1307 = vrot.slane %v1297, 2
    %v1308 = vrot.slane %v1298, 2
    %1311 = vmatprep.subr.mxu0 %v530
    %1312 = vmatpush1.msra.mxu0 %v529
    %1313 = vmatprep.subr.mxu0 %v536
    %1314 = vmatpush1.msra.mxu0 %v535
    %1315 = vmatprep.subr.mxu0 %v542
    %1316 = vmatpush1.msra.mxu0 %v541
    %1317 = vmatprep.subr.mxu0 %v548
    %1318 = vmatpush1.msra.mxu0 %v547
    %1319 = vmatprep.subr.mxu0 %v554
    %1320 = vmatpush1.msra.mxu0 %v553
    %1321 = vmatprep.subr.mxu0 %v560
    %1322 = vmatpush1.msra.mxu0 %v559
    %1323 = vmatprep.subr.mxu0 %v566
    %1324 = vmatpush1.msra.mxu0 %v565
    %1325 = vmatprep.subr.mxu0 %v572
    %1326 = vmatpush1.msra.mxu0 %v571
    %1327 = vmatprep.subr.mxu0 %v578
    %1328 = vmatpush1.msra.mxu0 %v577
    %1329 = vmatprep.subr.mxu0 %v584
    %1330 = vmatpush1.msra.mxu0 %v583
    %1331 = vmatprep.subr.mxu0 %v590
    %1332 = vmatpush1.msra.mxu0 %v589
    %1333 = vmatprep.subr.mxu0 %v596
    %1334 = vmatpush1.msra.mxu0 %v595
    %1335 = vmatprep.subr.mxu0 %v602
    %1336 = vmatpush1.msra.mxu0 %v601
    %1337 = vmatprep.subr.mxu0 %v608
    %1338 = vmatpush1.msra.mxu0 %v607
    %1339 = vmatprep.subr.mxu0 %v614
    %1340 = vmatpush1.msra.mxu0 %v613
    %1341 = vmatprep.subr.mxu0 %v620
    %1342 = vmatpush1.msra.mxu0 %v619
    %1343 = vmatprep.subr.mxu0 %v626
    %1344 = vmatpush1.msra.mxu0 %v625
    %1345 = vmatprep.subr.mxu0 %v632
    %1346 = vmatpush1.msra.mxu0 %v631
    %1347 = vmatprep.subr.mxu0 %v638
    %1348 = vmatpush1.msra.mxu0 %v637
    %1349 = vmatprep.subr.mxu0 %v644
    %1350 = vmatpush1.msra.mxu0 %v643
    %1351 = vmatprep.subr.mxu0 %v650
    %1352 = vmatpush1.msra.mxu0 %v649
    %1353 = vmatprep.subr.mxu0 %v656
    %1354 = vmatpush1.msra.mxu0 %v655
    %1355 = vmatprep.subr.mxu0 %v662
    %1356 = vmatpush1.msra.mxu0 %v661
    %1357 = vmatprep.subr.mxu0 %v668
    %1358 = vmatpush1.msra.mxu0 %v667
    %1359 = vmatprep.subr.mxu0 %v674
    %1360 = vmatpush1.msra.mxu0 %v673
    %1361 = vmatprep.subr.mxu0 %v680
    %1362 = vmatpush1.msra.mxu0 %v679
    %1363 = vmatprep.subr.mxu0 %v686
    %1364 = vmatpush1.msra.mxu0 %v685
    %1365 = vmatprep.subr.mxu0 %v692
    %1366 = vmatpush1.msra.mxu0 %v691
    %1367 = vmatprep.subr.mxu0 %v698
    %1368 = vmatpush1.msra.mxu0 %v697
    %1369 = vmatprep.subr.mxu0 %v704
    %1370 = vmatpush1.msra.mxu0 %v703
    %1371 = vmatprep.subr.mxu0 %v710
    %1372 = vmatpush1.msra.mxu0 %v709
    %1373 = vmatprep.subr.mxu0 %v716
    %1374 = vmatpush1.msra.mxu0 %v715
    %1375 = vmatprep.mubr.f32.mxu0 %v1308
    %1376 = vmatmul.mubr.f32.gmra.mrb[0].mxu0 %v1307
    %v1377 = vpop.f32.mrb[0].mxu0
    %v1378 = vadd.f32 %v732, %v1377
    %v1379 = vpop.f32.mrb[0].mxu0
    %v1380 = vadd.f32 %v736, %v1379
    %1381 = vdwg.mxu0
    %1382 = vmatprep.subr.mxu0 %v532
    %1383 = vmatpush1.msra.mxu0 %v531
    %1384 = vmatprep.subr.mxu0 %v538
    %1385 = vmatpush1.msra.mxu0 %v537
    %1386 = vmatprep.subr.mxu0 %v544
    %1387 = vmatpush1.msra.mxu0 %v543
    %1388 = vmatprep.subr.mxu0 %v550
    %1389 = vmatpush1.msra.mxu0 %v549
    %1390 = vmatprep.subr.mxu0 %v556
    %1391 = vmatpush1.msra.mxu0 %v555
    %1392 = vmatprep.subr.mxu0 %v562
    %1393 = vmatpush1.msra.mxu0 %v561
    %1394 = vmatprep.subr.mxu0 %v568
    %1395 = vmatpush1.msra.mxu0 %v567
    %1396 = vmatprep.subr.mxu0 %v574
    %1397 = vmatpush1.msra.mxu0 %v573
    %1398 = vmatprep.subr.mxu0 %v580
    %1399 = vmatpush1.msra.mxu0 %v579
    %1400 = vmatprep.subr.mxu0 %v586
    %1401 = vmatpush1.msra.mxu0 %v585
    %1402 = vmatprep.subr.mxu0 %v592
    %1403 = vmatpush1.msra.mxu0 %v591
    %1404 = vmatprep.subr.mxu0 %v598
    %1405 = vmatpush1.msra.mxu0 %v597
    %1406 = vmatprep.subr.mxu0 %v604
    %1407 = vmatpush1.msra.mxu0 %v603
    %1408 = vmatprep.subr.mxu0 %v610
    %1409 = vmatpush1.msra.mxu0 %v609
    %1410 = vmatprep.subr.mxu0 %v616
    %1411 = vmatpush1.msra.mxu0 %v615
    %1412 = vmatprep.subr.mxu0 %v622
    %1413 = vmatpush1.msra.mxu0 %v621
    %1414 = vmatprep.subr.mxu0 %v628
    %1415 = vmatpush1.msra.mxu0 %v627
    %1416 = vmatprep.subr.mxu0 %v634
    %1417 = vmatpush1.msra.mxu0 %v633
    %1418 = vmatprep.subr.mxu0 %v640
    %1419 = vmatpush1.msra.mxu0 %v639
    %1420 = vmatprep.subr.mxu0 %v646
    %1421 = vmatpush1.msra.mxu0 %v645
    %1422 = vmatprep.subr.mxu0 %v652
    %1423 = vmatpush1.msra.mxu0 %v651
    %1424 = vmatprep.subr.mxu0 %v658
    %1425 = vmatpush1.msra.mxu0 %v657
    %1426 = vmatprep.subr.mxu0 %v664
    %1427 = vmatpush1.msra.mxu0 %v663
    %1428 = vmatprep.subr.mxu0 %v670
    %1429 = vmatpush1.msra.mxu0 %v669
    %1430 = vmatprep.subr.mxu0 %v676
    %1431 = vmatpush1.msra.mxu0 %v675
    %1432 = vmatprep.subr.mxu0 %v682
    %1433 = vmatpush1.msra.mxu0 %v681
    %1434 = vmatprep.subr.mxu0 %v688
    %1435 = vmatpush1.msra.mxu0 %v687
    %1436 = vmatprep.subr.mxu0 %v694
    %1437 = vmatpush1.msra.mxu0 %v693
    %1438 = vmatprep.subr.mxu0 %v700
    %1439 = vmatpush1.msra.mxu0 %v699
    %1440 = vmatprep.subr.mxu0 %v706
    %1441 = vmatpush1.msra.mxu0 %v705
    %1442 = vmatprep.subr.mxu0 %v712
    %1443 = vmatpush1.msra.mxu0 %v711
    %1444 = vmatprep.subr.mxu0 %v718
    %1445 = vmatpush1.msra.mxu0 %v717
    %1446 = vmatprep.mubr.f32.mxu0 %v1308
    %1447 = vmatmul.mubr.f32.gmra.mrb[0].mxu0 %v1307
    %v1448 = vpop.f32.mrb[0].mxu0
    %v1449 = vadd.f32 %v740, %v1448
    %v1450 = vpop.f32.mrb[0].mxu0
    %v1451 = vadd.f32 %v744, %v1450
    %1452 = vdwg.mxu0
    %1453 = vmatprep.subr.mxu0 %v534
    %1454 = vmatpush1.msra.mxu0 %v533
    %1455 = vmatprep.subr.mxu0 %v540
    %1456 = vmatpush1.msra.mxu0 %v539
    %1457 = vmatprep.subr.mxu0 %v546
    %1458 = vmatpush1.msra.mxu0 %v545
    %1459 = vmatprep.subr.mxu0 %v552
    %1460 = vmatpush1.msra.mxu0 %v551
    %1461 = vmatprep.subr.mxu0 %v558
    %1462 = vmatpush1.msra.mxu0 %v557
    %1463 = vmatprep.subr.mxu0 %v564
    %1464 = vmatpush1.msra.mxu0 %v563
    %1465 = vmatprep.subr.mxu0 %v570
    %1466 = vmatpush1.msra.mxu0 %v569
    %1467 = vmatprep.subr.mxu0 %v576
    %1468 = vmatpush1.msra.mxu0 %v575
    %1469 = vmatprep.subr.mxu0 %v582
    %1470 = vmatpush1.msra.mxu0 %v581
    %1471 = vmatprep.subr.mxu0 %v588
    %1472 = vmatpush1.msra.mxu0 %v587
    %1473 = vmatprep.subr.mxu0 %v594
    %1474 = vmatpush1.msra.mxu0 %v593
    %1475 = vmatprep.subr.mxu0 %v600
    %1476 = vmatpush1.msra.mxu0 %v599
    %1477 = vmatprep.subr.mxu0 %v606
    %1478 = vmatpush1.msra.mxu0 %v605
    %1479 = vmatprep.subr.mxu0 %v612
    %1480 = vmatpush1.msra.mxu0 %v611
    %1481 = vmatprep.subr.mxu0 %v618
    %1482 = vmatpush1.msra.mxu0 %v617
    %1483 = vmatprep.subr.mxu0 %v624
    %1484 = vmatpush1.msra.mxu0 %v623
    %1485 = vmatprep.subr.mxu0 %v630
    %1486 = vmatpush1.msra.mxu0 %v629
    %1487 = vmatprep.subr.mxu0 %v636
    %1488 = vmatpush1.msra.mxu0 %v635
    %1489 = vmatprep.subr.mxu0 %v642
    %1490 = vmatpush1.msra.mxu0 %v641
    %1491 = vmatprep.subr.mxu0 %v648
    %1492 = vmatpush1.msra.mxu0 %v647
    %1493 = vmatprep.subr.mxu0 %v654
    %1494 = vmatpush1.msra.mxu0 %v653
    %1495 = vmatprep.subr.mxu0 %v660
    %1496 = vmatpush1.msra.mxu0 %v659
    %1497 = vmatprep.subr.mxu0 %v666
    %1498 = vmatpush1.msra.mxu0 %v665
    %1499 = vmatprep.subr.mxu0 %v672
    %1500 = vmatpush1.msra.mxu0 %v671
    %1501 = vmatprep.subr.mxu0 %v678
    %1502 = vmatpush1.msra.mxu0 %v677
    %1503 = vmatprep.subr.mxu0 %v684
    %1504 = vmatpush1.msra.mxu0 %v683
    %1505 = vmatprep.subr.mxu0 %v690
    %1506 = vmatpush1.msra.mxu0 %v689
    %1507 = vmatprep.subr.mxu0 %v696
    %1508 = vmatpush1.msra.mxu0 %v695
    %1509 = vmatprep.subr.mxu0 %v702
    %1510 = vmatpush1.msra.mxu0 %v701
    %1511 = vmatprep.subr.mxu0 %v708
    %1512 = vmatpush1.msra.mxu0 %v707
    %1513 = vmatprep.subr.mxu0 %v714
    %1514 = vmatpush1.msra.mxu0 %v713
    %1515 = vmatprep.subr.mxu0 %v720
    %1516 = vmatpush1.msra.mxu0 %v719
    %1517 = vmatprep.mubr.f32.mxu0 %v1308
    %1518 = vmatmul.mubr.f32.gmra.mrb[0].mxu0 %v1307
    %v1519 = vpop.f32.mrb[0].mxu0
    %v1520 = vadd.f32 %v748, %v1519
    %v1521 = vpop.f32.mrb[0].mxu0
    %v1522 = vadd.f32 %v752, %v1521
    %1523 = vdwg.mxu0
    %v1526 = vrot.slane %v1378, 4
    %v1527 = vrot.slane %v1380, 4
    %v1530 = vadd.f32 %v1299, %v1526
    %v1531 = vadd.f32 %v1300, %v1527
    %v1532 = vxor.u32 %v1530, 2147483648
    %v1533 = vxor.u32 %v1531, 2147483648
    %v1534 = vmul.f32 %v1532, 1.442695
    %v1535 = vpow.pop %v1534
    %v1536 = vmul.f32 %v1533, 1.442695
    %v1537 = vpow.pop %v1536
    %v1538 = vadd.f32 %v1535, 1.0
    %v1539 = vadd.f32 %v1537, 1.0
    %v1540 = vrcp.pop %v1538
    %v1541 = vmul.f32 1.0, %v1540
    %v1542 = vrcp.pop %v1539
    %v1543 = vmul.f32 1.0, %v1542
    %v1546 = vrot.slane %v1449, 4
    %v1547 = vrot.slane %v1451, 4
    %v1550 = vadd.f32 %v1301, %v1546
    %v1551 = vadd.f32 %v1302, %v1547
    %v1552 = vxor.u32 %v1550, 2147483648
    %v1553 = vxor.u32 %v1551, 2147483648
    %v1554 = vmul.f32 %v1552, 1.442695
    %v1555 = vpow.pop %v1554
    %v1556 = vmul.f32 %v1553, 1.442695
    %v1557 = vpow.pop %v1556
    %v1558 = vadd.f32 %v1555, 1.0
    %v1559 = vadd.f32 %v1557, 1.0
    %v1560 = vrcp.pop %v1558
    %v1561 = vmul.f32 1.0, %v1560
    %v1562 = vrcp.pop %v1559
    %v1563 = vmul.f32 1.0, %v1562
    %v1566 = vrot.slane %v1520, 4
    %v1567 = vrot.slane %v1522, 4
    %v1570 = vmul.f32 %v1541, %v1566
    %v1571 = vmul.f32 %v1543, %v1567
    %v1572 = vadd.f32 %v1303, %v1570
    %v1573 = vadd.f32 %v1304, %v1571
    %v1574 = vtanh.pop %v1572
    %v1575 = vtanh.pop %v1573
    %v1576 = vsub.f32 1.0, %v1561
    %v1577 = vsub.f32 1.0, %v1563
    %v1578 = vmul.f32 %v1576, %v1574
    %v1579 = vmul.f32 %v1577, %v1575
    %v1580 = vrot.slane %v1297, 6
    %v1581 = vrot.slane %v1298, 6
    %v1584 = vmul.f32 %v1561, %v1580
    %v1585 = vmul.f32 %v1563, %v1581
    %v1586 = vadd.f32 %v1578, %v1584
    %v1587 = vadd.f32 %v1579, %v1585
    %v1588 = vld [vmem:[#allocation2] sm:$0xc0]
    %v1589 = vld [vmem:[#allocation2 + $0x8] sm:$0xc0]
    %v1590 = vld [vmem:[#allocation2 + $0x10] sm:$0xc0]
    %v1591 = vld [vmem:[#allocation2 + $0x18] sm:$0xc0]
    %v1592 = vld [vmem:[#allocation2 + $0x20] sm:$0xc0]
    %v1593 = vld [vmem:[#allocation2 + $0x28] sm:$0xc0]
    %v1596 = vrot.slane %v1586, 4
    %v1597 = vrot.slane %v1587, 4
    %1600 = vmatprep.subr.mxu0 %v530
    %1601 = vmatpush1.msra.mxu0 %v529
    %1602 = vmatprep.subr.mxu0 %v536
    %1603 = vmatpush1.msra.mxu0 %v535
    %1604 = vmatprep.subr.mxu0 %v542
    %1605 = vmatpush1.msra.mxu0 %v541
    %1606 = vmatprep.subr.mxu0 %v548
    %1607 = vmatpush1.msra.mxu0 %v547
    %1608 = vmatprep.subr.mxu0 %v554
    %1609 = vmatpush1.msra.mxu0 %v553
    %1610 = vmatprep.subr.mxu0 %v560
    %1611 = vmatpush1.msra.mxu0 %v559
    %1612 = vmatprep.subr.mxu0 %v566
    %1613 = vmatpush1.msra.mxu0 %v565
    %1614 = vmatprep.subr.mxu0 %v572
    %1615 = vmatpush1.msra.mxu0 %v571
    %1616 = vmatprep.subr.mxu0 %v578
    %1617 = vmatpush1.msra.mxu0 %v577
    %1618 = vmatprep.subr.mxu0 %v584
    %1619 = vmatpush1.msra.mxu0 %v583
    %1620 = vmatprep.subr.mxu0 %v590
    %1621 = vmatpush1.msra.mxu0 %v589
    %1622 = vmatprep.subr.mxu0 %v596
    %1623 = vmatpush1.msra.mxu0 %v595
    %1624 = vmatprep.subr.mxu0 %v602
    %1625 = vmatpush1.msra.mxu0 %v601
    %1626 = vmatprep.subr.mxu0 %v608
    %1627 = vmatpush1.msra.mxu0 %v607
    %1628 = vmatprep.subr.mxu0 %v614
    %1629 = vmatpush1.msra.mxu0 %v613
    %1630 = vmatprep.subr.mxu0 %v620
    %1631 = vmatpush1.msra.mxu0 %v619
    %1632 = vmatprep.subr.mxu0 %v626
    %1633 = vmatpush1.msra.mxu0 %v625
    %1634 = vmatprep.subr.mxu0 %v632
    %1635 = vmatpush1.msra.mxu0 %v631
    %1636 = vmatprep.subr.mxu0 %v638
    %1637 = vmatpush1.msra.mxu0 %v637
    %1638 = vmatprep.subr.mxu0 %v644
    %1639 = vmatpush1.msra.mxu0 %v643
    %1640 = vmatprep.subr.mxu0 %v650
    %1641 = vmatpush1.msra.mxu0 %v649
    %1642 = vmatprep.subr.mxu0 %v656
    %1643 = vmatpush1.msra.mxu0 %v655
    %1644 = vmatprep.subr.mxu0 %v662
    %1645 = vmatpush1.msra.mxu0 %v661
    %1646 = vmatprep.subr.mxu0 %v668
    %1647 = vmatpush1.msra.mxu0 %v667
    %1648 = vmatprep.subr.mxu0 %v674
    %1649 = vmatpush1.msra.mxu0 %v673
    %1650 = vmatprep.subr.mxu0 %v680
    %1651 = vmatpush1.msra.mxu0 %v679
    %1652 = vmatprep.subr.mxu0 %v686
    %1653 = vmatpush1.msra.mxu0 %v685
    %1654 = vmatprep.subr.mxu0 %v692
    %1655 = vmatpush1.msra.mxu0 %v691
    %1656 = vmatprep.subr.mxu0 %v698
    %1657 = vmatpush1.msra.mxu0 %v697
    %1658 = vmatprep.subr.mxu0 %v704
    %1659 = vmatpush1.msra.mxu0 %v703
    %1660 = vmatprep.subr.mxu0 %v710
    %1661 = vmatpush1.msra.mxu0 %v709
    %1662 = vmatprep.subr.mxu0 %v716
    %1663 = vmatpush1.msra.mxu0 %v715
    %1664 = vmatprep.mubr.f32.mxu0 %v1597
    %1665 = vmatmul.mubr.f32.gmra.mrb[0].mxu0 %v1596
    %v1666 = vpop.f32.mrb[0].mxu0
    %v1667 = vadd.f32 %v732, %v1666
    %v1668 = vpop.f32.mrb[0].mxu0
    %v1669 = vadd.f32 %v736, %v1668
    %1670 = vdwg.mxu0
    %1671 = vmatprep.subr.mxu0 %v532
    %1672 = vmatpush1.msra.mxu0 %v531
    %1673 = vmatprep.subr.mxu0 %v538
    %1674 = vmatpush1.msra.mxu0 %v537
    %1675 = vmatprep.subr.mxu0 %v544
    %1676 = vmatpush1.msra.mxu0 %v543
    %1677 = vmatprep.subr.mxu0 %v550
    %1678 = vmatpush1.msra.mxu0 %v549
    %1679 = vmatprep.subr.mxu0 %v556
    %1680 = vmatpush1.msra.mxu0 %v555
    %1681 = vmatprep.subr.mxu0 %v562
    %1682 = vmatpush1.msra.mxu0 %v561
    %1683 = vmatprep.subr.mxu0 %v568
    %1684 = vmatpush1.msra.mxu0 %v567
    %1685 = vmatprep.subr.mxu0 %v574
    %1686 = vmatpush1.msra.mxu0 %v573
    %1687 = vmatprep.subr.mxu0 %v580
    %1688 = vmatpush1.msra.mxu0 %v579
    %1689 = vmatprep.subr.mxu0 %v586
    %1690 = vmatpush1.msra.mxu0 %v585
    %1691 = vmatprep.subr.mxu0 %v592
    %1692 = vmatpush1.msra.mxu0 %v591
    %1693 = vmatprep.subr.mxu0 %v598
    %1694 = vmatpush1.msra.mxu0 %v597
    %1695 = vmatprep.subr.mxu0 %v604
    %1696 = vmatpush1.msra.mxu0 %v603
    %1697 = vmatprep.subr.mxu0 %v610
    %1698 = vmatpush1.msra.mxu0 %v609
    %1699 = vmatprep.subr.mxu0 %v616
    %1700 = vmatpush1.msra.mxu0 %v615
    %1701 = vmatprep.subr.mxu0 %v622
    %1702 = vmatpush1.msra.mxu0 %v621
    %1703 = vmatprep.subr.mxu0 %v628
    %1704 = vmatpush1.msra.mxu0 %v627
    %1705 = vmatprep.subr.mxu0 %v634
    %1706 = vmatpush1.msra.mxu0 %v633
    %1707 = vmatprep.subr.mxu0 %v640
    %1708 = vmatpush1.msra.mxu0 %v639
    %1709 = vmatprep.subr.mxu0 %v646
    %1710 = vmatpush1.msra.mxu0 %v645
    %1711 = vmatprep.subr.mxu0 %v652
    %1712 = vmatpush1.msra.mxu0 %v651
    %1713 = vmatprep.subr.mxu0 %v658
    %1714 = vmatpush1.msra.mxu0 %v657
    %1715 = vmatprep.subr.mxu0 %v664
    %1716 = vmatpush1.msra.mxu0 %v663
    %1717 = vmatprep.subr.mxu0 %v670
    %1718 = vmatpush1.msra.mxu0 %v669
    %1719 = vmatprep.subr.mxu0 %v676
    %1720 = vmatpush1.msra.mxu0 %v675
    %1721 = vmatprep.subr.mxu0 %v682
    %1722 = vmatpush1.msra.mxu0 %v681
    %1723 = vmatprep.subr.mxu0 %v688
    %1724 = vmatpush1.msra.mxu0 %v687
    %1725 = vmatprep.subr.mxu0 %v694
    %1726 = vmatpush1.msra.mxu0 %v693
    %1727 = vmatprep.subr.mxu0 %v700
    %1728 = vmatpush1.msra.mxu0 %v699
    %1729 = vmatprep.subr.mxu0 %v706
    %1730 = vmatpush1.msra.mxu0 %v705
    %1731 = vmatprep.subr.mxu0 %v712
    %1732 = vmatpush1.msra.mxu0 %v711
    %1733 = vmatprep.subr.mxu0 %v718
    %1734 = vmatpush1.msra.mxu0 %v717
    %1735 = vmatprep.mubr.f32.mxu0 %v1597
    %1736 = vmatmul.mubr.f32.gmra.mrb[0].mxu0 %v1596
    %v1737 = vpop.f32.mrb[0].mxu0
    %v1738 = vadd.f32 %v740, %v1737
    %v1739 = vpop.f32.mrb[0].mxu0
    %v1740 = vadd.f32 %v744, %v1739
    %1741 = vdwg.mxu0
    %1742 = vmatprep.subr.mxu0 %v534
    %1743 = vmatpush1.msra.mxu0 %v533
    %1744 = vmatprep.subr.mxu0 %v540
    %1745 = vmatpush1.msra.mxu0 %v539
    %1746 = vmatprep.subr.mxu0 %v546
    %1747 = vmatpush1.msra.mxu0 %v545
    %1748 = vmatprep.subr.mxu0 %v552
    %1749 = vmatpush1.msra.mxu0 %v551
    %1750 = vmatprep.subr.mxu0 %v558
    %1751 = vmatpush1.msra.mxu0 %v557
    %1752 = vmatprep.subr.mxu0 %v564
    %1753 = vmatpush1.msra.mxu0 %v563
    %1754 = vmatprep.subr.mxu0 %v570
    %1755 = vmatpush1.msra.mxu0 %v569
    %1756 = vmatprep.subr.mxu0 %v576
    %1757 = vmatpush1.msra.mxu0 %v575
    %1758 = vmatprep.subr.mxu0 %v582
    %1759 = vmatpush1.msra.mxu0 %v581
    %1760 = vmatprep.subr.mxu0 %v588
    %1761 = vmatpush1.msra.mxu0 %v587
    %1762 = vmatprep.subr.mxu0 %v594
    %1763 = vmatpush1.msra.mxu0 %v593
    %1764 = vmatprep.subr.mxu0 %v600
    %1765 = vmatpush1.msra.mxu0 %v599
    %1766 = vmatprep.subr.mxu0 %v606
    %1767 = vmatpush1.msra.mxu0 %v605
    %1768 = vmatprep.subr.mxu0 %v612
    %1769 = vmatpush1.msra.mxu0 %v611
    %1770 = vmatprep.subr.mxu0 %v618
    %1771 = vmatpush1.msra.mxu0 %v617
    %1772 = vmatprep.subr.mxu0 %v624
    %1773 = vmatpush1.msra.mxu0 %v623
    %1774 = vmatprep.subr.mxu0 %v630
    %1775 = vmatpush1.msra.mxu0 %v629
    %1776 = vmatprep.subr.mxu0 %v636
    %1777 = vmatpush1.msra.mxu0 %v635
    %1778 = vmatprep.subr.mxu0 %v642
    %1779 = vmatpush1.msra.mxu0 %v641
    %1780 = vmatprep.subr.mxu0 %v648
    %1781 = vmatpush1.msra.mxu0 %v647
    %1782 = vmatprep.subr.mxu0 %v654
    %1783 = vmatpush1.msra.mxu0 %v653
    %1784 = vmatprep.subr.mxu0 %v660
    %1785 = vmatpush1.msra.mxu0 %v659
    %1786 = vmatprep.subr.mxu0 %v666
    %1787 = vmatpush1.msra.mxu0 %v665
    %1788 = vmatprep.subr.mxu0 %v672
    %1789 = vmatpush1.msra.mxu0 %v671
    %1790 = vmatprep.subr.mxu0 %v678
    %1791 = vmatpush1.msra.mxu0 %v677
    %1792 = vmatprep.subr.mxu0 %v684
    %1793 = vmatpush1.msra.mxu0 %v683
    %1794 = vmatprep.subr.mxu0 %v690
    %1795 = vmatpush1.msra.mxu0 %v689
    %1796 = vmatprep.subr.mxu0 %v696
    %1797 = vmatpush1.msra.mxu0 %v695
    %1798 = vmatprep.subr.mxu0 %v702
    %1799 = vmatpush1.msra.mxu0 %v701
    %1800 = vmatprep.subr.mxu0 %v708
    %1801 = vmatpush1.msra.mxu0 %v707
    %1802 = vmatprep.subr.mxu0 %v714
    %1803 = vmatpush1.msra.mxu0 %v713
    %1804 = vmatprep.subr.mxu0 %v720
    %1805 = vmatpush1.msra.mxu0 %v719
    %1806 = vmatprep.mubr.f32.mxu0 %v1597
    %1807 = vmatmul.mubr.f32.gmra.mrb[0].mxu0 %v1596
    %v1808 = vpop.f32.mrb[0].mxu0
    %v1809 = vadd.f32 %v748, %v1808
    %v1810 = vpop.f32.mrb[0].mxu0
    %v1811 = vadd.f32 %v752, %v1810
    %1812 = vdwg.mxu0
    %v1815 = vrot.slane %v1667, 2
    %v1816 = vrot.slane %v1669, 2
    %v1819 = vadd.f32 %v1588, %v1815
    %v1820 = vadd.f32 %v1589, %v1816
    %v1821 = vxor.u32 %v1819, 2147483648
    %v1822 = vxor.u32 %v1820, 2147483648
    %v1823 = vmul.f32 %v1821, 1.442695
    %v1824 = vpow.pop %v1823
    %v1825 = vmul.f32 %v1822, 1.442695
    %v1826 = vpow.pop %v1825
    %v1827 = vadd.f32 %v1824, 1.0
    %v1828 = vadd.f32 %v1826, 1.0
    %v1829 = vrcp.pop %v1827
    %v1830 = vmul.f32 1.0, %v1829
    %v1831 = vrcp.pop %v1828
    %v1832 = vmul.f32 1.0, %v1831
    %v1835 = vrot.slane %v1738, 2
    %v1836 = vrot.slane %v1740, 2
    %v1839 = vadd.f32 %v1590, %v1835
    %v1840 = vadd.f32 %v1591, %v1836
    %v1841 = vxor.u32 %v1839, 2147483648
    %v1842 = vxor.u32 %v1840, 2147483648
    %v1843 = vmul.f32 %v1841, 1.442695
    %v1844 = vpow.pop %v1843
    %v1845 = vmul.f32 %v1842, 1.442695
    %v1846 = vpow.pop %v1845
    %v1847 = vadd.f32 %v1844, 1.0
    %v1848 = vadd.f32 %v1846, 1.0
    %v1849 = vrcp.pop %v1847
    %v1850 = vmul.f32 1.0, %v1849
    %v1851 = vrcp.pop %v1848
    %v1852 = vmul.f32 1.0, %v1851
    %v1855 = vrot.slane %v1809, 2
    %v1856 = vrot.slane %v1811, 2
    %v1859 = vmul.f32 %v1830, %v1855
    %v1860 = vmul.f32 %v1832, %v1856
    %v1861 = vadd.f32 %v1592, %v1859
    %v1862 = vadd.f32 %v1593, %v1860
    %v1863 = vtanh.pop %v1861
    %v1864 = vtanh.pop %v1862
    %v1865 = vsub.f32 1.0, %v1850
    %v1866 = vsub.f32 1.0, %v1852
    %v1867 = vmul.f32 %v1865, %v1863
    %v1868 = vmul.f32 %v1866, %v1864
    %v1869 = vrot.slane %v1586, 6
    %v1870 = vrot.slane %v1587, 6
    %v1873 = vmul.f32 %v1850, %v1869
    %v1874 = vmul.f32 %v1852, %v1870
    %v1875 = vadd.f32 %v1867, %v1873
    %v1876 = vadd.f32 %v1868, %v1874
    %v1877 = vld [vmem:[#allocation2 + $0x30] sm:$0x3]
    %v1878 = vld [vmem:[#allocation2 + $0x38] sm:$0x3]
    %v1879 = vld [vmem:[#allocation2 + $0x40] sm:$0x3]
    %v1880 = vld [vmem:[#allocation2 + $0x48] sm:$0x3]
    %v1881 = vld [vmem:[#allocation2 + $0x50] sm:$0x3]
    %v1882 = vld [vmem:[#allocation2 + $0x58] sm:$0x3]
    %v1885 = vrot.slane %v1875, 6
    %v1886 = vrot.slane %v1876, 6
    %1889 = vmatprep.subr.mxu0 %v530
    %1890 = vmatpush1.msra.mxu0 %v529
    %1891 = vmatprep.subr.mxu0 %v536
    %1892 = vmatpush1.msra.mxu0 %v535
    %1893 = vmatprep.subr.mxu0 %v542
    %1894 = vmatpush1.msra.mxu0 %v541
    %1895 = vmatprep.subr.mxu0 %v548
    %1896 = vmatpush1.msra.mxu0 %v547
    %1897 = vmatprep.subr.mxu0 %v554
    %1898 = vmatpush1.msra.mxu0 %v553
    %1899 = vmatprep.subr.mxu0 %v560
    %1900 = vmatpush1.msra.mxu0 %v559
    %1901 = vmatprep.subr.mxu0 %v566
    %1902 = vmatpush1.msra.mxu0 %v565
    %1903 = vmatprep.subr.mxu0 %v572
    %1904 = vmatpush1.msra.mxu0 %v571
    %1905 = vmatprep.subr.mxu0 %v578
    %1906 = vmatpush1.msra.mxu0 %v577
    %1907 = vmatprep.subr.mxu0 %v584
    %1908 = vmatpush1.msra.mxu0 %v583
    %1909 = vmatprep.subr.mxu0 %v590
    %1910 = vmatpush1.msra.mxu0 %v589
    %1911 = vmatprep.subr.mxu0 %v596
    %1912 = vmatpush1.msra.mxu0 %v595
    %1913 = vmatprep.subr.mxu0 %v602
    %1914 = vmatpush1.msra.mxu0 %v601
    %1915 = vmatprep.subr.mxu0 %v608
    %1916 = vmatpush1.msra.mxu0 %v607
    %1917 = vmatprep.subr.mxu0 %v614
    %1918 = vmatpush1.msra.mxu0 %v613
    %1919 = vmatprep.subr.mxu0 %v620
    %1920 = vmatpush1.msra.mxu0 %v619
    %1921 = vmatprep.subr.mxu0 %v626
    %1922 = vmatpush1.msra.mxu0 %v625
    %1923 = vmatprep.subr.mxu0 %v632
    %1924 = vmatpush1.msra.mxu0 %v631
    %1925 = vmatprep.subr.mxu0 %v638
    %1926 = vmatpush1.msra.mxu0 %v637
    %1927 = vmatprep.subr.mxu0 %v644
    %1928 = vmatpush1.msra.mxu0 %v643
    %1929 = vmatprep.subr.mxu0 %v650
    %1930 = vmatpush1.msra.mxu0 %v649
    %1931 = vmatprep.subr.mxu0 %v656
    %1932 = vmatpush1.msra.mxu0 %v655
    %1933 = vmatprep.subr.mxu0 %v662
    %1934 = vmatpush1.msra.mxu0 %v661
    %1935 = vmatprep.subr.mxu0 %v668
    %1936 = vmatpush1.msra.mxu0 %v667
    %1937 = vmatprep.subr.mxu0 %v674
    %1938 = vmatpush1.msra.mxu0 %v673
    %1939 = vmatprep.subr.mxu0 %v680
    %1940 = vmatpush1.msra.mxu0 %v679
    %1941 = vmatprep.subr.mxu0 %v686
    %1942 = vmatpush1.msra.mxu0 %v685
    %1943 = vmatprep.subr.mxu0 %v692
    %1944 = vmatpush1.msra.mxu0 %v691
    %1945 = vmatprep.subr.mxu0 %v698
    %1946 = vmatpush1.msra.mxu0 %v697
    %1947 = vmatprep.subr.mxu0 %v704
    %1948 = vmatpush1.msra.mxu0 %v703
    %1949 = vmatprep.subr.mxu0 %v710
    %1950 = vmatpush1.msra.mxu0 %v709
    %1951 = vmatprep.subr.mxu0 %v716
    %1952 = vmatpush1.msra.mxu0 %v715
    %1953 = vmatprep.mubr.f32.mxu0 %v1886
    %1954 = vmatmul.mubr.f32.gmra.mrb[0].mxu0 %v1885
    %v1955 = vpop.f32.mrb[0].mxu0
    %v1956 = vadd.f32 %v732, %v1955
    %v1957 = vpop.f32.mrb[0].mxu0
    %v1958 = vadd.f32 %v736, %v1957
    %1959 = vdwg.mxu0
    %1960 = vmatprep.subr.mxu0 %v532
    %1961 = vmatpush1.msra.mxu0 %v531
    %1962 = vmatprep.subr.mxu0 %v538
    %1963 = vmatpush1.msra.mxu0 %v537
    %1964 = vmatprep.subr.mxu0 %v544
    %1965 = vmatpush1.msra.mxu0 %v543
    %1966 = vmatprep.subr.mxu0 %v550
    %1967 = vmatpush1.msra.mxu0 %v549
    %1968 = vmatprep.subr.mxu0 %v556
    %1969 = vmatpush1.msra.mxu0 %v555
    %1970 = vmatprep.subr.mxu0 %v562
    %1971 = vmatpush1.msra.mxu0 %v561
    %1972 = vmatprep.subr.mxu0 %v568
    %1973 = vmatpush1.msra.mxu0 %v567
    %1974 = vmatprep.subr.mxu0 %v574
    %1975 = vmatpush1.msra.mxu0 %v573
    %1976 = vmatprep.subr.mxu0 %v580
    %1977 = vmatpush1.msra.mxu0 %v579
    %1978 = vmatprep.subr.mxu0 %v586
    %1979 = vmatpush1.msra.mxu0 %v585
    %1980 = vmatprep.subr.mxu0 %v592
    %1981 = vmatpush1.msra.mxu0 %v591
    %1982 = vmatprep.subr.mxu0 %v598
    %1983 = vmatpush1.msra.mxu0 %v597
    %1984 = vmatprep.subr.mxu0 %v604
    %1985 = vmatpush1.msra.mxu0 %v603
    %1986 = vmatprep.subr.mxu0 %v610
    %1987 = vmatpush1.msra.mxu0 %v609
    %1988 = vmatprep.subr.mxu0 %v616
    %1989 = vmatpush1.msra.mxu0 %v615
    %1990 = vmatprep.subr.mxu0 %v622
    %1991 = vmatpush1.msra.mxu0 %v621
    %1992 = vmatprep.subr.mxu0 %v628
    %1993 = vmatpush1.msra.mxu0 %v627
    %1994 = vmatprep.subr.mxu0 %v634
    %1995 = vmatpush1.msra.mxu0 %v633
    %1996 = vmatprep.subr.mxu0 %v640
    %1997 = vmatpush1.msra.mxu0 %v639
    %1998 = vmatprep.subr.mxu0 %v646
    %1999 = vmatpush1.msra.mxu0 %v645
    %2000 = vmatprep.subr.mxu0 %v652
    %2001 = vmatpush1.msra.mxu0 %v651
    %2002 = vmatprep.subr.mxu0 %v658
    %2003 = vmatpush1.msra.mxu0 %v657
    %2004 = vmatprep.subr.mxu0 %v664
    %2005 = vmatpush1.msra.mxu0 %v663
    %2006 = vmatprep.subr.mxu0 %v670
    %2007 = vmatpush1.msra.mxu0 %v669
    %2008 = vmatprep.subr.mxu0 %v676
    %2009 = vmatpush1.msra.mxu0 %v675
    %2010 = vmatprep.subr.mxu0 %v682
    %2011 = vmatpush1.msra.mxu0 %v681
    %2012 = vmatprep.subr.mxu0 %v688
    %2013 = vmatpush1.msra.mxu0 %v687
    %2014 = vmatprep.subr.mxu0 %v694
    %2015 = vmatpush1.msra.mxu0 %v693
    %2016 = vmatprep.subr.mxu0 %v700
    %2017 = vmatpush1.msra.mxu0 %v699
    %2018 = vmatprep.subr.mxu0 %v706
    %2019 = vmatpush1.msra.mxu0 %v705
    %2020 = vmatprep.subr.mxu0 %v712
    %2021 = vmatpush1.msra.mxu0 %v711
    %2022 = vmatprep.subr.mxu0 %v718
    %2023 = vmatpush1.msra.mxu0 %v717
    %2024 = vmatprep.mubr.f32.mxu0 %v1886
    %2025 = vmatmul.mubr.f32.gmra.mrb[0].mxu0 %v1885
    %v2026 = vpop.f32.mrb[0].mxu0
    %v2027 = vadd.f32 %v740, %v2026
    %v2028 = vpop.f32.mrb[0].mxu0
    %v2029 = vadd.f32 %v744, %v2028
    %2030 = vdwg.mxu0
    %2031 = vmatprep.subr.mxu0 %v534
    %2032 = vmatpush1.msra.mxu0 %v533
    %2033 = vmatprep.subr.mxu0 %v540
    %2034 = vmatpush1.msra.mxu0 %v539
    %2035 = vmatprep.subr.mxu0 %v546
    %2036 = vmatpush1.msra.mxu0 %v545
    %2037 = vmatprep.subr.mxu0 %v552
    %2038 = vmatpush1.msra.mxu0 %v551
    %2039 = vmatprep.subr.mxu0 %v558
    %2040 = vmatpush1.msra.mxu0 %v557
    %2041 = vmatprep.subr.mxu0 %v564
    %2042 = vmatpush1.msra.mxu0 %v563
    %2043 = vmatprep.subr.mxu0 %v570
    %2044 = vmatpush1.msra.mxu0 %v569
    %2045 = vmatprep.subr.mxu0 %v576
    %2046 = vmatpush1.msra.mxu0 %v575
    %2047 = vmatprep.subr.mxu0 %v582
    %2048 = vmatpush1.msra.mxu0 %v581
    %2049 = vmatprep.subr.mxu0 %v588
    %2050 = vmatpush1.msra.mxu0 %v587
    %2051 = vmatprep.subr.mxu0 %v594
    %2052 = vmatpush1.msra.mxu0 %v593
    %2053 = vmatprep.subr.mxu0 %v600
    %2054 = vmatpush1.msra.mxu0 %v599
    %2055 = vmatprep.subr.mxu0 %v606
    %2056 = vmatpush1.msra.mxu0 %v605
    %2057 = vmatprep.subr.mxu0 %v612
    %2058 = vmatpush1.msra.mxu0 %v611
    %2059 = vmatprep.subr.mxu0 %v618
    %2060 = vmatpush1.msra.mxu0 %v617
    %2061 = vmatprep.subr.mxu0 %v624
    %2062 = vmatpush1.msra.mxu0 %v623
    %2063 = vmatprep.subr.mxu0 %v630
    %2064 = vmatpush1.msra.mxu0 %v629
    %2065 = vmatprep.subr.mxu0 %v636
    %2066 = vmatpush1.msra.mxu0 %v635
    %2067 = vmatprep.subr.mxu0 %v642
    %2068 = vmatpush1.msra.mxu0 %v641
    %2069 = vmatprep.subr.mxu0 %v648
    %2070 = vmatpush1.msra.mxu0 %v647
    %2071 = vmatprep.subr.mxu0 %v654
    %2072 = vmatpush1.msra.mxu0 %v653
    %2073 = vmatprep.subr.mxu0 %v660
    %2074 = vmatpush1.msra.mxu0 %v659
    %2075 = vmatprep.subr.mxu0 %v666
    %2076 = vmatpush1.msra.mxu0 %v665
    %2077 = vmatprep.subr.mxu0 %v672
    %2078 = vmatpush1.msra.mxu0 %v671
    %2079 = vmatprep.subr.mxu0 %v678
    %2080 = vmatpush1.msra.mxu0 %v677
    %2081 = vmatprep.subr.mxu0 %v684
    %2082 = vmatpush1.msra.mxu0 %v683
    %2083 = vmatprep.subr.mxu0 %v690
    %2084 = vmatpush1.msra.mxu0 %v689
    %2085 = vmatprep.subr.mxu0 %v696
    %2086 = vmatpush1.msra.mxu0 %v695
    %2087 = vmatprep.subr.mxu0 %v702
    %2088 = vmatpush1.msra.mxu0 %v701
    %2089 = vmatprep.subr.mxu0 %v708
    %2090 = vmatpush1.msra.mxu0 %v707
    %2091 = vmatprep.subr.mxu0 %v714
    %2092 = vmatpush1.msra.mxu0 %v713
    %2093 = vmatprep.subr.mxu0 %v720
    %2094 = vmatpush1.msra.mxu0 %v719
    %2095 = vmatprep.mubr.f32.mxu0 %v1886
    %2096 = vmatmul.mubr.f32.gmra.mrb[0].mxu0 %v1885
    %v2097 = vpop.f32.mrb[0].mxu0
    %v2098 = vadd.f32 %v748, %v2097
    %v2099 = vpop.f32.mrb[0].mxu0
    %v2100 = vadd.f32 %v752, %v2099
    %2101 = vdwg.mxu0
    %v2102 = vadd.f32 %v1877, %v1956
    %v2103 = vadd.f32 %v1878, %v1958
    %v2104 = vxor.u32 %v2102, 2147483648
    %v2105 = vxor.u32 %v2103, 2147483648
    %v2106 = vmul.f32 %v2104, 1.442695
    %v2107 = vpow.pop %v2106
    %v2108 = vmul.f32 %v2105, 1.442695
    %v2109 = vpow.pop %v2108
    %v2110 = vadd.f32 %v2107, 1.0
    %v2111 = vadd.f32 %v2109, 1.0
    %v2112 = vrcp.pop %v2110
    %v2113 = vmul.f32 1.0, %v2112
    %v2114 = vrcp.pop %v2111
    %v2115 = vmul.f32 1.0, %v2114
    %v2116 = vadd.f32 %v1879, %v2027
    %v2117 = vadd.f32 %v1880, %v2029
    %v2118 = vxor.u32 %v2116, 2147483648
    %v2119 = vxor.u32 %v2117, 2147483648
    %v2120 = vmul.f32 %v2118, 1.442695
    %v2121 = vpow.pop %v2120
    %v2122 = vmul.f32 %v2119, 1.442695
    %v2123 = vpow.pop %v2122
    %v2124 = vadd.f32 %v2121, 1.0
    %v2125 = vadd.f32 %v2123, 1.0
    %v2126 = vrcp.pop %v2124
    %v2127 = vmul.f32 1.0, %v2126
    %v2128 = vrcp.pop %v2125
    %v2129 = vmul.f32 1.0, %v2128
    %v2130 = vmul.f32 %v2113, %v2098
    %v2131 = vmul.f32 %v2115, %v2100
    %v2132 = vadd.f32 %v1881, %v2130
    %v2133 = vadd.f32 %v1882, %v2131
    %v2134 = vtanh.pop %v2132
    %v2135 = vtanh.pop %v2133
    %v2136 = vsub.f32 1.0, %v2127
    %v2137 = vsub.f32 1.0, %v2129
    %v2138 = vmul.f32 %v2136, %v2134
    %v2139 = vmul.f32 %v2137, %v2135
    %v2140 = vmul.f32 %v2127, %v1885
    %v2141 = vmul.f32 %v2129, %v1886
    %v2142 = vadd.f32 %v2138, %v2140
    %v2143 = vadd.f32 %v2139, %v2141
    %v2144 = vld [vmem:[#allocation2 + $0x30] sm:$0xc]
    %v2145 = vld [vmem:[#allocation2 + $0x38] sm:$0xc]
    %v2146 = vld [vmem:[#allocation2 + $0x40] sm:$0xc]
    %v2147 = vld [vmem:[#allocation2 + $0x48] sm:$0xc]
    %v2148 = vld [vmem:[#allocation2 + $0x50] sm:$0xc]
    %v2149 = vld [vmem:[#allocation2 + $0x58] sm:$0xc]
    %2150 = vmatprep.subr.mxu0 %v530
    %2151 = vmatpush1.msra.mxu0 %v529
    %2152 = vmatprep.subr.mxu0 %v536
    %2153 = vmatpush1.msra.mxu0 %v535
    %2154 = vmatprep.subr.mxu0 %v542
    %2155 = vmatpush1.msra.mxu0 %v541
    %2156 = vmatprep.subr.mxu0 %v548
    %2157 = vmatpush1.msra.mxu0 %v547
    %2158 = vmatprep.subr.mxu0 %v554
    %2159 = vmatpush1.msra.mxu0 %v553
    %2160 = vmatprep.subr.mxu0 %v560
    %2161 = vmatpush1.msra.mxu0 %v559
    %2162 = vmatprep.subr.mxu0 %v566
    %2163 = vmatpush1.msra.mxu0 %v565
    %2164 = vmatprep.subr.mxu0 %v572
    %2165 = vmatpush1.msra.mxu0 %v571
    %2166 = vmatprep.subr.mxu0 %v578
    %2167 = vmatpush1.msra.mxu0 %v577
    %2168 = vmatprep.subr.mxu0 %v584
    %2169 = vmatpush1.msra.mxu0 %v583
    %2170 = vmatprep.subr.mxu0 %v590
    %2171 = vmatpush1.msra.mxu0 %v589
    %2172 = vmatprep.subr.mxu0 %v596
    %2173 = vmatpush1.msra.mxu0 %v595
    %2174 = vmatprep.subr.mxu0 %v602
    %2175 = vmatpush1.msra.mxu0 %v601
    %2176 = vmatprep.subr.mxu0 %v608
    %2177 = vmatpush1.msra.mxu0 %v607
    %2178 = vmatprep.subr.mxu0 %v614
    %2179 = vmatpush1.msra.mxu0 %v613
    %2180 = vmatprep.subr.mxu0 %v620
    %2181 = vmatpush1.msra.mxu0 %v619
    %2182 = vmatprep.subr.mxu0 %v626
    %2183 = vmatpush1.msra.mxu0 %v625
    %2184 = vmatprep.subr.mxu0 %v632
    %2185 = vmatpush1.msra.mxu0 %v631
    %2186 = vmatprep.subr.mxu0 %v638
    %2187 = vmatpush1.msra.mxu0 %v637
    %2188 = vmatprep.subr.mxu0 %v644
    %2189 = vmatpush1.msra.mxu0 %v643
    %2190 = vmatprep.subr.mxu0 %v650
    %2191 = vmatpush1.msra.mxu0 %v649
    %2192 = vmatprep.subr.mxu0 %v656
    %2193 = vmatpush1.msra.mxu0 %v655
    %2194 = vmatprep.subr.mxu0 %v662
    %2195 = vmatpush1.msra.mxu0 %v661
    %2196 = vmatprep.subr.mxu0 %v668
    %2197 = vmatpush1.msra.mxu0 %v667
    %2198 = vmatprep.subr.mxu0 %v674
    %2199 = vmatpush1.msra.mxu0 %v673
    %2200 = vmatprep.subr.mxu0 %v680
    %2201 = vmatpush1.msra.mxu0 %v679
    %2202 = vmatprep.subr.mxu0 %v686
    %2203 = vmatpush1.msra.mxu0 %v685
    %2204 = vmatprep.subr.mxu0 %v692
    %2205 = vmatpush1.msra.mxu0 %v691
    %2206 = vmatprep.subr.mxu0 %v698
    %2207 = vmatpush1.msra.mxu0 %v697
    %2208 = vmatprep.subr.mxu0 %v704
    %2209 = vmatpush1.msra.mxu0 %v703
    %2210 = vmatprep.subr.mxu0 %v710
    %2211 = vmatpush1.msra.mxu0 %v709
    %2212 = vmatprep.subr.mxu0 %v716
    %2213 = vmatpush1.msra.mxu0 %v715
    %2214 = vmatprep.mubr.f32.mxu0 %v2143
    %2215 = vmatmul.mubr.f32.gmra.mrb[0].mxu0 %v2142
    %v2216 = vpop.f32.mrb[0].mxu0
    %v2217 = vadd.f32 %v732, %v2216
    %v2218 = vpop.f32.mrb[0].mxu0
    %v2219 = vadd.f32 %v736, %v2218
    %2220 = vdwg.mxu0
    %2221 = vmatprep.subr.mxu0 %v532
    %2222 = vmatpush1.msra.mxu0 %v531
    %2223 = vmatprep.subr.mxu0 %v538
    %2224 = vmatpush1.msra.mxu0 %v537
    %2225 = vmatprep.subr.mxu0 %v544
    %2226 = vmatpush1.msra.mxu0 %v543
    %2227 = vmatprep.subr.mxu0 %v550
    %2228 = vmatpush1.msra.mxu0 %v549
    %2229 = vmatprep.subr.mxu0 %v556
    %2230 = vmatpush1.msra.mxu0 %v555
    %2231 = vmatprep.subr.mxu0 %v562
    %2232 = vmatpush1.msra.mxu0 %v561
    %2233 = vmatprep.subr.mxu0 %v568
    %2234 = vmatpush1.msra.mxu0 %v567
    %2235 = vmatprep.subr.mxu0 %v574
    %2236 = vmatpush1.msra.mxu0 %v573
    %2237 = vmatprep.subr.mxu0 %v580
    %2238 = vmatpush1.msra.mxu0 %v579
    %2239 = vmatprep.subr.mxu0 %v586
    %2240 = vmatpush1.msra.mxu0 %v585
    %2241 = vmatprep.subr.mxu0 %v592
    %2242 = vmatpush1.msra.mxu0 %v591
    %2243 = vmatprep.subr.mxu0 %v598
    %2244 = vmatpush1.msra.mxu0 %v597
    %2245 = vmatprep.subr.mxu0 %v604
    %2246 = vmatpush1.msra.mxu0 %v603
    %2247 = vmatprep.subr.mxu0 %v610
    %2248 = vmatpush1.msra.mxu0 %v609
    %2249 = vmatprep.subr.mxu0 %v616
    %2250 = vmatpush1.msra.mxu0 %v615
    %2251 = vmatprep.subr.mxu0 %v622
    %2252 = vmatpush1.msra.mxu0 %v621
    %2253 = vmatprep.subr.mxu0 %v628
    %2254 = vmatpush1.msra.mxu0 %v627
    %2255 = vmatprep.subr.mxu0 %v634
    %2256 = vmatpush1.msra.mxu0 %v633
    %2257 = vmatprep.subr.mxu0 %v640
    %2258 = vmatpush1.msra.mxu0 %v639
    %2259 = vmatprep.subr.mxu0 %v646
    %2260 = vmatpush1.msra.mxu0 %v645
    %2261 = vmatprep.subr.mxu0 %v652
    %2262 = vmatpush1.msra.mxu0 %v651
    %2263 = vmatprep.subr.mxu0 %v658
    %2264 = vmatpush1.msra.mxu0 %v657
    %2265 = vmatprep.subr.mxu0 %v664
    %2266 = vmatpush1.msra.mxu0 %v663
    %2267 = vmatprep.subr.mxu0 %v670
    %2268 = vmatpush1.msra.mxu0 %v669
    %2269 = vmatprep.subr.mxu0 %v676
    %2270 = vmatpush1.msra.mxu0 %v675
    %2271 = vmatprep.subr.mxu0 %v682
    %2272 = vmatpush1.msra.mxu0 %v681
    %2273 = vmatprep.subr.mxu0 %v688
    %2274 = vmatpush1.msra.mxu0 %v687
    %2275 = vmatprep.subr.mxu0 %v694
    %2276 = vmatpush1.msra.mxu0 %v693
    %2277 = vmatprep.subr.mxu0 %v700
    %2278 = vmatpush1.msra.mxu0 %v699
    %2279 = vmatprep.subr.mxu0 %v706
    %2280 = vmatpush1.msra.mxu0 %v705
    %2281 = vmatprep.subr.mxu0 %v712
    %2282 = vmatpush1.msra.mxu0 %v711
    %2283 = vmatprep.subr.mxu0 %v718
    %2284 = vmatpush1.msra.mxu0 %v717
    %2285 = vmatprep.mubr.f32.mxu0 %v2143
    %2286 = vmatmul.mubr.f32.gmra.mrb[0].mxu0 %v2142
    %v2287 = vpop.f32.mrb[0].mxu0
    %v2288 = vadd.f32 %v740, %v2287
    %v2289 = vpop.f32.mrb[0].mxu0
    %v2290 = vadd.f32 %v744, %v2289
    %2291 = vdwg.mxu0
    %2292 = vmatprep.subr.mxu0 %v534
    %2293 = vmatpush1.msra.mxu0 %v533
    %2294 = vmatprep.subr.mxu0 %v540
    %2295 = vmatpush1.msra.mxu0 %v539
    %2296 = vmatprep.subr.mxu0 %v546
    %2297 = vmatpush1.msra.mxu0 %v545
    %2298 = vmatprep.subr.mxu0 %v552
    %2299 = vmatpush1.msra.mxu0 %v551
    %2300 = vmatprep.subr.mxu0 %v558
    %2301 = vmatpush1.msra.mxu0 %v557
    %2302 = vmatprep.subr.mxu0 %v564
    %2303 = vmatpush1.msra.mxu0 %v563
    %2304 = vmatprep.subr.mxu0 %v570
    %2305 = vmatpush1.msra.mxu0 %v569
    %2306 = vmatprep.subr.mxu0 %v576
    %2307 = vmatpush1.msra.mxu0 %v575
    %2308 = vmatprep.subr.mxu0 %v582
    %2309 = vmatpush1.msra.mxu0 %v581
    %2310 = vmatprep.subr.mxu0 %v588
    %2311 = vmatpush1.msra.mxu0 %v587
    %2312 = vmatprep.subr.mxu0 %v594
    %2313 = vmatpush1.msra.mxu0 %v593
    %2314 = vmatprep.subr.mxu0 %v600
    %2315 = vmatpush1.msra.mxu0 %v599
    %2316 = vmatprep.subr.mxu0 %v606
    %2317 = vmatpush1.msra.mxu0 %v605
    %2318 = vmatprep.subr.mxu0 %v612
    %2319 = vmatpush1.msra.mxu0 %v611
    %2320 = vmatprep.subr.mxu0 %v618
    %2321 = vmatpush1.msra.mxu0 %v617
    %2322 = vmatprep.subr.mxu0 %v624
    %2323 = vmatpush1.msra.mxu0 %v623
    %2324 = vmatprep.subr.mxu0 %v630
    %2325 = vmatpush1.msra.mxu0 %v629
    %2326 = vmatprep.subr.mxu0 %v636
    %2327 = vmatpush1.msra.mxu0 %v635
    %2328 = vmatprep.subr.mxu0 %v642
    %2329 = vmatpush1.msra.mxu0 %v641
    %2330 = vmatprep.subr.mxu0 %v648
    %2331 = vmatpush1.msra.mxu0 %v647
    %2332 = vmatprep.subr.mxu0 %v654
    %2333 = vmatpush1.msra.mxu0 %v653
    %2334 = vmatprep.subr.mxu0 %v660
    %2335 = vmatpush1.msra.mxu0 %v659
    %2336 = vmatprep.subr.mxu0 %v666
    %2337 = vmatpush1.msra.mxu0 %v665
    %2338 = vmatprep.subr.mxu0 %v672
    %2339 = vmatpush1.msra.mxu0 %v671
    %2340 = vmatprep.subr.mxu0 %v678
    %2341 = vmatpush1.msra.mxu0 %v677
    %2342 = vmatprep.subr.mxu0 %v684
    %2343 = vmatpush1.msra.mxu0 %v683
    %2344 = vmatprep.subr.mxu0 %v690
    %2345 = vmatpush1.msra.mxu0 %v689
    %2346 = vmatprep.subr.mxu0 %v696
    %2347 = vmatpush1.msra.mxu0 %v695
    %2348 = vmatprep.subr.mxu0 %v702
    %2349 = vmatpush1.msra.mxu0 %v701
    %2350 = vmatprep.subr.mxu0 %v708
    %2351 = vmatpush1.msra.mxu0 %v707
    %2352 = vmatprep.subr.mxu0 %v714
    %2353 = vmatpush1.msra.mxu0 %v713
    %2354 = vmatprep.subr.mxu0 %v720
    %2355 = vmatpush1.msra.mxu0 %v719
    %2356 = vmatprep.mubr.f32.mxu0 %v2143
    %2357 = vmatmul.mubr.f32.gmra.mrb[0].mxu0 %v2142
    %v2358 = vpop.f32.mrb[0].mxu0
    %v2359 = vadd.f32 %v748, %v2358
    %v2360 = vpop.f32.mrb[0].mxu0
    %v2361 = vadd.f32 %v752, %v2360
    %2362 = vdwg.mxu0
    %v2365 = vrot.slane %v2217, 6
    %v2366 = vrot.slane %v2219, 6
    %v2369 = vadd.f32 %v2144, %v2365
    %v2370 = vadd.f32 %v2145, %v2366
    %v2371 = vxor.u32 %v2369, 2147483648
    %v2372 = vxor.u32 %v2370, 2147483648
    %v2373 = vmul.f32 %v2371, 1.442695
    %v2374 = vpow.pop %v2373
    %v2375 = vmul.f32 %v2372, 1.442695
    %v2376 = vpow.pop %v2375
    %v2377 = vadd.f32 %v2374, 1.0
    %v2378 = vadd.f32 %v2376, 1.0
    %v2379 = vrcp.pop %v2377
    %v2380 = vmul.f32 1.0, %v2379
    %v2381 = vrcp.pop %v2378
    %v2382 = vmul.f32 1.0, %v2381
    %v2385 = vrot.slane %v2288, 6
    %v2386 = vrot.slane %v2290, 6
    %v2389 = vadd.f32 %v2146, %v2385
    %v2390 = vadd.f32 %v2147, %v2386
    %v2391 = vxor.u32 %v2389, 2147483648
    %v2392 = vxor.u32 %v2390, 2147483648
    %v2393 = vmul.f32 %v2391, 1.442695
    %v2394 = vpow.pop %v2393
    %v2395 = vmul.f32 %v2392, 1.442695
    %v2396 = vpow.pop %v2395
    %v2397 = vadd.f32 %v2394, 1.0
    %v2398 = vadd.f32 %v2396, 1.0
    %v2399 = vrcp.pop %v2397
    %v2400 = vmul.f32 1.0, %v2399
    %v2401 = vrcp.pop %v2398
    %v2402 = vmul.f32 1.0, %v2401
    %v2405 = vrot.slane %v2359, 6
    %v2406 = vrot.slane %v2361, 6
    %v2409 = vmul.f32 %v2380, %v2405
    %v2410 = vmul.f32 %v2382, %v2406
    %v2411 = vadd.f32 %v2148, %v2409
    %v2412 = vadd.f32 %v2149, %v2410
    %v2413 = vtanh.pop %v2411
    %v2414 = vtanh.pop %v2412
    %v2415 = vsub.f32 1.0, %v2400
    %v2416 = vsub.f32 1.0, %v2402
    %v2417 = vmul.f32 %v2415, %v2413
    %v2418 = vmul.f32 %v2416, %v2414
    %v2421 = vrot.slane %v2142, 6
    %v2422 = vrot.slane %v2143, 6
    %v2425 = vmul.f32 %v2400, %v2421
    %v2426 = vmul.f32 %v2402, %v2422
    %v2427 = vadd.f32 %v2417, %v2425
    %v2428 = vadd.f32 %v2418, %v2426
    %v2429 = vld [vmem:[#allocation2 + $0x30] sm:$0x30]
    %v2430 = vld [vmem:[#allocation2 + $0x38] sm:$0x30]
    %v2431 = vld [vmem:[#allocation2 + $0x40] sm:$0x30]
    %v2432 = vld [vmem:[#allocation2 + $0x48] sm:$0x30]
    %v2433 = vld [vmem:[#allocation2 + $0x50] sm:$0x30]
    %v2434 = vld [vmem:[#allocation2 + $0x58] sm:$0x30]
    %v2437 = vrot.slane %v2427, 2
    %v2438 = vrot.slane %v2428, 2
    %2441 = vmatprep.subr.mxu0 %v530
    %2442 = vmatpush1.msra.mxu0 %v529
    %2443 = vmatprep.subr.mxu0 %v536
    %2444 = vmatpush1.msra.mxu0 %v535
    %2445 = vmatprep.subr.mxu0 %v542
    %2446 = vmatpush1.msra.mxu0 %v541
    %2447 = vmatprep.subr.mxu0 %v548
    %2448 = vmatpush1.msra.mxu0 %v547
    %2449 = vmatprep.subr.mxu0 %v554
    %2450 = vmatpush1.msra.mxu0 %v553
    %2451 = vmatprep.subr.mxu0 %v560
    %2452 = vmatpush1.msra.mxu0 %v559
    %2453 = vmatprep.subr.mxu0 %v566
    %2454 = vmatpush1.msra.mxu0 %v565
    %2455 = vmatprep.subr.mxu0 %v572
    %2456 = vmatpush1.msra.mxu0 %v571
    %2457 = vmatprep.subr.mxu0 %v578
    %2458 = vmatpush1.msra.mxu0 %v577
    %2459 = vmatprep.subr.mxu0 %v584
    %2460 = vmatpush1.msra.mxu0 %v583
    %2461 = vmatprep.subr.mxu0 %v590
    %2462 = vmatpush1.msra.mxu0 %v589
    %2463 = vmatprep.subr.mxu0 %v596
    %2464 = vmatpush1.msra.mxu0 %v595
    %2465 = vmatprep.subr.mxu0 %v602
    %2466 = vmatpush1.msra.mxu0 %v601
    %2467 = vmatprep.subr.mxu0 %v608
    %2468 = vmatpush1.msra.mxu0 %v607
    %2469 = vmatprep.subr.mxu0 %v614
    %2470 = vmatpush1.msra.mxu0 %v613
    %2471 = vmatprep.subr.mxu0 %v620
    %2472 = vmatpush1.msra.mxu0 %v619
    %2473 = vmatprep.subr.mxu0 %v626
    %2474 = vmatpush1.msra.mxu0 %v625
    %2475 = vmatprep.subr.mxu0 %v632
    %2476 = vmatpush1.msra.mxu0 %v631
    %2477 = vmatprep.subr.mxu0 %v638
    %2478 = vmatpush1.msra.mxu0 %v637
    %2479 = vmatprep.subr.mxu0 %v644
    %2480 = vmatpush1.msra.mxu0 %v643
    %2481 = vmatprep.subr.mxu0 %v650
    %2482 = vmatpush1.msra.mxu0 %v649
    %2483 = vmatprep.subr.mxu0 %v656
    %2484 = vmatpush1.msra.mxu0 %v655
    %2485 = vmatprep.subr.mxu0 %v662
    %2486 = vmatpush1.msra.mxu0 %v661
    %2487 = vmatprep.subr.mxu0 %v668
    %2488 = vmatpush1.msra.mxu0 %v667
    %2489 = vmatprep.subr.mxu0 %v674
    %2490 = vmatpush1.msra.mxu0 %v673
    %2491 = vmatprep.subr.mxu0 %v680
    %2492 = vmatpush1.msra.mxu0 %v679
    %2493 = vmatprep.subr.mxu0 %v686
    %2494 = vmatpush1.msra.mxu0 %v685
    %2495 = vmatprep.subr.mxu0 %v692
    %2496 = vmatpush1.msra.mxu0 %v691
    %2497 = vmatprep.subr.mxu0 %v698
    %2498 = vmatpush1.msra.mxu0 %v697
    %2499 = vmatprep.subr.mxu0 %v704
    %2500 = vmatpush1.msra.mxu0 %v703
    %2501 = vmatprep.subr.mxu0 %v710
    %2502 = vmatpush1.msra.mxu0 %v709
    %2503 = vmatprep.subr.mxu0 %v716
    %2504 = vmatpush1.msra.mxu0 %v715
    %2505 = vmatprep.mubr.f32.mxu0 %v2438
    %2506 = vmatmul.mubr.f32.gmra.mrb[0].mxu0 %v2437
    %v2507 = vpop.f32.mrb[0].mxu0
    %v2508 = vadd.f32 %v732, %v2507
    %v2509 = vpop.f32.mrb[0].mxu0
    %v2510 = vadd.f32 %v736, %v2509
    %2511 = vdwg.mxu0
    %2512 = vmatprep.subr.mxu0 %v532
    %2513 = vmatpush1.msra.mxu0 %v531
    %2514 = vmatprep.subr.mxu0 %v538
    %2515 = vmatpush1.msra.mxu0 %v537
    %2516 = vmatprep.subr.mxu0 %v544
    %2517 = vmatpush1.msra.mxu0 %v543
    %2518 = vmatprep.subr.mxu0 %v550
    %2519 = vmatpush1.msra.mxu0 %v549
    %2520 = vmatprep.subr.mxu0 %v556
    %2521 = vmatpush1.msra.mxu0 %v555
    %2522 = vmatprep.subr.mxu0 %v562
    %2523 = vmatpush1.msra.mxu0 %v561
    %2524 = vmatprep.subr.mxu0 %v568
    %2525 = vmatpush1.msra.mxu0 %v567
    %2526 = vmatprep.subr.mxu0 %v574
    %2527 = vmatpush1.msra.mxu0 %v573
    %2528 = vmatprep.subr.mxu0 %v580
    %2529 = vmatpush1.msra.mxu0 %v579
    %2530 = vmatprep.subr.mxu0 %v586
    %2531 = vmatpush1.msra.mxu0 %v585
    %2532 = vmatprep.subr.mxu0 %v592
    %2533 = vmatpush1.msra.mxu0 %v591
    %2534 = vmatprep.subr.mxu0 %v598
    %2535 = vmatpush1.msra.mxu0 %v597
    %2536 = vmatprep.subr.mxu0 %v604
    %2537 = vmatpush1.msra.mxu0 %v603
    %2538 = vmatprep.subr.mxu0 %v610
    %2539 = vmatpush1.msra.mxu0 %v609
    %2540 = vmatprep.subr.mxu0 %v616
    %2541 = vmatpush1.msra.mxu0 %v615
    %2542 = vmatprep.subr.mxu0 %v622
    %2543 = vmatpush1.msra.mxu0 %v621
    %2544 = vmatprep.subr.mxu0 %v628
    %2545 = vmatpush1.msra.mxu0 %v627
    %2546 = vmatprep.subr.mxu0 %v634
    %2547 = vmatpush1.msra.mxu0 %v633
    %2548 = vmatprep.subr.mxu0 %v640
    %2549 = vmatpush1.msra.mxu0 %v639
    %2550 = vmatprep.subr.mxu0 %v646
    %2551 = vmatpush1.msra.mxu0 %v645
    %2552 = vmatprep.subr.mxu0 %v652
    %2553 = vmatpush1.msra.mxu0 %v651
    %2554 = vmatprep.subr.mxu0 %v658
    %2555 = vmatpush1.msra.mxu0 %v657
    %2556 = vmatprep.subr.mxu0 %v664
    %2557 = vmatpush1.msra.mxu0 %v663
    %2558 = vmatprep.subr.mxu0 %v670
    %2559 = vmatpush1.msra.mxu0 %v669
    %2560 = vmatprep.subr.mxu0 %v676
    %2561 = vmatpush1.msra.mxu0 %v675
    %2562 = vmatprep.subr.mxu0 %v682
    %2563 = vmatpush1.msra.mxu0 %v681
    %2564 = vmatprep.subr.mxu0 %v688
    %2565 = vmatpush1.msra.mxu0 %v687
    %2566 = vmatprep.subr.mxu0 %v694
    %2567 = vmatpush1.msra.mxu0 %v693
    %2568 = vmatprep.subr.mxu0 %v700
    %2569 = vmatpush1.msra.mxu0 %v699
    %2570 = vmatprep.subr.mxu0 %v706
    %2571 = vmatpush1.msra.mxu0 %v705
    %2572 = vmatprep.subr.mxu0 %v712
    %2573 = vmatpush1.msra.mxu0 %v711
    %2574 = vmatprep.subr.mxu0 %v718
    %2575 = vmatpush1.msra.mxu0 %v717
    %2576 = vmatprep.mubr.f32.mxu0 %v2438
    %2577 = vmatmul.mubr.f32.gmra.mrb[0].mxu0 %v2437
    %v2578 = vpop.f32.mrb[0].mxu0
    %v2579 = vadd.f32 %v740, %v2578
    %v2580 = vpop.f32.mrb[0].mxu0
    %v2581 = vadd.f32 %v744, %v2580
    %2582 = vdwg.mxu0
    %2583 = vmatprep.subr.mxu0 %v534
    %2584 = vmatpush1.msra.mxu0 %v533
    %2585 = vmatprep.subr.mxu0 %v540
    %2586 = vmatpush1.msra.mxu0 %v539
    %2587 = vmatprep.subr.mxu0 %v546
    %2588 = vmatpush1.msra.mxu0 %v545
    %2589 = vmatprep.subr.mxu0 %v552
    %2590 = vmatpush1.msra.mxu0 %v551
    %2591 = vmatprep.subr.mxu0 %v558
    %2592 = vmatpush1.msra.mxu0 %v557
    %2593 = vmatprep.subr.mxu0 %v564
    %2594 = vmatpush1.msra.mxu0 %v563
    %2595 = vmatprep.subr.mxu0 %v570
    %2596 = vmatpush1.msra.mxu0 %v569
    %2597 = vmatprep.subr.mxu0 %v576
    %2598 = vmatpush1.msra.mxu0 %v575
    %2599 = vmatprep.subr.mxu0 %v582
    %2600 = vmatpush1.msra.mxu0 %v581
    %2601 = vmatprep.subr.mxu0 %v588
    %2602 = vmatpush1.msra.mxu0 %v587
    %2603 = vmatprep.subr.mxu0 %v594
    %2604 = vmatpush1.msra.mxu0 %v593
    %2605 = vmatprep.subr.mxu0 %v600
    %2606 = vmatpush1.msra.mxu0 %v599
    %2607 = vmatprep.subr.mxu0 %v606
    %2608 = vmatpush1.msra.mxu0 %v605
    %2609 = vmatprep.subr.mxu0 %v612
    %2610 = vmatpush1.msra.mxu0 %v611
    %2611 = vmatprep.subr.mxu0 %v618
    %2612 = vmatpush1.msra.mxu0 %v617
    %2613 = vmatprep.subr.mxu0 %v624
    %2614 = vmatpush1.msra.mxu0 %v623
    %2615 = vmatprep.subr.mxu0 %v630
    %2616 = vmatpush1.msra.mxu0 %v629
    %2617 = vmatprep.subr.mxu0 %v636
    %2618 = vmatpush1.msra.mxu0 %v635
    %2619 = vmatprep.subr.mxu0 %v642
    %2620 = vmatpush1.msra.mxu0 %v641
    %2621 = vmatprep.subr.mxu0 %v648
    %2622 = vmatpush1.msra.mxu0 %v647
    %2623 = vmatprep.subr.mxu0 %v654
    %2624 = vmatpush1.msra.mxu0 %v653
    %2625 = vmatprep.subr.mxu0 %v660
    %2626 = vmatpush1.msra.mxu0 %v659
    %2627 = vmatprep.subr.mxu0 %v666
    %2628 = vmatpush1.msra.mxu0 %v665
    %2629 = vmatprep.subr.mxu0 %v672
    %2630 = vmatpush1.msra.mxu0 %v671
    %2631 = vmatprep.subr.mxu0 %v678
    %2632 = vmatpush1.msra.mxu0 %v677
    %2633 = vmatprep.subr.mxu0 %v684
    %2634 = vmatpush1.msra.mxu0 %v683
    %2635 = vmatprep.subr.mxu0 %v690
    %2636 = vmatpush1.msra.mxu0 %v689
    %2637 = vmatprep.subr.mxu0 %v696
    %2638 = vmatpush1.msra.mxu0 %v695
    %2639 = vmatprep.subr.mxu0 %v702
    %2640 = vmatpush1.msra.mxu0 %v701
    %2641 = vmatprep.subr.mxu0 %v708
    %2642 = vmatpush1.msra.mxu0 %v707
    %2643 = vmatprep.subr.mxu0 %v714
    %2644 = vmatpush1.msra.mxu0 %v713
    %2645 = vmatprep.subr.mxu0 %v720
    %2646 = vmatpush1.msra.mxu0 %v719
    %2647 = vmatprep.mubr.f32.mxu0 %v2438
    %2648 = vmatmul.mubr.f32.gmra.mrb[0].mxu0 %v2437
    %v2649 = vpop.f32.mrb[0].mxu0
    %v2650 = vadd.f32 %v748, %v2649
    %v2651 = vpop.f32.mrb[0].mxu0
    %v2652 = vadd.f32 %v752, %v2651
    %2653 = vdwg.mxu0
    %v2656 = vrot.slane %v2508, 4
    %v2657 = vrot.slane %v2510, 4
    %v2660 = vadd.f32 %v2429, %v2656
    %v2661 = vadd.f32 %v2430, %v2657
    %v2662 = vxor.u32 %v2660, 2147483648
    %v2663 = vxor.u32 %v2661, 2147483648
    %v2664 = vmul.f32 %v2662, 1.442695
    %v2665 = vpow.pop %v2664
    %v2666 = vmul.f32 %v2663, 1.442695
    %v2667 = vpow.pop %v2666
    %v2668 = vadd.f32 %v2665, 1.0
    %v2669 = vadd.f32 %v2667, 1.0
    %v2670 = vrcp.pop %v2668
    %v2671 = vmul.f32 1.0, %v2670
    %v2672 = vrcp.pop %v2669
    %v2673 = vmul.f32 1.0, %v2672
    %v2676 = vrot.slane %v2579, 4
    %v2677 = vrot.slane %v2581, 4
    %v2680 = vadd.f32 %v2431, %v2676
    %v2681 = vadd.f32 %v2432, %v2677
    %v2682 = vxor.u32 %v2680, 2147483648
    %v2683 = vxor.u32 %v2681, 2147483648
    %v2684 = vmul.f32 %v2682, 1.442695
    %v2685 = vpow.pop %v2684
    %v2686 = vmul.f32 %v2683, 1.442695
    %v2687 = vpow.pop %v2686
    %v2688 = vadd.f32 %v2685, 1.0
    %v2689 = vadd.f32 %v2687, 1.0
    %v2690 = vrcp.pop %v2688
    %v2691 = vmul.f32 1.0, %v2690
    %v2692 = vrcp.pop %v2689
    %v2693 = vmul.f32 1.0, %v2692
    %v2696 = vrot.slane %v2650, 4
    %v2697 = vrot.slane %v2652, 4
    %v2700 = vmul.f32 %v2671, %v2696
    %v2701 = vmul.f32 %v2673, %v2697
    %v2702 = vadd.f32 %v2433, %v2700
    %v2703 = vadd.f32 %v2434, %v2701
    %v2704 = vtanh.pop %v2702
    %v2705 = vtanh.pop %v2703
    %v2706 = vsub.f32 1.0, %v2691
    %v2707 = vsub.f32 1.0, %v2693
    %v2708 = vmul.f32 %v2706, %v2704
    %v2709 = vmul.f32 %v2707, %v2705
    %v2710 = vrot.slane %v2427, 6
    %v2711 = vrot.slane %v2428, 6
    %v2714 = vmul.f32 %v2691, %v2710
    %v2715 = vmul.f32 %v2693, %v2711
    %v2716 = vadd.f32 %v2708, %v2714
    %v2717 = vadd.f32 %v2709, %v2715
    %v2718 = vld [vmem:[#allocation2 + $0x30] sm:$0xc0]
    %v2719 = vld [vmem:[#allocation2 + $0x38] sm:$0xc0]
    %v2720 = vld [vmem:[#allocation2 + $0x40] sm:$0xc0]
    %v2721 = vld [vmem:[#allocation2 + $0x48] sm:$0xc0]
    %v2722 = vld [vmem:[#allocation2 + $0x50] sm:$0xc0]
    %v2723 = vld [vmem:[#allocation2 + $0x58] sm:$0xc0]
    %v2726 = vrot.slane %v2716, 4
    %v2727 = vrot.slane %v2717, 4
    %2730 = vmatprep.subr.mxu0 %v530
    %2731 = vmatpush1.msra.mxu0 %v529
    %2732 = vmatprep.subr.mxu0 %v536
    %2733 = vmatpush1.msra.mxu0 %v535
    %2734 = vmatprep.subr.mxu0 %v542
    %2735 = vmatpush1.msra.mxu0 %v541
    %2736 = vmatprep.subr.mxu0 %v548
    %2737 = vmatpush1.msra.mxu0 %v547
    %2738 = vmatprep.subr.mxu0 %v554
    %2739 = vmatpush1.msra.mxu0 %v553
    %2740 = vmatprep.subr.mxu0 %v560
    %2741 = vmatpush1.msra.mxu0 %v559
    %2742 = vmatprep.subr.mxu0 %v566
    %2743 = vmatpush1.msra.mxu0 %v565
    %2744 = vmatprep.subr.mxu0 %v572
    %2745 = vmatpush1.msra.mxu0 %v571
    %2746 = vmatprep.subr.mxu0 %v578
    %2747 = vmatpush1.msra.mxu0 %v577
    %2748 = vmatprep.subr.mxu0 %v584
    %2749 = vmatpush1.msra.mxu0 %v583
    %2750 = vmatprep.subr.mxu0 %v590
    %2751 = vmatpush1.msra.mxu0 %v589
    %2752 = vmatprep.subr.mxu0 %v596
    %2753 = vmatpush1.msra.mxu0 %v595
    %2754 = vmatprep.subr.mxu0 %v602
    %2755 = vmatpush1.msra.mxu0 %v601
    %2756 = vmatprep.subr.mxu0 %v608
    %2757 = vmatpush1.msra.mxu0 %v607
    %2758 = vmatprep.subr.mxu0 %v614
    %2759 = vmatpush1.msra.mxu0 %v613
    %2760 = vmatprep.subr.mxu0 %v620
    %2761 = vmatpush1.msra.mxu0 %v619
    %2762 = vmatprep.subr.mxu0 %v626
    %2763 = vmatpush1.msra.mxu0 %v625
    %2764 = vmatprep.subr.mxu0 %v632
    %2765 = vmatpush1.msra.mxu0 %v631
    %2766 = vmatprep.subr.mxu0 %v638
    %2767 = vmatpush1.msra.mxu0 %v637
    %2768 = vmatprep.subr.mxu0 %v644
    %2769 = vmatpush1.msra.mxu0 %v643
    %2770 = vmatprep.subr.mxu0 %v650
    %2771 = vmatpush1.msra.mxu0 %v649
    %2772 = vmatprep.subr.mxu0 %v656
    %2773 = vmatpush1.msra.mxu0 %v655
    %2774 = vmatprep.subr.mxu0 %v662
    %2775 = vmatpush1.msra.mxu0 %v661
    %2776 = vmatprep.subr.mxu0 %v668
    %2777 = vmatpush1.msra.mxu0 %v667
    %2778 = vmatprep.subr.mxu0 %v674
    %2779 = vmatpush1.msra.mxu0 %v673
    %2780 = vmatprep.subr.mxu0 %v680
    %2781 = vmatpush1.msra.mxu0 %v679
    %2782 = vmatprep.subr.mxu0 %v686
    %2783 = vmatpush1.msra.mxu0 %v685
    %2784 = vmatprep.subr.mxu0 %v692
    %2785 = vmatpush1.msra.mxu0 %v691
    %2786 = vmatprep.subr.mxu0 %v698
    %2787 = vmatpush1.msra.mxu0 %v697
    %2788 = vmatprep.subr.mxu0 %v704
    %2789 = vmatpush1.msra.mxu0 %v703
    %2790 = vmatprep.subr.mxu0 %v710
    %2791 = vmatpush1.msra.mxu0 %v709
    %2792 = vmatprep.subr.mxu0 %v716
    %2793 = vmatpush1.msra.mxu0 %v715
    %2794 = vmatprep.mubr.f32.mxu0 %v2727
    %2795 = vmatmul.mubr.f32.gmra.mrb[0].mxu0 %v2726
    %v2796 = vpop.f32.mrb[0].mxu0
    %v2797 = vadd.f32 %v732, %v2796
    %v2798 = vpop.f32.mrb[0].mxu0
    %v2799 = vadd.f32 %v736, %v2798
    %2800 = vdwg.mxu0
    %2801 = vmatprep.subr.mxu0 %v532
    %2802 = vmatpush1.msra.mxu0 %v531
    %2803 = vmatprep.subr.mxu0 %v538
    %2804 = vmatpush1.msra.mxu0 %v537
    %2805 = vmatprep.subr.mxu0 %v544
    %2806 = vmatpush1.msra.mxu0 %v543
    %2807 = vmatprep.subr.mxu0 %v550
    %2808 = vmatpush1.msra.mxu0 %v549
    %2809 = vmatprep.subr.mxu0 %v556
    %2810 = vmatpush1.msra.mxu0 %v555
    %2811 = vmatprep.subr.mxu0 %v562
    %2812 = vmatpush1.msra.mxu0 %v561
    %2813 = vmatprep.subr.mxu0 %v568
    %2814 = vmatpush1.msra.mxu0 %v567
    %2815 = vmatprep.subr.mxu0 %v574
    %2816 = vmatpush1.msra.mxu0 %v573
    %2817 = vmatprep.subr.mxu0 %v580
    %2818 = vmatpush1.msra.mxu0 %v579
    %2819 = vmatprep.subr.mxu0 %v586
    %2820 = vmatpush1.msra.mxu0 %v585
    %2821 = vmatprep.subr.mxu0 %v592
    %2822 = vmatpush1.msra.mxu0 %v591
    %2823 = vmatprep.subr.mxu0 %v598
    %2824 = vmatpush1.msra.mxu0 %v597
    %2825 = vmatprep.subr.mxu0 %v604
    %2826 = vmatpush1.msra.mxu0 %v603
    %2827 = vmatprep.subr.mxu0 %v610
    %2828 = vmatpush1.msra.mxu0 %v609
    %2829 = vmatprep.subr.mxu0 %v616
    %2830 = vmatpush1.msra.mxu0 %v615
    %2831 = vmatprep.subr.mxu0 %v622
    %2832 = vmatpush1.msra.mxu0 %v621
    %2833 = vmatprep.subr.mxu0 %v628
    %2834 = vmatpush1.msra.mxu0 %v627
    %2835 = vmatprep.subr.mxu0 %v634
    %2836 = vmatpush1.msra.mxu0 %v633
    %2837 = vmatprep.subr.mxu0 %v640
    %2838 = vmatpush1.msra.mxu0 %v639
    %2839 = vmatprep.subr.mxu0 %v646
    %2840 = vmatpush1.msra.mxu0 %v645
    %2841 = vmatprep.subr.mxu0 %v652
    %2842 = vmatpush1.msra.mxu0 %v651
    %2843 = vmatprep.subr.mxu0 %v658
    %2844 = vmatpush1.msra.mxu0 %v657
    %2845 = vmatprep.subr.mxu0 %v664
    %2846 = vmatpush1.msra.mxu0 %v663
    %2847 = vmatprep.subr.mxu0 %v670
    %2848 = vmatpush1.msra.mxu0 %v669
    %2849 = vmatprep.subr.mxu0 %v676
    %2850 = vmatpush1.msra.mxu0 %v675
    %2851 = vmatprep.subr.mxu0 %v682
    %2852 = vmatpush1.msra.mxu0 %v681
    %2853 = vmatprep.subr.mxu0 %v688
    %2854 = vmatpush1.msra.mxu0 %v687
    %2855 = vmatprep.subr.mxu0 %v694
    %2856 = vmatpush1.msra.mxu0 %v693
    %2857 = vmatprep.subr.mxu0 %v700
    %2858 = vmatpush1.msra.mxu0 %v699
    %2859 = vmatprep.subr.mxu0 %v706
    %2860 = vmatpush1.msra.mxu0 %v705
    %2861 = vmatprep.subr.mxu0 %v712
    %2862 = vmatpush1.msra.mxu0 %v711
    %2863 = vmatprep.subr.mxu0 %v718
    %2864 = vmatpush1.msra.mxu0 %v717
    %2865 = vmatprep.mubr.f32.mxu0 %v2727
    %2866 = vmatmul.mubr.f32.gmra.mrb[0].mxu0 %v2726
    %v2867 = vpop.f32.mrb[0].mxu0
    %v2868 = vadd.f32 %v740, %v2867
    %v2869 = vpop.f32.mrb[0].mxu0
    %v2870 = vadd.f32 %v744, %v2869
    %2871 = vdwg.mxu0
    %2872 = vmatprep.subr.mxu0 %v534
    %2873 = vmatpush1.msra.mxu0 %v533
    %2874 = vmatprep.subr.mxu0 %v540
    %2875 = vmatpush1.msra.mxu0 %v539
    %2876 = vmatprep.subr.mxu0 %v546
    %2877 = vmatpush1.msra.mxu0 %v545
    %2878 = vmatprep.subr.mxu0 %v552
    %2879 = vmatpush1.msra.mxu0 %v551
    %2880 = vmatprep.subr.mxu0 %v558
    %2881 = vmatpush1.msra.mxu0 %v557
    %2882 = vmatprep.subr.mxu0 %v564
    %2883 = vmatpush1.msra.mxu0 %v563
    %2884 = vmatprep.subr.mxu0 %v570
    %2885 = vmatpush1.msra.mxu0 %v569
    %2886 = vmatprep.subr.mxu0 %v576
    %2887 = vmatpush1.msra.mxu0 %v575
    %2888 = vmatprep.subr.mxu0 %v582
    %2889 = vmatpush1.msra.mxu0 %v581
    %2890 = vmatprep.subr.mxu0 %v588
    %2891 = vmatpush1.msra.mxu0 %v587
    %2892 = vmatprep.subr.mxu0 %v594
    %2893 = vmatpush1.msra.mxu0 %v593
    %2894 = vmatprep.subr.mxu0 %v600
    %2895 = vmatpush1.msra.mxu0 %v599
    %2896 = vmatprep.subr.mxu0 %v606
    %2897 = vmatpush1.msra.mxu0 %v605
    %2898 = vmatprep.subr.mxu0 %v612
    %2899 = vmatpush1.msra.mxu0 %v611
    %2900 = vmatprep.subr.mxu0 %v618
    %2901 = vmatpush1.msra.mxu0 %v617
    %2902 = vmatprep.subr.mxu0 %v624
    %2903 = vmatpush1.msra.mxu0 %v623
    %2904 = vmatprep.subr.mxu0 %v630
    %2905 = vmatpush1.msra.mxu0 %v629
    %2906 = vmatprep.subr.mxu0 %v636
    %2907 = vmatpush1.msra.mxu0 %v635
    %2908 = vmatprep.subr.mxu0 %v642
    %2909 = vmatpush1.msra.mxu0 %v641
    %2910 = vmatprep.subr.mxu0 %v648
    %2911 = vmatpush1.msra.mxu0 %v647
    %2912 = vmatprep.subr.mxu0 %v654
    %2913 = vmatpush1.msra.mxu0 %v653
    %2914 = vmatprep.subr.mxu0 %v660
    %2915 = vmatpush1.msra.mxu0 %v659
    %2916 = vmatprep.subr.mxu0 %v666
    %2917 = vmatpush1.msra.mxu0 %v665
    %2918 = vmatprep.subr.mxu0 %v672
    %2919 = vmatpush1.msra.mxu0 %v671
    %2920 = vmatprep.subr.mxu0 %v678
    %2921 = vmatpush1.msra.mxu0 %v677
    %2922 = vmatprep.subr.mxu0 %v684
    %2923 = vmatpush1.msra.mxu0 %v683
    %2924 = vmatprep.subr.mxu0 %v690
    %2925 = vmatpush1.msra.mxu0 %v689
    %2926 = vmatprep.subr.mxu0 %v696
    %2927 = vmatpush1.msra.mxu0 %v695
    %2928 = vmatprep.subr.mxu0 %v702
    %2929 = vmatpush1.msra.mxu0 %v701
    %2930 = vmatprep.subr.mxu0 %v708
    %2931 = vmatpush1.msra.mxu0 %v707
    %2932 = vmatprep.subr.mxu0 %v714
    %2933 = vmatpush1.msra.mxu0 %v713
    %2934 = vmatprep.subr.mxu0 %v720
    %2935 = vmatpush1.msra.mxu0 %v719
    %2936 = vmatprep.mubr.f32.mxu0 %v2727
    %2937 = vmatmul.mubr.f32.gmra.mrb[0].mxu0 %v2726
    %v2938 = vpop.f32.mrb[0].mxu0
    %v2939 = vadd.f32 %v748, %v2938
    %v2940 = vpop.f32.mrb[0].mxu0
    %v2941 = vadd.f32 %v752, %v2940
    %2942 = vdwg.mxu0
    %v2945 = vrot.slane %v2797, 2
    %v2946 = vrot.slane %v2799, 2
    %v2949 = vadd.f32 %v2718, %v2945
    %v2950 = vadd.f32 %v2719, %v2946
    %v2951 = vxor.u32 %v2949, 2147483648
    %v2952 = vxor.u32 %v2950, 2147483648
    %v2953 = vmul.f32 %v2951, 1.442695
    %v2954 = vpow.pop %v2953
    %v2955 = vmul.f32 %v2952, 1.442695
    %v2956 = vpow.pop %v2955
    %v2957 = vadd.f32 %v2954, 1.0
    %v2958 = vadd.f32 %v2956, 1.0
    %v2959 = vrcp.pop %v2957
    %v2960 = vmul.f32 1.0, %v2959
    %v2961 = vrcp.pop %v2958
    %v2962 = vmul.f32 1.0, %v2961
    %v2965 = vrot.slane %v2868, 2
    %v2966 = vrot.slane %v2870, 2
    %v2969 = vadd.f32 %v2720, %v2965
    %v2970 = vadd.f32 %v2721, %v2966
    %v2971 = vxor.u32 %v2969, 2147483648
    %v2972 = vxor.u32 %v2970, 2147483648
    %v2973 = vmul.f32 %v2971, 1.442695
    %v2974 = vpow.pop %v2973
    %v2975 = vmul.f32 %v2972, 1.442695
    %v2976 = vpow.pop %v2975
    %v2977 = vadd.f32 %v2974, 1.0
    %v2978 = vadd.f32 %v2976, 1.0
    %v2979 = vrcp.pop %v2977
    %v2980 = vmul.f32 1.0, %v2979
    %v2981 = vrcp.pop %v2978
    %v2982 = vmul.f32 1.0, %v2981
    %v2985 = vrot.slane %v2939, 2
    %v2986 = vrot.slane %v2941, 2
    %v2989 = vmul.f32 %v2960, %v2985
    %v2990 = vmul.f32 %v2962, %v2986
    %v2991 = vadd.f32 %v2722, %v2989
    %v2992 = vadd.f32 %v2723, %v2990
    %v2993 = vtanh.pop %v2991
    %v2994 = vtanh.pop %v2992
    %v2995 = vsub.f32 1.0, %v2980
    %v2996 = vsub.f32 1.0, %v2982
    %v2997 = vmul.f32 %v2995, %v2993
    %v2998 = vmul.f32 %v2996, %v2994
    %v2999 = vrot.slane %v2716, 6
    %v3000 = vrot.slane %v2717, 6
    %v3003 = vmul.f32 %v2980, %v2999
    %v3004 = vmul.f32 %v2982, %v3000
    %v3005 = vadd.f32 %v2997, %v3003
    %v3006 = vadd.f32 %v2998, %v3004
    %v3007 = vld [vmem:[#allocation2 + $0x60] sm:$0x3]
    %v3008 = vld [vmem:[#allocation2 + $0x68] sm:$0x3]
    %v3009 = vld [vmem:[#allocation2 + $0x70] sm:$0x3]
    %v3010 = vld [vmem:[#allocation2 + $0x78] sm:$0x3]
    %v3011 = vld [vmem:[#allocation2 + $0x80] sm:$0x3]
    %v3012 = vld [vmem:[#allocation2 + $0x88] sm:$0x3]
    %v3015 = vrot.slane %v3005, 6
    %v3016 = vrot.slane %v3006, 6
    %3019 = vmatprep.subr.mxu0 %v530
    %3020 = vmatpush1.msra.mxu0 %v529
    %3021 = vmatprep.subr.mxu0 %v536
    %3022 = vmatpush1.msra.mxu0 %v535
    %3023 = vmatprep.subr.mxu0 %v542
    %3024 = vmatpush1.msra.mxu0 %v541
    %3025 = vmatprep.subr.mxu0 %v548
    %3026 = vmatpush1.msra.mxu0 %v547
    %3027 = vmatprep.subr.mxu0 %v554
    %3028 = vmatpush1.msra.mxu0 %v553
    %3029 = vmatprep.subr.mxu0 %v560
    %3030 = vmatpush1.msra.mxu0 %v559
    %3031 = vmatprep.subr.mxu0 %v566
    %3032 = vmatpush1.msra.mxu0 %v565
    %3033 = vmatprep.subr.mxu0 %v572
    %3034 = vmatpush1.msra.mxu0 %v571
    %3035 = vmatprep.subr.mxu0 %v578
    %3036 = vmatpush1.msra.mxu0 %v577
    %3037 = vmatprep.subr.mxu0 %v584
    %3038 = vmatpush1.msra.mxu0 %v583
    %3039 = vmatprep.subr.mxu0 %v590
    %3040 = vmatpush1.msra.mxu0 %v589
    %3041 = vmatprep.subr.mxu0 %v596
    %3042 = vmatpush1.msra.mxu0 %v595
    %3043 = vmatprep.subr.mxu0 %v602
    %3044 = vmatpush1.msra.mxu0 %v601
    %3045 = vmatprep.subr.mxu0 %v608
    %3046 = vmatpush1.msra.mxu0 %v607
    %3047 = vmatprep.subr.mxu0 %v614
    %3048 = vmatpush1.msra.mxu0 %v613
    %3049 = vmatprep.subr.mxu0 %v620
    %3050 = vmatpush1.msra.mxu0 %v619
    %3051 = vmatprep.subr.mxu0 %v626
    %3052 = vmatpush1.msra.mxu0 %v625
    %3053 = vmatprep.subr.mxu0 %v632
    %3054 = vmatpush1.msra.mxu0 %v631
    %3055 = vmatprep.subr.mxu0 %v638
    %3056 = vmatpush1.msra.mxu0 %v637
    %3057 = vmatprep.subr.mxu0 %v644
    %3058 = vmatpush1.msra.mxu0 %v643
    %3059 = vmatprep.subr.mxu0 %v650
    %3060 = vmatpush1.msra.mxu0 %v649
    %3061 = vmatprep.subr.mxu0 %v656
    %3062 = vmatpush1.msra.mxu0 %v655
    %3063 = vmatprep.subr.mxu0 %v662
    %3064 = vmatpush1.msra.mxu0 %v661
    %3065 = vmatprep.subr.mxu0 %v668
    %3066 = vmatpush1.msra.mxu0 %v667
    %3067 = vmatprep.subr.mxu0 %v674
    %3068 = vmatpush1.msra.mxu0 %v673
    %3069 = vmatprep.subr.mxu0 %v680
    %3070 = vmatpush1.msra.mxu0 %v679
    %3071 = vmatprep.subr.mxu0 %v686
    %3072 = vmatpush1.msra.mxu0 %v685
    %3073 = vmatprep.subr.mxu0 %v692
    %3074 = vmatpush1.msra.mxu0 %v691
    %3075 = vmatprep.subr.mxu0 %v698
    %3076 = vmatpush1.msra.mxu0 %v697
    %3077 = vmatprep.subr.mxu0 %v704
    %3078 = vmatpush1.msra.mxu0 %v703
    %3079 = vmatprep.subr.mxu0 %v710
    %3080 = vmatpush1.msra.mxu0 %v709
    %3081 = vmatprep.subr.mxu0 %v716
    %3082 = vmatpush1.msra.mxu0 %v715
    %3083 = vmatprep.mubr.f32.mxu0 %v3016
    %3084 = vmatmul.mubr.f32.gmra.mrb[0].mxu0 %v3015
    %v3085 = vpop.f32.mrb[0].mxu0
    %v3086 = vadd.f32 %v732, %v3085
    %v3087 = vpop.f32.mrb[0].mxu0
    %v3088 = vadd.f32 %v736, %v3087
    %3089 = vdwg.mxu0
    %3090 = vmatprep.subr.mxu0 %v532
    %3091 = vmatpush1.msra.mxu0 %v531
    %3092 = vmatprep.subr.mxu0 %v538
    %3093 = vmatpush1.msra.mxu0 %v537
    %3094 = vmatprep.subr.mxu0 %v544
    %3095 = vmatpush1.msra.mxu0 %v543
    %3096 = vmatprep.subr.mxu0 %v550
    %3097 = vmatpush1.msra.mxu0 %v549
    %3098 = vmatprep.subr.mxu0 %v556
    %3099 = vmatpush1.msra.mxu0 %v555
    %3100 = vmatprep.subr.mxu0 %v562
    %3101 = vmatpush1.msra.mxu0 %v561
    %3102 = vmatprep.subr.mxu0 %v568
    %3103 = vmatpush1.msra.mxu0 %v567
    %3104 = vmatprep.subr.mxu0 %v574
    %3105 = vmatpush1.msra.mxu0 %v573
    %3106 = vmatprep.subr.mxu0 %v580
    %3107 = vmatpush1.msra.mxu0 %v579
    %3108 = vmatprep.subr.mxu0 %v586
    %3109 = vmatpush1.msra.mxu0 %v585
    %3110 = vmatprep.subr.mxu0 %v592
    %3111 = vmatpush1.msra.mxu0 %v591
    %3112 = vmatprep.subr.mxu0 %v598
    %3113 = vmatpush1.msra.mxu0 %v597
    %3114 = vmatprep.subr.mxu0 %v604
    %3115 = vmatpush1.msra.mxu0 %v603
    %3116 = vmatprep.subr.mxu0 %v610
    %3117 = vmatpush1.msra.mxu0 %v609
    %3118 = vmatprep.subr.mxu0 %v616
    %3119 = vmatpush1.msra.mxu0 %v615
    %3120 = vmatprep.subr.mxu0 %v622
    %3121 = vmatpush1.msra.mxu0 %v621
    %3122 = vmatprep.subr.mxu0 %v628
    %3123 = vmatpush1.msra.mxu0 %v627
    %3124 = vmatprep.subr.mxu0 %v634
    %3125 = vmatpush1.msra.mxu0 %v633
    %3126 = vmatprep.subr.mxu0 %v640
    %3127 = vmatpush1.msra.mxu0 %v639
    %3128 = vmatprep.subr.mxu0 %v646
    %3129 = vmatpush1.msra.mxu0 %v645
    %3130 = vmatprep.subr.mxu0 %v652
    %3131 = vmatpush1.msra.mxu0 %v651
    %3132 = vmatprep.subr.mxu0 %v658
    %3133 = vmatpush1.msra.mxu0 %v657
    %3134 = vmatprep.subr.mxu0 %v664
    %3135 = vmatpush1.msra.mxu0 %v663
    %3136 = vmatprep.subr.mxu0 %v670
    %3137 = vmatpush1.msra.mxu0 %v669
    %3138 = vmatprep.subr.mxu0 %v676
    %3139 = vmatpush1.msra.mxu0 %v675
    %3140 = vmatprep.subr.mxu0 %v682
    %3141 = vmatpush1.msra.mxu0 %v681
    %3142 = vmatprep.subr.mxu0 %v688
    %3143 = vmatpush1.msra.mxu0 %v687
    %3144 = vmatprep.subr.mxu0 %v694
    %3145 = vmatpush1.msra.mxu0 %v693
    %3146 = vmatprep.subr.mxu0 %v700
    %3147 = vmatpush1.msra.mxu0 %v699
    %3148 = vmatprep.subr.mxu0 %v706
    %3149 = vmatpush1.msra.mxu0 %v705
    %3150 = vmatprep.subr.mxu0 %v712
    %3151 = vmatpush1.msra.mxu0 %v711
    %3152 = vmatprep.subr.mxu0 %v718
    %3153 = vmatpush1.msra.mxu0 %v717
    %3154 = vmatprep.mubr.f32.mxu0 %v3016
    %3155 = vmatmul.mubr.f32.gmra.mrb[0].mxu0 %v3015
    %v3156 = vpop.f32.mrb[0].mxu0
    %v3157 = vadd.f32 %v740, %v3156
    %v3158 = vpop.f32.mrb[0].mxu0
    %v3159 = vadd.f32 %v744, %v3158
    %3160 = vdwg.mxu0
    %3161 = vmatprep.subr.mxu0 %v534
    %3162 = vmatpush1.msra.mxu0 %v533
    %3163 = vmatprep.subr.mxu0 %v540
    %3164 = vmatpush1.msra.mxu0 %v539
    %3165 = vmatprep.subr.mxu0 %v546
    %3166 = vmatpush1.msra.mxu0 %v545
    %3167 = vmatprep.subr.mxu0 %v552
    %3168 = vmatpush1.msra.mxu0 %v551
    %3169 = vmatprep.subr.mxu0 %v558
    %3170 = vmatpush1.msra.mxu0 %v557
    %3171 = vmatprep.subr.mxu0 %v564
    %3172 = vmatpush1.msra.mxu0 %v563
    %3173 = vmatprep.subr.mxu0 %v570
    %3174 = vmatpush1.msra.mxu0 %v569
    %3175 = vmatprep.subr.mxu0 %v576
    %3176 = vmatpush1.msra.mxu0 %v575
    %3177 = vmatprep.subr.mxu0 %v582
    %3178 = vmatpush1.msra.mxu0 %v581
    %3179 = vmatprep.subr.mxu0 %v588
    %3180 = vmatpush1.msra.mxu0 %v587
    %3181 = vmatprep.subr.mxu0 %v594
    %3182 = vmatpush1.msra.mxu0 %v593
    %3183 = vmatprep.subr.mxu0 %v600
    %3184 = vmatpush1.msra.mxu0 %v599
    %3185 = vmatprep.subr.mxu0 %v606
    %3186 = vmatpush1.msra.mxu0 %v605
    %3187 = vmatprep.subr.mxu0 %v612
    %3188 = vmatpush1.msra.mxu0 %v611
    %3189 = vmatprep.subr.mxu0 %v618
    %3190 = vmatpush1.msra.mxu0 %v617
    %3191 = vmatprep.subr.mxu0 %v624
    %3192 = vmatpush1.msra.mxu0 %v623
    %3193 = vmatprep.subr.mxu0 %v630
    %3194 = vmatpush1.msra.mxu0 %v629
    %3195 = vmatprep.subr.mxu0 %v636
    %3196 = vmatpush1.msra.mxu0 %v635
    %3197 = vmatprep.subr.mxu0 %v642
    %3198 = vmatpush1.msra.mxu0 %v641
    %3199 = vmatprep.subr.mxu0 %v648
    %3200 = vmatpush1.msra.mxu0 %v647
    %3201 = vmatprep.subr.mxu0 %v654
    %3202 = vmatpush1.msra.mxu0 %v653
    %3203 = vmatprep.subr.mxu0 %v660
    %3204 = vmatpush1.msra.mxu0 %v659
    %3205 = vmatprep.subr.mxu0 %v666
    %3206 = vmatpush1.msra.mxu0 %v665
    %3207 = vmatprep.subr.mxu0 %v672
    %3208 = vmatpush1.msra.mxu0 %v671
    %3209 = vmatprep.subr.mxu0 %v678
    %3210 = vmatpush1.msra.mxu0 %v677
    %3211 = vmatprep.subr.mxu0 %v684
    %3212 = vmatpush1.msra.mxu0 %v683
    %3213 = vmatprep.subr.mxu0 %v690
    %3214 = vmatpush1.msra.mxu0 %v689
    %3215 = vmatprep.subr.mxu0 %v696
    %3216 = vmatpush1.msra.mxu0 %v695
    %3217 = vmatprep.subr.mxu0 %v702
    %3218 = vmatpush1.msra.mxu0 %v701
    %3219 = vmatprep.subr.mxu0 %v708
    %3220 = vmatpush1.msra.mxu0 %v707
    %3221 = vmatprep.subr.mxu0 %v714
    %3222 = vmatpush1.msra.mxu0 %v713
    %3223 = vmatprep.subr.mxu0 %v720
    %3224 = vmatpush1.msra.mxu0 %v719
    %3225 = vmatprep.mubr.f32.mxu0 %v3016
    %3226 = vmatmul.mubr.f32.gmra.mrb[0].mxu0 %v3015
    %v3227 = vpop.f32.mrb[0].mxu0
    %v3228 = vadd.f32 %v748, %v3227
    %v3229 = vpop.f32.mrb[0].mxu0
    %v3230 = vadd.f32 %v752, %v3229
    %3231 = vdwg.mxu0
    %v3232 = vadd.f32 %v3007, %v3086
    %v3233 = vadd.f32 %v3008, %v3088
    %v3234 = vxor.u32 %v3232, 2147483648
    %v3235 = vxor.u32 %v3233, 2147483648
    %v3236 = vmul.f32 %v3234, 1.442695
    %v3237 = vpow.pop %v3236
    %v3238 = vmul.f32 %v3235, 1.442695
    %v3239 = vpow.pop %v3238
    %v3240 = vadd.f32 %v3237, 1.0
    %v3241 = vadd.f32 %v3239, 1.0
    %v3242 = vrcp.pop %v3240
    %v3243 = vmul.f32 1.0, %v3242
    %v3244 = vrcp.pop %v3241
    %v3245 = vmul.f32 1.0, %v3244
    %v3246 = vadd.f32 %v3009, %v3157
    %v3247 = vadd.f32 %v3010, %v3159
    %v3248 = vxor.u32 %v3246, 2147483648
    %v3249 = vxor.u32 %v3247, 2147483648
    %v3250 = vmul.f32 %v3248, 1.442695
    %v3251 = vpow.pop %v3250
    %v3252 = vmul.f32 %v3249, 1.442695
    %v3253 = vpow.pop %v3252
    %v3254 = vadd.f32 %v3251, 1.0
    %v3255 = vadd.f32 %v3253, 1.0
    %v3256 = vrcp.pop %v3254
    %v3257 = vmul.f32 1.0, %v3256
    %v3258 = vrcp.pop %v3255
    %v3259 = vmul.f32 1.0, %v3258
    %v3260 = vmul.f32 %v3243, %v3228
    %v3261 = vmul.f32 %v3245, %v3230
    %v3262 = vadd.f32 %v3011, %v3260
    %v3263 = vadd.f32 %v3012, %v3261
    %v3264 = vtanh.pop %v3262
    %v3265 = vtanh.pop %v3263
    %v3266 = vsub.f32 1.0, %v3257
    %v3267 = vsub.f32 1.0, %v3259
    %v3268 = vmul.f32 %v3266, %v3264
    %v3269 = vmul.f32 %v3267, %v3265
    %v3270 = vmul.f32 %v3257, %v3015
    %v3271 = vmul.f32 %v3259, %v3016
    %v3272 = vadd.f32 %v3268, %v3270
    %v3273 = vadd.f32 %v3269, %v3271
    %v3274 = vld [vmem:[#allocation2 + $0x60] sm:$0xc]
    %v3275 = vld [vmem:[#allocation2 + $0x68] sm:$0xc]
    %v3276 = vld [vmem:[#allocation2 + $0x70] sm:$0xc]
    %v3277 = vld [vmem:[#allocation2 + $0x78] sm:$0xc]
    %v3278 = vld [vmem:[#allocation2 + $0x80] sm:$0xc]
    %v3279 = vld [vmem:[#allocation2 + $0x88] sm:$0xc]
    %3280 = vmatprep.subr.mxu0 %v530
    %3281 = vmatpush1.msra.mxu0 %v529
    %3282 = vmatprep.subr.mxu0 %v536
    %3283 = vmatpush1.msra.mxu0 %v535
    %3284 = vmatprep.subr.mxu0 %v542
    %3285 = vmatpush1.msra.mxu0 %v541
    %3286 = vmatprep.subr.mxu0 %v548
    %3287 = vmatpush1.msra.mxu0 %v547
    %3288 = vmatprep.subr.mxu0 %v554
    %3289 = vmatpush1.msra.mxu0 %v553
    %3290 = vmatprep.subr.mxu0 %v560
    %3291 = vmatpush1.msra.mxu0 %v559
    %3292 = vmatprep.subr.mxu0 %v566
    %3293 = vmatpush1.msra.mxu0 %v565
    %3294 = vmatprep.subr.mxu0 %v572
    %3295 = vmatpush1.msra.mxu0 %v571
    %3296 = vmatprep.subr.mxu0 %v578
    %3297 = vmatpush1.msra.mxu0 %v577
    %3298 = vmatprep.subr.mxu0 %v584
    %3299 = vmatpush1.msra.mxu0 %v583
    %3300 = vmatprep.subr.mxu0 %v590
    %3301 = vmatpush1.msra.mxu0 %v589
    %3302 = vmatprep.subr.mxu0 %v596
    %3303 = vmatpush1.msra.mxu0 %v595
    %3304 = vmatprep.subr.mxu0 %v602
    %3305 = vmatpush1.msra.mxu0 %v601
    %3306 = vmatprep.subr.mxu0 %v608
    %3307 = vmatpush1.msra.mxu0 %v607
    %3308 = vmatprep.subr.mxu0 %v614
    %3309 = vmatpush1.msra.mxu0 %v613
    %3310 = vmatprep.subr.mxu0 %v620
    %3311 = vmatpush1.msra.mxu0 %v619
    %3312 = vmatprep.subr.mxu0 %v626
    %3313 = vmatpush1.msra.mxu0 %v625
    %3314 = vmatprep.subr.mxu0 %v632
    %3315 = vmatpush1.msra.mxu0 %v631
    %3316 = vmatprep.subr.mxu0 %v638
    %3317 = vmatpush1.msra.mxu0 %v637
    %3318 = vmatprep.subr.mxu0 %v644
    %3319 = vmatpush1.msra.mxu0 %v643
    %3320 = vmatprep.subr.mxu0 %v650
    %3321 = vmatpush1.msra.mxu0 %v649
    %3322 = vmatprep.subr.mxu0 %v656
    %3323 = vmatpush1.msra.mxu0 %v655
    %3324 = vmatprep.subr.mxu0 %v662
    %3325 = vmatpush1.msra.mxu0 %v661
    %3326 = vmatprep.subr.mxu0 %v668
    %3327 = vmatpush1.msra.mxu0 %v667
    %3328 = vmatprep.subr.mxu0 %v674
    %3329 = vmatpush1.msra.mxu0 %v673
    %3330 = vmatprep.subr.mxu0 %v680
    %3331 = vmatpush1.msra.mxu0 %v679
    %3332 = vmatprep.subr.mxu0 %v686
    %3333 = vmatpush1.msra.mxu0 %v685
    %3334 = vmatprep.subr.mxu0 %v692
    %3335 = vmatpush1.msra.mxu0 %v691
    %3336 = vmatprep.subr.mxu0 %v698
    %3337 = vmatpush1.msra.mxu0 %v697
    %3338 = vmatprep.subr.mxu0 %v704
    %3339 = vmatpush1.msra.mxu0 %v703
    %3340 = vmatprep.subr.mxu0 %v710
    %3341 = vmatpush1.msra.mxu0 %v709
    %3342 = vmatprep.subr.mxu0 %v716
    %3343 = vmatpush1.msra.mxu0 %v715
    %3344 = vmatprep.mubr.f32.mxu0 %v3273
    %3345 = vmatmul.mubr.f32.gmra.mrb[0].mxu0 %v3272
    %v3346 = vpop.f32.mrb[0].mxu0
    %v3347 = vadd.f32 %v732, %v3346
    %v3348 = vpop.f32.mrb[0].mxu0
    %v3349 = vadd.f32 %v736, %v3348
    %3350 = vdwg.mxu0
    %3351 = vmatprep.subr.mxu0 %v532
    %3352 = vmatpush1.msra.mxu0 %v531
    %3353 = vmatprep.subr.mxu0 %v538
    %3354 = vmatpush1.msra.mxu0 %v537
    %3355 = vmatprep.subr.mxu0 %v544
    %3356 = vmatpush1.msra.mxu0 %v543
    %3357 = vmatprep.subr.mxu0 %v550
    %3358 = vmatpush1.msra.mxu0 %v549
    %3359 = vmatprep.subr.mxu0 %v556
    %3360 = vmatpush1.msra.mxu0 %v555
    %3361 = vmatprep.subr.mxu0 %v562
    %3362 = vmatpush1.msra.mxu0 %v561
    %3363 = vmatprep.subr.mxu0 %v568
    %3364 = vmatpush1.msra.mxu0 %v567
    %3365 = vmatprep.subr.mxu0 %v574
    %3366 = vmatpush1.msra.mxu0 %v573
    %3367 = vmatprep.subr.mxu0 %v580
    %3368 = vmatpush1.msra.mxu0 %v579
    %3369 = vmatprep.subr.mxu0 %v586
    %3370 = vmatpush1.msra.mxu0 %v585
    %3371 = vmatprep.subr.mxu0 %v592
    %3372 = vmatpush1.msra.mxu0 %v591
    %3373 = vmatprep.subr.mxu0 %v598
    %3374 = vmatpush1.msra.mxu0 %v597
    %3375 = vmatprep.subr.mxu0 %v604
    %3376 = vmatpush1.msra.mxu0 %v603
    %3377 = vmatprep.subr.mxu0 %v610
    %3378 = vmatpush1.msra.mxu0 %v609
    %3379 = vmatprep.subr.mxu0 %v616
    %3380 = vmatpush1.msra.mxu0 %v615
    %3381 = vmatprep.subr.mxu0 %v622
    %3382 = vmatpush1.msra.mxu0 %v621
    %3383 = vmatprep.subr.mxu0 %v628
    %3384 = vmatpush1.msra.mxu0 %v627
    %3385 = vmatprep.subr.mxu0 %v634
    %3386 = vmatpush1.msra.mxu0 %v633
    %3387 = vmatprep.subr.mxu0 %v640
    %3388 = vmatpush1.msra.mxu0 %v639
    %3389 = vmatprep.subr.mxu0 %v646
    %3390 = vmatpush1.msra.mxu0 %v645
    %3391 = vmatprep.subr.mxu0 %v652
    %3392 = vmatpush1.msra.mxu0 %v651
    %3393 = vmatprep.subr.mxu0 %v658
    %3394 = vmatpush1.msra.mxu0 %v657
    %3395 = vmatprep.subr.mxu0 %v664
    %3396 = vmatpush1.msra.mxu0 %v663
    %3397 = vmatprep.subr.mxu0 %v670
    %3398 = vmatpush1.msra.mxu0 %v669
    %3399 = vmatprep.subr.mxu0 %v676
    %3400 = vmatpush1.msra.mxu0 %v675
    %3401 = vmatprep.subr.mxu0 %v682
    %3402 = vmatpush1.msra.mxu0 %v681
    %3403 = vmatprep.subr.mxu0 %v688
    %3404 = vmatpush1.msra.mxu0 %v687
    %3405 = vmatprep.subr.mxu0 %v694
    %3406 = vmatpush1.msra.mxu0 %v693
    %3407 = vmatprep.subr.mxu0 %v700
    %3408 = vmatpush1.msra.mxu0 %v699
    %3409 = vmatprep.subr.mxu0 %v706
    %3410 = vmatpush1.msra.mxu0 %v705
    %3411 = vmatprep.subr.mxu0 %v712
    %3412 = vmatpush1.msra.mxu0 %v711
    %3413 = vmatprep.subr.mxu0 %v718
    %3414 = vmatpush1.msra.mxu0 %v717
    %3415 = vmatprep.mubr.f32.mxu0 %v3273
    %3416 = vmatmul.mubr.f32.gmra.mrb[0].mxu0 %v3272
    %v3417 = vpop.f32.mrb[0].mxu0
    %v3418 = vadd.f32 %v740, %v3417
    %v3419 = vpop.f32.mrb[0].mxu0
    %v3420 = vadd.f32 %v744, %v3419
    %3421 = vdwg.mxu0
    %3422 = vmatprep.subr.mxu0 %v534
    %3423 = vmatpush1.msra.mxu0 %v533
    %3424 = vmatprep.subr.mxu0 %v540
    %3425 = vmatpush1.msra.mxu0 %v539
    %3426 = vmatprep.subr.mxu0 %v546
    %3427 = vmatpush1.msra.mxu0 %v545
    %3428 = vmatprep.subr.mxu0 %v552
    %3429 = vmatpush1.msra.mxu0 %v551
    %3430 = vmatprep.subr.mxu0 %v558
    %3431 = vmatpush1.msra.mxu0 %v557
    %3432 = vmatprep.subr.mxu0 %v564
    %3433 = vmatpush1.msra.mxu0 %v563
    %3434 = vmatprep.subr.mxu0 %v570
    %3435 = vmatpush1.msra.mxu0 %v569
    %3436 = vmatprep.subr.mxu0 %v576
    %3437 = vmatpush1.msra.mxu0 %v575
    %3438 = vmatprep.subr.mxu0 %v582
    %3439 = vmatpush1.msra.mxu0 %v581
    %3440 = vmatprep.subr.mxu0 %v588
    %3441 = vmatpush1.msra.mxu0 %v587
    %3442 = vmatprep.subr.mxu0 %v594
    %3443 = vmatpush1.msra.mxu0 %v593
    %3444 = vmatprep.subr.mxu0 %v600
    %3445 = vmatpush1.msra.mxu0 %v599
    %3446 = vmatprep.subr.mxu0 %v606
    %3447 = vmatpush1.msra.mxu0 %v605
    %3448 = vmatprep.subr.mxu0 %v612
    %3449 = vmatpush1.msra.mxu0 %v611
    %3450 = vmatprep.subr.mxu0 %v618
    %3451 = vmatpush1.msra.mxu0 %v617
    %3452 = vmatprep.subr.mxu0 %v624
    %3453 = vmatpush1.msra.mxu0 %v623
    %3454 = vmatprep.subr.mxu0 %v630
    %3455 = vmatpush1.msra.mxu0 %v629
    %3456 = vmatprep.subr.mxu0 %v636
    %3457 = vmatpush1.msra.mxu0 %v635
    %3458 = vmatprep.subr.mxu0 %v642
    %3459 = vmatpush1.msra.mxu0 %v641
    %3460 = vmatprep.subr.mxu0 %v648
    %3461 = vmatpush1.msra.mxu0 %v647
    %3462 = vmatprep.subr.mxu0 %v654
    %3463 = vmatpush1.msra.mxu0 %v653
    %3464 = vmatprep.subr.mxu0 %v660
    %3465 = vmatpush1.msra.mxu0 %v659
    %3466 = vmatprep.subr.mxu0 %v666
    %3467 = vmatpush1.msra.mxu0 %v665
    %3468 = vmatprep.subr.mxu0 %v672
    %3469 = vmatpush1.msra.mxu0 %v671
    %3470 = vmatprep.subr.mxu0 %v678
    %3471 = vmatpush1.msra.mxu0 %v677
    %3472 = vmatprep.subr.mxu0 %v684
    %3473 = vmatpush1.msra.mxu0 %v683
    %3474 = vmatprep.subr.mxu0 %v690
    %3475 = vmatpush1.msra.mxu0 %v689
    %3476 = vmatprep.subr.mxu0 %v696
    %3477 = vmatpush1.msra.mxu0 %v695
    %3478 = vmatprep.subr.mxu0 %v702
    %3479 = vmatpush1.msra.mxu0 %v701
    %3480 = vmatprep.subr.mxu0 %v708
    %3481 = vmatpush1.msra.mxu0 %v707
    %3482 = vmatprep.subr.mxu0 %v714
    %3483 = vmatpush1.msra.mxu0 %v713
    %3484 = vmatprep.subr.mxu0 %v720
    %3485 = vmatpush1.msra.mxu0 %v719
    %3486 = vmatprep.mubr.f32.mxu0 %v3273
    %3487 = vmatmul.mubr.f32.gmra.mrb[0].mxu0 %v3272
    %v3488 = vpop.f32.mrb[0].mxu0
    %v3489 = vadd.f32 %v748, %v3488
    %v3490 = vpop.f32.mrb[0].mxu0
    %v3491 = vadd.f32 %v752, %v3490
    %3492 = vdwg.mxu0
    %v3495 = vrot.slane %v3347, 6
    %v3496 = vrot.slane %v3349, 6
    %v3499 = vadd.f32 %v3274, %v3495
    %v3500 = vadd.f32 %v3275, %v3496
    %v3501 = vxor.u32 %v3499, 2147483648
    %v3502 = vxor.u32 %v3500, 2147483648
    %v3503 = vmul.f32 %v3501, 1.442695
    %v3504 = vpow.pop %v3503
    %v3505 = vmul.f32 %v3502, 1.442695
    %v3506 = vpow.pop %v3505
    %v3507 = vadd.f32 %v3504, 1.0
    %v3508 = vadd.f32 %v3506, 1.0
    %v3509 = vrcp.pop %v3507
    %v3510 = vmul.f32 1.0, %v3509
    %v3511 = vrcp.pop %v3508
    %v3512 = vmul.f32 1.0, %v3511
    %v3515 = vrot.slane %v3418, 6
    %v3516 = vrot.slane %v3420, 6
    %v3519 = vadd.f32 %v3276, %v3515
    %v3520 = vadd.f32 %v3277, %v3516
    %v3521 = vxor.u32 %v3519, 2147483648
    %v3522 = vxor.u32 %v3520, 2147483648
    %v3523 = vmul.f32 %v3521, 1.442695
    %v3524 = vpow.pop %v3523
    %v3525 = vmul.f32 %v3522, 1.442695
    %v3526 = vpow.pop %v3525
    %v3527 = vadd.f32 %v3524, 1.0
    %v3528 = vadd.f32 %v3526, 1.0
    %v3529 = vrcp.pop %v3527
    %v3530 = vmul.f32 1.0, %v3529
    %v3531 = vrcp.pop %v3528
    %v3532 = vmul.f32 1.0, %v3531
    %v3535 = vrot.slane %v3489, 6
    %v3536 = vrot.slane %v3491, 6
    %v3539 = vmul.f32 %v3510, %v3535
    %v3540 = vmul.f32 %v3512, %v3536
    %v3541 = vadd.f32 %v3278, %v3539
    %v3542 = vadd.f32 %v3279, %v3540
    %v3543 = vtanh.pop %v3541
    %v3544 = vtanh.pop %v3542
    %v3545 = vsub.f32 1.0, %v3530
    %v3546 = vsub.f32 1.0, %v3532
    %v3547 = vmul.f32 %v3545, %v3543
    %v3548 = vmul.f32 %v3546, %v3544
    %v3551 = vrot.slane %v3272, 6
    %v3552 = vrot.slane %v3273, 6
    %v3555 = vmul.f32 %v3530, %v3551
    %v3556 = vmul.f32 %v3532, %v3552
    %v3557 = vadd.f32 %v3547, %v3555
    %v3558 = vadd.f32 %v3548, %v3556
    %v3559 = vld [vmem:[#allocation2 + $0x60] sm:$0x30]
    %v3560 = vld [vmem:[#allocation2 + $0x68] sm:$0x30]
    %v3561 = vld [vmem:[#allocation2 + $0x70] sm:$0x30]
    %v3562 = vld [vmem:[#allocation2 + $0x78] sm:$0x30]
    %v3563 = vld [vmem:[#allocation2 + $0x80] sm:$0x30]
    %v3564 = vld [vmem:[#allocation2 + $0x88] sm:$0x30]
    %v3567 = vrot.slane %v3557, 2
    %v3568 = vrot.slane %v3558, 2
    %3571 = vmatprep.subr.mxu0 %v530
    %3572 = vmatpush1.msra.mxu0 %v529
    %3573 = vmatprep.subr.mxu0 %v536
    %3574 = vmatpush1.msra.mxu0 %v535
    %3575 = vmatprep.subr.mxu0 %v542
    %3576 = vmatpush1.msra.mxu0 %v541
    %3577 = vmatprep.subr.mxu0 %v548
    %3578 = vmatpush1.msra.mxu0 %v547
    %3579 = vmatprep.subr.mxu0 %v554
    %3580 = vmatpush1.msra.mxu0 %v553
    %3581 = vmatprep.subr.mxu0 %v560
    %3582 = vmatpush1.msra.mxu0 %v559
    %3583 = vmatprep.subr.mxu0 %v566
    %3584 = vmatpush1.msra.mxu0 %v565
    %3585 = vmatprep.subr.mxu0 %v572
    %3586 = vmatpush1.msra.mxu0 %v571
    %3587 = vmatprep.subr.mxu0 %v578
    %3588 = vmatpush1.msra.mxu0 %v577
    %3589 = vmatprep.subr.mxu0 %v584
    %3590 = vmatpush1.msra.mxu0 %v583
    %3591 = vmatprep.subr.mxu0 %v590
    %3592 = vmatpush1.msra.mxu0 %v589
    %3593 = vmatprep.subr.mxu0 %v596
    %3594 = vmatpush1.msra.mxu0 %v595
    %3595 = vmatprep.subr.mxu0 %v602
    %3596 = vmatpush1.msra.mxu0 %v601
    %3597 = vmatprep.subr.mxu0 %v608
    %3598 = vmatpush1.msra.mxu0 %v607
    %3599 = vmatprep.subr.mxu0 %v614
    %3600 = vmatpush1.msra.mxu0 %v613
    %3601 = vmatprep.subr.mxu0 %v620
    %3602 = vmatpush1.msra.mxu0 %v619
    %3603 = vmatprep.subr.mxu0 %v626
    %3604 = vmatpush1.msra.mxu0 %v625
    %3605 = vmatprep.subr.mxu0 %v632
    %3606 = vmatpush1.msra.mxu0 %v631
    %3607 = vmatprep.subr.mxu0 %v638
    %3608 = vmatpush1.msra.mxu0 %v637
    %3609 = vmatprep.subr.mxu0 %v644
    %3610 = vmatpush1.msra.mxu0 %v643
    %3611 = vmatprep.subr.mxu0 %v650
    %3612 = vmatpush1.msra.mxu0 %v649
    %3613 = vmatprep.subr.mxu0 %v656
    %3614 = vmatpush1.msra.mxu0 %v655
    %3615 = vmatprep.subr.mxu0 %v662
    %3616 = vmatpush1.msra.mxu0 %v661
    %3617 = vmatprep.subr.mxu0 %v668
    %3618 = vmatpush1.msra.mxu0 %v667
    %3619 = vmatprep.subr.mxu0 %v674
    %3620 = vmatpush1.msra.mxu0 %v673
    %3621 = vmatprep.subr.mxu0 %v680
    %3622 = vmatpush1.msra.mxu0 %v679
    %3623 = vmatprep.subr.mxu0 %v686
    %3624 = vmatpush1.msra.mxu0 %v685
    %3625 = vmatprep.subr.mxu0 %v692
    %3626 = vmatpush1.msra.mxu0 %v691
    %3627 = vmatprep.subr.mxu0 %v698
    %3628 = vmatpush1.msra.mxu0 %v697
    %3629 = vmatprep.subr.mxu0 %v704
    %3630 = vmatpush1.msra.mxu0 %v703
    %3631 = vmatprep.subr.mxu0 %v710
    %3632 = vmatpush1.msra.mxu0 %v709
    %3633 = vmatprep.subr.mxu0 %v716
    %3634 = vmatpush1.msra.mxu0 %v715
    %3635 = vmatprep.mubr.f32.mxu0 %v3568
    %3636 = vmatmul.mubr.f32.gmra.mrb[0].mxu0 %v3567
    %v3637 = vpop.f32.mrb[0].mxu0
    %v3638 = vadd.f32 %v732, %v3637
    %v3639 = vpop.f32.mrb[0].mxu0
    %v3640 = vadd.f32 %v736, %v3639
    %3641 = vdwg.mxu0
    %3642 = vmatprep.subr.mxu0 %v532
    %3643 = vmatpush1.msra.mxu0 %v531
    %3644 = vmatprep.subr.mxu0 %v538
    %3645 = vmatpush1.msra.mxu0 %v537
    %3646 = vmatprep.subr.mxu0 %v544
    %3647 = vmatpush1.msra.mxu0 %v543
    %3648 = vmatprep.subr.mxu0 %v550
    %3649 = vmatpush1.msra.mxu0 %v549
    %3650 = vmatprep.subr.mxu0 %v556
    %3651 = vmatpush1.msra.mxu0 %v555
    %3652 = vmatprep.subr.mxu0 %v562
    %3653 = vmatpush1.msra.mxu0 %v561
    %3654 = vmatprep.subr.mxu0 %v568
    %3655 = vmatpush1.msra.mxu0 %v567
    %3656 = vmatprep.subr.mxu0 %v574
    %3657 = vmatpush1.msra.mxu0 %v573
    %3658 = vmatprep.subr.mxu0 %v580
    %3659 = vmatpush1.msra.mxu0 %v579
    %3660 = vmatprep.subr.mxu0 %v586
    %3661 = vmatpush1.msra.mxu0 %v585
    %3662 = vmatprep.subr.mxu0 %v592
    %3663 = vmatpush1.msra.mxu0 %v591
    %3664 = vmatprep.subr.mxu0 %v598
    %3665 = vmatpush1.msra.mxu0 %v597
    %3666 = vmatprep.subr.mxu0 %v604
    %3667 = vmatpush1.msra.mxu0 %v603
    %3668 = vmatprep.subr.mxu0 %v610
    %3669 = vmatpush1.msra.mxu0 %v609
    %3670 = vmatprep.subr.mxu0 %v616
    %3671 = vmatpush1.msra.mxu0 %v615
    %3672 = vmatprep.subr.mxu0 %v622
    %3673 = vmatpush1.msra.mxu0 %v621
    %3674 = vmatprep.subr.mxu0 %v628
    %3675 = vmatpush1.msra.mxu0 %v627
    %3676 = vmatprep.subr.mxu0 %v634
    %3677 = vmatpush1.msra.mxu0 %v633
    %3678 = vmatprep.subr.mxu0 %v640
    %3679 = vmatpush1.msra.mxu0 %v639
    %3680 = vmatprep.subr.mxu0 %v646
    %3681 = vmatpush1.msra.mxu0 %v645
    %3682 = vmatprep.subr.mxu0 %v652
    %3683 = vmatpush1.msra.mxu0 %v651
    %3684 = vmatprep.subr.mxu0 %v658
    %3685 = vmatpush1.msra.mxu0 %v657
    %3686 = vmatprep.subr.mxu0 %v664
    %3687 = vmatpush1.msra.mxu0 %v663
    %3688 = vmatprep.subr.mxu0 %v670
    %3689 = vmatpush1.msra.mxu0 %v669
    %3690 = vmatprep.subr.mxu0 %v676
    %3691 = vmatpush1.msra.mxu0 %v675
    %3692 = vmatprep.subr.mxu0 %v682
    %3693 = vmatpush1.msra.mxu0 %v681
    %3694 = vmatprep.subr.mxu0 %v688
    %3695 = vmatpush1.msra.mxu0 %v687
    %3696 = vmatprep.subr.mxu0 %v694
    %3697 = vmatpush1.msra.mxu0 %v693
    %3698 = vmatprep.subr.mxu0 %v700
    %3699 = vmatpush1.msra.mxu0 %v699
    %3700 = vmatprep.subr.mxu0 %v706
    %3701 = vmatpush1.msra.mxu0 %v705
    %3702 = vmatprep.subr.mxu0 %v712
    %3703 = vmatpush1.msra.mxu0 %v711
    %3704 = vmatprep.subr.mxu0 %v718
    %3705 = vmatpush1.msra.mxu0 %v717
    %3706 = vmatprep.mubr.f32.mxu0 %v3568
    %3707 = vmatmul.mubr.f32.gmra.mrb[0].mxu0 %v3567
    %v3708 = vpop.f32.mrb[0].mxu0
    %v3709 = vadd.f32 %v740, %v3708
    %v3710 = vpop.f32.mrb[0].mxu0
    %v3711 = vadd.f32 %v744, %v3710
    %3712 = vdwg.mxu0
    %3713 = vmatprep.subr.mxu0 %v534
    %3714 = vmatpush1.msra.mxu0 %v533
    %3715 = vmatprep.subr.mxu0 %v540
    %3716 = vmatpush1.msra.mxu0 %v539
    %3717 = vmatprep.subr.mxu0 %v546
    %3718 = vmatpush1.msra.mxu0 %v545
    %3719 = vmatprep.subr.mxu0 %v552
    %3720 = vmatpush1.msra.mxu0 %v551
    %3721 = vmatprep.subr.mxu0 %v558
    %3722 = vmatpush1.msra.mxu0 %v557
    %3723 = vmatprep.subr.mxu0 %v564
    %3724 = vmatpush1.msra.mxu0 %v563
    %3725 = vmatprep.subr.mxu0 %v570
    %3726 = vmatpush1.msra.mxu0 %v569
    %3727 = vmatprep.subr.mxu0 %v576
    %3728 = vmatpush1.msra.mxu0 %v575
    %3729 = vmatprep.subr.mxu0 %v582
    %3730 = vmatpush1.msra.mxu0 %v581
    %3731 = vmatprep.subr.mxu0 %v588
    %3732 = vmatpush1.msra.mxu0 %v587
    %3733 = vmatprep.subr.mxu0 %v594
    %3734 = vmatpush1.msra.mxu0 %v593
    %3735 = vmatprep.subr.mxu0 %v600
    %3736 = vmatpush1.msra.mxu0 %v599
    %3737 = vmatprep.subr.mxu0 %v606
    %3738 = vmatpush1.msra.mxu0 %v605
    %3739 = vmatprep.subr.mxu0 %v612
    %3740 = vmatpush1.msra.mxu0 %v611
    %3741 = vmatprep.subr.mxu0 %v618
    %3742 = vmatpush1.msra.mxu0 %v617
    %3743 = vmatprep.subr.mxu0 %v624
    %3744 = vmatpush1.msra.mxu0 %v623
    %3745 = vmatprep.subr.mxu0 %v630
    %3746 = vmatpush1.msra.mxu0 %v629
    %3747 = vmatprep.subr.mxu0 %v636
    %3748 = vmatpush1.msra.mxu0 %v635
    %3749 = vmatprep.subr.mxu0 %v642
    %3750 = vmatpush1.msra.mxu0 %v641
    %3751 = vmatprep.subr.mxu0 %v648
    %3752 = vmatpush1.msra.mxu0 %v647
    %3753 = vmatprep.subr.mxu0 %v654
    %3754 = vmatpush1.msra.mxu0 %v653
    %3755 = vmatprep.subr.mxu0 %v660
    %3756 = vmatpush1.msra.mxu0 %v659
    %3757 = vmatprep.subr.mxu0 %v666
    %3758 = vmatpush1.msra.mxu0 %v665
    %3759 = vmatprep.subr.mxu0 %v672
    %3760 = vmatpush1.msra.mxu0 %v671
    %3761 = vmatprep.subr.mxu0 %v678
    %3762 = vmatpush1.msra.mxu0 %v677
    %3763 = vmatprep.subr.mxu0 %v684
    %3764 = vmatpush1.msra.mxu0 %v683
    %3765 = vmatprep.subr.mxu0 %v690
    %3766 = vmatpush1.msra.mxu0 %v689
    %3767 = vmatprep.subr.mxu0 %v696
    %3768 = vmatpush1.msra.mxu0 %v695
    %3769 = vmatprep.subr.mxu0 %v702
    %3770 = vmatpush1.msra.mxu0 %v701
    %3771 = vmatprep.subr.mxu0 %v708
    %3772 = vmatpush1.msra.mxu0 %v707
    %3773 = vmatprep.subr.mxu0 %v714
    %3774 = vmatpush1.msra.mxu0 %v713
    %3775 = vmatprep.subr.mxu0 %v720
    %3776 = vmatpush1.msra.mxu0 %v719
    %3777 = vmatprep.mubr.f32.mxu0 %v3568
    %3778 = vmatmul.mubr.f32.gmra.mrb[0].mxu0 %v3567
    %v3779 = vpop.f32.mrb[0].mxu0
    %v3780 = vadd.f32 %v748, %v3779
    %v3781 = vpop.f32.mrb[0].mxu0
    %v3782 = vadd.f32 %v752, %v3781
    %3783 = vdwg.mxu0
    %v3786 = vrot.slane %v3638, 4
    %v3787 = vrot.slane %v3640, 4
    %v3790 = vadd.f32 %v3559, %v3786
    %v3791 = vadd.f32 %v3560, %v3787
    %v3792 = vxor.u32 %v3790, 2147483648
    %v3793 = vxor.u32 %v3791, 2147483648
    %v3794 = vmul.f32 %v3792, 1.442695
    %v3795 = vpow.pop %v3794
    %v3796 = vmul.f32 %v3793, 1.442695
    %v3797 = vpow.pop %v3796
    %v3798 = vadd.f32 %v3795, 1.0
    %v3799 = vadd.f32 %v3797, 1.0
    %v3800 = vrcp.pop %v3798
    %v3801 = vmul.f32 1.0, %v3800
    %v3802 = vrcp.pop %v3799
    %v3803 = vmul.f32 1.0, %v3802
    %v3806 = vrot.slane %v3709, 4
    %v3807 = vrot.slane %v3711, 4
    %v3810 = vadd.f32 %v3561, %v3806
    %v3811 = vadd.f32 %v3562, %v3807
    %v3812 = vxor.u32 %v3810, 2147483648
    %v3813 = vxor.u32 %v3811, 2147483648
    %v3814 = vmul.f32 %v3812, 1.442695
    %v3815 = vpow.pop %v3814
    %v3816 = vmul.f32 %v3813, 1.442695
    %v3817 = vpow.pop %v3816
    %v3818 = vadd.f32 %v3815, 1.0
    %v3819 = vadd.f32 %v3817, 1.0
    %v3820 = vrcp.pop %v3818
    %v3821 = vmul.f32 1.0, %v3820
    %v3822 = vrcp.pop %v3819
    %v3823 = vmul.f32 1.0, %v3822
    %v3826 = vrot.slane %v3780, 4
    %v3827 = vrot.slane %v3782, 4
    %v3830 = vmul.f32 %v3801, %v3826
    %v3831 = vmul.f32 %v3803, %v3827
    %v3832 = vadd.f32 %v3563, %v3830
    %v3833 = vadd.f32 %v3564, %v3831
    %v3834 = vtanh.pop %v3832
    %v3835 = vtanh.pop %v3833
    %v3836 = vsub.f32 1.0, %v3821
    %v3837 = vsub.f32 1.0, %v3823
    %v3838 = vmul.f32 %v3836, %v3834
    %v3839 = vmul.f32 %v3837, %v3835
    %v3840 = vrot.slane %v3557, 6
    %v3841 = vrot.slane %v3558, 6
    %v3844 = vmul.f32 %v3821, %v3840
    %v3845 = vmul.f32 %v3823, %v3841
    %v3846 = vadd.f32 %v3838, %v3844
    %v3847 = vadd.f32 %v3839, %v3845
    %v3848 = vld [vmem:[#allocation2 + $0x60] sm:$0xc0]
    %v3849 = vld [vmem:[#allocation2 + $0x68] sm:$0xc0]
    %v3850 = vld [vmem:[#allocation2 + $0x70] sm:$0xc0]
    %v3851 = vld [vmem:[#allocation2 + $0x78] sm:$0xc0]
    %v3852 = vld [vmem:[#allocation2 + $0x80] sm:$0xc0]
    %v3853 = vld [vmem:[#allocation2 + $0x88] sm:$0xc0]
    %v3856 = vrot.slane %v3846, 4
    %v3857 = vrot.slane %v3847, 4
    %3860 = vmatprep.subr.mxu0 %v530
    %3861 = vmatpush1.msra.mxu0 %v529
    %3862 = vmatprep.subr.mxu0 %v536
    %3863 = vmatpush1.msra.mxu0 %v535
    %3864 = vmatprep.subr.mxu0 %v542
    %3865 = vmatpush1.msra.mxu0 %v541
    %3866 = vmatprep.subr.mxu0 %v548
    %3867 = vmatpush1.msra.mxu0 %v547
    %3868 = vmatprep.subr.mxu0 %v554
    %3869 = vmatpush1.msra.mxu0 %v553
    %3870 = vmatprep.subr.mxu0 %v560
    %3871 = vmatpush1.msra.mxu0 %v559
    %3872 = vmatprep.subr.mxu0 %v566
    %3873 = vmatpush1.msra.mxu0 %v565
    %3874 = vmatprep.subr.mxu0 %v572
    %3875 = vmatpush1.msra.mxu0 %v571
    %3876 = vmatprep.subr.mxu0 %v578
    %3877 = vmatpush1.msra.mxu0 %v577
    %3878 = vmatprep.subr.mxu0 %v584
    %3879 = vmatpush1.msra.mxu0 %v583
    %3880 = vmatprep.subr.mxu0 %v590
    %3881 = vmatpush1.msra.mxu0 %v589
    %3882 = vmatprep.subr.mxu0 %v596
    %3883 = vmatpush1.msra.mxu0 %v595
    %3884 = vmatprep.subr.mxu0 %v602
    %3885 = vmatpush1.msra.mxu0 %v601
    %3886 = vmatprep.subr.mxu0 %v608
    %3887 = vmatpush1.msra.mxu0 %v607
    %3888 = vmatprep.subr.mxu0 %v614
    %3889 = vmatpush1.msra.mxu0 %v613
    %3890 = vmatprep.subr.mxu0 %v620
    %3891 = vmatpush1.msra.mxu0 %v619
    %3892 = vmatprep.subr.mxu0 %v626
    %3893 = vmatpush1.msra.mxu0 %v625
    %3894 = vmatprep.subr.mxu0 %v632
    %3895 = vmatpush1.msra.mxu0 %v631
    %3896 = vmatprep.subr.mxu0 %v638
    %3897 = vmatpush1.msra.mxu0 %v637
    %3898 = vmatprep.subr.mxu0 %v644
    %3899 = vmatpush1.msra.mxu0 %v643
    %3900 = vmatprep.subr.mxu0 %v650
    %3901 = vmatpush1.msra.mxu0 %v649
    %3902 = vmatprep.subr.mxu0 %v656
    %3903 = vmatpush1.msra.mxu0 %v655
    %3904 = vmatprep.subr.mxu0 %v662
    %3905 = vmatpush1.msra.mxu0 %v661
    %3906 = vmatprep.subr.mxu0 %v668
    %3907 = vmatpush1.msra.mxu0 %v667
    %3908 = vmatprep.subr.mxu0 %v674
    %3909 = vmatpush1.msra.mxu0 %v673
    %3910 = vmatprep.subr.mxu0 %v680
    %3911 = vmatpush1.msra.mxu0 %v679
    %3912 = vmatprep.subr.mxu0 %v686
    %3913 = vmatpush1.msra.mxu0 %v685
    %3914 = vmatprep.subr.mxu0 %v692
    %3915 = vmatpush1.msra.mxu0 %v691
    %3916 = vmatprep.subr.mxu0 %v698
    %3917 = vmatpush1.msra.mxu0 %v697
    %3918 = vmatprep.subr.mxu0 %v704
    %3919 = vmatpush1.msra.mxu0 %v703
    %3920 = vmatprep.subr.mxu0 %v710
    %3921 = vmatpush1.msra.mxu0 %v709
    %3922 = vmatprep.subr.mxu0 %v716
    %3923 = vmatpush1.msra.mxu0 %v715
    %3924 = vmatprep.mubr.f32.mxu0 %v3857
    %3925 = vmatmul.mubr.f32.gmra.mrb[0].mxu0 %v3856
    %v3926 = vpop.f32.mrb[0].mxu0
    %v3927 = vadd.f32 %v732, %v3926
    %v3928 = vpop.f32.mrb[0].mxu0
    %v3929 = vadd.f32 %v736, %v3928
    %3930 = vdwg.mxu0
    %3931 = vmatprep.subr.mxu0 %v532
    %3932 = vmatpush1.msra.mxu0 %v531
    %3933 = vmatprep.subr.mxu0 %v538
    %3934 = vmatpush1.msra.mxu0 %v537
    %3935 = vmatprep.subr.mxu0 %v544
    %3936 = vmatpush1.msra.mxu0 %v543
    %3937 = vmatprep.subr.mxu0 %v550
    %3938 = vmatpush1.msra.mxu0 %v549
    %3939 = vmatprep.subr.mxu0 %v556
    %3940 = vmatpush1.msra.mxu0 %v555
    %3941 = vmatprep.subr.mxu0 %v562
    %3942 = vmatpush1.msra.mxu0 %v561
    %3943 = vmatprep.subr.mxu0 %v568
    %3944 = vmatpush1.msra.mxu0 %v567
    %3945 = vmatprep.subr.mxu0 %v574
    %3946 = vmatpush1.msra.mxu0 %v573
    %3947 = vmatprep.subr.mxu0 %v580
    %3948 = vmatpush1.msra.mxu0 %v579
    %3949 = vmatprep.subr.mxu0 %v586
    %3950 = vmatpush1.msra.mxu0 %v585
    %3951 = vmatprep.subr.mxu0 %v592
    %3952 = vmatpush1.msra.mxu0 %v591
    %3953 = vmatprep.subr.mxu0 %v598
    %3954 = vmatpush1.msra.mxu0 %v597
    %3955 = vmatprep.subr.mxu0 %v604
    %3956 = vmatpush1.msra.mxu0 %v603
    %3957 = vmatprep.subr.mxu0 %v610
    %3958 = vmatpush1.msra.mxu0 %v609
    %3959 = vmatprep.subr.mxu0 %v616
    %3960 = vmatpush1.msra.mxu0 %v615
    %3961 = vmatprep.subr.mxu0 %v622
    %3962 = vmatpush1.msra.mxu0 %v621
    %3963 = vmatprep.subr.mxu0 %v628
    %3964 = vmatpush1.msra.mxu0 %v627
    %3965 = vmatprep.subr.mxu0 %v634
    %3966 = vmatpush1.msra.mxu0 %v633
    %3967 = vmatprep.subr.mxu0 %v640
    %3968 = vmatpush1.msra.mxu0 %v639
    %3969 = vmatprep.subr.mxu0 %v646
    %3970 = vmatpush1.msra.mxu0 %v645
    %3971 = vmatprep.subr.mxu0 %v652
    %3972 = vmatpush1.msra.mxu0 %v651
    %3973 = vmatprep.subr.mxu0 %v658
    %3974 = vmatpush1.msra.mxu0 %v657
    %3975 = vmatprep.subr.mxu0 %v664
    %3976 = vmatpush1.msra.mxu0 %v663
    %3977 = vmatprep.subr.mxu0 %v670
    %3978 = vmatpush1.msra.mxu0 %v669
    %3979 = vmatprep.subr.mxu0 %v676
    %3980 = vmatpush1.msra.mxu0 %v675
    %3981 = vmatprep.subr.mxu0 %v682
    %3982 = vmatpush1.msra.mxu0 %v681
    %3983 = vmatprep.subr.mxu0 %v688
    %3984 = vmatpush1.msra.mxu0 %v687
    %3985 = vmatprep.subr.mxu0 %v694
    %3986 = vmatpush1.msra.mxu0 %v693
    %3987 = vmatprep.subr.mxu0 %v700
    %3988 = vmatpush1.msra.mxu0 %v699
    %3989 = vmatprep.subr.mxu0 %v706
    %3990 = vmatpush1.msra.mxu0 %v705
    %3991 = vmatprep.subr.mxu0 %v712
    %3992 = vmatpush1.msra.mxu0 %v711
    %3993 = vmatprep.subr.mxu0 %v718
    %3994 = vmatpush1.msra.mxu0 %v717
    %3995 = vmatprep.mubr.f32.mxu0 %v3857
    %3996 = vmatmul.mubr.f32.gmra.mrb[0].mxu0 %v3856
    %v3997 = vpop.f32.mrb[0].mxu0
    %v3998 = vadd.f32 %v740, %v3997
    %v3999 = vpop.f32.mrb[0].mxu0
    %v4000 = vadd.f32 %v744, %v3999
    %4001 = vdwg.mxu0
    %4002 = vmatprep.subr.mxu0 %v534
    %4003 = vmatpush1.msra.mxu0 %v533
    %4004 = vmatprep.subr.mxu0 %v540
    %4005 = vmatpush1.msra.mxu0 %v539
    %4006 = vmatprep.subr.mxu0 %v546
    %4007 = vmatpush1.msra.mxu0 %v545
    %4008 = vmatprep.subr.mxu0 %v552
    %4009 = vmatpush1.msra.mxu0 %v551
    %4010 = vmatprep.subr.mxu0 %v558
    %4011 = vmatpush1.msra.mxu0 %v557
    %4012 = vmatprep.subr.mxu0 %v564
    %4013 = vmatpush1.msra.mxu0 %v563
    %4014 = vmatprep.subr.mxu0 %v570
    %4015 = vmatpush1.msra.mxu0 %v569
    %4016 = vmatprep.subr.mxu0 %v576
    %4017 = vmatpush1.msra.mxu0 %v575
    %4018 = vmatprep.subr.mxu0 %v582
    %4019 = vmatpush1.msra.mxu0 %v581
    %4020 = vmatprep.subr.mxu0 %v588
    %4021 = vmatpush1.msra.mxu0 %v587
    %4022 = vmatprep.subr.mxu0 %v594
    %4023 = vmatpush1.msra.mxu0 %v593
    %4024 = vmatprep.subr.mxu0 %v600
    %4025 = vmatpush1.msra.mxu0 %v599
    %4026 = vmatprep.subr.mxu0 %v606
    %4027 = vmatpush1.msra.mxu0 %v605
    %4028 = vmatprep.subr.mxu0 %v612
    %4029 = vmatpush1.msra.mxu0 %v611
    %4030 = vmatprep.subr.mxu0 %v618
    %4031 = vmatpush1.msra.mxu0 %v617
    %4032 = vmatprep.subr.mxu0 %v624
    %4033 = vmatpush1.msra.mxu0 %v623
    %4034 = vmatprep.subr.mxu0 %v630
    %4035 = vmatpush1.msra.mxu0 %v629
    %4036 = vmatprep.subr.mxu0 %v636
    %4037 = vmatpush1.msra.mxu0 %v635
    %4038 = vmatprep.subr.mxu0 %v642
    %4039 = vmatpush1.msra.mxu0 %v641
    %4040 = vmatprep.subr.mxu0 %v648
    %4041 = vmatpush1.msra.mxu0 %v647
    %4042 = vmatprep.subr.mxu0 %v654
    %4043 = vmatpush1.msra.mxu0 %v653
    %4044 = vmatprep.subr.mxu0 %v660
    %4045 = vmatpush1.msra.mxu0 %v659
    %4046 = vmatprep.subr.mxu0 %v666
    %4047 = vmatpush1.msra.mxu0 %v665
    %4048 = vmatprep.subr.mxu0 %v672
    %4049 = vmatpush1.msra.mxu0 %v671
    %4050 = vmatprep.subr.mxu0 %v678
    %4051 = vmatpush1.msra.mxu0 %v677
    %4052 = vmatprep.subr.mxu0 %v684
    %4053 = vmatpush1.msra.mxu0 %v683
    %4054 = vmatprep.subr.mxu0 %v690
    %4055 = vmatpush1.msra.mxu0 %v689
    %4056 = vmatprep.subr.mxu0 %v696
    %4057 = vmatpush1.msra.mxu0 %v695
    %4058 = vmatprep.subr.mxu0 %v702
    %4059 = vmatpush1.msra.mxu0 %v701
    %4060 = vmatprep.subr.mxu0 %v708
    %4061 = vmatpush1.msra.mxu0 %v707
    %4062 = vmatprep.subr.mxu0 %v714
    %4063 = vmatpush1.msra.mxu0 %v713
    %4064 = vmatprep.subr.mxu0 %v720
    %4065 = vmatpush1.msra.mxu0 %v719
    %4066 = vmatprep.mubr.f32.mxu0 %v3857
    %4067 = vmatmul.mubr.f32.gmra.mrb[0].mxu0 %v3856
    %v4068 = vpop.f32.mrb[0].mxu0
    %v4069 = vadd.f32 %v748, %v4068
    %v4070 = vpop.f32.mrb[0].mxu0
    %v4071 = vadd.f32 %v752, %v4070
    %4072 = vdwg.mxu0
    %v4075 = vrot.slane %v3927, 2
    %v4076 = vrot.slane %v3929, 2
    %v4079 = vadd.f32 %v3848, %v4075
    %v4080 = vadd.f32 %v3849, %v4076
    %v4081 = vxor.u32 %v4079, 2147483648
    %v4082 = vxor.u32 %v4080, 2147483648
    %v4083 = vmul.f32 %v4081, 1.442695
    %v4084 = vpow.pop %v4083
    %v4085 = vmul.f32 %v4082, 1.442695
    %v4086 = vpow.pop %v4085
    %v4087 = vadd.f32 %v4084, 1.0
    %v4088 = vadd.f32 %v4086, 1.0
    %v4089 = vrcp.pop %v4087
    %v4090 = vmul.f32 1.0, %v4089
    %v4091 = vrcp.pop %v4088
    %v4092 = vmul.f32 1.0, %v4091
    %v4095 = vrot.slane %v3998, 2
    %v4096 = vrot.slane %v4000, 2
    %v4099 = vadd.f32 %v3850, %v4095
    %v4100 = vadd.f32 %v3851, %v4096
    %v4101 = vxor.u32 %v4099, 2147483648
    %v4102 = vxor.u32 %v4100, 2147483648
    %v4103 = vmul.f32 %v4101, 1.442695
    %v4104 = vpow.pop %v4103
    %v4105 = vmul.f32 %v4102, 1.442695
    %v4106 = vpow.pop %v4105
    %v4107 = vadd.f32 %v4104, 1.0
    %v4108 = vadd.f32 %v4106, 1.0
    %v4109 = vrcp.pop %v4107
    %v4110 = vmul.f32 1.0, %v4109
    %v4111 = vrcp.pop %v4108
    %v4112 = vmul.f32 1.0, %v4111
    %v4115 = vrot.slane %v4069, 2
    %v4116 = vrot.slane %v4071, 2
    %v4119 = vmul.f32 %v4090, %v4115
    %v4120 = vmul.f32 %v4092, %v4116
    %v4121 = vadd.f32 %v3852, %v4119
    %v4122 = vadd.f32 %v3853, %v4120
    %v4123 = vtanh.pop %v4121
    %v4124 = vtanh.pop %v4122
    %v4125 = vsub.f32 1.0, %v4110
    %v4126 = vsub.f32 1.0, %v4112
    %v4127 = vmul.f32 %v4125, %v4123
    %v4128 = vmul.f32 %v4126, %v4124
    %v4129 = vrot.slane %v3846, 6
    %v4130 = vrot.slane %v3847, 6
    %v4133 = vmul.f32 %v4110, %v4129
    %v4134 = vmul.f32 %v4112, %v4130
    %v4135 = vadd.f32 %v4127, %v4133
    %v4136 = vadd.f32 %v4128, %v4134
    %v4139 = vcombine.high %v4135, %v4136
    %v4141 = vunpack.c.l.s4 1983009808
    %v4142 = vunpack.c.0.s8 %v4141
    %v4143 = vlaneseq
    %v4144 = vshrl.u32 %v4143, 7
    %v4145 = vsub.s32 %v4142, %v4144
    %v4146 = vrot.slane %v4139, %v4145
    %v4147 = vcombine.high %v4146, %v4146
    %4149 = vst [vmem:[%s7] sm:$0xf] %v4147
    // Predicated region
    $region54: #{model_encdec_re_forward.2} parent=1 // pred_check
      _
    $region55: #{model_encdec_re_forward.2} parent=1 // pred_check_branch
      %4151 = sbr.rel (0) target = $region57
    $region56: #{model_encdec_re_forward.2} parent=1 // pred_region
      _
    $region57: #{model_encdec_re_forward.2} parent=1 // pred_fallthru
      _
    // Predicated region
    $region58: #{model_encdec_re_forward.2} parent=1 // pred_check
      _
    $region59: #{model_encdec_re_forward.2} parent=1 // pred_check_branch
      %4153 = sbr.rel (0) target = $region61
    $region60: #{model_encdec_re_forward.2} parent=1 // pred_region
      _
    $region61: #{model_encdec_re_forward.2} parent=1 // pred_fallthru
      _
    %4154 = vsyncpa [#allocation4], 1
    %4155 = vsyncpa [#allocation6], 1
    %4156 = vsyncpa [#allocation9], 1
    %4157 = vsyncpa [#allocation12], 1

// kernel: model_encdec_re_forward.3
$region0: #{model_encdec_re_forward.3}
  #allocation0 [shape = 'u32[]', space=smem, size = 0x4, offset = 0x4, fixed_abs, tag = 'smem constant byte address 0x4 - core index']
  #allocation1 [shape = 'u32[144,128]{1,0:T(1,128)}', space=vmem, size = 0x12000, scoped, tag = 'internal scratch']
  %s0 = inlined_call_operand.vmem [shape: f32[2,256], index: 0, kind: input, shape index: {}]
  %s1 = inlined_call_operand.vmem [shape: bf16[2,256,1024], index: 1, kind: input, shape index: {}]
  %s2 = inlined_call_operand.hbm [shape: f32[2,1,1024], index: 2, kind: input, shape index: {}]
  %s3 = inlined_call_operand.hbm [shape: bf16[2,1024,512], index: 3, kind: input, shape index: {}]
  %s4 = inlined_call_operand.hbm [shape: f32[2,1,512], index: 4, kind: input, shape index: {}]
  %s5 = inlined_call_operand.hbm [shape: bf16[2,512,1024], index: 5, kind: input, shape index: {}]
  %s6 = inlined_call_operand.hbm [shape: f32[2,1,1024], index: 6, kind: input, shape index: {}]
  %s7 = inlined_call_operand.vmem [shape: bf16[2,1024,32], index: 7, kind: input, shape index: {}]
  %s8 = inlined_call_operand.hbm [shape: f32[2,1,32], index: 8, kind: input, shape index: {}]
  %s9 = inlined_call_operand.vmem [shape: f32[2,2,32], index: 9, kind: output, shape index: {}]
  %s10 = sld [smem:[#allocation0]]
  $region93: #{model_encdec_re_forward.3} parent=0
    _
  %s12 = ssub.s32 1, %s10
  %s13 = scalar_select 0, %s12, %s10
  $region1: #{model_encdec_re_forward.3} parent=0
    #allocation2 [shape = 'u8[8192]{0}', space=vmem, size = 0x2000, scoped, tag = 'input window, operand 2']
    #allocation3 [shape = 's32[2]{0}', space=sflag, size = 0x8, scoped, tag = 'scoped memory for model_encdec_re_forward.3']
    #allocation4 [shape = 'u8[2097152]{0}', space=vmem, size = 0x200000, scoped, tag = 'input window, operand 3']
    #allocation5 [shape = 's32[2]{0}', space=sflag, size = 0x8, scoped, tag = 'scoped memory for model_encdec_re_forward.3']
    #allocation6 [shape = 'u8[4096]{0}', space=vmem, size = 0x1000, scoped, tag = 'input window, operand 4']
    #allocation7 [shape = 'u8[2097152]{0}', space=vmem, size = 0x200000, scoped, tag = 'input window, operand 5']
    #allocation8 [shape = 's32[2]{0}', space=sflag, size = 0x8, scoped, tag = 'scoped memory for model_encdec_re_forward.3']
    #allocation9 [shape = 'u8[8192]{0}', space=vmem, size = 0x2000, scoped, tag = 'input window, operand 6']
    #allocation10 [shape = 'u8[1024]{0}', space=vmem, size = 0x400, scoped, tag = 'input window, operand 8']
    #allocation11 [shape = 's32[2]{0}', space=sflag, size = 0x8, scoped, tag = 'scoped memory for model_encdec_re_forward.3']
    %14 = vsyncpa [#allocation3], 0
    %s15 = scalar_lea.sflag [#allocation3], 1
    %16 = vsyncpa %s15, 0
    %17 = vsyncpa [#allocation5], 0
    %s18 = scalar_lea.sflag [#allocation5], 1
    %19 = vsyncpa %s18, 0
    %20 = vsyncpa [#allocation8], 0
    %s21 = scalar_lea.sflag [#allocation8], 1
    %22 = vsyncpa %s21, 0
    %23 = vsyncpa [#allocation11], 0
    %s24 = scalar_lea.sflag [#allocation11], 1
    %25 = vsyncpa %s24, 0
    loop: start=0, step=1, limit=4
    $region2: #{model_encdec_re_forward.3} parent=1 // loop_pre_header
      _
    $region3: #{model_encdec_re_forward.3} parent=1 // loop_header
      %s27 = sphi 0, %s31
      %p28 = scmp.ge.s32.totalorder %s27, 4
      %s35 = sphi 0, %s35
      %s37 = sphi 0, %s35
      %s38 = sphi 0, %s37
      %s52 = sphi 0, %s38
      %s58 = sphi 0, %s60
      %s61 = sphi 0, %s58
      %s62 = sphi 0, %s61
      %s78 = sphi 0, %s62
      %s84 = sphi 0, %s86
      %s87 = sphi 0, %s84
      %s88 = sphi 0, %s87
      %s104 = sphi 0, %s88
      %s110 = sphi 0, %s112
      %s113 = sphi 0, %s110
      %s114 = sphi 0, %s113
      %s130 = sphi 0, %s114
      %s136 = sphi 0, %s138
      %s139 = sphi 0, %s136
      %s140 = sphi 0, %s139
      %s156 = sphi 0, %s140
      %s162 = sphi 0, %s164
      %s165 = sphi 0, %s162
      %s166 = sphi 0, %s165
      %s182 = sphi 0, %s166
      %s188 = sphi 0, %s190
      %s191 = sphi 0, %s188
      %s192 = sphi 0, %s191
      %s208 = sphi 0, %s192
      %s214 = sphi 0, %s216
      %s217 = sphi 0, %s214
      %s218 = sphi 0, %s217
      %s234 = sphi 0, %s218
      %s240 = sphi 0, %s242
      %s243 = sphi 0, %s240
      %s244 = sphi 0, %s243
      %s260 = sphi 0, %s244
      %s266 = sphi 0, %s268
      %s269 = sphi 0, %s266
      %s270 = sphi 0, %s269
      %s286 = sphi 0, %s270
    $region4: #{model_encdec_re_forward.3} parent=1 // loop_header_branch
      %30 = sbr.rel (%p28) target = $region8
    $region5: #{model_encdec_re_forward.3} parent=1 // loop_body
      %s32 = ssub.s32 %s27, 1
      %s33 = ssub.s32 %s27, 2
      %s34 = sadd.s32 %s27, 1
      %s36 = sadd.s32 %s35, 1
      %p39 = scmp.eq.s32.totalorder %s27, 1
      %p40 = scmp.ne.s32.totalorder %s35, %s37
      %p41 = scmp.eq.s32.totalorder %s27, 0
      %p42 = por %p40, %p41
      %p43 = scmp.ne.s32.totalorder %s35, %s37
      %p44 = scmp.eq.s32.totalorder %s32, 1
      %p45 = por %p43, %p44
      %p46 = scmp.ne.s32.totalorder %s37, %s38
      %p47 = scmp.eq.s32.totalorder %s32, 0
      %p48 = por %p46, %p47
      %p49 = scmp.ne.s32.totalorder %s37, %s38
      %p50 = scmp.eq.s32.totalorder %s33, 1
      %p51 = por %p49, %p50
      %p53 = scmp.ne.s32.totalorder %s38, %s52
      %p54 = scmp.eq.s32.totalorder %s33, 0
      %p55 = por %p53, %p54
      %s56 = ssub.s32 %s27, %s34
      %p57 = scmp.eq.s32.totalorder %s56, 0
      %s59 = sadd.s32 %s58, 1
      %s60 = scalar_select %p57, %s58, %s59
      %p63 = pneg %p57
      %p64 = scmp.eq.s32.totalorder %s27, 1
      %p65 = por %p63, %p64
      %p66 = scmp.ne.s32.totalorder %s58, %s61
      %p67 = scmp.eq.s32.totalorder %s27, 0
      %p68 = por %p66, %p67
      %p69 = scmp.ne.s32.totalorder %s58, %s61
      %p70 = scmp.eq.s32.totalorder %s32, 1
      %p71 = por %p69, %p70
      %p72 = scmp.ne.s32.totalorder %s61, %s62
      %p73 = scmp.eq.s32.totalorder %s32, 0
      %p74 = por %p72, %p73
      %p75 = scmp.ne.s32.totalorder %s61, %s62
      %p76 = scmp.eq.s32.totalorder %s33, 1
      %p77 = por %p75, %p76
      %p79 = scmp.ne.s32.totalorder %s62, %s78
      %p80 = scmp.eq.s32.totalorder %s33, 0
      %p81 = por %p79, %p80
      %s82 = ssub.s32 %s27, %s34
      %p83 = scmp.eq.s32.totalorder %s82, 0
      %s85 = sadd.s32 %s84, 1
      %s86 = scalar_select %p83, %s84, %s85
      %p89 = pneg %p83
      %p90 = scmp.eq.s32.totalorder %s27, 1
      %p91 = por %p89, %p90
      %p92 = scmp.ne.s32.totalorder %s84, %s87
      %p93 = scmp.eq.s32.totalorder %s27, 0
      %p94 = por %p92, %p93
      %p95 = scmp.ne.s32.totalorder %s84, %s87
      %p96 = scmp.eq.s32.totalorder %s32, 1
      %p97 = por %p95, %p96
      %p98 = scmp.ne.s32.totalorder %s87, %s88
      %p99 = scmp.eq.s32.totalorder %s32, 0
      %p100 = por %p98, %p99
      %p101 = scmp.ne.s32.totalorder %s87, %s88
      %p102 = scmp.eq.s32.totalorder %s33, 1
      %p103 = por %p101, %p102
      %p105 = scmp.ne.s32.totalorder %s88, %s104
      %p106 = scmp.eq.s32.totalorder %s33, 0
      %p107 = por %p105, %p106
      %s108 = ssub.s32 %s27, %s34
      %p109 = scmp.eq.s32.totalorder %s108, 0
      %s111 = sadd.s32 %s110, 1
      %s112 = scalar_select %p109, %s110, %s111
      %p115 = pneg %p109
      %p116 = scmp.eq.s32.totalorder %s27, 1
      %p117 = por %p115, %p116
      %p118 = scmp.ne.s32.totalorder %s110, %s113
      %p119 = scmp.eq.s32.totalorder %s27, 0
      %p120 = por %p118, %p119
      %p121 = scmp.ne.s32.totalorder %s110, %s113
      %p122 = scmp.eq.s32.totalorder %s32, 1
      %p123 = por %p121, %p122
      %p124 = scmp.ne.s32.totalorder %s113, %s114
      %p125 = scmp.eq.s32.totalorder %s32, 0
      %p126 = por %p124, %p125
      %p127 = scmp.ne.s32.totalorder %s113, %s114
      %p128 = scmp.eq.s32.totalorder %s33, 1
      %p129 = por %p127, %p128
      %p131 = scmp.ne.s32.totalorder %s114, %s130
      %p132 = scmp.eq.s32.totalorder %s33, 0
      %p133 = por %p131, %p132
      %s134 = ssub.s32 %s27, %s34
      %p135 = scmp.eq.s32.totalorder %s134, 0
      %s137 = sadd.s32 %s136, 1
      %s138 = scalar_select %p135, %s136, %s137
      %p141 = pneg %p135
      %p142 = scmp.eq.s32.totalorder %s27, 1
      %p143 = por %p141, %p142
      %p144 = scmp.ne.s32.totalorder %s136, %s139
      %p145 = scmp.eq.s32.totalorder %s27, 0
      %p146 = por %p144, %p145
      %p147 = scmp.ne.s32.totalorder %s136, %s139
      %p148 = scmp.eq.s32.totalorder %s32, 1
      %p149 = por %p147, %p148
      %p150 = scmp.ne.s32.totalorder %s139, %s140
      %p151 = scmp.eq.s32.totalorder %s32, 0
      %p152 = por %p150, %p151
      %p153 = scmp.ne.s32.totalorder %s139, %s140
      %p154 = scmp.eq.s32.totalorder %s33, 1
      %p155 = por %p153, %p154
      %p157 = scmp.ne.s32.totalorder %s140, %s156
      %p158 = scmp.eq.s32.totalorder %s33, 0
      %p159 = por %p157, %p158
      %s160 = ssub.s32 %s27, %s34
      %p161 = scmp.eq.s32.totalorder %s160, 0
      %s163 = sadd.s32 %s162, 1
      %s164 = scalar_select %p161, %s162, %s163
      %p167 = pneg %p161
      %p168 = scmp.eq.s32.totalorder %s27, 1
      %p169 = por %p167, %p168
      %p170 = scmp.ne.s32.totalorder %s162, %s165
      %p171 = scmp.eq.s32.totalorder %s27, 0
      %p172 = por %p170, %p171
      %p173 = scmp.ne.s32.totalorder %s162, %s165
      %p174 = scmp.eq.s32.totalorder %s32, 1
      %p175 = por %p173, %p174
      %p176 = scmp.ne.s32.totalorder %s165, %s166
      %p177 = scmp.eq.s32.totalorder %s32, 0
      %p178 = por %p176, %p177
      %p179 = scmp.ne.s32.totalorder %s165, %s166
      %p180 = scmp.eq.s32.totalorder %s33, 1
      %p181 = por %p179, %p180
      %p183 = scmp.ne.s32.totalorder %s166, %s182
      %p184 = scmp.eq.s32.totalorder %s33, 0
      %p185 = por %p183, %p184
      %s186 = ssub.s32 %s27, %s34
      %p187 = scmp.eq.s32.totalorder %s186, 0
      %s189 = sadd.s32 %s188, 1
      %s190 = scalar_select %p187, %s188, %s189
      %p193 = pneg %p187
      %p194 = scmp.eq.s32.totalorder %s27, 1
      %p195 = por %p193, %p194
      %p196 = scmp.ne.s32.totalorder %s188, %s191
      %p197 = scmp.eq.s32.totalorder %s27, 0
      %p198 = por %p196, %p197
      %p199 = scmp.ne.s32.totalorder %s188, %s191
      %p200 = scmp.eq.s32.totalorder %s32, 1
      %p201 = por %p199, %p200
      %p202 = scmp.ne.s32.totalorder %s191, %s192
      %p203 = scmp.eq.s32.totalorder %s32, 0
      %p204 = por %p202, %p203
      %p205 = scmp.ne.s32.totalorder %s191, %s192
      %p206 = scmp.eq.s32.totalorder %s33, 1
      %p207 = por %p205, %p206
      %p209 = scmp.ne.s32.totalorder %s192, %s208
      %p210 = scmp.eq.s32.totalorder %s33, 0
      %p211 = por %p209, %p210
      %s212 = ssub.s32 %s27, %s34
      %p213 = scmp.eq.s32.totalorder %s212, 0
      %s215 = sadd.s32 %s214, 1
      %s216 = scalar_select %p213, %s214, %s215
      %p219 = pneg %p213
      %p220 = scmp.eq.s32.totalorder %s27, 1
      %p221 = por %p219, %p220
      %p222 = scmp.ne.s32.totalorder %s214, %s217
      %p223 = scmp.eq.s32.totalorder %s27, 0
      %p224 = por %p222, %p223
      %p225 = scmp.ne.s32.totalorder %s214, %s217
      %p226 = scmp.eq.s32.totalorder %s32, 1
      %p227 = por %p225, %p226
      %p228 = scmp.ne.s32.totalorder %s217, %s218
      %p229 = scmp.eq.s32.totalorder %s32, 0
      %p230 = por %p228, %p229
      %p231 = scmp.ne.s32.totalorder %s217, %s218
      %p232 = scmp.eq.s32.totalorder %s33, 1
      %p233 = por %p231, %p232
      %p235 = scmp.ne.s32.totalorder %s218, %s234
      %p236 = scmp.eq.s32.totalorder %s33, 0
      %p237 = por %p235, %p236
      %s238 = ssub.s32 %s27, %s34
      %p239 = scmp.eq.s32.totalorder %s238, 0
      %s241 = sadd.s32 %s240, 1
      %s242 = scalar_select %p239, %s240, %s241
      %p245 = pneg %p239
      %p246 = scmp.eq.s32.totalorder %s27, 1
      %p247 = por %p245, %p246
      %p248 = scmp.ne.s32.totalorder %s240, %s243
      %p249 = scmp.eq.s32.totalorder %s27, 0
      %p250 = por %p248, %p249
      %p251 = scmp.ne.s32.totalorder %s240, %s243
      %p252 = scmp.eq.s32.totalorder %s32, 1
      %p253 = por %p251, %p252
      %p254 = scmp.ne.s32.totalorder %s243, %s244
      %p255 = scmp.eq.s32.totalorder %s32, 0
      %p256 = por %p254, %p255
      %p257 = scmp.ne.s32.totalorder %s243, %s244
      %p258 = scmp.eq.s32.totalorder %s33, 1
      %p259 = por %p257, %p258
      %p261 = scmp.ne.s32.totalorder %s244, %s260
      %p262 = scmp.eq.s32.totalorder %s33, 0
      %p263 = por %p261, %p262
      %s264 = ssub.s32 %s27, %s34
      %p265 = scmp.eq.s32.totalorder %s264, 0
      %s267 = sadd.s32 %s266, 1
      %s268 = scalar_select %p265, %s266, %s267
      %p271 = pneg %p265
      %p272 = scmp.eq.s32.totalorder %s27, 1
      %p273 = por %p271, %p272
      %p274 = scmp.ne.s32.totalorder %s266, %s269
      %p275 = scmp.eq.s32.totalorder %s27, 0
      %p276 = por %p274, %p275
      %p277 = scmp.ne.s32.totalorder %s266, %s269
      %p278 = scmp.eq.s32.totalorder %s32, 1
      %p279 = por %p277, %p278
      %p280 = scmp.ne.s32.totalorder %s269, %s270
      %p281 = scmp.eq.s32.totalorder %s32, 0
      %p282 = por %p280, %p281
      %p283 = scmp.ne.s32.totalorder %s269, %s270
      %p284 = scmp.eq.s32.totalorder %s33, 1
      %p285 = por %p283, %p284
      %p287 = scmp.ne.s32.totalorder %s270, %s286
      %p288 = scmp.eq.s32.totalorder %s33, 0
      %p289 = por %p287, %p288
      %p290 = scmp.le.s32.totalorder 1, %s27
      %p291 = scmp.lt.s32.totalorder %s27, 3
      %p292 = pnand %p290, %p291
      %p293 = pneg %p292
      // Predicated region
      $region9: #{model_encdec_re_forward.3} parent=5 // pred_check
        _
      $region10: #{model_encdec_re_forward.3} parent=5 // pred_check_branch
        %295 = sbr.rel (%p292) target = $region12
      $region11: #{model_encdec_re_forward.3} parent=5 // pred_region
        %s296 = ssub.s32 %s27, 1
        // Predicated region
        $region13: #{model_encdec_re_forward.3} parent=11 // pred_check
          %p297 = pneg %p48
        $region14: #{model_encdec_re_forward.3} parent=11 // pred_check_branch
          %299 = sbr.rel (%p297) target = $region16
        $region15: #{model_encdec_re_forward.3} parent=11 // pred_region
          _
        $region16: #{model_encdec_re_forward.3} parent=11 // pred_fallthru
          _
      $region12: #{model_encdec_re_forward.3} parent=5 // pred_fallthru
        _
      %p300 = scmp.lt.s32.totalorder %s27, 2
      // Predicated region
      $region17: #{model_encdec_re_forward.3} parent=5 // pred_check
        %p301 = pneg %p300
      $region18: #{model_encdec_re_forward.3} parent=5 // pred_check_branch
        %303 = sbr.rel (%p301) target = $region20
      $region19: #{model_encdec_re_forward.3} parent=5 // pred_region
        // Predicated region
        $region21: #{model_encdec_re_forward.3} parent=19 // pred_check
          %p304 = pneg %p68
        $region22: #{model_encdec_re_forward.3} parent=19 // pred_check_branch
          %306 = sbr.rel (%p304) target = $region24
        $region23: #{model_encdec_re_forward.3} parent=19 // pred_region
          %p307 = scmp.lt.s32.totalorder %s27, 1
          %s308 = scalar_select %p307, %s27, 1
          %s309 = smul.addr %s308, 256
          %s310 = smul.addr %s309, 4
          %s311 = scalar_lea.vmem %s1, %s310
        $region24: #{model_encdec_re_forward.3} parent=19 // pred_fallthru
          _
        // Predicated region
        $region25: #{model_encdec_re_forward.3} parent=19 // pred_check
          %p312 = pneg %p94
        $region26: #{model_encdec_re_forward.3} parent=19 // pred_check_branch
          %314 = sbr.rel (%p312) target = $region28
        $region27: #{model_encdec_re_forward.3} parent=19 // pred_region
          %s315 = sand.u32 %s84, 1
          %s316 = scalar_lea.sflag [#allocation3], %s315
          %s317 = sand.u32 %s84, 1
          %s318 = smul.addr %s317, 8
          %s319 = scalar_lea.vmem [#allocation2], %s318
          %s321 = ssub.s32 128, 128
          %322 = vsyncadd %s316, %s321
          %s323 = smul.addr %s27, 8
          %s324 = smul.addr %s323, 16
          %s325 = scalar_lea.hbm %s2, %s324
          %s327 = sshll.u32 %s319, 4
          %s328 = int_to_ptr.vmem [resolvable:$true] %s327
          %330 = dma.hbm_to_vmem [thread:$0]  %s325, 128, %s328, %s316
        $region28: #{model_encdec_re_forward.3} parent=19 // pred_fallthru
          _
        // Predicated region
        $region29: #{model_encdec_re_forward.3} parent=19 // pred_check
          %p331 = pneg %p120
        $region30: #{model_encdec_re_forward.3} parent=19 // pred_check_branch
          %333 = sbr.rel (%p331) target = $region32
        $region31: #{model_encdec_re_forward.3} parent=19 // pred_region
          %s334 = sand.u32 %s27, 1
          %s335 = scalar_lea.sflag [#allocation5], %s334
          %s336 = sand.u32 %s110, 1
          %s337 = smul.addr %s336, 2048
          %s338 = scalar_lea.vmem [#allocation4], %s337
          %s340 = ssub.s32 32768, 32768
          %341 = vsyncadd %s335, %s340
          %s342 = smul.addr %s27, 512
          %s343 = smul.addr %s342, 64
          %s344 = scalar_lea.hbm %s3, %s343
          %s345 = sshll.u32 %s338, 4
          %s346 = int_to_ptr.vmem [resolvable:$true] %s345
          %351 = dma.hbm_to_vmem [thread:$0]  %s344, 32768, %s346, %s335, 256, 256, 16
        $region32: #{model_encdec_re_forward.3} parent=19 // pred_fallthru
          _
        // Predicated region
        $region33: #{model_encdec_re_forward.3} parent=19 // pred_check
          %p352 = pneg %p146
        $region34: #{model_encdec_re_forward.3} parent=19 // pred_check_branch
          %354 = sbr.rel (%p352) target = $region36
        $region35: #{model_encdec_re_forward.3} parent=19 // pred_region
          %s355 = sand.u32 %s27, 1
          %s356 = scalar_lea.sflag [#allocation5], %s355
          %s357 = sand.u32 %s136, 1
          %s358 = smul.addr %s357, 4
          %s359 = scalar_lea.vmem [#allocation6], %s358
          %s361 = ssub.s32 64, 64
          %362 = vsyncadd %s356, %s361
          %s363 = smul.addr %s27, 4
          %s364 = smul.addr %s363, 16
          %s365 = scalar_lea.hbm %s4, %s364
          %s367 = sshll.u32 %s359, 4
          %s368 = int_to_ptr.vmem [resolvable:$true] %s367
          %370 = dma.hbm_to_vmem [thread:$0]  %s365, 64, %s368, %s356
        $region36: #{model_encdec_re_forward.3} parent=19 // pred_fallthru
          _
        // Predicated region
        $region37: #{model_encdec_re_forward.3} parent=19 // pred_check
          %p371 = pneg %p172
        $region38: #{model_encdec_re_forward.3} parent=19 // pred_check_branch
          %373 = sbr.rel (%p371) target = $region40
        $region39: #{model_encdec_re_forward.3} parent=19 // pred_region
          %s374 = sand.u32 %s27, 1
          %s375 = scalar_lea.sflag [#allocation8], %s374
          %s376 = sand.u32 %s162, 1
          %s377 = smul.addr %s376, 2048
          %s378 = scalar_lea.vmem [#allocation7], %s377
          %s380 = ssub.s32 32768, 32768
          %381 = vsyncadd %s375, %s380
          %s382 = smul.addr %s27, 512
          %s383 = smul.addr %s382, 64
          %s384 = scalar_lea.hbm %s5, %s383
          %s385 = sshll.u32 %s378, 4
          %s386 = int_to_ptr.vmem [resolvable:$true] %s385
          %391 = dma.hbm_to_vmem [thread:$0]  %s384, 32768, %s386, %s375, 512, 512, 32
        $region40: #{model_encdec_re_forward.3} parent=19 // pred_fallthru
          _
        // Predicated region
        $region41: #{model_encdec_re_forward.3} parent=19 // pred_check
          %p392 = pneg %p198
        $region42: #{model_encdec_re_forward.3} parent=19 // pred_check_branch
          %394 = sbr.rel (%p392) target = $region44
        $region43: #{model_encdec_re_forward.3} parent=19 // pred_region
          %s395 = sand.u32 %s27, 1
          %s396 = scalar_lea.sflag [#allocation8], %s395
          %s397 = sand.u32 %s188, 1
          %s398 = smul.addr %s397, 8
          %s399 = scalar_lea.vmem [#allocation9], %s398
          %s401 = ssub.s32 128, 128
          %402 = vsyncadd %s396, %s401
          %s403 = smul.addr %s27, 8
          %s404 = smul.addr %s403, 16
          %s405 = scalar_lea.hbm %s6, %s404
          %s407 = sshll.u32 %s399, 4
          %s408 = int_to_ptr.vmem [resolvable:$true] %s407
          %410 = dma.hbm_to_vmem [thread:$0]  %s405, 128, %s408, %s396
        $region44: #{model_encdec_re_forward.3} parent=19 // pred_fallthru
          _
        // Predicated region
        $region45: #{model_encdec_re_forward.3} parent=19 // pred_check
          %p411 = pneg %p224
        $region46: #{model_encdec_re_forward.3} parent=19 // pred_check_branch
          %413 = sbr.rel (%p411) target = $region48
        $region47: #{model_encdec_re_forward.3} parent=19 // pred_region
          %p414 = scmp.lt.s32.totalorder %s27, 1
          %s415 = scalar_select %p414, %s27, 1
          %s416 = smul.addr %s415, 128
          %s417 = smul.addr %s416, 4
          %s418 = scalar_lea.vmem %s7, %s417
        $region48: #{model_encdec_re_forward.3} parent=19 // pred_fallthru
          _
        // Predicated region
        $region49: #{model_encdec_re_forward.3} parent=19 // pred_check
          %p419 = pneg %p250
        $region50: #{model_encdec_re_forward.3} parent=19 // pred_check_branch
          %421 = sbr.rel (%p419) target = $region52
        $region51: #{model_encdec_re_forward.3} parent=19 // pred_region
          %s422 = sand.u32 %s240, 1
          %s423 = scalar_lea.sflag [#allocation11], %s422
          %s424 = sand.u32 %s240, 1
          %s425 = scalar_lea.vmem [#allocation10], %s424
          %s427 = ssub.s32 16, 16
          %428 = vsyncadd %s423, %s427
          %s429 = smul.addr %s27, 16
          %s430 = scalar_lea.hbm %s8, %s429
          %s432 = sshll.u32 %s425, 4
          %s433 = int_to_ptr.vmem [resolvable:$true] %s432
          %435 = dma.hbm_to_vmem [thread:$0]  %s430, 16, %s433, %s423
        $region52: #{model_encdec_re_forward.3} parent=19 // pred_fallthru
          _
      $region20: #{model_encdec_re_forward.3} parent=5 // pred_fallthru
        _
      %p436 = scmp.le.s32.totalorder 1, %s27
      %p437 = scmp.lt.s32.totalorder %s27, 3
      %p438 = pnand %p436, %p437
      %p439 = pneg %p438
      // Predicated region
      $region53: #{model_encdec_re_forward.3} parent=5 // pred_check
        _
      $region54: #{model_encdec_re_forward.3} parent=5 // pred_check_branch
        %441 = sbr.rel (%p438) target = $region56
      $region55: #{model_encdec_re_forward.3} parent=5 // pred_region
        %s442 = ssub.s32 %s27, 1
        %s443 = sand.u32 %s87, 1
        %s444 = scalar_lea.sflag [#allocation3], %s443
        %s445 = sand.u32 %s87, 1
        %s446 = smul.addr %s445, 8
        %s447 = scalar_lea.vmem [#allocation2], %s446
        // Predicated region
        $region57: #{model_encdec_re_forward.3} parent=55 // pred_check
          %p448 = pneg %p100
        $region58: #{model_encdec_re_forward.3} parent=55 // pred_check_branch
          %450 = sbr.rel (%p448) target = $region60
        $region59: #{model_encdec_re_forward.3} parent=55 // pred_region
          %451 = dma.done %s444, 128
        $region60: #{model_encdec_re_forward.3} parent=55 // pred_fallthru
          _
        %s452 = sand.u32 %s32, 1
        %s453 = scalar_lea.sflag [#allocation5], %s452
        %s454 = sand.u32 %s113, 1
        %s455 = smul.addr %s454, 2048
        %s456 = scalar_lea.vmem [#allocation4], %s455
        // Predicated region
        $region61: #{model_encdec_re_forward.3} parent=55 // pred_check
          %p457 = pneg %p126
        $region62: #{model_encdec_re_forward.3} parent=55 // pred_check_branch
          %459 = sbr.rel (%p457) target = $region64
        $region63: #{model_encdec_re_forward.3} parent=55 // pred_region
          %460 = dma.done %s453, 32768
        $region64: #{model_encdec_re_forward.3} parent=55 // pred_fallthru
          _
        %s461 = sand.u32 %s32, 1
        %s462 = scalar_lea.sflag [#allocation5], %s461
        %s463 = sand.u32 %s139, 1
        %s464 = smul.addr %s463, 4
        %s465 = scalar_lea.vmem [#allocation6], %s464
        // Predicated region
        $region65: #{model_encdec_re_forward.3} parent=55 // pred_check
          %p466 = pneg %p152
        $region66: #{model_encdec_re_forward.3} parent=55 // pred_check_branch
          %468 = sbr.rel (%p466) target = $region68
        $region67: #{model_encdec_re_forward.3} parent=55 // pred_region
          %469 = dma.done %s462, 64
        $region68: #{model_encdec_re_forward.3} parent=55 // pred_fallthru
          _
        %s470 = sand.u32 %s32, 1
        %s471 = scalar_lea.sflag [#allocation8], %s470
        %s472 = sand.u32 %s165, 1
        %s473 = smul.addr %s472, 2048
        %s474 = scalar_lea.vmem [#allocation7], %s473
        // Predicated region
        $region69: #{model_encdec_re_forward.3} parent=55 // pred_check
          %p475 = pneg %p178
        $region70: #{model_encdec_re_forward.3} parent=55 // pred_check_branch
          %477 = sbr.rel (%p475) target = $region72
        $region71: #{model_encdec_re_forward.3} parent=55 // pred_region
          %478 = dma.done %s471, 32768
        $region72: #{model_encdec_re_forward.3} parent=55 // pred_fallthru
          _
        %s479 = sand.u32 %s32, 1
        %s480 = scalar_lea.sflag [#allocation8], %s479
        %s481 = sand.u32 %s191, 1
        %s482 = smul.addr %s481, 8
        %s483 = scalar_lea.vmem [#allocation9], %s482
        // Predicated region
        $region73: #{model_encdec_re_forward.3} parent=55 // pred_check
          %p484 = pneg %p204
        $region74: #{model_encdec_re_forward.3} parent=55 // pred_check_branch
          %486 = sbr.rel (%p484) target = $region76
        $region75: #{model_encdec_re_forward.3} parent=55 // pred_region
          %487 = dma.done %s480, 128
        $region76: #{model_encdec_re_forward.3} parent=55 // pred_fallthru
          _
        %s488 = sand.u32 %s243, 1
        %s489 = scalar_lea.sflag [#allocation11], %s488
        %s490 = sand.u32 %s243, 1
        %s491 = scalar_lea.vmem [#allocation10], %s490
        // Predicated region
        $region77: #{model_encdec_re_forward.3} parent=55 // pred_check
          %p492 = pneg %p256
        $region78: #{model_encdec_re_forward.3} parent=55 // pred_check_branch
          %494 = sbr.rel (%p492) target = $region80
        $region79: #{model_encdec_re_forward.3} parent=55 // pred_region
          %495 = dma.done %s489, 16
        $region80: #{model_encdec_re_forward.3} parent=55 // pred_fallthru
          _
        %p496 = pneg %p48
        %p497 = pneg %p45
        %p498 = scmp.lt.s32.totalorder %s32, 1
        %s499 = scalar_select %p498, %s32, 1
        %s500 = smul.addr %s499, 256
        %s501 = smul.addr %s500, 4
        %s502 = scalar_lea.vmem %s1, %s501
        %p503 = pneg %p74
        %p504 = pneg %p71
        %s505 = sand.u32 %s87, 1
        %s506 = scalar_lea.sflag [#allocation3], %s505
        %s507 = sand.u32 %s87, 1
        %s508 = smul.addr %s507, 8
        %s509 = scalar_lea.vmem [#allocation2], %s508
        %p510 = pneg %p100
        %p511 = pneg %p97
        %s512 = sand.u32 %s32, 1
        %s513 = scalar_lea.sflag [#allocation5], %s512
        %s514 = sand.u32 %s113, 1
        %s515 = smul.addr %s514, 2048
        %s516 = scalar_lea.vmem [#allocation4], %s515
        %p517 = pneg %p126
        %p518 = pneg %p123
        %s519 = sand.u32 %s32, 1
        %s520 = scalar_lea.sflag [#allocation5], %s519
        %s521 = sand.u32 %s139, 1
        %s522 = smul.addr %s521, 4
        %s523 = scalar_lea.vmem [#allocation6], %s522
        %p524 = pneg %p152
        %p525 = pneg %p149
        %s526 = sand.u32 %s32, 1
        %s527 = scalar_lea.sflag [#allocation8], %s526
        %s528 = sand.u32 %s165, 1
        %s529 = smul.addr %s528, 2048
        %s530 = scalar_lea.vmem [#allocation7], %s529
        %p531 = pneg %p178
        %p532 = pneg %p175
        %s533 = sand.u32 %s32, 1
        %s534 = scalar_lea.sflag [#allocation8], %s533
        %s535 = sand.u32 %s191, 1
        %s536 = smul.addr %s535, 8
        %s537 = scalar_lea.vmem [#allocation9], %s536
        %p538 = pneg %p204
        %p539 = pneg %p201
        %p540 = scmp.lt.s32.totalorder %s32, 1
        %s541 = scalar_select %p540, %s32, 1
        %s542 = smul.addr %s541, 128
        %s543 = smul.addr %s542, 4
        %s544 = scalar_lea.vmem %s7, %s543
        %p545 = pneg %p230
        %p546 = pneg %p227
        %s547 = sand.u32 %s243, 1
        %s548 = scalar_lea.sflag [#allocation11], %s547
        %s549 = sand.u32 %s243, 1
        %s550 = scalar_lea.vmem [#allocation10], %s549
        %p551 = pneg %p256
        %p552 = pneg %p253
        %p553 = pneg %p282
        %p554 = pneg %p279
        %p555 = scmp.lt.s32.totalorder %s32, 1
        %s556 = scalar_select %p555, %s32, 1
        %s557 = smul.addr %s556, 2
        %s558 = scalar_lea.vmem %s9, %s557
        %p559 = scmp.lt.s32.totalorder %s32, 1
        %s560 = scalar_select %p559, %s32, 1
        %s561 = smul.addr %s560, 256
        %s562 = smul.addr %s561, 4
        %s563 = scalar_lea.vmem %s1, %s562
        %p564 = scmp.lt.s32.totalorder %s32, 1
        %s565 = scalar_select %p564, %s32, 1
        %s566 = smul.addr %s565, 128
        %s567 = smul.addr %s566, 4
        %s568 = scalar_lea.vmem %s7, %s567
        %p569 = scmp.lt.s32.totalorder %s32, 1
        %s570 = scalar_select %p569, %s32, 1
        %s571 = smul.addr %s570, 2
        %s572 = scalar_lea.vmem %s9, %s571
        %v574 = vld [vmem:[%s0] sm:$0xf]
        %v577 = vunpack.c.l.s4 1983009808
        %v578 = vunpack.c.0.s8 %v577
        %v579 = vlaneseq
        %v580 = vshrl.u32 %v579, 7
        %v581 = vsub.s32 %v578, %v580
        %v582 = vrot.slane %v574, %v581
        %v583 = vcombine.high %v582, %v582
        %v586 = vpack.c.bf16 %v582, %v582
        %v587 = vpack.c.bf16 %v583, %v583
        %v588 = vld [vmem:[%s563] sm:$0xff]
        %v589 = vld [vmem:[%s563 + $0x8] sm:$0xff]
        %v590 = vld [vmem:[%s563 + $0x10] sm:$0xff]
        %v591 = vld [vmem:[%s563 + $0x18] sm:$0xff]
        %v592 = vld [vmem:[%s563 + $0x20] sm:$0xff]
        %v593 = vld [vmem:[%s563 + $0x28] sm:$0xff]
        %v594 = vld [vmem:[%s563 + $0x30] sm:$0xff]
        %v595 = vld [vmem:[%s563 + $0x38] sm:$0xff]
        %v596 = vld [vmem:[%s563 + $0x40] sm:$0xff]
        %v597 = vld [vmem:[%s563 + $0x48] sm:$0xff]
        %v598 = vld [vmem:[%s563 + $0x50] sm:$0xff]
        %v599 = vld [vmem:[%s563 + $0x58] sm:$0xff]
        %v600 = vld [vmem:[%s563 + $0x60] sm:$0xff]
        %v601 = vld [vmem:[%s563 + $0x68] sm:$0xff]
        %v602 = vld [vmem:[%s563 + $0x70] sm:$0xff]
        %v603 = vld [vmem:[%s563 + $0x78] sm:$0xff]
        %v604 = vld [vmem:[%s563 + $0x80] sm:$0xff]
        %v605 = vld [vmem:[%s563 + $0x88] sm:$0xff]
        %v606 = vld [vmem:[%s563 + $0x90] sm:$0xff]
        %v607 = vld [vmem:[%s563 + $0x98] sm:$0xff]
        %v608 = vld [vmem:[%s563 + $0xa0] sm:$0xff]
        %v609 = vld [vmem:[%s563 + $0xa8] sm:$0xff]
        %v610 = vld [vmem:[%s563 + $0xb0] sm:$0xff]
        %v611 = vld [vmem:[%s563 + $0xb8] sm:$0xff]
        %v612 = vld [vmem:[%s563 + $0xc0] sm:$0xff]
        %v613 = vld [vmem:[%s563 + $0xc8] sm:$0xff]
        %v614 = vld [vmem:[%s563 + $0xd0] sm:$0xff]
        %v615 = vld [vmem:[%s563 + $0xd8] sm:$0xff]
        %v616 = vld [vmem:[%s563 + $0xe0] sm:$0xff]
        %v617 = vld [vmem:[%s563 + $0xe8] sm:$0xff]
        %v618 = vld [vmem:[%s563 + $0xf0] sm:$0xff]
        %v619 = vld [vmem:[%s563 + $0xf8] sm:$0xff]
        %v620 = vld [vmem:[%s563 + $0x100] sm:$0xff]
        %v621 = vld [vmem:[%s563 + $0x108] sm:$0xff]
        %v622 = vld [vmem:[%s563 + $0x110] sm:$0xff]
        %v623 = vld [vmem:[%s563 + $0x118] sm:$0xff]
        %v624 = vld [vmem:[%s563 + $0x120] sm:$0xff]
        %v625 = vld [vmem:[%s563 + $0x128] sm:$0xff]
        %v626 = vld [vmem:[%s563 + $0x130] sm:$0xff]
        %v627 = vld [vmem:[%s563 + $0x138] sm:$0xff]
        %v628 = vld [vmem:[%s563 + $0x140] sm:$0xff]
        %v629 = vld [vmem:[%s563 + $0x148] sm:$0xff]
        %v630 = vld [vmem:[%s563 + $0x150] sm:$0xff]
        %v631 = vld [vmem:[%s563 + $0x158] sm:$0xff]
        %v632 = vld [vmem:[%s563 + $0x160] sm:$0xff]
        %v633 = vld [vmem:[%s563 + $0x168] sm:$0xff]
        %v634 = vld [vmem:[%s563 + $0x170] sm:$0xff]
        %v635 = vld [vmem:[%s563 + $0x178] sm:$0xff]
        %v636 = vld [vmem:[%s563 + $0x180] sm:$0xff]
        %v637 = vld [vmem:[%s563 + $0x188] sm:$0xff]
        %v638 = vld [vmem:[%s563 + $0x190] sm:$0xff]
        %v639 = vld [vmem:[%s563 + $0x198] sm:$0xff]
        %v640 = vld [vmem:[%s563 + $0x1a0] sm:$0xff]
        %v641 = vld [vmem:[%s563 + $0x1a8] sm:$0xff]
        %v642 = vld [vmem:[%s563 + $0x1b0] sm:$0xff]
        %v643 = vld [vmem:[%s563 + $0x1b8] sm:$0xff]
        %v644 = vld [vmem:[%s563 + $0x1c0] sm:$0xff]
        %v645 = vld [vmem:[%s563 + $0x1c8] sm:$0xff]
        %v646 = vld [vmem:[%s563 + $0x1d0] sm:$0xff]
        %v647 = vld [vmem:[%s563 + $0x1d8] sm:$0xff]
        %v648 = vld [vmem:[%s563 + $0x1e0] sm:$0xff]
        %v649 = vld [vmem:[%s563 + $0x1e8] sm:$0xff]
        %v650 = vld [vmem:[%s563 + $0x1f0] sm:$0xff]
        %v651 = vld [vmem:[%s563 + $0x1f8] sm:$0xff]
        %v652 = vld [vmem:[%s563 + $0x200] sm:$0xff]
        %v653 = vld [vmem:[%s563 + $0x208] sm:$0xff]
        %v654 = vld [vmem:[%s563 + $0x210] sm:$0xff]
        %v655 = vld [vmem:[%s563 + $0x218] sm:$0xff]
        %v656 = vld [vmem:[%s563 + $0x220] sm:$0xff]
        %v657 = vld [vmem:[%s563 + $0x228] sm:$0xff]
        %v658 = vld [vmem:[%s563 + $0x230] sm:$0xff]
        %v659 = vld [vmem:[%s563 + $0x238] sm:$0xff]
        %v660 = vld [vmem:[%s563 + $0x240] sm:$0xff]
        %v661 = vld [vmem:[%s563 + $0x248] sm:$0xff]
        %v662 = vld [vmem:[%s563 + $0x250] sm:$0xff]
        %v663 = vld [vmem:[%s563 + $0x258] sm:$0xff]
        %v664 = vld [vmem:[%s563 + $0x260] sm:$0xff]
        %v665 = vld [vmem:[%s563 + $0x268] sm:$0xff]
        %v666 = vld [vmem:[%s563 + $0x270] sm:$0xff]
        %v667 = vld [vmem:[%s563 + $0x278] sm:$0xff]
        %v668 = vld [vmem:[%s563 + $0x280] sm:$0xff]
        %v669 = vld [vmem:[%s563 + $0x288] sm:$0xff]
        %v670 = vld [vmem:[%s563 + $0x290] sm:$0xff]
        %v671 = vld [vmem:[%s563 + $0x298] sm:$0xff]
        %v672 = vld [vmem:[%s563 + $0x2a0] sm:$0xff]
        %v673 = vld [vmem:[%s563 + $0x2a8] sm:$0xff]
        %v674 = vld [vmem:[%s563 + $0x2b0] sm:$0xff]
        %v675 = vld [vmem:[%s563 + $0x2b8] sm:$0xff]
        %v676 = vld [vmem:[%s563 + $0x2c0] sm:$0xff]
        %v677 = vld [vmem:[%s563 + $0x2c8] sm:$0xff]
        %v678 = vld [vmem:[%s563 + $0x2d0] sm:$0xff]
        %v679 = vld [vmem:[%s563 + $0x2d8] sm:$0xff]
        %v680 = vld [vmem:[%s563 + $0x2e0] sm:$0xff]
        %v681 = vld [vmem:[%s563 + $0x2e8] sm:$0xff]
        %v682 = vld [vmem:[%s563 + $0x2f0] sm:$0xff]
        %v683 = vld [vmem:[%s563 + $0x2f8] sm:$0xff]
        %v684 = vld [vmem:[%s563 + $0x300] sm:$0xff]
        %v685 = vld [vmem:[%s563 + $0x308] sm:$0xff]
        %v686 = vld [vmem:[%s563 + $0x310] sm:$0xff]
        %v687 = vld [vmem:[%s563 + $0x318] sm:$0xff]
        %v688 = vld [vmem:[%s563 + $0x320] sm:$0xff]
        %v689 = vld [vmem:[%s563 + $0x328] sm:$0xff]
        %v690 = vld [vmem:[%s563 + $0x330] sm:$0xff]
        %v691 = vld [vmem:[%s563 + $0x338] sm:$0xff]
        %v692 = vld [vmem:[%s563 + $0x340] sm:$0xff]
        %v693 = vld [vmem:[%s563 + $0x348] sm:$0xff]
        %v694 = vld [vmem:[%s563 + $0x350] sm:$0xff]
        %v695 = vld [vmem:[%s563 + $0x358] sm:$0xff]
        %v696 = vld [vmem:[%s563 + $0x360] sm:$0xff]
        %v697 = vld [vmem:[%s563 + $0x368] sm:$0xff]
        %v698 = vld [vmem:[%s563 + $0x370] sm:$0xff]
        %v699 = vld [vmem:[%s563 + $0x378] sm:$0xff]
        %v700 = vld [vmem:[%s563 + $0x380] sm:$0xff]
        %v701 = vld [vmem:[%s563 + $0x388] sm:$0xff]
        %v702 = vld [vmem:[%s563 + $0x390] sm:$0xff]
        %v703 = vld [vmem:[%s563 + $0x398] sm:$0xff]
        %v704 = vld [vmem:[%s563 + $0x3a0] sm:$0xff]
        %v705 = vld [vmem:[%s563 + $0x3a8] sm:$0xff]
        %v706 = vld [vmem:[%s563 + $0x3b0] sm:$0xff]
        %v707 = vld [vmem:[%s563 + $0x3b8] sm:$0xff]
        %v708 = vld [vmem:[%s563 + $0x3c0] sm:$0xff]
        %v709 = vld [vmem:[%s563 + $0x3c8] sm:$0xff]
        %v710 = vld [vmem:[%s563 + $0x3d0] sm:$0xff]
        %v711 = vld [vmem:[%s563 + $0x3d8] sm:$0xff]
        %v712 = vld [vmem:[%s563 + $0x3e0] sm:$0xff]
        %v713 = vld [vmem:[%s563 + $0x3e8] sm:$0xff]
        %v714 = vld [vmem:[%s563 + $0x3f0] sm:$0xff]
        %v715 = vld [vmem:[%s563 + $0x3f8] sm:$0xff]
        %v716 = vld [vmem:[%s447] sm:$0xff]
        %v718 = vlaneseq
        %v719 = vshrl.u32 %v718, 7
        %v720 = vsub.s32 0, %v719
        %v721 = vrot.slane %v716, %v720
        %v722 = vlaneseq
        %v723 = vshrl.u32 %v722, 7
        %v724 = vsub.s32 1, %v723
        %v725 = vrot.slane %v716, %v724
        %v726 = vlaneseq
        %v727 = vshrl.u32 %v726, 7
        %v728 = vsub.s32 2, %v727
        %v729 = vrot.slane %v716, %v728
        %v730 = vlaneseq
        %v731 = vshrl.u32 %v730, 7
        %v732 = vsub.s32 3, %v731
        %v733 = vrot.slane %v716, %v732
        %v734 = vlaneseq
        %v735 = vshrl.u32 %v734, 7
        %v736 = vsub.s32 4, %v735
        %v737 = vrot.slane %v716, %v736
        %v738 = vlaneseq
        %v739 = vshrl.u32 %v738, 7
        %v740 = vsub.s32 5, %v739
        %v741 = vrot.slane %v716, %v740
        %v742 = vlaneseq
        %v743 = vshrl.u32 %v742, 7
        %v744 = vsub.s32 6, %v743
        %v745 = vrot.slane %v716, %v744
        %v746 = vlaneseq
        %v747 = vshrl.u32 %v746, 7
        %v748 = vsub.s32 7, %v747
        %v749 = vrot.slane %v716, %v748
        %v886 = vunpack.c.l.b16 %v588
        %v887 = vunpack.c.h.b16 %v588
        %v888 = vunpack.c.l.b16 %v589
        %v889 = vunpack.c.h.b16 %v589
        %v890 = vunpack.c.l.b16 %v590
        %v891 = vunpack.c.h.b16 %v590
        %v892 = vunpack.c.l.b16 %v591
        %v893 = vunpack.c.h.b16 %v591
        %v894 = vunpack.c.l.b16 %v592
        %v895 = vunpack.c.h.b16 %v592
        %v896 = vunpack.c.l.b16 %v593
        %v897 = vunpack.c.h.b16 %v593
        %v898 = vunpack.c.l.b16 %v594
        %v899 = vunpack.c.h.b16 %v594
        %v900 = vunpack.c.l.b16 %v595
        %v901 = vunpack.c.h.b16 %v595
        %v902 = vunpack.c.l.b16 %v596
        %v903 = vunpack.c.h.b16 %v596
        %v904 = vunpack.c.l.b16 %v597
        %v905 = vunpack.c.h.b16 %v597
        %v906 = vunpack.c.l.b16 %v598
        %v907 = vunpack.c.h.b16 %v598
        %v908 = vunpack.c.l.b16 %v599
        %v909 = vunpack.c.h.b16 %v599
        %v910 = vunpack.c.l.b16 %v600
        %v911 = vunpack.c.h.b16 %v600
        %v912 = vunpack.c.l.b16 %v601
        %v913 = vunpack.c.h.b16 %v601
        %v914 = vunpack.c.l.b16 %v602
        %v915 = vunpack.c.h.b16 %v602
        %v916 = vunpack.c.l.b16 %v603
        %v917 = vunpack.c.h.b16 %v603
        %v918 = vunpack.c.l.b16 %v604
        %v919 = vunpack.c.h.b16 %v604
        %v920 = vunpack.c.l.b16 %v605
        %v921 = vunpack.c.h.b16 %v605
        %v922 = vunpack.c.l.b16 %v606
        %v923 = vunpack.c.h.b16 %v606
        %v924 = vunpack.c.l.b16 %v607
        %v925 = vunpack.c.h.b16 %v607
        %v926 = vunpack.c.l.b16 %v608
        %v927 = vunpack.c.h.b16 %v608
        %v928 = vunpack.c.l.b16 %v609
        %v929 = vunpack.c.h.b16 %v609
        %v930 = vunpack.c.l.b16 %v610
        %v931 = vunpack.c.h.b16 %v610
        %v932 = vunpack.c.l.b16 %v611
        %v933 = vunpack.c.h.b16 %v611
        %v934 = vunpack.c.l.b16 %v612
        %v935 = vunpack.c.h.b16 %v612
        %v936 = vunpack.c.l.b16 %v613
        %v937 = vunpack.c.h.b16 %v613
        %v938 = vunpack.c.l.b16 %v614
        %v939 = vunpack.c.h.b16 %v614
        %v940 = vunpack.c.l.b16 %v615
        %v941 = vunpack.c.h.b16 %v615
        %v942 = vunpack.c.l.b16 %v616
        %v943 = vunpack.c.h.b16 %v616
        %v944 = vunpack.c.l.b16 %v617
        %v945 = vunpack.c.h.b16 %v617
        %v946 = vunpack.c.l.b16 %v618
        %v947 = vunpack.c.h.b16 %v618
        %v948 = vunpack.c.l.b16 %v619
        %v949 = vunpack.c.h.b16 %v619
        %v950 = vunpack.c.l.b16 %v620
        %v951 = vunpack.c.h.b16 %v620
        %v952 = vunpack.c.l.b16 %v621
        %v953 = vunpack.c.h.b16 %v621
        %v954 = vunpack.c.l.b16 %v622
        %v955 = vunpack.c.h.b16 %v622
        %v956 = vunpack.c.l.b16 %v623
        %v957 = vunpack.c.h.b16 %v623
        %v958 = vunpack.c.l.b16 %v624
        %v959 = vunpack.c.h.b16 %v624
        %v960 = vunpack.c.l.b16 %v625
        %v961 = vunpack.c.h.b16 %v625
        %v962 = vunpack.c.l.b16 %v626
        %v963 = vunpack.c.h.b16 %v626
        %v964 = vunpack.c.l.b16 %v627
        %v965 = vunpack.c.h.b16 %v627
        %v966 = vunpack.c.l.b16 %v628
        %v967 = vunpack.c.h.b16 %v628
        %v968 = vunpack.c.l.b16 %v629
        %v969 = vunpack.c.h.b16 %v629
        %v970 = vunpack.c.l.b16 %v630
        %v971 = vunpack.c.h.b16 %v630
        %v972 = vunpack.c.l.b16 %v631
        %v973 = vunpack.c.h.b16 %v631
        %v974 = vunpack.c.l.b16 %v632
        %v975 = vunpack.c.h.b16 %v632
        %v976 = vunpack.c.l.b16 %v633
        %v977 = vunpack.c.h.b16 %v633
        %v978 = vunpack.c.l.b16 %v634
        %v979 = vunpack.c.h.b16 %v634
        %v980 = vunpack.c.l.b16 %v635
        %v981 = vunpack.c.h.b16 %v635
        %v982 = vunpack.c.l.b16 %v636
        %v983 = vunpack.c.h.b16 %v636
        %v984 = vunpack.c.l.b16 %v637
        %v985 = vunpack.c.h.b16 %v637
        %v986 = vunpack.c.l.b16 %v638
        %v987 = vunpack.c.h.b16 %v638
        %v988 = vunpack.c.l.b16 %v639
        %v989 = vunpack.c.h.b16 %v639
        %v990 = vunpack.c.l.b16 %v640
        %v991 = vunpack.c.h.b16 %v640
        %v992 = vunpack.c.l.b16 %v641
        %v993 = vunpack.c.h.b16 %v641
        %v994 = vunpack.c.l.b16 %v642
        %v995 = vunpack.c.h.b16 %v642
        %v996 = vunpack.c.l.b16 %v643
        %v997 = vunpack.c.h.b16 %v643
        %v998 = vunpack.c.l.b16 %v644
        %v999 = vunpack.c.h.b16 %v644
        %v1000 = vunpack.c.l.b16 %v645
        %v1001 = vunpack.c.h.b16 %v645
        %v1002 = vunpack.c.l.b16 %v646
        %v1003 = vunpack.c.h.b16 %v646
        %v1004 = vunpack.c.l.b16 %v647
        %v1005 = vunpack.c.h.b16 %v647
        %v1006 = vunpack.c.l.b16 %v648
        %v1007 = vunpack.c.h.b16 %v648
        %v1008 = vunpack.c.l.b16 %v649
        %v1009 = vunpack.c.h.b16 %v649
        %v1010 = vunpack.c.l.b16 %v650
        %v1011 = vunpack.c.h.b16 %v650
        %v1012 = vunpack.c.l.b16 %v651
        %v1013 = vunpack.c.h.b16 %v651
        %v1014 = vunpack.c.l.b16 %v652
        %v1015 = vunpack.c.h.b16 %v652
        %v1016 = vunpack.c.l.b16 %v653
        %v1017 = vunpack.c.h.b16 %v653
        %v1018 = vunpack.c.l.b16 %v654
        %v1019 = vunpack.c.h.b16 %v654
        %v1020 = vunpack.c.l.b16 %v655
        %v1021 = vunpack.c.h.b16 %v655
        %v1022 = vunpack.c.l.b16 %v656
        %v1023 = vunpack.c.h.b16 %v656
        %v1024 = vunpack.c.l.b16 %v657
        %v1025 = vunpack.c.h.b16 %v657
        %v1026 = vunpack.c.l.b16 %v658
        %v1027 = vunpack.c.h.b16 %v658
        %v1028 = vunpack.c.l.b16 %v659
        %v1029 = vunpack.c.h.b16 %v659
        %v1030 = vunpack.c.l.b16 %v660
        %v1031 = vunpack.c.h.b16 %v660
        %v1032 = vunpack.c.l.b16 %v661
        %v1033 = vunpack.c.h.b16 %v661
        %v1034 = vunpack.c.l.b16 %v662
        %v1035 = vunpack.c.h.b16 %v662
        %v1036 = vunpack.c.l.b16 %v663
        %v1037 = vunpack.c.h.b16 %v663
        %v1038 = vunpack.c.l.b16 %v664
        %v1039 = vunpack.c.h.b16 %v664
        %v1040 = vunpack.c.l.b16 %v665
        %v1041 = vunpack.c.h.b16 %v665
        %v1042 = vunpack.c.l.b16 %v666
        %v1043 = vunpack.c.h.b16 %v666
        %v1044 = vunpack.c.l.b16 %v667
        %v1045 = vunpack.c.h.b16 %v667
        %v1046 = vunpack.c.l.b16 %v668
        %v1047 = vunpack.c.h.b16 %v668
        %v1048 = vunpack.c.l.b16 %v669
        %v1049 = vunpack.c.h.b16 %v669
        %v1050 = vunpack.c.l.b16 %v670
        %v1051 = vunpack.c.h.b16 %v670
        %v1052 = vunpack.c.l.b16 %v671
        %v1053 = vunpack.c.h.b16 %v671
        %v1054 = vunpack.c.l.b16 %v672
        %v1055 = vunpack.c.h.b16 %v672
        %v1056 = vunpack.c.l.b16 %v673
        %v1057 = vunpack.c.h.b16 %v673
        %v1058 = vunpack.c.l.b16 %v674
        %v1059 = vunpack.c.h.b16 %v674
        %v1060 = vunpack.c.l.b16 %v675
        %v1061 = vunpack.c.h.b16 %v675
        %v1062 = vunpack.c.l.b16 %v676
        %v1063 = vunpack.c.h.b16 %v676
        %v1064 = vunpack.c.l.b16 %v677
        %v1065 = vunpack.c.h.b16 %v677
        %v1066 = vunpack.c.l.b16 %v678
        %v1067 = vunpack.c.h.b16 %v678
        %v1068 = vunpack.c.l.b16 %v679
        %v1069 = vunpack.c.h.b16 %v679
        %v1070 = vunpack.c.l.b16 %v680
        %v1071 = vunpack.c.h.b16 %v680
        %v1072 = vunpack.c.l.b16 %v681
        %v1073 = vunpack.c.h.b16 %v681
        %v1074 = vunpack.c.l.b16 %v682
        %v1075 = vunpack.c.h.b16 %v682
        %v1076 = vunpack.c.l.b16 %v683
        %v1077 = vunpack.c.h.b16 %v683
        %v1078 = vunpack.c.l.b16 %v684
        %v1079 = vunpack.c.h.b16 %v684
        %v1080 = vunpack.c.l.b16 %v685
        %v1081 = vunpack.c.h.b16 %v685
        %v1082 = vunpack.c.l.b16 %v686
        %v1083 = vunpack.c.h.b16 %v686
        %v1084 = vunpack.c.l.b16 %v687
        %v1085 = vunpack.c.h.b16 %v687
        %v1086 = vunpack.c.l.b16 %v688
        %v1087 = vunpack.c.h.b16 %v688
        %v1088 = vunpack.c.l.b16 %v689
        %v1089 = vunpack.c.h.b16 %v689
        %v1090 = vunpack.c.l.b16 %v690
        %v1091 = vunpack.c.h.b16 %v690
        %v1092 = vunpack.c.l.b16 %v691
        %v1093 = vunpack.c.h.b16 %v691
        %v1094 = vunpack.c.l.b16 %v692
        %v1095 = vunpack.c.h.b16 %v692
        %v1096 = vunpack.c.l.b16 %v693
        %v1097 = vunpack.c.h.b16 %v693
        %v1098 = vunpack.c.l.b16 %v694
        %v1099 = vunpack.c.h.b16 %v694
        %v1100 = vunpack.c.l.b16 %v695
        %v1101 = vunpack.c.h.b16 %v695
        %v1102 = vunpack.c.l.b16 %v696
        %v1103 = vunpack.c.h.b16 %v696
        %v1104 = vunpack.c.l.b16 %v697
        %v1105 = vunpack.c.h.b16 %v697
        %v1106 = vunpack.c.l.b16 %v698
        %v1107 = vunpack.c.h.b16 %v698
        %v1108 = vunpack.c.l.b16 %v699
        %v1109 = vunpack.c.h.b16 %v699
        %v1110 = vunpack.c.l.b16 %v700
        %v1111 = vunpack.c.h.b16 %v700
        %v1112 = vunpack.c.l.b16 %v701
        %v1113 = vunpack.c.h.b16 %v701
        %v1114 = vunpack.c.l.b16 %v702
        %v1115 = vunpack.c.h.b16 %v702
        %v1116 = vunpack.c.l.b16 %v703
        %v1117 = vunpack.c.h.b16 %v703
        %v1118 = vunpack.c.l.b16 %v704
        %v1119 = vunpack.c.h.b16 %v704
        %v1120 = vunpack.c.l.b16 %v705
        %v1121 = vunpack.c.h.b16 %v705
        %v1122 = vunpack.c.l.b16 %v706
        %v1123 = vunpack.c.h.b16 %v706
        %v1124 = vunpack.c.l.b16 %v707
        %v1125 = vunpack.c.h.b16 %v707
        %v1126 = vunpack.c.l.b16 %v708
        %v1127 = vunpack.c.h.b16 %v708
        %v1128 = vunpack.c.l.b16 %v709
        %v1129 = vunpack.c.h.b16 %v709
        %v1130 = vunpack.c.l.b16 %v710
        %v1131 = vunpack.c.h.b16 %v710
        %v1132 = vunpack.c.l.b16 %v711
        %v1133 = vunpack.c.h.b16 %v711
        %v1134 = vunpack.c.l.b16 %v712
        %v1135 = vunpack.c.h.b16 %v712
        %v1136 = vunpack.c.l.b16 %v713
        %v1137 = vunpack.c.h.b16 %v713
        %v1138 = vunpack.c.l.b16 %v714
        %v1139 = vunpack.c.h.b16 %v714
        %v1140 = vunpack.c.l.b16 %v715
        %v1141 = vunpack.c.h.b16 %v715
        %v1142 = vpack.c.b16 %v894, %v886
        %v1143 = vpack.c.b16 %v895, %v887
        %v1144 = vpack.c.b16 %v896, %v888
        %v1145 = vpack.c.b16 %v897, %v889
        %v1146 = vpack.c.b16 %v898, %v890
        %v1147 = vpack.c.b16 %v899, %v891
        %v1148 = vpack.c.b16 %v900, %v892
        %v1149 = vpack.c.b16 %v901, %v893
        %v1150 = vpack.c.b16 %v910, %v902
        %v1151 = vpack.c.b16 %v911, %v903
        %v1152 = vpack.c.b16 %v912, %v904
        %v1153 = vpack.c.b16 %v913, %v905
        %v1154 = vpack.c.b16 %v914, %v906
        %v1155 = vpack.c.b16 %v915, %v907
        %v1156 = vpack.c.b16 %v916, %v908
        %v1157 = vpack.c.b16 %v917, %v909
        %v1158 = vpack.c.b16 %v926, %v918
        %v1159 = vpack.c.b16 %v927, %v919
        %v1160 = vpack.c.b16 %v928, %v920
        %v1161 = vpack.c.b16 %v929, %v921
        %v1162 = vpack.c.b16 %v930, %v922
        %v1163 = vpack.c.b16 %v931, %v923
        %v1164 = vpack.c.b16 %v932, %v924
        %v1165 = vpack.c.b16 %v933, %v925
        %v1166 = vpack.c.b16 %v942, %v934
        %v1167 = vpack.c.b16 %v943, %v935
        %v1168 = vpack.c.b16 %v944, %v936
        %v1169 = vpack.c.b16 %v945, %v937
        %v1170 = vpack.c.b16 %v946, %v938
        %v1171 = vpack.c.b16 %v947, %v939
        %v1172 = vpack.c.b16 %v948, %v940
        %v1173 = vpack.c.b16 %v949, %v941
        %v1174 = vpack.c.b16 %v958, %v950
        %v1175 = vpack.c.b16 %v959, %v951
        %v1176 = vpack.c.b16 %v960, %v952
        %v1177 = vpack.c.b16 %v961, %v953
        %v1178 = vpack.c.b16 %v962, %v954
        %v1179 = vpack.c.b16 %v963, %v955
        %v1180 = vpack.c.b16 %v964, %v956
        %v1181 = vpack.c.b16 %v965, %v957
        %v1182 = vpack.c.b16 %v974, %v966
        %v1183 = vpack.c.b16 %v975, %v967
        %v1184 = vpack.c.b16 %v976, %v968
        %v1185 = vpack.c.b16 %v977, %v969
        %v1186 = vpack.c.b16 %v978, %v970
        %v1187 = vpack.c.b16 %v979, %v971
        %v1188 = vpack.c.b16 %v980, %v972
        %v1189 = vpack.c.b16 %v981, %v973
        %v1190 = vpack.c.b16 %v990, %v982
        %v1191 = vpack.c.b16 %v991, %v983
        %v1192 = vpack.c.b16 %v992, %v984
        %v1193 = vpack.c.b16 %v993, %v985
        %v1194 = vpack.c.b16 %v994, %v986
        %v1195 = vpack.c.b16 %v995, %v987
        %v1196 = vpack.c.b16 %v996, %v988
        %v1197 = vpack.c.b16 %v997, %v989
        %v1198 = vpack.c.b16 %v1006, %v998
        %v1199 = vpack.c.b16 %v1007, %v999
        %v1200 = vpack.c.b16 %v1008, %v1000
        %v1201 = vpack.c.b16 %v1009, %v1001
        %v1202 = vpack.c.b16 %v1010, %v1002
        %v1203 = vpack.c.b16 %v1011, %v1003
        %v1204 = vpack.c.b16 %v1012, %v1004
        %v1205 = vpack.c.b16 %v1013, %v1005
        %v1206 = vpack.c.b16 %v1022, %v1014
        %v1207 = vpack.c.b16 %v1023, %v1015
        %v1208 = vpack.c.b16 %v1024, %v1016
        %v1209 = vpack.c.b16 %v1025, %v1017
        %v1210 = vpack.c.b16 %v1026, %v1018
        %v1211 = vpack.c.b16 %v1027, %v1019
        %v1212 = vpack.c.b16 %v1028, %v1020
        %v1213 = vpack.c.b16 %v1029, %v1021
        %v1214 = vpack.c.b16 %v1038, %v1030
        %v1215 = vpack.c.b16 %v1039, %v1031
        %v1216 = vpack.c.b16 %v1040, %v1032
        %v1217 = vpack.c.b16 %v1041, %v1033
        %v1218 = vpack.c.b16 %v1042, %v1034
        %v1219 = vpack.c.b16 %v1043, %v1035
        %v1220 = vpack.c.b16 %v1044, %v1036
        %v1221 = vpack.c.b16 %v1045, %v1037
        %v1222 = vpack.c.b16 %v1054, %v1046
        %v1223 = vpack.c.b16 %v1055, %v1047
        %v1224 = vpack.c.b16 %v1056, %v1048
        %v1225 = vpack.c.b16 %v1057, %v1049
        %v1226 = vpack.c.b16 %v1058, %v1050
        %v1227 = vpack.c.b16 %v1059, %v1051
        %v1228 = vpack.c.b16 %v1060, %v1052
        %v1229 = vpack.c.b16 %v1061, %v1053
        %v1230 = vpack.c.b16 %v1070, %v1062
        %v1231 = vpack.c.b16 %v1071, %v1063
        %v1232 = vpack.c.b16 %v1072, %v1064
        %v1233 = vpack.c.b16 %v1073, %v1065
        %v1234 = vpack.c.b16 %v1074, %v1066
        %v1235 = vpack.c.b16 %v1075, %v1067
        %v1236 = vpack.c.b16 %v1076, %v1068
        %v1237 = vpack.c.b16 %v1077, %v1069
        %v1238 = vpack.c.b16 %v1086, %v1078
        %v1239 = vpack.c.b16 %v1087, %v1079
        %v1240 = vpack.c.b16 %v1088, %v1080
        %v1241 = vpack.c.b16 %v1089, %v1081
        %v1242 = vpack.c.b16 %v1090, %v1082
        %v1243 = vpack.c.b16 %v1091, %v1083
        %v1244 = vpack.c.b16 %v1092, %v1084
        %v1245 = vpack.c.b16 %v1093, %v1085
        %v1246 = vpack.c.b16 %v1102, %v1094
        %v1247 = vpack.c.b16 %v1103, %v1095
        %v1248 = vpack.c.b16 %v1104, %v1096
        %v1249 = vpack.c.b16 %v1105, %v1097
        %v1250 = vpack.c.b16 %v1106, %v1098
        %v1251 = vpack.c.b16 %v1107, %v1099
        %v1252 = vpack.c.b16 %v1108, %v1100
        %v1253 = vpack.c.b16 %v1109, %v1101
        %v1254 = vpack.c.b16 %v1118, %v1110
        %v1255 = vpack.c.b16 %v1119, %v1111
        %v1256 = vpack.c.b16 %v1120, %v1112
        %v1257 = vpack.c.b16 %v1121, %v1113
        %v1258 = vpack.c.b16 %v1122, %v1114
        %v1259 = vpack.c.b16 %v1123, %v1115
        %v1260 = vpack.c.b16 %v1124, %v1116
        %v1261 = vpack.c.b16 %v1125, %v1117
        %v1262 = vpack.c.b16 %v1134, %v1126
        %v1263 = vpack.c.b16 %v1135, %v1127
        %v1264 = vpack.c.b16 %v1136, %v1128
        %v1265 = vpack.c.b16 %v1137, %v1129
        %v1266 = vpack.c.b16 %v1138, %v1130
        %v1267 = vpack.c.b16 %v1139, %v1131
        %v1268 = vpack.c.b16 %v1140, %v1132
        %v1269 = vpack.c.b16 %v1141, %v1133
        %1398 = vmatprep.subr.bf16.mxu0 %v1143
        %1399 = vmatpush1.bf16.msra.mxu0 %v1142
        %1400 = vmatprep.subr.bf16.mxu0 %v1151
        %1401 = vmatpush1.bf16.msra.mxu0 %v1150
        %1402 = vmatprep.subr.bf16.mxu0 %v1159
        %1403 = vmatpush1.bf16.msra.mxu0 %v1158
        %1404 = vmatprep.subr.bf16.mxu0 %v1167
        %1405 = vmatpush1.bf16.msra.mxu0 %v1166
        %1406 = vmatprep.subr.bf16.mxu0 %v1175
        %1407 = vmatpush1.bf16.msra.mxu0 %v1174
        %1408 = vmatprep.subr.bf16.mxu0 %v1183
        %1409 = vmatpush1.bf16.msra.mxu0 %v1182
        %1410 = vmatprep.subr.bf16.mxu0 %v1191
        %1411 = vmatpush1.bf16.msra.mxu0 %v1190
        %1412 = vmatprep.subr.bf16.mxu0 %v1199
        %1413 = vmatpush1.bf16.msra.mxu0 %v1198
        %1414 = vmatprep.subr.bf16.mxu0 %v1207
        %1415 = vmatpush1.bf16.msra.mxu0 %v1206
        %1416 = vmatprep.subr.bf16.mxu0 %v1215
        %1417 = vmatpush1.bf16.msra.mxu0 %v1214
        %1418 = vmatprep.subr.bf16.mxu0 %v1223
        %1419 = vmatpush1.bf16.msra.mxu0 %v1222
        %1420 = vmatprep.subr.bf16.mxu0 %v1231
        %1421 = vmatpush1.bf16.msra.mxu0 %v1230
        %1422 = vmatprep.subr.bf16.mxu0 %v1239
        %1423 = vmatpush1.bf16.msra.mxu0 %v1238
        %1424 = vmatprep.subr.bf16.mxu0 %v1247
        %1425 = vmatpush1.bf16.msra.mxu0 %v1246
        %1426 = vmatprep.subr.bf16.mxu0 %v1255
        %1427 = vmatpush1.bf16.msra.mxu0 %v1254
        %1428 = vmatprep.subr.bf16.mxu0 %v1263
        %1429 = vmatpush1.bf16.msra.mxu0 %v1262
        %1430 = vmatprep.mubr.bf16.mxu0 %v587
        %1431 = vmatmul.mubr.bf16.gmra.mrb[0].mxu0 %v586
        %v1432 = vpop.f32.mrb[0].mxu0
        %v1433 = vadd.f32 %v721, %v1432
        %v1434 = vpop.f32.mrb[0].mxu0
        %v1435 = vadd.f32 %v725, %v1434
        %v1436 = vpop.f32.mrb[0].mxu0
        %v1437 = vpop.f32.mrb[0].mxu0
        %1438 = vdwg.mxu0
        %1439 = vmatprep.subr.bf16.mxu0 %v1145
        %1440 = vmatpush1.bf16.msra.mxu0 %v1144
        %1441 = vmatprep.subr.bf16.mxu0 %v1153
        %1442 = vmatpush1.bf16.msra.mxu0 %v1152
        %1443 = vmatprep.subr.bf16.mxu0 %v1161
        %1444 = vmatpush1.bf16.msra.mxu0 %v1160
        %1445 = vmatprep.subr.bf16.mxu0 %v1169
        %1446 = vmatpush1.bf16.msra.mxu0 %v1168
        %1447 = vmatprep.subr.bf16.mxu0 %v1177
        %1448 = vmatpush1.bf16.msra.mxu0 %v1176
        %1449 = vmatprep.subr.bf16.mxu0 %v1185
        %1450 = vmatpush1.bf16.msra.mxu0 %v1184
        %1451 = vmatprep.subr.bf16.mxu0 %v1193
        %1452 = vmatpush1.bf16.msra.mxu0 %v1192
        %1453 = vmatprep.subr.bf16.mxu0 %v1201
        %1454 = vmatpush1.bf16.msra.mxu0 %v1200
        %1455 = vmatprep.subr.bf16.mxu0 %v1209
        %1456 = vmatpush1.bf16.msra.mxu0 %v1208
        %1457 = vmatprep.subr.bf16.mxu0 %v1217
        %1458 = vmatpush1.bf16.msra.mxu0 %v1216
        %1459 = vmatprep.subr.bf16.mxu0 %v1225
        %1460 = vmatpush1.bf16.msra.mxu0 %v1224
        %1461 = vmatprep.subr.bf16.mxu0 %v1233
        %1462 = vmatpush1.bf16.msra.mxu0 %v1232
        %1463 = vmatprep.subr.bf16.mxu0 %v1241
        %1464 = vmatpush1.bf16.msra.mxu0 %v1240
        %1465 = vmatprep.subr.bf16.mxu0 %v1249
        %1466 = vmatpush1.bf16.msra.mxu0 %v1248
        %1467 = vmatprep.subr.bf16.mxu0 %v1257
        %1468 = vmatpush1.bf16.msra.mxu0 %v1256
        %1469 = vmatprep.subr.bf16.mxu0 %v1265
        %1470 = vmatpush1.bf16.msra.mxu0 %v1264
        %1471 = vmatprep.mubr.bf16.mxu0 %v587
        %1472 = vmatmul.mubr.bf16.gmra.mrb[0].mxu0 %v586
        %v1473 = vpop.f32.mrb[0].mxu0
        %v1474 = vadd.f32 %v729, %v1473
        %v1475 = vpop.f32.mrb[0].mxu0
        %v1476 = vadd.f32 %v733, %v1475
        %v1477 = vpop.f32.mrb[0].mxu0
        %v1478 = vpop.f32.mrb[0].mxu0
        %1479 = vdwg.mxu0
        %1480 = vmatprep.subr.bf16.mxu0 %v1147
        %1481 = vmatpush1.bf16.msra.mxu0 %v1146
        %1482 = vmatprep.subr.bf16.mxu0 %v1155
        %1483 = vmatpush1.bf16.msra.mxu0 %v1154
        %1484 = vmatprep.subr.bf16.mxu0 %v1163
        %1485 = vmatpush1.bf16.msra.mxu0 %v1162
        %1486 = vmatprep.subr.bf16.mxu0 %v1171
        %1487 = vmatpush1.bf16.msra.mxu0 %v1170
        %1488 = vmatprep.subr.bf16.mxu0 %v1179
        %1489 = vmatpush1.bf16.msra.mxu0 %v1178
        %1490 = vmatprep.subr.bf16.mxu0 %v1187
        %1491 = vmatpush1.bf16.msra.mxu0 %v1186
        %1492 = vmatprep.subr.bf16.mxu0 %v1195
        %1493 = vmatpush1.bf16.msra.mxu0 %v1194
        %1494 = vmatprep.subr.bf16.mxu0 %v1203
        %1495 = vmatpush1.bf16.msra.mxu0 %v1202
        %1496 = vmatprep.subr.bf16.mxu0 %v1211
        %1497 = vmatpush1.bf16.msra.mxu0 %v1210
        %1498 = vmatprep.subr.bf16.mxu0 %v1219
        %1499 = vmatpush1.bf16.msra.mxu0 %v1218
        %1500 = vmatprep.subr.bf16.mxu0 %v1227
        %1501 = vmatpush1.bf16.msra.mxu0 %v1226
        %1502 = vmatprep.subr.bf16.mxu0 %v1235
        %1503 = vmatpush1.bf16.msra.mxu0 %v1234
        %1504 = vmatprep.subr.bf16.mxu0 %v1243
        %1505 = vmatpush1.bf16.msra.mxu0 %v1242
        %1506 = vmatprep.subr.bf16.mxu0 %v1251
        %1507 = vmatpush1.bf16.msra.mxu0 %v1250
        %1508 = vmatprep.subr.bf16.mxu0 %v1259
        %1509 = vmatpush1.bf16.msra.mxu0 %v1258
        %1510 = vmatprep.subr.bf16.mxu0 %v1267
        %1511 = vmatpush1.bf16.msra.mxu0 %v1266
        %1512 = vmatprep.mubr.bf16.mxu0 %v587
        %1513 = vmatmul.mubr.bf16.gmra.mrb[0].mxu0 %v586
        %v1514 = vpop.f32.mrb[0].mxu0
        %v1515 = vadd.f32 %v737, %v1514
        %v1516 = vpop.f32.mrb[0].mxu0
        %v1517 = vadd.f32 %v741, %v1516
        %v1518 = vpop.f32.mrb[0].mxu0
        %v1519 = vpop.f32.mrb[0].mxu0
        %1520 = vdwg.mxu0
        %1521 = vmatprep.subr.bf16.mxu0 %v1149
        %1522 = vmatpush1.bf16.msra.mxu0 %v1148
        %1523 = vmatprep.subr.bf16.mxu0 %v1157
        %1524 = vmatpush1.bf16.msra.mxu0 %v1156
        %1525 = vmatprep.subr.bf16.mxu0 %v1165
        %1526 = vmatpush1.bf16.msra.mxu0 %v1164
        %1527 = vmatprep.subr.bf16.mxu0 %v1173
        %1528 = vmatpush1.bf16.msra.mxu0 %v1172
        %1529 = vmatprep.subr.bf16.mxu0 %v1181
        %1530 = vmatpush1.bf16.msra.mxu0 %v1180
        %1531 = vmatprep.subr.bf16.mxu0 %v1189
        %1532 = vmatpush1.bf16.msra.mxu0 %v1188
        %1533 = vmatprep.subr.bf16.mxu0 %v1197
        %1534 = vmatpush1.bf16.msra.mxu0 %v1196
        %1535 = vmatprep.subr.bf16.mxu0 %v1205
        %1536 = vmatpush1.bf16.msra.mxu0 %v1204
        %1537 = vmatprep.subr.bf16.mxu0 %v1213
        %1538 = vmatpush1.bf16.msra.mxu0 %v1212
        %1539 = vmatprep.subr.bf16.mxu0 %v1221
        %1540 = vmatpush1.bf16.msra.mxu0 %v1220
        %1541 = vmatprep.subr.bf16.mxu0 %v1229
        %1542 = vmatpush1.bf16.msra.mxu0 %v1228
        %1543 = vmatprep.subr.bf16.mxu0 %v1237
        %1544 = vmatpush1.bf16.msra.mxu0 %v1236
        %1545 = vmatprep.subr.bf16.mxu0 %v1245
        %1546 = vmatpush1.bf16.msra.mxu0 %v1244
        %1547 = vmatprep.subr.bf16.mxu0 %v1253
        %1548 = vmatpush1.bf16.msra.mxu0 %v1252
        %1549 = vmatprep.subr.bf16.mxu0 %v1261
        %1550 = vmatpush1.bf16.msra.mxu0 %v1260
        %1551 = vmatprep.subr.bf16.mxu0 %v1269
        %1552 = vmatpush1.bf16.msra.mxu0 %v1268
        %1553 = vmatprep.mubr.bf16.mxu0 %v587
        %1554 = vmatmul.mubr.bf16.gmra.mrb[0].mxu0 %v586
        %v1555 = vpop.f32.mrb[0].mxu0
        %v1556 = vadd.f32 %v745, %v1555
        %v1557 = vpop.f32.mrb[0].mxu0
        %v1558 = vadd.f32 %v749, %v1557
        %v1559 = vpop.f32.mrb[0].mxu0
        %v1560 = vpop.f32.mrb[0].mxu0
        %1561 = vdwg.mxu0
        %v1562 = vmax.f32 %v1433, 0.0
        %v1563 = vmax.f32 %v1435, 0.0
        %v1564 = vmax.f32 %v1474, 0.0
        %v1565 = vmax.f32 %v1476, 0.0
        %v1566 = vmax.f32 %v1515, 0.0
        %v1567 = vmax.f32 %v1517, 0.0
        %v1568 = vmax.f32 %v1556, 0.0
        %v1569 = vmax.f32 %v1558, 0.0
        %v1570 = vpack.c.bf16 %v1562, %v1562
        %v1571 = vpack.c.bf16 %v1563, %v1563
        %v1572 = vpack.c.bf16 %v1564, %v1564
        %v1573 = vpack.c.bf16 %v1565, %v1565
        %v1574 = vpack.c.bf16 %v1566, %v1566
        %v1575 = vpack.c.bf16 %v1567, %v1567
        %v1576 = vpack.c.bf16 %v1568, %v1568
        %v1577 = vpack.c.bf16 %v1569, %v1569
        %v1578 = vld [vmem:[%s456] sm:$0xff]
        %v1579 = vld [vmem:[%s456 + $0x8] sm:$0xff]
        %v1580 = vld [vmem:[%s456 + $0x10] sm:$0xff]
        %v1581 = vld [vmem:[%s456 + $0x18] sm:$0xff]
        %v1582 = vld [vmem:[%s456 + $0x20] sm:$0xff]
        %v1583 = vld [vmem:[%s456 + $0x28] sm:$0xff]
        %v1584 = vld [vmem:[%s456 + $0x30] sm:$0xff]
        %v1585 = vld [vmem:[%s456 + $0x38] sm:$0xff]
        %v1586 = vld [vmem:[%s456 + $0x40] sm:$0xff]
        %v1587 = vld [vmem:[%s456 + $0x48] sm:$0xff]
        %v1588 = vld [vmem:[%s456 + $0x50] sm:$0xff]
        %v1589 = vld [vmem:[%s456 + $0x58] sm:$0xff]
        %v1590 = vld [vmem:[%s456 + $0x60] sm:$0xff]
        %v1591 = vld [vmem:[%s456 + $0x68] sm:$0xff]
        %v1592 = vld [vmem:[%s456 + $0x70] sm:$0xff]
        %v1593 = vld [vmem:[%s456 + $0x78] sm:$0xff]
        %v1594 = vld [vmem:[%s456 + $0x80] sm:$0xff]
        %v1595 = vld [vmem:[%s456 + $0x88] sm:$0xff]
        %v1596 = vld [vmem:[%s456 + $0x90] sm:$0xff]
        %v1597 = vld [vmem:[%s456 + $0x98] sm:$0xff]
        %v1598 = vld [vmem:[%s456 + $0xa0] sm:$0xff]
        %v1599 = vld [vmem:[%s456 + $0xa8] sm:$0xff]
        %v1600 = vld [vmem:[%s456 + $0xb0] sm:$0xff]
        %v1601 = vld [vmem:[%s456 + $0xb8] sm:$0xff]
        %v1602 = vld [vmem:[%s456 + $0xc0] sm:$0xff]
        %v1603 = vld [vmem:[%s456 + $0xc8] sm:$0xff]
        %v1604 = vld [vmem:[%s456 + $0xd0] sm:$0xff]
        %v1605 = vld [vmem:[%s456 + $0xd8] sm:$0xff]
        %v1606 = vld [vmem:[%s456 + $0xe0] sm:$0xff]
        %v1607 = vld [vmem:[%s456 + $0xe8] sm:$0xff]
        %v1608 = vld [vmem:[%s456 + $0xf0] sm:$0xff]
        %v1609 = vld [vmem:[%s456 + $0xf8] sm:$0xff]
        %v1610 = vld [vmem:[%s456 + $0x100] sm:$0xff]
        %v1611 = vld [vmem:[%s456 + $0x108] sm:$0xff]
        %v1612 = vld [vmem:[%s456 + $0x110] sm:$0xff]
        %v1613 = vld [vmem:[%s456 + $0x118] sm:$0xff]
        %v1614 = vld [vmem:[%s456 + $0x120] sm:$0xff]
        %v1615 = vld [vmem:[%s456 + $0x128] sm:$0xff]
        %v1616 = vld [vmem:[%s456 + $0x130] sm:$0xff]
        %v1617 = vld [vmem:[%s456 + $0x138] sm:$0xff]
        %v1618 = vld [vmem:[%s456 + $0x140] sm:$0xff]
        %v1619 = vld [vmem:[%s456 + $0x148] sm:$0xff]
        %v1620 = vld [vmem:[%s456 + $0x150] sm:$0xff]
        %v1621 = vld [vmem:[%s456 + $0x158] sm:$0xff]
        %v1622 = vld [vmem:[%s456 + $0x160] sm:$0xff]
        %v1623 = vld [vmem:[%s456 + $0x168] sm:$0xff]
        %v1624 = vld [vmem:[%s456 + $0x170] sm:$0xff]
        %v1625 = vld [vmem:[%s456 + $0x178] sm:$0xff]
        %v1626 = vld [vmem:[%s456 + $0x180] sm:$0xff]
        %v1627 = vld [vmem:[%s456 + $0x188] sm:$0xff]
        %v1628 = vld [vmem:[%s456 + $0x190] sm:$0xff]
        %v1629 = vld [vmem:[%s456 + $0x198] sm:$0xff]
        %v1630 = vld [vmem:[%s456 + $0x1a0] sm:$0xff]
        %v1631 = vld [vmem:[%s456 + $0x1a8] sm:$0xff]
        %v1632 = vld [vmem:[%s456 + $0x1b0] sm:$0xff]
        %v1633 = vld [vmem:[%s456 + $0x1b8] sm:$0xff]
        %v1634 = vld [vmem:[%s456 + $0x1c0] sm:$0xff]
        %v1635 = vld [vmem:[%s456 + $0x1c8] sm:$0xff]
        %v1636 = vld [vmem:[%s456 + $0x1d0] sm:$0xff]
        %v1637 = vld [vmem:[%s456 + $0x1d8] sm:$0xff]
        %v1638 = vld [vmem:[%s456 + $0x1e0] sm:$0xff]
        %v1639 = vld [vmem:[%s456 + $0x1e8] sm:$0xff]
        %v1640 = vld [vmem:[%s456 + $0x1f0] sm:$0xff]
        %v1641 = vld [vmem:[%s456 + $0x1f8] sm:$0xff]
        %v1642 = vld [vmem:[%s456 + $0x200] sm:$0xff]
        %v1643 = vld [vmem:[%s456 + $0x208] sm:$0xff]
        %v1644 = vld [vmem:[%s456 + $0x210] sm:$0xff]
        %v1645 = vld [vmem:[%s456 + $0x218] sm:$0xff]
        %v1646 = vld [vmem:[%s456 + $0x220] sm:$0xff]
        %v1647 = vld [vmem:[%s456 + $0x228] sm:$0xff]
        %v1648 = vld [vmem:[%s456 + $0x230] sm:$0xff]
        %v1649 = vld [vmem:[%s456 + $0x238] sm:$0xff]
        %v1650 = vld [vmem:[%s456 + $0x240] sm:$0xff]
        %v1651 = vld [vmem:[%s456 + $0x248] sm:$0xff]
        %v1652 = vld [vmem:[%s456 + $0x250] sm:$0xff]
        %v1653 = vld [vmem:[%s456 + $0x258] sm:$0xff]
        %v1654 = vld [vmem:[%s456 + $0x260] sm:$0xff]
        %v1655 = vld [vmem:[%s456 + $0x268] sm:$0xff]
        %v1656 = vld [vmem:[%s456 + $0x270] sm:$0xff]
        %v1657 = vld [vmem:[%s456 + $0x278] sm:$0xff]
        %v1658 = vld [vmem:[%s456 + $0x280] sm:$0xff]
        %v1659 = vld [vmem:[%s456 + $0x288] sm:$0xff]
        %v1660 = vld [vmem:[%s456 + $0x290] sm:$0xff]
        %v1661 = vld [vmem:[%s456 + $0x298] sm:$0xff]
        %v1662 = vld [vmem:[%s456 + $0x2a0] sm:$0xff]
        %v1663 = vld [vmem:[%s456 + $0x2a8] sm:$0xff]
        %v1664 = vld [vmem:[%s456 + $0x2b0] sm:$0xff]
        %v1665 = vld [vmem:[%s456 + $0x2b8] sm:$0xff]
        %v1666 = vld [vmem:[%s456 + $0x2c0] sm:$0xff]
        %v1667 = vld [vmem:[%s456 + $0x2c8] sm:$0xff]
        %v1668 = vld [vmem:[%s456 + $0x2d0] sm:$0xff]
        %v1669 = vld [vmem:[%s456 + $0x2d8] sm:$0xff]
        %v1670 = vld [vmem:[%s456 + $0x2e0] sm:$0xff]
        %v1671 = vld [vmem:[%s456 + $0x2e8] sm:$0xff]
        %v1672 = vld [vmem:[%s456 + $0x2f0] sm:$0xff]
        %v1673 = vld [vmem:[%s456 + $0x2f8] sm:$0xff]
        %v1674 = vld [vmem:[%s456 + $0x300] sm:$0xff]
        %v1675 = vld [vmem:[%s456 + $0x308] sm:$0xff]
        %v1676 = vld [vmem:[%s456 + $0x310] sm:$0xff]
        %v1677 = vld [vmem:[%s456 + $0x318] sm:$0xff]
        %v1678 = vld [vmem:[%s456 + $0x320] sm:$0xff]
        %v1679 = vld [vmem:[%s456 + $0x328] sm:$0xff]
        %v1680 = vld [vmem:[%s456 + $0x330] sm:$0xff]
        %v1681 = vld [vmem:[%s456 + $0x338] sm:$0xff]
        %v1682 = vld [vmem:[%s456 + $0x340] sm:$0xff]
        %v1683 = vld [vmem:[%s456 + $0x348] sm:$0xff]
        %v1684 = vld [vmem:[%s456 + $0x350] sm:$0xff]
        %v1685 = vld [vmem:[%s456 + $0x358] sm:$0xff]
        %v1686 = vld [vmem:[%s456 + $0x360] sm:$0xff]
        %v1687 = vld [vmem:[%s456 + $0x368] sm:$0xff]
        %v1688 = vld [vmem:[%s456 + $0x370] sm:$0xff]
        %v1689 = vld [vmem:[%s456 + $0x378] sm:$0xff]
        %v1690 = vld [vmem:[%s456 + $0x380] sm:$0xff]
        %v1691 = vld [vmem:[%s456 + $0x388] sm:$0xff]
        %v1692 = vld [vmem:[%s456 + $0x390] sm:$0xff]
        %v1693 = vld [vmem:[%s456 + $0x398] sm:$0xff]
        %v1694 = vld [vmem:[%s456 + $0x3a0] sm:$0xff]
        %v1695 = vld [vmem:[%s456 + $0x3a8] sm:$0xff]
        %v1696 = vld [vmem:[%s456 + $0x3b0] sm:$0xff]
        %v1697 = vld [vmem:[%s456 + $0x3b8] sm:$0xff]
        %v1698 = vld [vmem:[%s456 + $0x3c0] sm:$0xff]
        %v1699 = vld [vmem:[%s456 + $0x3c8] sm:$0xff]
        %v1700 = vld [vmem:[%s456 + $0x3d0] sm:$0xff]
        %v1701 = vld [vmem:[%s456 + $0x3d8] sm:$0xff]
        %v1702 = vld [vmem:[%s456 + $0x3e0] sm:$0xff]
        %v1703 = vld [vmem:[%s456 + $0x3e8] sm:$0xff]
        %v1704 = vld [vmem:[%s456 + $0x3f0] sm:$0xff]
        %v1705 = vld [vmem:[%s456 + $0x3f8] sm:$0xff]
        %v1706 = vld [vmem:[%s456 + $0x400] sm:$0xff]
        %v1707 = vld [vmem:[%s456 + $0x408] sm:$0xff]
        %v1708 = vld [vmem:[%s456 + $0x410] sm:$0xff]
        %v1709 = vld [vmem:[%s456 + $0x418] sm:$0xff]
        %v1710 = vld [vmem:[%s456 + $0x420] sm:$0xff]
        %v1711 = vld [vmem:[%s456 + $0x428] sm:$0xff]
        %v1712 = vld [vmem:[%s456 + $0x430] sm:$0xff]
        %v1713 = vld [vmem:[%s456 + $0x438] sm:$0xff]
        %v1714 = vld [vmem:[%s456 + $0x440] sm:$0xff]
        %v1715 = vld [vmem:[%s456 + $0x448] sm:$0xff]
        %v1716 = vld [vmem:[%s456 + $0x450] sm:$0xff]
        %v1717 = vld [vmem:[%s456 + $0x458] sm:$0xff]
        %v1718 = vld [vmem:[%s456 + $0x460] sm:$0xff]
        %v1719 = vld [vmem:[%s456 + $0x468] sm:$0xff]
        %v1720 = vld [vmem:[%s456 + $0x470] sm:$0xff]
        %v1721 = vld [vmem:[%s456 + $0x478] sm:$0xff]
        %v1722 = vld [vmem:[%s456 + $0x480] sm:$0xff]
        %v1723 = vld [vmem:[%s456 + $0x488] sm:$0xff]
        %v1724 = vld [vmem:[%s456 + $0x490] sm:$0xff]
        %v1725 = vld [vmem:[%s456 + $0x498] sm:$0xff]
        %v1726 = vld [vmem:[%s456 + $0x4a0] sm:$0xff]
        %v1727 = vld [vmem:[%s456 + $0x4a8] sm:$0xff]
        %v1728 = vld [vmem:[%s456 + $0x4b0] sm:$0xff]
        %v1729 = vld [vmem:[%s456 + $0x4b8] sm:$0xff]
        %v1730 = vld [vmem:[%s456 + $0x4c0] sm:$0xff]
        %v1731 = vld [vmem:[%s456 + $0x4c8] sm:$0xff]
        %v1732 = vld [vmem:[%s456 + $0x4d0] sm:$0xff]
        %v1733 = vld [vmem:[%s456 + $0x4d8] sm:$0xff]
        %v1734 = vld [vmem:[%s456 + $0x4e0] sm:$0xff]
        %v1735 = vld [vmem:[%s456 + $0x4e8] sm:$0xff]
        %v1736 = vld [vmem:[%s456 + $0x4f0] sm:$0xff]
        %v1737 = vld [vmem:[%s456 + $0x4f8] sm:$0xff]
        %v1738 = vld [vmem:[%s456 + $0x500] sm:$0xff]
        %v1739 = vld [vmem:[%s456 + $0x508] sm:$0xff]
        %v1740 = vld [vmem:[%s456 + $0x510] sm:$0xff]
        %v1741 = vld [vmem:[%s456 + $0x518] sm:$0xff]
        %v1742 = vld [vmem:[%s456 + $0x520] sm:$0xff]
        %v1743 = vld [vmem:[%s456 + $0x528] sm:$0xff]
        %v1744 = vld [vmem:[%s456 + $0x530] sm:$0xff]
        %v1745 = vld [vmem:[%s456 + $0x538] sm:$0xff]
        %v1746 = vld [vmem:[%s456 + $0x540] sm:$0xff]
        %v1747 = vld [vmem:[%s456 + $0x548] sm:$0xff]
        %v1748 = vld [vmem:[%s456 + $0x550] sm:$0xff]
        %v1749 = vld [vmem:[%s456 + $0x558] sm:$0xff]
        %v1750 = vld [vmem:[%s456 + $0x560] sm:$0xff]
        %v1751 = vld [vmem:[%s456 + $0x568] sm:$0xff]
        %v1752 = vld [vmem:[%s456 + $0x570] sm:$0xff]
        %v1753 = vld [vmem:[%s456 + $0x578] sm:$0xff]
        %v1754 = vld [vmem:[%s456 + $0x580] sm:$0xff]
        %v1755 = vld [vmem:[%s456 + $0x588] sm:$0xff]
        %v1756 = vld [vmem:[%s456 + $0x590] sm:$0xff]
        %v1757 = vld [vmem:[%s456 + $0x598] sm:$0xff]
        %v1758 = vld [vmem:[%s456 + $0x5a0] sm:$0xff]
        %v1759 = vld [vmem:[%s456 + $0x5a8] sm:$0xff]
        %v1760 = vld [vmem:[%s456 + $0x5b0] sm:$0xff]
        %v1761 = vld [vmem:[%s456 + $0x5b8] sm:$0xff]
        %v1762 = vld [vmem:[%s456 + $0x5c0] sm:$0xff]
        %v1763 = vld [vmem:[%s456 + $0x5c8] sm:$0xff]
        %v1764 = vld [vmem:[%s456 + $0x5d0] sm:$0xff]
        %v1765 = vld [vmem:[%s456 + $0x5d8] sm:$0xff]
        %v1766 = vld [vmem:[%s456 + $0x5e0] sm:$0xff]
        %v1767 = vld [vmem:[%s456 + $0x5e8] sm:$0xff]
        %v1768 = vld [vmem:[%s456 + $0x5f0] sm:$0xff]
        %v1769 = vld [vmem:[%s456 + $0x5f8] sm:$0xff]
        %v1770 = vld [vmem:[%s456 + $0x600] sm:$0xff]
        %v1771 = vld [vmem:[%s456 + $0x608] sm:$0xff]
        %v1772 = vld [vmem:[%s456 + $0x610] sm:$0xff]
        %v1773 = vld [vmem:[%s456 + $0x618] sm:$0xff]
        %v1774 = vld [vmem:[%s456 + $0x620] sm:$0xff]
        %v1775 = vld [vmem:[%s456 + $0x628] sm:$0xff]
        %v1776 = vld [vmem:[%s456 + $0x630] sm:$0xff]
        %v1777 = vld [vmem:[%s456 + $0x638] sm:$0xff]
        %v1778 = vld [vmem:[%s456 + $0x640] sm:$0xff]
        %v1779 = vld [vmem:[%s456 + $0x648] sm:$0xff]
        %v1780 = vld [vmem:[%s456 + $0x650] sm:$0xff]
        %v1781 = vld [vmem:[%s456 + $0x658] sm:$0xff]
        %v1782 = vld [vmem:[%s456 + $0x660] sm:$0xff]
        %v1783 = vld [vmem:[%s456 + $0x668] sm:$0xff]
        %v1784 = vld [vmem:[%s456 + $0x670] sm:$0xff]
        %v1785 = vld [vmem:[%s456 + $0x678] sm:$0xff]
        %v1786 = vld [vmem:[%s456 + $0x680] sm:$0xff]
        %v1787 = vld [vmem:[%s456 + $0x688] sm:$0xff]
        %v1788 = vld [vmem:[%s456 + $0x690] sm:$0xff]
        %v1789 = vld [vmem:[%s456 + $0x698] sm:$0xff]
        %v1790 = vld [vmem:[%s456 + $0x6a0] sm:$0xff]
        %v1791 = vld [vmem:[%s456 + $0x6a8] sm:$0xff]
        %v1792 = vld [vmem:[%s456 + $0x6b0] sm:$0xff]
        %v1793 = vld [vmem:[%s456 + $0x6b8] sm:$0xff]
        %v1794 = vld [vmem:[%s456 + $0x6c0] sm:$0xff]
        %v1795 = vld [vmem:[%s456 + $0x6c8] sm:$0xff]
        %v1796 = vld [vmem:[%s456 + $0x6d0] sm:$0xff]
        %v1797 = vld [vmem:[%s456 + $0x6d8] sm:$0xff]
        %v1798 = vld [vmem:[%s456 + $0x6e0] sm:$0xff]
        %v1799 = vld [vmem:[%s456 + $0x6e8] sm:$0xff]
        %v1800 = vld [vmem:[%s456 + $0x6f0] sm:$0xff]
        %v1801 = vld [vmem:[%s456 + $0x6f8] sm:$0xff]
        %v1802 = vld [vmem:[%s456 + $0x700] sm:$0xff]
        %v1803 = vld [vmem:[%s456 + $0x708] sm:$0xff]
        %v1804 = vld [vmem:[%s456 + $0x710] sm:$0xff]
        %v1805 = vld [vmem:[%s456 + $0x718] sm:$0xff]
        %v1806 = vld [vmem:[%s456 + $0x720] sm:$0xff]
        %v1807 = vld [vmem:[%s456 + $0x728] sm:$0xff]
        %v1808 = vld [vmem:[%s456 + $0x730] sm:$0xff]
        %v1809 = vld [vmem:[%s456 + $0x738] sm:$0xff]
        %v1810 = vld [vmem:[%s456 + $0x740] sm:$0xff]
        %v1811 = vld [vmem:[%s456 + $0x748] sm:$0xff]
        %v1812 = vld [vmem:[%s456 + $0x750] sm:$0xff]
        %v1813 = vld [vmem:[%s456 + $0x758] sm:$0xff]
        %v1814 = vld [vmem:[%s456 + $0x760] sm:$0xff]
        %v1815 = vld [vmem:[%s456 + $0x768] sm:$0xff]
        %v1816 = vld [vmem:[%s456 + $0x770] sm:$0xff]
        %v1817 = vld [vmem:[%s456 + $0x778] sm:$0xff]
        %v1818 = vld [vmem:[%s456 + $0x780] sm:$0xff]
        %v1819 = vld [vmem:[%s456 + $0x788] sm:$0xff]
        %v1820 = vld [vmem:[%s456 + $0x790] sm:$0xff]
        %v1821 = vld [vmem:[%s456 + $0x798] sm:$0xff]
        %v1822 = vld [vmem:[%s456 + $0x7a0] sm:$0xff]
        %v1823 = vld [vmem:[%s456 + $0x7a8] sm:$0xff]
        %v1824 = vld [vmem:[%s456 + $0x7b0] sm:$0xff]
        %v1825 = vld [vmem:[%s456 + $0x7b8] sm:$0xff]
        %v1826 = vld [vmem:[%s456 + $0x7c0] sm:$0xff]
        %v1827 = vld [vmem:[%s456 + $0x7c8] sm:$0xff]
        %v1828 = vld [vmem:[%s456 + $0x7d0] sm:$0xff]
        %v1829 = vld [vmem:[%s456 + $0x7d8] sm:$0xff]
        %v1830 = vld [vmem:[%s456 + $0x7e0] sm:$0xff]
        %v1831 = vld [vmem:[%s456 + $0x7e8] sm:$0xff]
        %v1832 = vld [vmem:[%s456 + $0x7f0] sm:$0xff]
        %v1833 = vld [vmem:[%s456 + $0x7f8] sm:$0xff]
        %v1834 = vld [vmem:[%s465] sm:$0xf]
        %v1836 = vlaneseq
        %v1837 = vshrl.u32 %v1836, 7
        %v1838 = vsub.s32 0, %v1837
        %v1839 = vrot.slane %v1834, %v1838
        %v1840 = vlaneseq
        %v1841 = vshrl.u32 %v1840, 7
        %v1842 = vsub.s32 1, %v1841
        %v1843 = vrot.slane %v1834, %v1842
        %v1844 = vlaneseq
        %v1845 = vshrl.u32 %v1844, 7
        %v1846 = vsub.s32 2, %v1845
        %v1847 = vrot.slane %v1834, %v1846
        %v1848 = vlaneseq
        %v1849 = vshrl.u32 %v1848, 7
        %v1850 = vsub.s32 3, %v1849
        %v1851 = vrot.slane %v1834, %v1850
        %v2112 = vunpack.c.l.b16 %v1578
        %v2113 = vunpack.c.h.b16 %v1578
        %v2114 = vunpack.c.l.b16 %v1579
        %v2115 = vunpack.c.h.b16 %v1579
        %v2116 = vunpack.c.l.b16 %v1580
        %v2117 = vunpack.c.h.b16 %v1580
        %v2118 = vunpack.c.l.b16 %v1581
        %v2119 = vunpack.c.h.b16 %v1581
        %v2120 = vunpack.c.l.b16 %v1582
        %v2121 = vunpack.c.h.b16 %v1582
        %v2122 = vunpack.c.l.b16 %v1583
        %v2123 = vunpack.c.h.b16 %v1583
        %v2124 = vunpack.c.l.b16 %v1584
        %v2125 = vunpack.c.h.b16 %v1584
        %v2126 = vunpack.c.l.b16 %v1585
        %v2127 = vunpack.c.h.b16 %v1585
        %v2128 = vunpack.c.l.b16 %v1586
        %v2129 = vunpack.c.h.b16 %v1586
        %v2130 = vunpack.c.l.b16 %v1587
        %v2131 = vunpack.c.h.b16 %v1587
        %v2132 = vunpack.c.l.b16 %v1588
        %v2133 = vunpack.c.h.b16 %v1588
        %v2134 = vunpack.c.l.b16 %v1589
        %v2135 = vunpack.c.h.b16 %v1589
        %v2136 = vunpack.c.l.b16 %v1590
        %v2137 = vunpack.c.h.b16 %v1590
        %v2138 = vunpack.c.l.b16 %v1591
        %v2139 = vunpack.c.h.b16 %v1591
        %v2140 = vunpack.c.l.b16 %v1592
        %v2141 = vunpack.c.h.b16 %v1592
        %v2142 = vunpack.c.l.b16 %v1593
        %v2143 = vunpack.c.h.b16 %v1593
        %v2144 = vunpack.c.l.b16 %v1594
        %v2145 = vunpack.c.h.b16 %v1594
        %v2146 = vunpack.c.l.b16 %v1595
        %v2147 = vunpack.c.h.b16 %v1595
        %v2148 = vunpack.c.l.b16 %v1596
        %v2149 = vunpack.c.h.b16 %v1596
        %v2150 = vunpack.c.l.b16 %v1597
        %v2151 = vunpack.c.h.b16 %v1597
        %v2152 = vunpack.c.l.b16 %v1598
        %v2153 = vunpack.c.h.b16 %v1598
        %v2154 = vunpack.c.l.b16 %v1599
        %v2155 = vunpack.c.h.b16 %v1599
        %v2156 = vunpack.c.l.b16 %v1600
        %v2157 = vunpack.c.h.b16 %v1600
        %v2158 = vunpack.c.l.b16 %v1601
        %v2159 = vunpack.c.h.b16 %v1601
        %v2160 = vunpack.c.l.b16 %v1602
        %v2161 = vunpack.c.h.b16 %v1602
        %v2162 = vunpack.c.l.b16 %v1603
        %v2163 = vunpack.c.h.b16 %v1603
        %v2164 = vunpack.c.l.b16 %v1604
        %v2165 = vunpack.c.h.b16 %v1604
        %v2166 = vunpack.c.l.b16 %v1605
        %v2167 = vunpack.c.h.b16 %v1605
        %v2168 = vunpack.c.l.b16 %v1606
        %v2169 = vunpack.c.h.b16 %v1606
        %v2170 = vunpack.c.l.b16 %v1607
        %v2171 = vunpack.c.h.b16 %v1607
        %v2172 = vunpack.c.l.b16 %v1608
        %v2173 = vunpack.c.h.b16 %v1608
        %v2174 = vunpack.c.l.b16 %v1609
        %v2175 = vunpack.c.h.b16 %v1609
        %v2176 = vunpack.c.l.b16 %v1610
        %v2177 = vunpack.c.h.b16 %v1610
        %v2178 = vunpack.c.l.b16 %v1611
        %v2179 = vunpack.c.h.b16 %v1611
        %v2180 = vunpack.c.l.b16 %v1612
        %v2181 = vunpack.c.h.b16 %v1612
        %v2182 = vunpack.c.l.b16 %v1613
        %v2183 = vunpack.c.h.b16 %v1613
        %v2184 = vunpack.c.l.b16 %v1614
        %v2185 = vunpack.c.h.b16 %v1614
        %v2186 = vunpack.c.l.b16 %v1615
        %v2187 = vunpack.c.h.b16 %v1615
        %v2188 = vunpack.c.l.b16 %v1616
        %v2189 = vunpack.c.h.b16 %v1616
        %v2190 = vunpack.c.l.b16 %v1617
        %v2191 = vunpack.c.h.b16 %v1617
        %v2192 = vunpack.c.l.b16 %v1618
        %v2193 = vunpack.c.h.b16 %v1618
        %v2194 = vunpack.c.l.b16 %v1619
        %v2195 = vunpack.c.h.b16 %v1619
        %v2196 = vunpack.c.l.b16 %v1620
        %v2197 = vunpack.c.h.b16 %v1620
        %v2198 = vunpack.c.l.b16 %v1621
        %v2199 = vunpack.c.h.b16 %v1621
        %v2200 = vunpack.c.l.b16 %v1622
        %v2201 = vunpack.c.h.b16 %v1622
        %v2202 = vunpack.c.l.b16 %v1623
        %v2203 = vunpack.c.h.b16 %v1623
        %v2204 = vunpack.c.l.b16 %v1624
        %v2205 = vunpack.c.h.b16 %v1624
        %v2206 = vunpack.c.l.b16 %v1625
        %v2207 = vunpack.c.h.b16 %v1625
        %v2208 = vunpack.c.l.b16 %v1626
        %v2209 = vunpack.c.h.b16 %v1626
        %v2210 = vunpack.c.l.b16 %v1627
        %v2211 = vunpack.c.h.b16 %v1627
        %v2212 = vunpack.c.l.b16 %v1628
        %v2213 = vunpack.c.h.b16 %v1628
        %v2214 = vunpack.c.l.b16 %v1629
        %v2215 = vunpack.c.h.b16 %v1629
        %v2216 = vunpack.c.l.b16 %v1630
        %v2217 = vunpack.c.h.b16 %v1630
        %v2218 = vunpack.c.l.b16 %v1631
        %v2219 = vunpack.c.h.b16 %v1631
        %v2220 = vunpack.c.l.b16 %v1632
        %v2221 = vunpack.c.h.b16 %v1632
        %v2222 = vunpack.c.l.b16 %v1633
        %v2223 = vunpack.c.h.b16 %v1633
        %v2224 = vunpack.c.l.b16 %v1634
        %v2225 = vunpack.c.h.b16 %v1634
        %v2226 = vunpack.c.l.b16 %v1635
        %v2227 = vunpack.c.h.b16 %v1635
        %v2228 = vunpack.c.l.b16 %v1636
        %v2229 = vunpack.c.h.b16 %v1636
        %v2230 = vunpack.c.l.b16 %v1637
        %v2231 = vunpack.c.h.b16 %v1637
        %v2232 = vunpack.c.l.b16 %v1638
        %v2233 = vunpack.c.h.b16 %v1638
        %v2234 = vunpack.c.l.b16 %v1639
        %v2235 = vunpack.c.h.b16 %v1639
        %v2236 = vunpack.c.l.b16 %v1640
        %v2237 = vunpack.c.h.b16 %v1640
        %v2238 = vunpack.c.l.b16 %v1641
        %v2239 = vunpack.c.h.b16 %v1641
        %v2240 = vunpack.c.l.b16 %v1642
        %v2241 = vunpack.c.h.b16 %v1642
        %v2242 = vunpack.c.l.b16 %v1643
        %v2243 = vunpack.c.h.b16 %v1643
        %v2244 = vunpack.c.l.b16 %v1644
        %v2245 = vunpack.c.h.b16 %v1644
        %v2246 = vunpack.c.l.b16 %v1645
        %v2247 = vunpack.c.h.b16 %v1645
        %v2248 = vunpack.c.l.b16 %v1646
        %v2249 = vunpack.c.h.b16 %v1646
        %v2250 = vunpack.c.l.b16 %v1647
        %v2251 = vunpack.c.h.b16 %v1647
        %v2252 = vunpack.c.l.b16 %v1648
        %v2253 = vunpack.c.h.b16 %v1648
        %v2254 = vunpack.c.l.b16 %v1649
        %v2255 = vunpack.c.h.b16 %v1649
        %v2256 = vunpack.c.l.b16 %v1650
        %v2257 = vunpack.c.h.b16 %v1650
        %v2258 = vunpack.c.l.b16 %v1651
        %v2259 = vunpack.c.h.b16 %v1651
        %v2260 = vunpack.c.l.b16 %v1652
        %v2261 = vunpack.c.h.b16 %v1652
        %v2262 = vunpack.c.l.b16 %v1653
        %v2263 = vunpack.c.h.b16 %v1653
        %v2264 = vunpack.c.l.b16 %v1654
        %v2265 = vunpack.c.h.b16 %v1654
        %v2266 = vunpack.c.l.b16 %v1655
        %v2267 = vunpack.c.h.b16 %v1655
        %v2268 = vunpack.c.l.b16 %v1656
        %v2269 = vunpack.c.h.b16 %v1656
        %v2270 = vunpack.c.l.b16 %v1657
        %v2271 = vunpack.c.h.b16 %v1657
        %v2272 = vunpack.c.l.b16 %v1658
        %v2273 = vunpack.c.h.b16 %v1658
        %v2274 = vunpack.c.l.b16 %v1659
        %v2275 = vunpack.c.h.b16 %v1659
        %v2276 = vunpack.c.l.b16 %v1660
        %v2277 = vunpack.c.h.b16 %v1660
        %v2278 = vunpack.c.l.b16 %v1661
        %v2279 = vunpack.c.h.b16 %v1661
        %v2280 = vunpack.c.l.b16 %v1662
        %v2281 = vunpack.c.h.b16 %v1662
        %v2282 = vunpack.c.l.b16 %v1663
        %v2283 = vunpack.c.h.b16 %v1663
        %v2284 = vunpack.c.l.b16 %v1664
        %v2285 = vunpack.c.h.b16 %v1664
        %v2286 = vunpack.c.l.b16 %v1665
        %v2287 = vunpack.c.h.b16 %v1665
        %v2288 = vunpack.c.l.b16 %v1666
        %v2289 = vunpack.c.h.b16 %v1666
        %v2290 = vunpack.c.l.b16 %v1667
        %v2291 = vunpack.c.h.b16 %v1667
        %v2292 = vunpack.c.l.b16 %v1668
        %v2293 = vunpack.c.h.b16 %v1668
        %v2294 = vunpack.c.l.b16 %v1669
        %v2295 = vunpack.c.h.b16 %v1669
        %v2296 = vunpack.c.l.b16 %v1670
        %v2297 = vunpack.c.h.b16 %v1670
        %v2298 = vunpack.c.l.b16 %v1671
        %v2299 = vunpack.c.h.b16 %v1671
        %v2300 = vunpack.c.l.b16 %v1672
        %v2301 = vunpack.c.h.b16 %v1672
        %v2302 = vunpack.c.l.b16 %v1673
        %v2303 = vunpack.c.h.b16 %v1673
        %v2304 = vunpack.c.l.b16 %v1674
        %v2305 = vunpack.c.h.b16 %v1674
        %v2306 = vunpack.c.l.b16 %v1675
        %v2307 = vunpack.c.h.b16 %v1675
        %v2308 = vunpack.c.l.b16 %v1676
        %v2309 = vunpack.c.h.b16 %v1676
        %v2310 = vunpack.c.l.b16 %v1677
        %v2311 = vunpack.c.h.b16 %v1677
        %v2312 = vunpack.c.l.b16 %v1678
        %v2313 = vunpack.c.h.b16 %v1678
        %v2314 = vunpack.c.l.b16 %v1679
        %v2315 = vunpack.c.h.b16 %v1679
        %v2316 = vunpack.c.l.b16 %v1680
        %v2317 = vunpack.c.h.b16 %v1680
        %v2318 = vunpack.c.l.b16 %v1681
        %v2319 = vunpack.c.h.b16 %v1681
        %v2320 = vunpack.c.l.b16 %v1682
        %v2321 = vunpack.c.h.b16 %v1682
        %v2322 = vunpack.c.l.b16 %v1683
        %v2323 = vunpack.c.h.b16 %v1683
        %v2324 = vunpack.c.l.b16 %v1684
        %v2325 = vunpack.c.h.b16 %v1684
        %v2326 = vunpack.c.l.b16 %v1685
        %v2327 = vunpack.c.h.b16 %v1685
        %v2328 = vunpack.c.l.b16 %v1686
        %v2329 = vunpack.c.h.b16 %v1686
        %v2330 = vunpack.c.l.b16 %v1687
        %v2331 = vunpack.c.h.b16 %v1687
        %v2332 = vunpack.c.l.b16 %v1688
        %v2333 = vunpack.c.h.b16 %v1688
        %v2334 = vunpack.c.l.b16 %v1689
        %v2335 = vunpack.c.h.b16 %v1689
        %v2336 = vunpack.c.l.b16 %v1690
        %v2337 = vunpack.c.h.b16 %v1690
        %v2338 = vunpack.c.l.b16 %v1691
        %v2339 = vunpack.c.h.b16 %v1691
        %v2340 = vunpack.c.l.b16 %v1692
        %v2341 = vunpack.c.h.b16 %v1692
        %v2342 = vunpack.c.l.b16 %v1693
        %v2343 = vunpack.c.h.b16 %v1693
        %v2344 = vunpack.c.l.b16 %v1694
        %v2345 = vunpack.c.h.b16 %v1694
        %v2346 = vunpack.c.l.b16 %v1695
        %v2347 = vunpack.c.h.b16 %v1695
        %v2348 = vunpack.c.l.b16 %v1696
        %v2349 = vunpack.c.h.b16 %v1696
        %v2350 = vunpack.c.l.b16 %v1697
        %v2351 = vunpack.c.h.b16 %v1697
        %v2352 = vunpack.c.l.b16 %v1698
        %v2353 = vunpack.c.h.b16 %v1698
        %v2354 = vunpack.c.l.b16 %v1699
        %v2355 = vunpack.c.h.b16 %v1699
        %v2356 = vunpack.c.l.b16 %v1700
        %v2357 = vunpack.c.h.b16 %v1700
        %v2358 = vunpack.c.l.b16 %v1701
        %v2359 = vunpack.c.h.b16 %v1701
        %v2360 = vunpack.c.l.b16 %v1702
        %v2361 = vunpack.c.h.b16 %v1702
        %v2362 = vunpack.c.l.b16 %v1703
        %v2363 = vunpack.c.h.b16 %v1703
        %v2364 = vunpack.c.l.b16 %v1704
        %v2365 = vunpack.c.h.b16 %v1704
        %v2366 = vunpack.c.l.b16 %v1705
        %v2367 = vunpack.c.h.b16 %v1705
        %v2368 = vunpack.c.l.b16 %v1706
        %v2369 = vunpack.c.h.b16 %v1706
        %v2370 = vunpack.c.l.b16 %v1707
        %v2371 = vunpack.c.h.b16 %v1707
        %v2372 = vunpack.c.l.b16 %v1708
        %v2373 = vunpack.c.h.b16 %v1708
        %v2374 = vunpack.c.l.b16 %v1709
        %v2375 = vunpack.c.h.b16 %v1709
        %v2376 = vunpack.c.l.b16 %v1710
        %v2377 = vunpack.c.h.b16 %v1710
        %v2378 = vunpack.c.l.b16 %v1711
        %v2379 = vunpack.c.h.b16 %v1711
        %v2380 = vunpack.c.l.b16 %v1712
        %v2381 = vunpack.c.h.b16 %v1712
        %v2382 = vunpack.c.l.b16 %v1713
        %v2383 = vunpack.c.h.b16 %v1713
        %v2384 = vunpack.c.l.b16 %v1714
        %v2385 = vunpack.c.h.b16 %v1714
        %v2386 = vunpack.c.l.b16 %v1715
        %v2387 = vunpack.c.h.b16 %v1715
        %v2388 = vunpack.c.l.b16 %v1716
        %v2389 = vunpack.c.h.b16 %v1716
        %v2390 = vunpack.c.l.b16 %v1717
        %v2391 = vunpack.c.h.b16 %v1717
        %v2392 = vunpack.c.l.b16 %v1718
        %v2393 = vunpack.c.h.b16 %v1718
        %v2394 = vunpack.c.l.b16 %v1719
        %v2395 = vunpack.c.h.b16 %v1719
        %v2396 = vunpack.c.l.b16 %v1720
        %v2397 = vunpack.c.h.b16 %v1720
        %v2398 = vunpack.c.l.b16 %v1721
        %v2399 = vunpack.c.h.b16 %v1721
        %v2400 = vunpack.c.l.b16 %v1722
        %v2401 = vunpack.c.h.b16 %v1722
        %v2402 = vunpack.c.l.b16 %v1723
        %v2403 = vunpack.c.h.b16 %v1723
        %v2404 = vunpack.c.l.b16 %v1724
        %v2405 = vunpack.c.h.b16 %v1724
        %v2406 = vunpack.c.l.b16 %v1725
        %v2407 = vunpack.c.h.b16 %v1725
        %v2408 = vunpack.c.l.b16 %v1726
        %v2409 = vunpack.c.h.b16 %v1726
        %v2410 = vunpack.c.l.b16 %v1727
        %v2411 = vunpack.c.h.b16 %v1727
        %v2412 = vunpack.c.l.b16 %v1728
        %v2413 = vunpack.c.h.b16 %v1728
        %v2414 = vunpack.c.l.b16 %v1729
        %v2415 = vunpack.c.h.b16 %v1729
        %v2416 = vunpack.c.l.b16 %v1730
        %v2417 = vunpack.c.h.b16 %v1730
        %v2418 = vunpack.c.l.b16 %v1731
        %v2419 = vunpack.c.h.b16 %v1731
        %v2420 = vunpack.c.l.b16 %v1732
        %v2421 = vunpack.c.h.b16 %v1732
        %v2422 = vunpack.c.l.b16 %v1733
        %v2423 = vunpack.c.h.b16 %v1733
        %v2424 = vunpack.c.l.b16 %v1734
        %v2425 = vunpack.c.h.b16 %v1734
        %v2426 = vunpack.c.l.b16 %v1735
        %v2427 = vunpack.c.h.b16 %v1735
        %v2428 = vunpack.c.l.b16 %v1736
        %v2429 = vunpack.c.h.b16 %v1736
        %v2430 = vunpack.c.l.b16 %v1737
        %v2431 = vunpack.c.h.b16 %v1737
        %v2432 = vunpack.c.l.b16 %v1738
        %v2433 = vunpack.c.h.b16 %v1738
        %v2434 = vunpack.c.l.b16 %v1739
        %v2435 = vunpack.c.h.b16 %v1739
        %v2436 = vunpack.c.l.b16 %v1740
        %v2437 = vunpack.c.h.b16 %v1740
        %v2438 = vunpack.c.l.b16 %v1741
        %v2439 = vunpack.c.h.b16 %v1741
        %v2440 = vunpack.c.l.b16 %v1742
        %v2441 = vunpack.c.h.b16 %v1742
        %v2442 = vunpack.c.l.b16 %v1743
        %v2443 = vunpack.c.h.b16 %v1743
        %v2444 = vunpack.c.l.b16 %v1744
        %v2445 = vunpack.c.h.b16 %v1744
        %v2446 = vunpack.c.l.b16 %v1745
        %v2447 = vunpack.c.h.b16 %v1745
        %v2448 = vunpack.c.l.b16 %v1746
        %v2449 = vunpack.c.h.b16 %v1746
        %v2450 = vunpack.c.l.b16 %v1747
        %v2451 = vunpack.c.h.b16 %v1747
        %v2452 = vunpack.c.l.b16 %v1748
        %v2453 = vunpack.c.h.b16 %v1748
        %v2454 = vunpack.c.l.b16 %v1749
        %v2455 = vunpack.c.h.b16 %v1749
        %v2456 = vunpack.c.l.b16 %v1750
        %v2457 = vunpack.c.h.b16 %v1750
        %v2458 = vunpack.c.l.b16 %v1751
        %v2459 = vunpack.c.h.b16 %v1751
        %v2460 = vunpack.c.l.b16 %v1752
        %v2461 = vunpack.c.h.b16 %v1752
        %v2462 = vunpack.c.l.b16 %v1753
        %v2463 = vunpack.c.h.b16 %v1753
        %v2464 = vunpack.c.l.b16 %v1754
        %v2465 = vunpack.c.h.b16 %v1754
        %v2466 = vunpack.c.l.b16 %v1755
        %v2467 = vunpack.c.h.b16 %v1755
        %v2468 = vunpack.c.l.b16 %v1756
        %v2469 = vunpack.c.h.b16 %v1756
        %v2470 = vunpack.c.l.b16 %v1757
        %v2471 = vunpack.c.h.b16 %v1757
        %v2472 = vunpack.c.l.b16 %v1758
        %v2473 = vunpack.c.h.b16 %v1758
        %v2474 = vunpack.c.l.b16 %v1759
        %v2475 = vunpack.c.h.b16 %v1759
        %v2476 = vunpack.c.l.b16 %v1760
        %v2477 = vunpack.c.h.b16 %v1760
        %v2478 = vunpack.c.l.b16 %v1761
        %v2479 = vunpack.c.h.b16 %v1761
        %v2480 = vunpack.c.l.b16 %v1762
        %v2481 = vunpack.c.h.b16 %v1762
        %v2482 = vunpack.c.l.b16 %v1763
        %v2483 = vunpack.c.h.b16 %v1763
        %v2484 = vunpack.c.l.b16 %v1764
        %v2485 = vunpack.c.h.b16 %v1764
        %v2486 = vunpack.c.l.b16 %v1765
        %v2487 = vunpack.c.h.b16 %v1765
        %v2488 = vunpack.c.l.b16 %v1766
        %v2489 = vunpack.c.h.b16 %v1766
        %v2490 = vunpack.c.l.b16 %v1767
        %v2491 = vunpack.c.h.b16 %v1767
        %v2492 = vunpack.c.l.b16 %v1768
        %v2493 = vunpack.c.h.b16 %v1768
        %v2494 = vunpack.c.l.b16 %v1769
        %v2495 = vunpack.c.h.b16 %v1769
        %v2496 = vunpack.c.l.b16 %v1770
        %v2497 = vunpack.c.h.b16 %v1770
        %v2498 = vunpack.c.l.b16 %v1771
        %v2499 = vunpack.c.h.b16 %v1771
        %v2500 = vunpack.c.l.b16 %v1772
        %v2501 = vunpack.c.h.b16 %v1772
        %v2502 = vunpack.c.l.b16 %v1773
        %v2503 = vunpack.c.h.b16 %v1773
        %v2504 = vunpack.c.l.b16 %v1774
        %v2505 = vunpack.c.h.b16 %v1774
        %v2506 = vunpack.c.l.b16 %v1775
        %v2507 = vunpack.c.h.b16 %v1775
        %v2508 = vunpack.c.l.b16 %v1776
        %v2509 = vunpack.c.h.b16 %v1776
        %v2510 = vunpack.c.l.b16 %v1777
        %v2511 = vunpack.c.h.b16 %v1777
        %v2512 = vunpack.c.l.b16 %v1778
        %v2513 = vunpack.c.h.b16 %v1778
        %v2514 = vunpack.c.l.b16 %v1779
        %v2515 = vunpack.c.h.b16 %v1779
        %v2516 = vunpack.c.l.b16 %v1780
        %v2517 = vunpack.c.h.b16 %v1780
        %v2518 = vunpack.c.l.b16 %v1781
        %v2519 = vunpack.c.h.b16 %v1781
        %v2520 = vunpack.c.l.b16 %v1782
        %v2521 = vunpack.c.h.b16 %v1782
        %v2522 = vunpack.c.l.b16 %v1783
        %v2523 = vunpack.c.h.b16 %v1783
        %v2524 = vunpack.c.l.b16 %v1784
        %v2525 = vunpack.c.h.b16 %v1784
        %v2526 = vunpack.c.l.b16 %v1785
        %v2527 = vunpack.c.h.b16 %v1785
        %v2528 = vunpack.c.l.b16 %v1786
        %v2529 = vunpack.c.h.b16 %v1786
        %v2530 = vunpack.c.l.b16 %v1787
        %v2531 = vunpack.c.h.b16 %v1787
        %v2532 = vunpack.c.l.b16 %v1788
        %v2533 = vunpack.c.h.b16 %v1788
        %v2534 = vunpack.c.l.b16 %v1789
        %v2535 = vunpack.c.h.b16 %v1789
        %v2536 = vunpack.c.l.b16 %v1790
        %v2537 = vunpack.c.h.b16 %v1790
        %v2538 = vunpack.c.l.b16 %v1791
        %v2539 = vunpack.c.h.b16 %v1791
        %v2540 = vunpack.c.l.b16 %v1792
        %v2541 = vunpack.c.h.b16 %v1792
        %v2542 = vunpack.c.l.b16 %v1793
        %v2543 = vunpack.c.h.b16 %v1793
        %v2544 = vunpack.c.l.b16 %v1794
        %v2545 = vunpack.c.h.b16 %v1794
        %v2546 = vunpack.c.l.b16 %v1795
        %v2547 = vunpack.c.h.b16 %v1795
        %v2548 = vunpack.c.l.b16 %v1796
        %v2549 = vunpack.c.h.b16 %v1796
        %v2550 = vunpack.c.l.b16 %v1797
        %v2551 = vunpack.c.h.b16 %v1797
        %v2552 = vunpack.c.l.b16 %v1798
        %v2553 = vunpack.c.h.b16 %v1798
        %v2554 = vunpack.c.l.b16 %v1799
        %v2555 = vunpack.c.h.b16 %v1799
        %v2556 = vunpack.c.l.b16 %v1800
        %v2557 = vunpack.c.h.b16 %v1800
        %v2558 = vunpack.c.l.b16 %v1801
        %v2559 = vunpack.c.h.b16 %v1801
        %v2560 = vunpack.c.l.b16 %v1802
        %v2561 = vunpack.c.h.b16 %v1802
        %v2562 = vunpack.c.l.b16 %v1803
        %v2563 = vunpack.c.h.b16 %v1803
        %v2564 = vunpack.c.l.b16 %v1804
        %v2565 = vunpack.c.h.b16 %v1804
        %v2566 = vunpack.c.l.b16 %v1805
        %v2567 = vunpack.c.h.b16 %v1805
        %v2568 = vunpack.c.l.b16 %v1806
        %v2569 = vunpack.c.h.b16 %v1806
        %v2570 = vunpack.c.l.b16 %v1807
        %v2571 = vunpack.c.h.b16 %v1807
        %v2572 = vunpack.c.l.b16 %v1808
        %v2573 = vunpack.c.h.b16 %v1808
        %v2574 = vunpack.c.l.b16 %v1809
        %v2575 = vunpack.c.h.b16 %v1809
        %v2576 = vunpack.c.l.b16 %v1810
        %v2577 = vunpack.c.h.b16 %v1810
        %v2578 = vunpack.c.l.b16 %v1811
        %v2579 = vunpack.c.h.b16 %v1811
        %v2580 = vunpack.c.l.b16 %v1812
        %v2581 = vunpack.c.h.b16 %v1812
        %v2582 = vunpack.c.l.b16 %v1813
        %v2583 = vunpack.c.h.b16 %v1813
        %v2584 = vunpack.c.l.b16 %v1814
        %v2585 = vunpack.c.h.b16 %v1814
        %v2586 = vunpack.c.l.b16 %v1815
        %v2587 = vunpack.c.h.b16 %v1815
        %v2588 = vunpack.c.l.b16 %v1816
        %v2589 = vunpack.c.h.b16 %v1816
        %v2590 = vunpack.c.l.b16 %v1817
        %v2591 = vunpack.c.h.b16 %v1817
        %v2592 = vunpack.c.l.b16 %v1818
        %v2593 = vunpack.c.h.b16 %v1818
        %v2594 = vunpack.c.l.b16 %v1819
        %v2595 = vunpack.c.h.b16 %v1819
        %v2596 = vunpack.c.l.b16 %v1820
        %v2597 = vunpack.c.h.b16 %v1820
        %v2598 = vunpack.c.l.b16 %v1821
        %v2599 = vunpack.c.h.b16 %v1821
        %v2600 = vunpack.c.l.b16 %v1822
        %v2601 = vunpack.c.h.b16 %v1822
        %v2602 = vunpack.c.l.b16 %v1823
        %v2603 = vunpack.c.h.b16 %v1823
        %v2604 = vunpack.c.l.b16 %v1824
        %v2605 = vunpack.c.h.b16 %v1824
        %v2606 = vunpack.c.l.b16 %v1825
        %v2607 = vunpack.c.h.b16 %v1825
        %v2608 = vunpack.c.l.b16 %v1826
        %v2609 = vunpack.c.h.b16 %v1826
        %v2610 = vunpack.c.l.b16 %v1827
        %v2611 = vunpack.c.h.b16 %v1827
        %v2612 = vunpack.c.l.b16 %v1828
        %v2613 = vunpack.c.h.b16 %v1828
        %v2614 = vunpack.c.l.b16 %v1829
        %v2615 = vunpack.c.h.b16 %v1829
        %v2616 = vunpack.c.l.b16 %v1830
        %v2617 = vunpack.c.h.b16 %v1830
        %v2618 = vunpack.c.l.b16 %v1831
        %v2619 = vunpack.c.h.b16 %v1831
        %v2620 = vunpack.c.l.b16 %v1832
        %v2621 = vunpack.c.h.b16 %v1832
        %v2622 = vunpack.c.l.b16 %v1833
        %v2623 = vunpack.c.h.b16 %v1833
        %v2624 = vpack.c.b16 %v2116, %v2112
        %v2625 = vpack.c.b16 %v2117, %v2113
        %v2626 = vpack.c.b16 %v2118, %v2114
        %v2627 = vpack.c.b16 %v2119, %v2115
        %v2628 = vpack.c.b16 %v2124, %v2120
        %v2629 = vpack.c.b16 %v2125, %v2121
        %v2630 = vpack.c.b16 %v2126, %v2122
        %v2631 = vpack.c.b16 %v2127, %v2123
        %v2632 = vpack.c.b16 %v2132, %v2128
        %v2633 = vpack.c.b16 %v2133, %v2129
        %v2634 = vpack.c.b16 %v2134, %v2130
        %v2635 = vpack.c.b16 %v2135, %v2131
        %v2636 = vpack.c.b16 %v2140, %v2136
        %v2637 = vpack.c.b16 %v2141, %v2137
        %v2638 = vpack.c.b16 %v2142, %v2138
        %v2639 = vpack.c.b16 %v2143, %v2139
        %v2640 = vpack.c.b16 %v2148, %v2144
        %v2641 = vpack.c.b16 %v2149, %v2145
        %v2642 = vpack.c.b16 %v2150, %v2146
        %v2643 = vpack.c.b16 %v2151, %v2147
        %v2644 = vpack.c.b16 %v2156, %v2152
        %v2645 = vpack.c.b16 %v2157, %v2153
        %v2646 = vpack.c.b16 %v2158, %v2154
        %v2647 = vpack.c.b16 %v2159, %v2155
        %v2648 = vpack.c.b16 %v2164, %v2160
        %v2649 = vpack.c.b16 %v2165, %v2161
        %v2650 = vpack.c.b16 %v2166, %v2162
        %v2651 = vpack.c.b16 %v2167, %v2163
        %v2652 = vpack.c.b16 %v2172, %v2168
        %v2653 = vpack.c.b16 %v2173, %v2169
        %v2654 = vpack.c.b16 %v2174, %v2170
        %v2655 = vpack.c.b16 %v2175, %v2171
        %v2656 = vpack.c.b16 %v2180, %v2176
        %v2657 = vpack.c.b16 %v2181, %v2177
        %v2658 = vpack.c.b16 %v2182, %v2178
        %v2659 = vpack.c.b16 %v2183, %v2179
        %v2660 = vpack.c.b16 %v2188, %v2184
        %v2661 = vpack.c.b16 %v2189, %v2185
        %v2662 = vpack.c.b16 %v2190, %v2186
        %v2663 = vpack.c.b16 %v2191, %v2187
        %v2664 = vpack.c.b16 %v2196, %v2192
        %v2665 = vpack.c.b16 %v2197, %v2193
        %v2666 = vpack.c.b16 %v2198, %v2194
        %v2667 = vpack.c.b16 %v2199, %v2195
        %v2668 = vpack.c.b16 %v2204, %v2200
        %v2669 = vpack.c.b16 %v2205, %v2201
        %v2670 = vpack.c.b16 %v2206, %v2202
        %v2671 = vpack.c.b16 %v2207, %v2203
        %v2672 = vpack.c.b16 %v2212, %v2208
        %v2673 = vpack.c.b16 %v2213, %v2209
        %v2674 = vpack.c.b16 %v2214, %v2210
        %v2675 = vpack.c.b16 %v2215, %v2211
        %v2676 = vpack.c.b16 %v2220, %v2216
        %v2677 = vpack.c.b16 %v2221, %v2217
        %v2678 = vpack.c.b16 %v2222, %v2218
        %v2679 = vpack.c.b16 %v2223, %v2219
        %v2680 = vpack.c.b16 %v2228, %v2224
        %v2681 = vpack.c.b16 %v2229, %v2225
        %v2682 = vpack.c.b16 %v2230, %v2226
        %v2683 = vpack.c.b16 %v2231, %v2227
        %v2684 = vpack.c.b16 %v2236, %v2232
        %v2685 = vpack.c.b16 %v2237, %v2233
        %v2686 = vpack.c.b16 %v2238, %v2234
        %v2687 = vpack.c.b16 %v2239, %v2235
        %v2688 = vpack.c.b16 %v2244, %v2240
        %v2689 = vpack.c.b16 %v2245, %v2241
        %v2690 = vpack.c.b16 %v2246, %v2242
        %v2691 = vpack.c.b16 %v2247, %v2243
        %v2692 = vpack.c.b16 %v2252, %v2248
        %v2693 = vpack.c.b16 %v2253, %v2249
        %v2694 = vpack.c.b16 %v2254, %v2250
        %v2695 = vpack.c.b16 %v2255, %v2251
        %v2696 = vpack.c.b16 %v2260, %v2256
        %v2697 = vpack.c.b16 %v2261, %v2257
        %v2698 = vpack.c.b16 %v2262, %v2258
        %v2699 = vpack.c.b16 %v2263, %v2259
        %v2700 = vpack.c.b16 %v2268, %v2264
        %v2701 = vpack.c.b16 %v2269, %v2265
        %v2702 = vpack.c.b16 %v2270, %v2266
        %v2703 = vpack.c.b16 %v2271, %v2267
        %v2704 = vpack.c.b16 %v2276, %v2272
        %v2705 = vpack.c.b16 %v2277, %v2273
        %v2706 = vpack.c.b16 %v2278, %v2274
        %v2707 = vpack.c.b16 %v2279, %v2275
        %v2708 = vpack.c.b16 %v2284, %v2280
        %v2709 = vpack.c.b16 %v2285, %v2281
        %v2710 = vpack.c.b16 %v2286, %v2282
        %v2711 = vpack.c.b16 %v2287, %v2283
        %v2712 = vpack.c.b16 %v2292, %v2288
        %v2713 = vpack.c.b16 %v2293, %v2289
        %v2714 = vpack.c.b16 %v2294, %v2290
        %v2715 = vpack.c.b16 %v2295, %v2291
        %v2716 = vpack.c.b16 %v2300, %v2296
        %v2717 = vpack.c.b16 %v2301, %v2297
        %v2718 = vpack.c.b16 %v2302, %v2298
        %v2719 = vpack.c.b16 %v2303, %v2299
        %v2720 = vpack.c.b16 %v2308, %v2304
        %v2721 = vpack.c.b16 %v2309, %v2305
        %v2722 = vpack.c.b16 %v2310, %v2306
        %v2723 = vpack.c.b16 %v2311, %v2307
        %v2724 = vpack.c.b16 %v2316, %v2312
        %v2725 = vpack.c.b16 %v2317, %v2313
        %v2726 = vpack.c.b16 %v2318, %v2314
        %v2727 = vpack.c.b16 %v2319, %v2315
        %v2728 = vpack.c.b16 %v2324, %v2320
        %v2729 = vpack.c.b16 %v2325, %v2321
        %v2730 = vpack.c.b16 %v2326, %v2322
        %v2731 = vpack.c.b16 %v2327, %v2323
        %v2732 = vpack.c.b16 %v2332, %v2328
        %v2733 = vpack.c.b16 %v2333, %v2329
        %v2734 = vpack.c.b16 %v2334, %v2330
        %v2735 = vpack.c.b16 %v2335, %v2331
        %v2736 = vpack.c.b16 %v2340, %v2336
        %v2737 = vpack.c.b16 %v2341, %v2337
        %v2738 = vpack.c.b16 %v2342, %v2338
        %v2739 = vpack.c.b16 %v2343, %v2339
        %v2740 = vpack.c.b16 %v2348, %v2344
        %v2741 = vpack.c.b16 %v2349, %v2345
        %v2742 = vpack.c.b16 %v2350, %v2346
        %v2743 = vpack.c.b16 %v2351, %v2347
        %v2744 = vpack.c.b16 %v2356, %v2352
        %v2745 = vpack.c.b16 %v2357, %v2353
        %v2746 = vpack.c.b16 %v2358, %v2354
        %v2747 = vpack.c.b16 %v2359, %v2355
        %v2748 = vpack.c.b16 %v2364, %v2360
        %v2749 = vpack.c.b16 %v2365, %v2361
        %v2750 = vpack.c.b16 %v2366, %v2362
        %v2751 = vpack.c.b16 %v2367, %v2363
        %v2752 = vpack.c.b16 %v2372, %v2368
        %v2753 = vpack.c.b16 %v2373, %v2369
        %v2754 = vpack.c.b16 %v2374, %v2370
        %v2755 = vpack.c.b16 %v2375, %v2371
        %v2756 = vpack.c.b16 %v2380, %v2376
        %v2757 = vpack.c.b16 %v2381, %v2377
        %v2758 = vpack.c.b16 %v2382, %v2378
        %v2759 = vpack.c.b16 %v2383, %v2379
        %v2760 = vpack.c.b16 %v2388, %v2384
        %v2761 = vpack.c.b16 %v2389, %v2385
        %v2762 = vpack.c.b16 %v2390, %v2386
        %v2763 = vpack.c.b16 %v2391, %v2387
        %v2764 = vpack.c.b16 %v2396, %v2392
        %v2765 = vpack.c.b16 %v2397, %v2393
        %v2766 = vpack.c.b16 %v2398, %v2394
        %v2767 = vpack.c.b16 %v2399, %v2395
        %v2768 = vpack.c.b16 %v2404, %v2400
        %v2769 = vpack.c.b16 %v2405, %v2401
        %v2770 = vpack.c.b16 %v2406, %v2402
        %v2771 = vpack.c.b16 %v2407, %v2403
        %v2772 = vpack.c.b16 %v2412, %v2408
        %v2773 = vpack.c.b16 %v2413, %v2409
        %v2774 = vpack.c.b16 %v2414, %v2410
        %v2775 = vpack.c.b16 %v2415, %v2411
        %v2776 = vpack.c.b16 %v2420, %v2416
        %v2777 = vpack.c.b16 %v2421, %v2417
        %v2778 = vpack.c.b16 %v2422, %v2418
        %v2779 = vpack.c.b16 %v2423, %v2419
        %v2780 = vpack.c.b16 %v2428, %v2424
        %v2781 = vpack.c.b16 %v2429, %v2425
        %v2782 = vpack.c.b16 %v2430, %v2426
        %v2783 = vpack.c.b16 %v2431, %v2427
        %v2784 = vpack.c.b16 %v2436, %v2432
        %v2785 = vpack.c.b16 %v2437, %v2433
        %v2786 = vpack.c.b16 %v2438, %v2434
        %v2787 = vpack.c.b16 %v2439, %v2435
        %v2788 = vpack.c.b16 %v2444, %v2440
        %v2789 = vpack.c.b16 %v2445, %v2441
        %v2790 = vpack.c.b16 %v2446, %v2442
        %v2791 = vpack.c.b16 %v2447, %v2443
        %v2792 = vpack.c.b16 %v2452, %v2448
        %v2793 = vpack.c.b16 %v2453, %v2449
        %v2794 = vpack.c.b16 %v2454, %v2450
        %v2795 = vpack.c.b16 %v2455, %v2451
        %v2796 = vpack.c.b16 %v2460, %v2456
        %v2797 = vpack.c.b16 %v2461, %v2457
        %v2798 = vpack.c.b16 %v2462, %v2458
        %v2799 = vpack.c.b16 %v2463, %v2459
        %v2800 = vpack.c.b16 %v2468, %v2464
        %v2801 = vpack.c.b16 %v2469, %v2465
        %v2802 = vpack.c.b16 %v2470, %v2466
        %v2803 = vpack.c.b16 %v2471, %v2467
        %v2804 = vpack.c.b16 %v2476, %v2472
        %v2805 = vpack.c.b16 %v2477, %v2473
        %v2806 = vpack.c.b16 %v2478, %v2474
        %v2807 = vpack.c.b16 %v2479, %v2475
        %v2808 = vpack.c.b16 %v2484, %v2480
        %v2809 = vpack.c.b16 %v2485, %v2481
        %v2810 = vpack.c.b16 %v2486, %v2482
        %v2811 = vpack.c.b16 %v2487, %v2483
        %v2812 = vpack.c.b16 %v2492, %v2488
        %v2813 = vpack.c.b16 %v2493, %v2489
        %v2814 = vpack.c.b16 %v2494, %v2490
        %v2815 = vpack.c.b16 %v2495, %v2491
        %v2816 = vpack.c.b16 %v2500, %v2496
        %v2817 = vpack.c.b16 %v2501, %v2497
        %v2818 = vpack.c.b16 %v2502, %v2498
        %v2819 = vpack.c.b16 %v2503, %v2499
        %v2820 = vpack.c.b16 %v2508, %v2504
        %v2821 = vpack.c.b16 %v2509, %v2505
        %v2822 = vpack.c.b16 %v2510, %v2506
        %v2823 = vpack.c.b16 %v2511, %v2507
        %v2824 = vpack.c.b16 %v2516, %v2512
        %v2825 = vpack.c.b16 %v2517, %v2513
        %v2826 = vpack.c.b16 %v2518, %v2514
        %v2827 = vpack.c.b16 %v2519, %v2515
        %v2828 = vpack.c.b16 %v2524, %v2520
        %v2829 = vpack.c.b16 %v2525, %v2521
        %v2830 = vpack.c.b16 %v2526, %v2522
        %v2831 = vpack.c.b16 %v2527, %v2523
        %v2832 = vpack.c.b16 %v2532, %v2528
        %v2833 = vpack.c.b16 %v2533, %v2529
        %v2834 = vpack.c.b16 %v2534, %v2530
        %v2835 = vpack.c.b16 %v2535, %v2531
        %v2836 = vpack.c.b16 %v2540, %v2536
        %v2837 = vpack.c.b16 %v2541, %v2537
        %v2838 = vpack.c.b16 %v2542, %v2538
        %v2839 = vpack.c.b16 %v2543, %v2539
        %v2840 = vpack.c.b16 %v2548, %v2544
        %v2841 = vpack.c.b16 %v2549, %v2545
        %v2842 = vpack.c.b16 %v2550, %v2546
        %v2843 = vpack.c.b16 %v2551, %v2547
        %v2844 = vpack.c.b16 %v2556, %v2552
        %v2845 = vpack.c.b16 %v2557, %v2553
        %v2846 = vpack.c.b16 %v2558, %v2554
        %v2847 = vpack.c.b16 %v2559, %v2555
        %v2848 = vpack.c.b16 %v2564, %v2560
        %v2849 = vpack.c.b16 %v2565, %v2561
        %v2850 = vpack.c.b16 %v2566, %v2562
        %v2851 = vpack.c.b16 %v2567, %v2563
        %v2852 = vpack.c.b16 %v2572, %v2568
        %v2853 = vpack.c.b16 %v2573, %v2569
        %v2854 = vpack.c.b16 %v2574, %v2570
        %v2855 = vpack.c.b16 %v2575, %v2571
        %v2856 = vpack.c.b16 %v2580, %v2576
        %v2857 = vpack.c.b16 %v2581, %v2577
        %v2858 = vpack.c.b16 %v2582, %v2578
        %v2859 = vpack.c.b16 %v2583, %v2579
        %v2860 = vpack.c.b16 %v2588, %v2584
        %v2861 = vpack.c.b16 %v2589, %v2585
        %v2862 = vpack.c.b16 %v2590, %v2586
        %v2863 = vpack.c.b16 %v2591, %v2587
        %v2864 = vpack.c.b16 %v2596, %v2592
        %v2865 = vpack.c.b16 %v2597, %v2593
        %v2866 = vpack.c.b16 %v2598, %v2594
        %v2867 = vpack.c.b16 %v2599, %v2595
        %v2868 = vpack.c.b16 %v2604, %v2600
        %v2869 = vpack.c.b16 %v2605, %v2601
        %v2870 = vpack.c.b16 %v2606, %v2602
        %v2871 = vpack.c.b16 %v2607, %v2603
        %v2872 = vpack.c.b16 %v2612, %v2608
        %v2873 = vpack.c.b16 %v2613, %v2609
        %v2874 = vpack.c.b16 %v2614, %v2610
        %v2875 = vpack.c.b16 %v2615, %v2611
        %v2876 = vpack.c.b16 %v2620, %v2616
        %v2877 = vpack.c.b16 %v2621, %v2617
        %v2878 = vpack.c.b16 %v2622, %v2618
        %v2879 = vpack.c.b16 %v2623, %v2619
        %3136 = vmatprep.subr.bf16.mxu0 %v2625
        %3137 = vmatpush1.bf16.msra.mxu0 %v2624
        %3138 = vmatprep.subr.bf16.mxu0 %v2629
        %3139 = vmatpush1.bf16.msra.mxu0 %v2628
        %3140 = vmatprep.subr.bf16.mxu0 %v2633
        %3141 = vmatpush1.bf16.msra.mxu0 %v2632
        %3142 = vmatprep.subr.bf16.mxu0 %v2637
        %3143 = vmatpush1.bf16.msra.mxu0 %v2636
        %3144 = vmatprep.subr.bf16.mxu0 %v2641
        %3145 = vmatpush1.bf16.msra.mxu0 %v2640
        %3146 = vmatprep.subr.bf16.mxu0 %v2645
        %3147 = vmatpush1.bf16.msra.mxu0 %v2644
        %3148 = vmatprep.subr.bf16.mxu0 %v2649
        %3149 = vmatpush1.bf16.msra.mxu0 %v2648
        %3150 = vmatprep.subr.bf16.mxu0 %v2653
        %3151 = vmatpush1.bf16.msra.mxu0 %v2652
        %3152 = vmatprep.subr.bf16.mxu0 %v2657
        %3153 = vmatpush1.bf16.msra.mxu0 %v2656
        %3154 = vmatprep.subr.bf16.mxu0 %v2661
        %3155 = vmatpush1.bf16.msra.mxu0 %v2660
        %3156 = vmatprep.subr.bf16.mxu0 %v2665
        %3157 = vmatpush1.bf16.msra.mxu0 %v2664
        %3158 = vmatprep.subr.bf16.mxu0 %v2669
        %3159 = vmatpush1.bf16.msra.mxu0 %v2668
        %3160 = vmatprep.subr.bf16.mxu0 %v2673
        %3161 = vmatpush1.bf16.msra.mxu0 %v2672
        %3162 = vmatprep.subr.bf16.mxu0 %v2677
        %3163 = vmatpush1.bf16.msra.mxu0 %v2676
        %3164 = vmatprep.subr.bf16.mxu0 %v2681
        %3165 = vmatpush1.bf16.msra.mxu0 %v2680
        %3166 = vmatprep.subr.bf16.mxu0 %v2685
        %3167 = vmatpush1.bf16.msra.mxu0 %v2684
        %3168 = vmatprep.mubr.bf16.mxu0 %v1571
        %3169 = vmatmul.mubr.bf16.gmra.mrb[0].mxu0 %v1570
        %v3170 = vpop.f32.mrb[0].mxu0
        %v3171 = vadd.f32 %v1839, %v3170
        %v3172 = vpop.f32.mrb[0].mxu0
        %v3173 = vadd.f32 %v1843, %v3172
        %v3174 = vpop.f32.mrb[0].mxu0
        %v3175 = vpop.f32.mrb[0].mxu0
        %3176 = vdwg.mxu0
        %3177 = vmatprep.subr.bf16.mxu0 %v2689
        %3178 = vmatpush1.bf16.msra.mxu0 %v2688
        %3179 = vmatprep.subr.bf16.mxu0 %v2693
        %3180 = vmatpush1.bf16.msra.mxu0 %v2692
        %3181 = vmatprep.subr.bf16.mxu0 %v2697
        %3182 = vmatpush1.bf16.msra.mxu0 %v2696
        %3183 = vmatprep.subr.bf16.mxu0 %v2701
        %3184 = vmatpush1.bf16.msra.mxu0 %v2700
        %3185 = vmatprep.subr.bf16.mxu0 %v2705
        %3186 = vmatpush1.bf16.msra.mxu0 %v2704
        %3187 = vmatprep.subr.bf16.mxu0 %v2709
        %3188 = vmatpush1.bf16.msra.mxu0 %v2708
        %3189 = vmatprep.subr.bf16.mxu0 %v2713
        %3190 = vmatpush1.bf16.msra.mxu0 %v2712
        %3191 = vmatprep.subr.bf16.mxu0 %v2717
        %3192 = vmatpush1.bf16.msra.mxu0 %v2716
        %3193 = vmatprep.subr.bf16.mxu0 %v2721
        %3194 = vmatpush1.bf16.msra.mxu0 %v2720
        %3195 = vmatprep.subr.bf16.mxu0 %v2725
        %3196 = vmatpush1.bf16.msra.mxu0 %v2724
        %3197 = vmatprep.subr.bf16.mxu0 %v2729
        %3198 = vmatpush1.bf16.msra.mxu0 %v2728
        %3199 = vmatprep.subr.bf16.mxu0 %v2733
        %3200 = vmatpush1.bf16.msra.mxu0 %v2732
        %3201 = vmatprep.subr.bf16.mxu0 %v2737
        %3202 = vmatpush1.bf16.msra.mxu0 %v2736
        %3203 = vmatprep.subr.bf16.mxu0 %v2741
        %3204 = vmatpush1.bf16.msra.mxu0 %v2740
        %3205 = vmatprep.subr.bf16.mxu0 %v2745
        %3206 = vmatpush1.bf16.msra.mxu0 %v2744
        %3207 = vmatprep.subr.bf16.mxu0 %v2749
        %3208 = vmatpush1.bf16.msra.mxu0 %v2748
        %3209 = vmatprep.mubr.bf16.mxu0 %v1573
        %3210 = vmatmul.mubr.bf16.gmra.mrb[0].mxu0 %v1572
        %v3211 = vpop.f32.mrb[0].mxu0
        %v3212 = vadd.f32 %v3171, %v3211
        %v3213 = vpop.f32.mrb[0].mxu0
        %v3214 = vadd.f32 %v3173, %v3213
        %v3215 = vpop.f32.mrb[0].mxu0
        %v3216 = vpop.f32.mrb[0].mxu0
        %3217 = vdwg.mxu0
        %3218 = vmatprep.subr.bf16.mxu0 %v2753
        %3219 = vmatpush1.bf16.msra.mxu0 %v2752
        %3220 = vmatprep.subr.bf16.mxu0 %v2757
        %3221 = vmatpush1.bf16.msra.mxu0 %v2756
        %3222 = vmatprep.subr.bf16.mxu0 %v2761
        %3223 = vmatpush1.bf16.msra.mxu0 %v2760
        %3224 = vmatprep.subr.bf16.mxu0 %v2765
        %3225 = vmatpush1.bf16.msra.mxu0 %v2764
        %3226 = vmatprep.subr.bf16.mxu0 %v2769
        %3227 = vmatpush1.bf16.msra.mxu0 %v2768
        %3228 = vmatprep.subr.bf16.mxu0 %v2773
        %3229 = vmatpush1.bf16.msra.mxu0 %v2772
        %3230 = vmatprep.subr.bf16.mxu0 %v2777
        %3231 = vmatpush1.bf16.msra.mxu0 %v2776
        %3232 = vmatprep.subr.bf16.mxu0 %v2781
        %3233 = vmatpush1.bf16.msra.mxu0 %v2780
        %3234 = vmatprep.subr.bf16.mxu0 %v2785
        %3235 = vmatpush1.bf16.msra.mxu0 %v2784
        %3236 = vmatprep.subr.bf16.mxu0 %v2789
        %3237 = vmatpush1.bf16.msra.mxu0 %v2788
        %3238 = vmatprep.subr.bf16.mxu0 %v2793
        %3239 = vmatpush1.bf16.msra.mxu0 %v2792
        %3240 = vmatprep.subr.bf16.mxu0 %v2797
        %3241 = vmatpush1.bf16.msra.mxu0 %v2796
        %3242 = vmatprep.subr.bf16.mxu0 %v2801
        %3243 = vmatpush1.bf16.msra.mxu0 %v2800
        %3244 = vmatprep.subr.bf16.mxu0 %v2805
        %3245 = vmatpush1.bf16.msra.mxu0 %v2804
        %3246 = vmatprep.subr.bf16.mxu0 %v2809
        %3247 = vmatpush1.bf16.msra.mxu0 %v2808
        %3248 = vmatprep.subr.bf16.mxu0 %v2813
        %3249 = vmatpush1.bf16.msra.mxu0 %v2812
        %3250 = vmatprep.mubr.bf16.mxu0 %v1575
        %3251 = vmatmul.mubr.bf16.gmra.mrb[0].mxu0 %v1574
        %v3252 = vpop.f32.mrb[0].mxu0
        %v3253 = vadd.f32 %v3212, %v3252
        %v3254 = vpop.f32.mrb[0].mxu0
        %v3255 = vadd.f32 %v3214, %v3254
        %v3256 = vpop.f32.mrb[0].mxu0
        %v3257 = vpop.f32.mrb[0].mxu0
        %3258 = vdwg.mxu0
        %3259 = vmatprep.subr.bf16.mxu0 %v2817
        %3260 = vmatpush1.bf16.msra.mxu0 %v2816
        %3261 = vmatprep.subr.bf16.mxu0 %v2821
        %3262 = vmatpush1.bf16.msra.mxu0 %v2820
        %3263 = vmatprep.subr.bf16.mxu0 %v2825
        %3264 = vmatpush1.bf16.msra.mxu0 %v2824
        %3265 = vmatprep.subr.bf16.mxu0 %v2829
        %3266 = vmatpush1.bf16.msra.mxu0 %v2828
        %3267 = vmatprep.subr.bf16.mxu0 %v2833
        %3268 = vmatpush1.bf16.msra.mxu0 %v2832
        %3269 = vmatprep.subr.bf16.mxu0 %v2837
        %3270 = vmatpush1.bf16.msra.mxu0 %v2836
        %3271 = vmatprep.subr.bf16.mxu0 %v2841
        %3272 = vmatpush1.bf16.msra.mxu0 %v2840
        %3273 = vmatprep.subr.bf16.mxu0 %v2845
        %3274 = vmatpush1.bf16.msra.mxu0 %v2844
        %3275 = vmatprep.subr.bf16.mxu0 %v2849
        %3276 = vmatpush1.bf16.msra.mxu0 %v2848
        %3277 = vmatprep.subr.bf16.mxu0 %v2853
        %3278 = vmatpush1.bf16.msra.mxu0 %v2852
        %3279 = vmatprep.subr.bf16.mxu0 %v2857
        %3280 = vmatpush1.bf16.msra.mxu0 %v2856
        %3281 = vmatprep.subr.bf16.mxu0 %v2861
        %3282 = vmatpush1.bf16.msra.mxu0 %v2860
        %3283 = vmatprep.subr.bf16.mxu0 %v2865
        %3284 = vmatpush1.bf16.msra.mxu0 %v2864
        %3285 = vmatprep.subr.bf16.mxu0 %v2869
        %3286 = vmatpush1.bf16.msra.mxu0 %v2868
        %3287 = vmatprep.subr.bf16.mxu0 %v2873
        %3288 = vmatpush1.bf16.msra.mxu0 %v2872
        %3289 = vmatprep.subr.bf16.mxu0 %v2877
        %3290 = vmatpush1.bf16.msra.mxu0 %v2876
        %3291 = vmatprep.mubr.bf16.mxu0 %v1577
        %3292 = vmatmul.mubr.bf16.gmra.mrb[0].mxu0 %v1576
        %v3293 = vpop.f32.mrb[0].mxu0
        %v3294 = vadd.f32 %v3253, %v3293
        %v3295 = vpop.f32.mrb[0].mxu0
        %v3296 = vadd.f32 %v3255, %v3295
        %v3297 = vpop.f32.mrb[0].mxu0
        %v3298 = vpop.f32.mrb[0].mxu0
        %3299 = vdwg.mxu0
        %3300 = vmatprep.subr.bf16.mxu0 %v2627
        %3301 = vmatpush1.bf16.msra.mxu0 %v2626
        %3302 = vmatprep.subr.bf16.mxu0 %v2631
        %3303 = vmatpush1.bf16.msra.mxu0 %v2630
        %3304 = vmatprep.subr.bf16.mxu0 %v2635
        %3305 = vmatpush1.bf16.msra.mxu0 %v2634
        %3306 = vmatprep.subr.bf16.mxu0 %v2639
        %3307 = vmatpush1.bf16.msra.mxu0 %v2638
        %3308 = vmatprep.subr.bf16.mxu0 %v2643
        %3309 = vmatpush1.bf16.msra.mxu0 %v2642
        %3310 = vmatprep.subr.bf16.mxu0 %v2647
        %3311 = vmatpush1.bf16.msra.mxu0 %v2646
        %3312 = vmatprep.subr.bf16.mxu0 %v2651
        %3313 = vmatpush1.bf16.msra.mxu0 %v2650
        %3314 = vmatprep.subr.bf16.mxu0 %v2655
        %3315 = vmatpush1.bf16.msra.mxu0 %v2654
        %3316 = vmatprep.subr.bf16.mxu0 %v2659
        %3317 = vmatpush1.bf16.msra.mxu0 %v2658
        %3318 = vmatprep.subr.bf16.mxu0 %v2663
        %3319 = vmatpush1.bf16.msra.mxu0 %v2662
        %3320 = vmatprep.subr.bf16.mxu0 %v2667
        %3321 = vmatpush1.bf16.msra.mxu0 %v2666
        %3322 = vmatprep.subr.bf16.mxu0 %v2671
        %3323 = vmatpush1.bf16.msra.mxu0 %v2670
        %3324 = vmatprep.subr.bf16.mxu0 %v2675
        %3325 = vmatpush1.bf16.msra.mxu0 %v2674
        %3326 = vmatprep.subr.bf16.mxu0 %v2679
        %3327 = vmatpush1.bf16.msra.mxu0 %v2678
        %3328 = vmatprep.subr.bf16.mxu0 %v2683
        %3329 = vmatpush1.bf16.msra.mxu0 %v2682
        %3330 = vmatprep.subr.bf16.mxu0 %v2687
        %3331 = vmatpush1.bf16.msra.mxu0 %v2686
        %3332 = vmatprep.mubr.bf16.mxu0 %v1571
        %3333 = vmatmul.mubr.bf16.gmra.mrb[0].mxu0 %v1570
        %v3334 = vpop.f32.mrb[0].mxu0
        %v3335 = vadd.f32 %v1847, %v3334
        %v3336 = vpop.f32.mrb[0].mxu0
        %v3337 = vadd.f32 %v1851, %v3336
        %v3338 = vpop.f32.mrb[0].mxu0
        %v3339 = vpop.f32.mrb[0].mxu0
        %3340 = vdwg.mxu0
        %3341 = vmatprep.subr.bf16.mxu0 %v2691
        %3342 = vmatpush1.bf16.msra.mxu0 %v2690
        %3343 = vmatprep.subr.bf16.mxu0 %v2695
        %3344 = vmatpush1.bf16.msra.mxu0 %v2694
        %3345 = vmatprep.subr.bf16.mxu0 %v2699
        %3346 = vmatpush1.bf16.msra.mxu0 %v2698
        %3347 = vmatprep.subr.bf16.mxu0 %v2703
        %3348 = vmatpush1.bf16.msra.mxu0 %v2702
        %3349 = vmatprep.subr.bf16.mxu0 %v2707
        %3350 = vmatpush1.bf16.msra.mxu0 %v2706
        %3351 = vmatprep.subr.bf16.mxu0 %v2711
        %3352 = vmatpush1.bf16.msra.mxu0 %v2710
        %3353 = vmatprep.subr.bf16.mxu0 %v2715
        %3354 = vmatpush1.bf16.msra.mxu0 %v2714
        %3355 = vmatprep.subr.bf16.mxu0 %v2719
        %3356 = vmatpush1.bf16.msra.mxu0 %v2718
        %3357 = vmatprep.subr.bf16.mxu0 %v2723
        %3358 = vmatpush1.bf16.msra.mxu0 %v2722
        %3359 = vmatprep.subr.bf16.mxu0 %v2727
        %3360 = vmatpush1.bf16.msra.mxu0 %v2726
        %3361 = vmatprep.subr.bf16.mxu0 %v2731
        %3362 = vmatpush1.bf16.msra.mxu0 %v2730
        %3363 = vmatprep.subr.bf16.mxu0 %v2735
        %3364 = vmatpush1.bf16.msra.mxu0 %v2734
        %3365 = vmatprep.subr.bf16.mxu0 %v2739
        %3366 = vmatpush1.bf16.msra.mxu0 %v2738
        %3367 = vmatprep.subr.bf16.mxu0 %v2743
        %3368 = vmatpush1.bf16.msra.mxu0 %v2742
        %3369 = vmatprep.subr.bf16.mxu0 %v2747
        %3370 = vmatpush1.bf16.msra.mxu0 %v2746
        %3371 = vmatprep.subr.bf16.mxu0 %v2751
        %3372 = vmatpush1.bf16.msra.mxu0 %v2750
        %3373 = vmatprep.mubr.bf16.mxu0 %v1573
        %3374 = vmatmul.mubr.bf16.gmra.mrb[0].mxu0 %v1572
        %v3375 = vpop.f32.mrb[0].mxu0
        %v3376 = vadd.f32 %v3335, %v3375
        %v3377 = vpop.f32.mrb[0].mxu0
        %v3378 = vadd.f32 %v3337, %v3377
        %v3379 = vpop.f32.mrb[0].mxu0
        %v3380 = vpop.f32.mrb[0].mxu0
        %3381 = vdwg.mxu0
        %3382 = vmatprep.subr.bf16.mxu0 %v2755
        %3383 = vmatpush1.bf16.msra.mxu0 %v2754
        %3384 = vmatprep.subr.bf16.mxu0 %v2759
        %3385 = vmatpush1.bf16.msra.mxu0 %v2758
        %3386 = vmatprep.subr.bf16.mxu0 %v2763
        %3387 = vmatpush1.bf16.msra.mxu0 %v2762
        %3388 = vmatprep.subr.bf16.mxu0 %v2767
        %3389 = vmatpush1.bf16.msra.mxu0 %v2766
        %3390 = vmatprep.subr.bf16.mxu0 %v2771
        %3391 = vmatpush1.bf16.msra.mxu0 %v2770
        %3392 = vmatprep.subr.bf16.mxu0 %v2775
        %3393 = vmatpush1.bf16.msra.mxu0 %v2774
        %3394 = vmatprep.subr.bf16.mxu0 %v2779
        %3395 = vmatpush1.bf16.msra.mxu0 %v2778
        %3396 = vmatprep.subr.bf16.mxu0 %v2783
        %3397 = vmatpush1.bf16.msra.mxu0 %v2782
        %3398 = vmatprep.subr.bf16.mxu0 %v2787
        %3399 = vmatpush1.bf16.msra.mxu0 %v2786
        %3400 = vmatprep.subr.bf16.mxu0 %v2791
        %3401 = vmatpush1.bf16.msra.mxu0 %v2790
        %3402 = vmatprep.subr.bf16.mxu0 %v2795
        %3403 = vmatpush1.bf16.msra.mxu0 %v2794
        %3404 = vmatprep.subr.bf16.mxu0 %v2799
        %3405 = vmatpush1.bf16.msra.mxu0 %v2798
        %3406 = vmatprep.subr.bf16.mxu0 %v2803
        %3407 = vmatpush1.bf16.msra.mxu0 %v2802
        %3408 = vmatprep.subr.bf16.mxu0 %v2807
        %3409 = vmatpush1.bf16.msra.mxu0 %v2806
        %3410 = vmatprep.subr.bf16.mxu0 %v2811
        %3411 = vmatpush1.bf16.msra.mxu0 %v2810
        %3412 = vmatprep.subr.bf16.mxu0 %v2815
        %3413 = vmatpush1.bf16.msra.mxu0 %v2814
        %3414 = vmatprep.mubr.bf16.mxu0 %v1575
        %3415 = vmatmul.mubr.bf16.gmra.mrb[0].mxu0 %v1574
        %v3416 = vpop.f32.mrb[0].mxu0
        %v3417 = vadd.f32 %v3376, %v3416
        %v3418 = vpop.f32.mrb[0].mxu0
        %v3419 = vadd.f32 %v3378, %v3418
        %v3420 = vpop.f32.mrb[0].mxu0
        %v3421 = vpop.f32.mrb[0].mxu0
        %3422 = vdwg.mxu0
        %3423 = vmatprep.subr.bf16.mxu0 %v2819
        %3424 = vmatpush1.bf16.msra.mxu0 %v2818
        %3425 = vmatprep.subr.bf16.mxu0 %v2823
        %3426 = vmatpush1.bf16.msra.mxu0 %v2822
        %3427 = vmatprep.subr.bf16.mxu0 %v2827
        %3428 = vmatpush1.bf16.msra.mxu0 %v2826
        %3429 = vmatprep.subr.bf16.mxu0 %v2831
        %3430 = vmatpush1.bf16.msra.mxu0 %v2830
        %3431 = vmatprep.subr.bf16.mxu0 %v2835
        %3432 = vmatpush1.bf16.msra.mxu0 %v2834
        %3433 = vmatprep.subr.bf16.mxu0 %v2839
        %3434 = vmatpush1.bf16.msra.mxu0 %v2838
        %3435 = vmatprep.subr.bf16.mxu0 %v2843
        %3436 = vmatpush1.bf16.msra.mxu0 %v2842
        %3437 = vmatprep.subr.bf16.mxu0 %v2847
        %3438 = vmatpush1.bf16.msra.mxu0 %v2846
        %3439 = vmatprep.subr.bf16.mxu0 %v2851
        %3440 = vmatpush1.bf16.msra.mxu0 %v2850
        %3441 = vmatprep.subr.bf16.mxu0 %v2855
        %3442 = vmatpush1.bf16.msra.mxu0 %v2854
        %3443 = vmatprep.subr.bf16.mxu0 %v2859
        %3444 = vmatpush1.bf16.msra.mxu0 %v2858
        %3445 = vmatprep.subr.bf16.mxu0 %v2863
        %3446 = vmatpush1.bf16.msra.mxu0 %v2862
        %3447 = vmatprep.subr.bf16.mxu0 %v2867
        %3448 = vmatpush1.bf16.msra.mxu0 %v2866
        %3449 = vmatprep.subr.bf16.mxu0 %v2871
        %3450 = vmatpush1.bf16.msra.mxu0 %v2870
        %3451 = vmatprep.subr.bf16.mxu0 %v2875
        %3452 = vmatpush1.bf16.msra.mxu0 %v2874
        %3453 = vmatprep.subr.bf16.mxu0 %v2879
        %3454 = vmatpush1.bf16.msra.mxu0 %v2878
        %3455 = vmatprep.mubr.bf16.mxu0 %v1577
        %3456 = vmatmul.mubr.bf16.gmra.mrb[0].mxu0 %v1576
        %v3457 = vpop.f32.mrb[0].mxu0
        %v3458 = vadd.f32 %v3417, %v3457
        %v3459 = vpop.f32.mrb[0].mxu0
        %v3460 = vadd.f32 %v3419, %v3459
        %v3461 = vpop.f32.mrb[0].mxu0
        %v3462 = vpop.f32.mrb[0].mxu0
        %3463 = vdwg.mxu0
        %v3464 = vmax.f32 %v3294, 0.0
        %v3465 = vmax.f32 %v3296, 0.0
        %v3466 = vmax.f32 %v3458, 0.0
        %v3467 = vmax.f32 %v3460, 0.0
        %v3468 = vpack.c.bf16 %v3464, %v3464
        %v3469 = vpack.c.bf16 %v3465, %v3465
        %v3470 = vpack.c.bf16 %v3466, %v3466
        %v3471 = vpack.c.bf16 %v3467, %v3467
        %v3472 = vld [vmem:[%s474] sm:$0xff]
        %v3473 = vld [vmem:[%s474 + $0x8] sm:$0xff]
        %v3474 = vld [vmem:[%s474 + $0x10] sm:$0xff]
        %v3475 = vld [vmem:[%s474 + $0x18] sm:$0xff]
        %v3476 = vld [vmem:[%s474 + $0x20] sm:$0xff]
        %v3477 = vld [vmem:[%s474 + $0x28] sm:$0xff]
        %v3478 = vld [vmem:[%s474 + $0x30] sm:$0xff]
        %v3479 = vld [vmem:[%s474 + $0x38] sm:$0xff]
        %v3480 = vld [vmem:[%s474 + $0x40] sm:$0xff]
        %v3481 = vld [vmem:[%s474 + $0x48] sm:$0xff]
        %v3482 = vld [vmem:[%s474 + $0x50] sm:$0xff]
        %v3483 = vld [vmem:[%s474 + $0x58] sm:$0xff]
        %v3484 = vld [vmem:[%s474 + $0x60] sm:$0xff]
        %v3485 = vld [vmem:[%s474 + $0x68] sm:$0xff]
        %v3486 = vld [vmem:[%s474 + $0x70] sm:$0xff]
        %v3487 = vld [vmem:[%s474 + $0x78] sm:$0xff]
        %v3488 = vld [vmem:[%s474 + $0x80] sm:$0xff]
        %v3489 = vld [vmem:[%s474 + $0x88] sm:$0xff]
        %v3490 = vld [vmem:[%s474 + $0x90] sm:$0xff]
        %v3491 = vld [vmem:[%s474 + $0x98] sm:$0xff]
        %v3492 = vld [vmem:[%s474 + $0xa0] sm:$0xff]
        %v3493 = vld [vmem:[%s474 + $0xa8] sm:$0xff]
        %v3494 = vld [vmem:[%s474 + $0xb0] sm:$0xff]
        %v3495 = vld [vmem:[%s474 + $0xb8] sm:$0xff]
        %v3496 = vld [vmem:[%s474 + $0xc0] sm:$0xff]
        %v3497 = vld [vmem:[%s474 + $0xc8] sm:$0xff]
        %v3498 = vld [vmem:[%s474 + $0xd0] sm:$0xff]
        %v3499 = vld [vmem:[%s474 + $0xd8] sm:$0xff]
        %v3500 = vld [vmem:[%s474 + $0xe0] sm:$0xff]
        %v3501 = vld [vmem:[%s474 + $0xe8] sm:$0xff]
        %v3502 = vld [vmem:[%s474 + $0xf0] sm:$0xff]
        %v3503 = vld [vmem:[%s474 + $0xf8] sm:$0xff]
        %v3504 = vld [vmem:[%s474 + $0x100] sm:$0xff]
        %v3505 = vld [vmem:[%s474 + $0x108] sm:$0xff]
        %v3506 = vld [vmem:[%s474 + $0x110] sm:$0xff]
        %v3507 = vld [vmem:[%s474 + $0x118] sm:$0xff]
        %v3508 = vld [vmem:[%s474 + $0x120] sm:$0xff]
        %v3509 = vld [vmem:[%s474 + $0x128] sm:$0xff]
        %v3510 = vld [vmem:[%s474 + $0x130] sm:$0xff]
        %v3511 = vld [vmem:[%s474 + $0x138] sm:$0xff]
        %v3512 = vld [vmem:[%s474 + $0x140] sm:$0xff]
        %v3513 = vld [vmem:[%s474 + $0x148] sm:$0xff]
        %v3514 = vld [vmem:[%s474 + $0x150] sm:$0xff]
        %v3515 = vld [vmem:[%s474 + $0x158] sm:$0xff]
        %v3516 = vld [vmem:[%s474 + $0x160] sm:$0xff]
        %v3517 = vld [vmem:[%s474 + $0x168] sm:$0xff]
        %v3518 = vld [vmem:[%s474 + $0x170] sm:$0xff]
        %v3519 = vld [vmem:[%s474 + $0x178] sm:$0xff]
        %v3520 = vld [vmem:[%s474 + $0x180] sm:$0xff]
        %v3521 = vld [vmem:[%s474 + $0x188] sm:$0xff]
        %v3522 = vld [vmem:[%s474 + $0x190] sm:$0xff]
        %v3523 = vld [vmem:[%s474 + $0x198] sm:$0xff]
        %v3524 = vld [vmem:[%s474 + $0x1a0] sm:$0xff]
        %v3525 = vld [vmem:[%s474 + $0x1a8] sm:$0xff]
        %v3526 = vld [vmem:[%s474 + $0x1b0] sm:$0xff]
        %v3527 = vld [vmem:[%s474 + $0x1b8] sm:$0xff]
        %v3528 = vld [vmem:[%s474 + $0x1c0] sm:$0xff]
        %v3529 = vld [vmem:[%s474 + $0x1c8] sm:$0xff]
        %v3530 = vld [vmem:[%s474 + $0x1d0] sm:$0xff]
        %v3531 = vld [vmem:[%s474 + $0x1d8] sm:$0xff]
        %v3532 = vld [vmem:[%s474 + $0x1e0] sm:$0xff]
        %v3533 = vld [vmem:[%s474 + $0x1e8] sm:$0xff]
        %v3534 = vld [vmem:[%s474 + $0x1f0] sm:$0xff]
        %v3535 = vld [vmem:[%s474 + $0x1f8] sm:$0xff]
        %v3536 = vld [vmem:[%s474 + $0x200] sm:$0xff]
        %v3537 = vld [vmem:[%s474 + $0x208] sm:$0xff]
        %v3538 = vld [vmem:[%s474 + $0x210] sm:$0xff]
        %v3539 = vld [vmem:[%s474 + $0x218] sm:$0xff]
        %v3540 = vld [vmem:[%s474 + $0x220] sm:$0xff]
        %v3541 = vld [vmem:[%s474 + $0x228] sm:$0xff]
        %v3542 = vld [vmem:[%s474 + $0x230] sm:$0xff]
        %v3543 = vld [vmem:[%s474 + $0x238] sm:$0xff]
        %v3544 = vld [vmem:[%s474 + $0x240] sm:$0xff]
        %v3545 = vld [vmem:[%s474 + $0x248] sm:$0xff]
        %v3546 = vld [vmem:[%s474 + $0x250] sm:$0xff]
        %v3547 = vld [vmem:[%s474 + $0x258] sm:$0xff]
        %v3548 = vld [vmem:[%s474 + $0x260] sm:$0xff]
        %v3549 = vld [vmem:[%s474 + $0x268] sm:$0xff]
        %v3550 = vld [vmem:[%s474 + $0x270] sm:$0xff]
        %v3551 = vld [vmem:[%s474 + $0x278] sm:$0xff]
        %v3552 = vld [vmem:[%s474 + $0x280] sm:$0xff]
        %v3553 = vld [vmem:[%s474 + $0x288] sm:$0xff]
        %v3554 = vld [vmem:[%s474 + $0x290] sm:$0xff]
        %v3555 = vld [vmem:[%s474 + $0x298] sm:$0xff]
        %v3556 = vld [vmem:[%s474 + $0x2a0] sm:$0xff]
        %v3557 = vld [vmem:[%s474 + $0x2a8] sm:$0xff]
        %v3558 = vld [vmem:[%s474 + $0x2b0] sm:$0xff]
        %v3559 = vld [vmem:[%s474 + $0x2b8] sm:$0xff]
        %v3560 = vld [vmem:[%s474 + $0x2c0] sm:$0xff]
        %v3561 = vld [vmem:[%s474 + $0x2c8] sm:$0xff]
        %v3562 = vld [vmem:[%s474 + $0x2d0] sm:$0xff]
        %v3563 = vld [vmem:[%s474 + $0x2d8] sm:$0xff]
        %v3564 = vld [vmem:[%s474 + $0x2e0] sm:$0xff]
        %v3565 = vld [vmem:[%s474 + $0x2e8] sm:$0xff]
        %v3566 = vld [vmem:[%s474 + $0x2f0] sm:$0xff]
        %v3567 = vld [vmem:[%s474 + $0x2f8] sm:$0xff]
        %v3568 = vld [vmem:[%s474 + $0x300] sm:$0xff]
        %v3569 = vld [vmem:[%s474 + $0x308] sm:$0xff]
        %v3570 = vld [vmem:[%s474 + $0x310] sm:$0xff]
        %v3571 = vld [vmem:[%s474 + $0x318] sm:$0xff]
        %v3572 = vld [vmem:[%s474 + $0x320] sm:$0xff]
        %v3573 = vld [vmem:[%s474 + $0x328] sm:$0xff]
        %v3574 = vld [vmem:[%s474 + $0x330] sm:$0xff]
        %v3575 = vld [vmem:[%s474 + $0x338] sm:$0xff]
        %v3576 = vld [vmem:[%s474 + $0x340] sm:$0xff]
        %v3577 = vld [vmem:[%s474 + $0x348] sm:$0xff]
        %v3578 = vld [vmem:[%s474 + $0x350] sm:$0xff]
        %v3579 = vld [vmem:[%s474 + $0x358] sm:$0xff]
        %v3580 = vld [vmem:[%s474 + $0x360] sm:$0xff]
        %v3581 = vld [vmem:[%s474 + $0x368] sm:$0xff]
        %v3582 = vld [vmem:[%s474 + $0x370] sm:$0xff]
        %v3583 = vld [vmem:[%s474 + $0x378] sm:$0xff]
        %v3584 = vld [vmem:[%s474 + $0x380] sm:$0xff]
        %v3585 = vld [vmem:[%s474 + $0x388] sm:$0xff]
        %v3586 = vld [vmem:[%s474 + $0x390] sm:$0xff]
        %v3587 = vld [vmem:[%s474 + $0x398] sm:$0xff]
        %v3588 = vld [vmem:[%s474 + $0x3a0] sm:$0xff]
        %v3589 = vld [vmem:[%s474 + $0x3a8] sm:$0xff]
        %v3590 = vld [vmem:[%s474 + $0x3b0] sm:$0xff]
        %v3591 = vld [vmem:[%s474 + $0x3b8] sm:$0xff]
        %v3592 = vld [vmem:[%s474 + $0x3c0] sm:$0xff]
        %v3593 = vld [vmem:[%s474 + $0x3c8] sm:$0xff]
        %v3594 = vld [vmem:[%s474 + $0x3d0] sm:$0xff]
        %v3595 = vld [vmem:[%s474 + $0x3d8] sm:$0xff]
        %v3596 = vld [vmem:[%s474 + $0x3e0] sm:$0xff]
        %v3597 = vld [vmem:[%s474 + $0x3e8] sm:$0xff]
        %v3598 = vld [vmem:[%s474 + $0x3f0] sm:$0xff]
        %v3599 = vld [vmem:[%s474 + $0x3f8] sm:$0xff]
        %v3600 = vld [vmem:[%s474 + $0x400] sm:$0xff]
        %v3601 = vld [vmem:[%s474 + $0x408] sm:$0xff]
        %v3602 = vld [vmem:[%s474 + $0x410] sm:$0xff]
        %v3603 = vld [vmem:[%s474 + $0x418] sm:$0xff]
        %v3604 = vld [vmem:[%s474 + $0x420] sm:$0xff]
        %v3605 = vld [vmem:[%s474 + $0x428] sm:$0xff]
        %v3606 = vld [vmem:[%s474 + $0x430] sm:$0xff]
        %v3607 = vld [vmem:[%s474 + $0x438] sm:$0xff]
        %v3608 = vld [vmem:[%s474 + $0x440] sm:$0xff]
        %v3609 = vld [vmem:[%s474 + $0x448] sm:$0xff]
        %v3610 = vld [vmem:[%s474 + $0x450] sm:$0xff]
        %v3611 = vld [vmem:[%s474 + $0x458] sm:$0xff]
        %v3612 = vld [vmem:[%s474 + $0x460] sm:$0xff]
        %v3613 = vld [vmem:[%s474 + $0x468] sm:$0xff]
        %v3614 = vld [vmem:[%s474 + $0x470] sm:$0xff]
        %v3615 = vld [vmem:[%s474 + $0x478] sm:$0xff]
        %v3616 = vld [vmem:[%s474 + $0x480] sm:$0xff]
        %v3617 = vld [vmem:[%s474 + $0x488] sm:$0xff]
        %v3618 = vld [vmem:[%s474 + $0x490] sm:$0xff]
        %v3619 = vld [vmem:[%s474 + $0x498] sm:$0xff]
        %v3620 = vld [vmem:[%s474 + $0x4a0] sm:$0xff]
        %v3621 = vld [vmem:[%s474 + $0x4a8] sm:$0xff]
        %v3622 = vld [vmem:[%s474 + $0x4b0] sm:$0xff]
        %v3623 = vld [vmem:[%s474 + $0x4b8] sm:$0xff]
        %v3624 = vld [vmem:[%s474 + $0x4c0] sm:$0xff]
        %v3625 = vld [vmem:[%s474 + $0x4c8] sm:$0xff]
        %v3626 = vld [vmem:[%s474 + $0x4d0] sm:$0xff]
        %v3627 = vld [vmem:[%s474 + $0x4d8] sm:$0xff]
        %v3628 = vld [vmem:[%s474 + $0x4e0] sm:$0xff]
        %v3629 = vld [vmem:[%s474 + $0x4e8] sm:$0xff]
        %v3630 = vld [vmem:[%s474 + $0x4f0] sm:$0xff]
        %v3631 = vld [vmem:[%s474 + $0x4f8] sm:$0xff]
        %v3632 = vld [vmem:[%s474 + $0x500] sm:$0xff]
        %v3633 = vld [vmem:[%s474 + $0x508] sm:$0xff]
        %v3634 = vld [vmem:[%s474 + $0x510] sm:$0xff]
        %v3635 = vld [vmem:[%s474 + $0x518] sm:$0xff]
        %v3636 = vld [vmem:[%s474 + $0x520] sm:$0xff]
        %v3637 = vld [vmem:[%s474 + $0x528] sm:$0xff]
        %v3638 = vld [vmem:[%s474 + $0x530] sm:$0xff]
        %v3639 = vld [vmem:[%s474 + $0x538] sm:$0xff]
        %v3640 = vld [vmem:[%s474 + $0x540] sm:$0xff]
        %v3641 = vld [vmem:[%s474 + $0x548] sm:$0xff]
        %v3642 = vld [vmem:[%s474 + $0x550] sm:$0xff]
        %v3643 = vld [vmem:[%s474 + $0x558] sm:$0xff]
        %v3644 = vld [vmem:[%s474 + $0x560] sm:$0xff]
        %v3645 = vld [vmem:[%s474 + $0x568] sm:$0xff]
        %v3646 = vld [vmem:[%s474 + $0x570] sm:$0xff]
        %v3647 = vld [vmem:[%s474 + $0x578] sm:$0xff]
        %v3648 = vld [vmem:[%s474 + $0x580] sm:$0xff]
        %v3649 = vld [vmem:[%s474 + $0x588] sm:$0xff]
        %v3650 = vld [vmem:[%s474 + $0x590] sm:$0xff]
        %v3651 = vld [vmem:[%s474 + $0x598] sm:$0xff]
        %v3652 = vld [vmem:[%s474 + $0x5a0] sm:$0xff]
        %v3653 = vld [vmem:[%s474 + $0x5a8] sm:$0xff]
        %v3654 = vld [vmem:[%s474 + $0x5b0] sm:$0xff]
        %v3655 = vld [vmem:[%s474 + $0x5b8] sm:$0xff]
        %v3656 = vld [vmem:[%s474 + $0x5c0] sm:$0xff]
        %v3657 = vld [vmem:[%s474 + $0x5c8] sm:$0xff]
        %v3658 = vld [vmem:[%s474 + $0x5d0] sm:$0xff]
        %v3659 = vld [vmem:[%s474 + $0x5d8] sm:$0xff]
        %v3660 = vld [vmem:[%s474 + $0x5e0] sm:$0xff]
        %v3661 = vld [vmem:[%s474 + $0x5e8] sm:$0xff]
        %v3662 = vld [vmem:[%s474 + $0x5f0] sm:$0xff]
        %v3663 = vld [vmem:[%s474 + $0x5f8] sm:$0xff]
        %v3664 = vld [vmem:[%s474 + $0x600] sm:$0xff]
        %v3665 = vld [vmem:[%s474 + $0x608] sm:$0xff]
        %v3666 = vld [vmem:[%s474 + $0x610] sm:$0xff]
        %v3667 = vld [vmem:[%s474 + $0x618] sm:$0xff]
        %v3668 = vld [vmem:[%s474 + $0x620] sm:$0xff]
        %v3669 = vld [vmem:[%s474 + $0x628] sm:$0xff]
        %v3670 = vld [vmem:[%s474 + $0x630] sm:$0xff]
        %v3671 = vld [vmem:[%s474 + $0x638] sm:$0xff]
        %v3672 = vld [vmem:[%s474 + $0x640] sm:$0xff]
        %v3673 = vld [vmem:[%s474 + $0x648] sm:$0xff]
        %v3674 = vld [vmem:[%s474 + $0x650] sm:$0xff]
        %v3675 = vld [vmem:[%s474 + $0x658] sm:$0xff]
        %v3676 = vld [vmem:[%s474 + $0x660] sm:$0xff]
        %v3677 = vld [vmem:[%s474 + $0x668] sm:$0xff]
        %v3678 = vld [vmem:[%s474 + $0x670] sm:$0xff]
        %v3679 = vld [vmem:[%s474 + $0x678] sm:$0xff]
        %v3680 = vld [vmem:[%s474 + $0x680] sm:$0xff]
        %v3681 = vld [vmem:[%s474 + $0x688] sm:$0xff]
        %v3682 = vld [vmem:[%s474 + $0x690] sm:$0xff]
        %v3683 = vld [vmem:[%s474 + $0x698] sm:$0xff]
        %v3684 = vld [vmem:[%s474 + $0x6a0] sm:$0xff]
        %v3685 = vld [vmem:[%s474 + $0x6a8] sm:$0xff]
        %v3686 = vld [vmem:[%s474 + $0x6b0] sm:$0xff]
        %v3687 = vld [vmem:[%s474 + $0x6b8] sm:$0xff]
        %v3688 = vld [vmem:[%s474 + $0x6c0] sm:$0xff]
        %v3689 = vld [vmem:[%s474 + $0x6c8] sm:$0xff]
        %v3690 = vld [vmem:[%s474 + $0x6d0] sm:$0xff]
        %v3691 = vld [vmem:[%s474 + $0x6d8] sm:$0xff]
        %v3692 = vld [vmem:[%s474 + $0x6e0] sm:$0xff]
        %v3693 = vld [vmem:[%s474 + $0x6e8] sm:$0xff]
        %v3694 = vld [vmem:[%s474 + $0x6f0] sm:$0xff]
        %v3695 = vld [vmem:[%s474 + $0x6f8] sm:$0xff]
        %v3696 = vld [vmem:[%s474 + $0x700] sm:$0xff]
        %v3697 = vld [vmem:[%s474 + $0x708] sm:$0xff]
        %v3698 = vld [vmem:[%s474 + $0x710] sm:$0xff]
        %v3699 = vld [vmem:[%s474 + $0x718] sm:$0xff]
        %v3700 = vld [vmem:[%s474 + $0x720] sm:$0xff]
        %v3701 = vld [vmem:[%s474 + $0x728] sm:$0xff]
        %v3702 = vld [vmem:[%s474 + $0x730] sm:$0xff]
        %v3703 = vld [vmem:[%s474 + $0x738] sm:$0xff]
        %v3704 = vld [vmem:[%s474 + $0x740] sm:$0xff]
        %v3705 = vld [vmem:[%s474 + $0x748] sm:$0xff]
        %v3706 = vld [vmem:[%s474 + $0x750] sm:$0xff]
        %v3707 = vld [vmem:[%s474 + $0x758] sm:$0xff]
        %v3708 = vld [vmem:[%s474 + $0x760] sm:$0xff]
        %v3709 = vld [vmem:[%s474 + $0x768] sm:$0xff]
        %v3710 = vld [vmem:[%s474 + $0x770] sm:$0xff]
        %v3711 = vld [vmem:[%s474 + $0x778] sm:$0xff]
        %v3712 = vld [vmem:[%s474 + $0x780] sm:$0xff]
        %v3713 = vld [vmem:[%s474 + $0x788] sm:$0xff]
        %v3714 = vld [vmem:[%s474 + $0x790] sm:$0xff]
        %v3715 = vld [vmem:[%s474 + $0x798] sm:$0xff]
        %v3716 = vld [vmem:[%s474 + $0x7a0] sm:$0xff]
        %v3717 = vld [vmem:[%s474 + $0x7a8] sm:$0xff]
        %v3718 = vld [vmem:[%s474 + $0x7b0] sm:$0xff]
        %v3719 = vld [vmem:[%s474 + $0x7b8] sm:$0xff]
        %v3720 = vld [vmem:[%s474 + $0x7c0] sm:$0xff]
        %v3721 = vld [vmem:[%s474 + $0x7c8] sm:$0xff]
        %v3722 = vld [vmem:[%s474 + $0x7d0] sm:$0xff]
        %v3723 = vld [vmem:[%s474 + $0x7d8] sm:$0xff]
        %v3724 = vld [vmem:[%s474 + $0x7e0] sm:$0xff]
        %v3725 = vld [vmem:[%s474 + $0x7e8] sm:$0xff]
        %v3726 = vld [vmem:[%s474 + $0x7f0] sm:$0xff]
        %v3727 = vld [vmem:[%s474 + $0x7f8] sm:$0xff]
        %v3728 = vld [vmem:[%s483] sm:$0xff]
        %v3730 = vlaneseq
        %v3731 = vshrl.u32 %v3730, 7
        %v3732 = vsub.s32 0, %v3731
        %v3733 = vrot.slane %v3728, %v3732
        %v3734 = vlaneseq
        %v3735 = vshrl.u32 %v3734, 7
        %v3736 = vsub.s32 1, %v3735
        %v3737 = vrot.slane %v3728, %v3736
        %v3738 = vlaneseq
        %v3739 = vshrl.u32 %v3738, 7
        %v3740 = vsub.s32 2, %v3739
        %v3741 = vrot.slane %v3728, %v3740
        %v3742 = vlaneseq
        %v3743 = vshrl.u32 %v3742, 7
        %v3744 = vsub.s32 3, %v3743
        %v3745 = vrot.slane %v3728, %v3744
        %v3746 = vlaneseq
        %v3747 = vshrl.u32 %v3746, 7
        %v3748 = vsub.s32 4, %v3747
        %v3749 = vrot.slane %v3728, %v3748
        %v3750 = vlaneseq
        %v3751 = vshrl.u32 %v3750, 7
        %v3752 = vsub.s32 5, %v3751
        %v3753 = vrot.slane %v3728, %v3752
        %v3754 = vlaneseq
        %v3755 = vshrl.u32 %v3754, 7
        %v3756 = vsub.s32 6, %v3755
        %v3757 = vrot.slane %v3728, %v3756
        %v3758 = vlaneseq
        %v3759 = vshrl.u32 %v3758, 7
        %v3760 = vsub.s32 7, %v3759
        %v3761 = vrot.slane %v3728, %v3760
        %v4026 = vunpack.c.l.b16 %v3472
        %v4027 = vunpack.c.h.b16 %v3472
        %v4028 = vunpack.c.l.b16 %v3473
        %v4029 = vunpack.c.h.b16 %v3473
        %v4030 = vunpack.c.l.b16 %v3474
        %v4031 = vunpack.c.h.b16 %v3474
        %v4032 = vunpack.c.l.b16 %v3475
        %v4033 = vunpack.c.h.b16 %v3475
        %v4034 = vunpack.c.l.b16 %v3476
        %v4035 = vunpack.c.h.b16 %v3476
        %v4036 = vunpack.c.l.b16 %v3477
        %v4037 = vunpack.c.h.b16 %v3477
        %v4038 = vunpack.c.l.b16 %v3478
        %v4039 = vunpack.c.h.b16 %v3478
        %v4040 = vunpack.c.l.b16 %v3479
        %v4041 = vunpack.c.h.b16 %v3479
        %v4042 = vunpack.c.l.b16 %v3480
        %v4043 = vunpack.c.h.b16 %v3480
        %v4044 = vunpack.c.l.b16 %v3481
        %v4045 = vunpack.c.h.b16 %v3481
        %v4046 = vunpack.c.l.b16 %v3482
        %v4047 = vunpack.c.h.b16 %v3482
        %v4048 = vunpack.c.l.b16 %v3483
        %v4049 = vunpack.c.h.b16 %v3483
        %v4050 = vunpack.c.l.b16 %v3484
        %v4051 = vunpack.c.h.b16 %v3484
        %v4052 = vunpack.c.l.b16 %v3485
        %v4053 = vunpack.c.h.b16 %v3485
        %v4054 = vunpack.c.l.b16 %v3486
        %v4055 = vunpack.c.h.b16 %v3486
        %v4056 = vunpack.c.l.b16 %v3487
        %v4057 = vunpack.c.h.b16 %v3487
        %v4058 = vunpack.c.l.b16 %v3488
        %v4059 = vunpack.c.h.b16 %v3488
        %v4060 = vunpack.c.l.b16 %v3489
        %v4061 = vunpack.c.h.b16 %v3489
        %v4062 = vunpack.c.l.b16 %v3490
        %v4063 = vunpack.c.h.b16 %v3490
        %v4064 = vunpack.c.l.b16 %v3491
        %v4065 = vunpack.c.h.b16 %v3491
        %v4066 = vunpack.c.l.b16 %v3492
        %v4067 = vunpack.c.h.b16 %v3492
        %v4068 = vunpack.c.l.b16 %v3493
        %v4069 = vunpack.c.h.b16 %v3493
        %v4070 = vunpack.c.l.b16 %v3494
        %v4071 = vunpack.c.h.b16 %v3494
        %v4072 = vunpack.c.l.b16 %v3495
        %v4073 = vunpack.c.h.b16 %v3495
        %v4074 = vunpack.c.l.b16 %v3496
        %v4075 = vunpack.c.h.b16 %v3496
        %v4076 = vunpack.c.l.b16 %v3497
        %v4077 = vunpack.c.h.b16 %v3497
        %v4078 = vunpack.c.l.b16 %v3498
        %v4079 = vunpack.c.h.b16 %v3498
        %v4080 = vunpack.c.l.b16 %v3499
        %v4081 = vunpack.c.h.b16 %v3499
        %v4082 = vunpack.c.l.b16 %v3500
        %v4083 = vunpack.c.h.b16 %v3500
        %v4084 = vunpack.c.l.b16 %v3501
        %v4085 = vunpack.c.h.b16 %v3501
        %v4086 = vunpack.c.l.b16 %v3502
        %v4087 = vunpack.c.h.b16 %v3502
        %v4088 = vunpack.c.l.b16 %v3503
        %v4089 = vunpack.c.h.b16 %v3503
        %v4090 = vunpack.c.l.b16 %v3504
        %v4091 = vunpack.c.h.b16 %v3504
        %v4092 = vunpack.c.l.b16 %v3505
        %v4093 = vunpack.c.h.b16 %v3505
        %v4094 = vunpack.c.l.b16 %v3506
        %v4095 = vunpack.c.h.b16 %v3506
        %v4096 = vunpack.c.l.b16 %v3507
        %v4097 = vunpack.c.h.b16 %v3507
        %v4098 = vunpack.c.l.b16 %v3508
        %v4099 = vunpack.c.h.b16 %v3508
        %v4100 = vunpack.c.l.b16 %v3509
        %v4101 = vunpack.c.h.b16 %v3509
        %v4102 = vunpack.c.l.b16 %v3510
        %v4103 = vunpack.c.h.b16 %v3510
        %v4104 = vunpack.c.l.b16 %v3511
        %v4105 = vunpack.c.h.b16 %v3511
        %v4106 = vunpack.c.l.b16 %v3512
        %v4107 = vunpack.c.h.b16 %v3512
        %v4108 = vunpack.c.l.b16 %v3513
        %v4109 = vunpack.c.h.b16 %v3513
        %v4110 = vunpack.c.l.b16 %v3514
        %v4111 = vunpack.c.h.b16 %v3514
        %v4112 = vunpack.c.l.b16 %v3515
        %v4113 = vunpack.c.h.b16 %v3515
        %v4114 = vunpack.c.l.b16 %v3516
        %v4115 = vunpack.c.h.b16 %v3516
        %v4116 = vunpack.c.l.b16 %v3517
        %v4117 = vunpack.c.h.b16 %v3517
        %v4118 = vunpack.c.l.b16 %v3518
        %v4119 = vunpack.c.h.b16 %v3518
        %v4120 = vunpack.c.l.b16 %v3519
        %v4121 = vunpack.c.h.b16 %v3519
        %v4122 = vunpack.c.l.b16 %v3520
        %v4123 = vunpack.c.h.b16 %v3520
        %v4124 = vunpack.c.l.b16 %v3521
        %v4125 = vunpack.c.h.b16 %v3521
        %v4126 = vunpack.c.l.b16 %v3522
        %v4127 = vunpack.c.h.b16 %v3522
        %v4128 = vunpack.c.l.b16 %v3523
        %v4129 = vunpack.c.h.b16 %v3523
        %v4130 = vunpack.c.l.b16 %v3524
        %v4131 = vunpack.c.h.b16 %v3524
        %v4132 = vunpack.c.l.b16 %v3525
        %v4133 = vunpack.c.h.b16 %v3525
        %v4134 = vunpack.c.l.b16 %v3526
        %v4135 = vunpack.c.h.b16 %v3526
        %v4136 = vunpack.c.l.b16 %v3527
        %v4137 = vunpack.c.h.b16 %v3527
        %v4138 = vunpack.c.l.b16 %v3528
        %v4139 = vunpack.c.h.b16 %v3528
        %v4140 = vunpack.c.l.b16 %v3529
        %v4141 = vunpack.c.h.b16 %v3529
        %v4142 = vunpack.c.l.b16 %v3530
        %v4143 = vunpack.c.h.b16 %v3530
        %v4144 = vunpack.c.l.b16 %v3531
        %v4145 = vunpack.c.h.b16 %v3531
        %v4146 = vunpack.c.l.b16 %v3532
        %v4147 = vunpack.c.h.b16 %v3532
        %v4148 = vunpack.c.l.b16 %v3533
        %v4149 = vunpack.c.h.b16 %v3533
        %v4150 = vunpack.c.l.b16 %v3534
        %v4151 = vunpack.c.h.b16 %v3534
        %v4152 = vunpack.c.l.b16 %v3535
        %v4153 = vunpack.c.h.b16 %v3535
        %v4154 = vunpack.c.l.b16 %v3536
        %v4155 = vunpack.c.h.b16 %v3536
        %v4156 = vunpack.c.l.b16 %v3537
        %v4157 = vunpack.c.h.b16 %v3537
        %v4158 = vunpack.c.l.b16 %v3538
        %v4159 = vunpack.c.h.b16 %v3538
        %v4160 = vunpack.c.l.b16 %v3539
        %v4161 = vunpack.c.h.b16 %v3539
        %v4162 = vunpack.c.l.b16 %v3540
        %v4163 = vunpack.c.h.b16 %v3540
        %v4164 = vunpack.c.l.b16 %v3541
        %v4165 = vunpack.c.h.b16 %v3541
        %v4166 = vunpack.c.l.b16 %v3542
        %v4167 = vunpack.c.h.b16 %v3542
        %v4168 = vunpack.c.l.b16 %v3543
        %v4169 = vunpack.c.h.b16 %v3543
        %v4170 = vunpack.c.l.b16 %v3544
        %v4171 = vunpack.c.h.b16 %v3544
        %v4172 = vunpack.c.l.b16 %v3545
        %v4173 = vunpack.c.h.b16 %v3545
        %v4174 = vunpack.c.l.b16 %v3546
        %v4175 = vunpack.c.h.b16 %v3546
        %v4176 = vunpack.c.l.b16 %v3547
        %v4177 = vunpack.c.h.b16 %v3547
        %v4178 = vunpack.c.l.b16 %v3548
        %v4179 = vunpack.c.h.b16 %v3548
        %v4180 = vunpack.c.l.b16 %v3549
        %v4181 = vunpack.c.h.b16 %v3549
        %v4182 = vunpack.c.l.b16 %v3550
        %v4183 = vunpack.c.h.b16 %v3550
        %v4184 = vunpack.c.l.b16 %v3551
        %v4185 = vunpack.c.h.b16 %v3551
        %v4186 = vunpack.c.l.b16 %v3552
        %v4187 = vunpack.c.h.b16 %v3552
        %v4188 = vunpack.c.l.b16 %v3553
        %v4189 = vunpack.c.h.b16 %v3553
        %v4190 = vunpack.c.l.b16 %v3554
        %v4191 = vunpack.c.h.b16 %v3554
        %v4192 = vunpack.c.l.b16 %v3555
        %v4193 = vunpack.c.h.b16 %v3555
        %v4194 = vunpack.c.l.b16 %v3556
        %v4195 = vunpack.c.h.b16 %v3556
        %v4196 = vunpack.c.l.b16 %v3557
        %v4197 = vunpack.c.h.b16 %v3557
        %v4198 = vunpack.c.l.b16 %v3558
        %v4199 = vunpack.c.h.b16 %v3558
        %v4200 = vunpack.c.l.b16 %v3559
        %v4201 = vunpack.c.h.b16 %v3559
        %v4202 = vunpack.c.l.b16 %v3560
        %v4203 = vunpack.c.h.b16 %v3560
        %v4204 = vunpack.c.l.b16 %v3561
        %v4205 = vunpack.c.h.b16 %v3561
        %v4206 = vunpack.c.l.b16 %v3562
        %v4207 = vunpack.c.h.b16 %v3562
        %v4208 = vunpack.c.l.b16 %v3563
        %v4209 = vunpack.c.h.b16 %v3563
        %v4210 = vunpack.c.l.b16 %v3564
        %v4211 = vunpack.c.h.b16 %v3564
        %v4212 = vunpack.c.l.b16 %v3565
        %v4213 = vunpack.c.h.b16 %v3565
        %v4214 = vunpack.c.l.b16 %v3566
        %v4215 = vunpack.c.h.b16 %v3566
        %v4216 = vunpack.c.l.b16 %v3567
        %v4217 = vunpack.c.h.b16 %v3567
        %v4218 = vunpack.c.l.b16 %v3568
        %v4219 = vunpack.c.h.b16 %v3568
        %v4220 = vunpack.c.l.b16 %v3569
        %v4221 = vunpack.c.h.b16 %v3569
        %v4222 = vunpack.c.l.b16 %v3570
        %v4223 = vunpack.c.h.b16 %v3570
        %v4224 = vunpack.c.l.b16 %v3571
        %v4225 = vunpack.c.h.b16 %v3571
        %v4226 = vunpack.c.l.b16 %v3572
        %v4227 = vunpack.c.h.b16 %v3572
        %v4228 = vunpack.c.l.b16 %v3573
        %v4229 = vunpack.c.h.b16 %v3573
        %v4230 = vunpack.c.l.b16 %v3574
        %v4231 = vunpack.c.h.b16 %v3574
        %v4232 = vunpack.c.l.b16 %v3575
        %v4233 = vunpack.c.h.b16 %v3575
        %v4234 = vunpack.c.l.b16 %v3576
        %v4235 = vunpack.c.h.b16 %v3576
        %v4236 = vunpack.c.l.b16 %v3577
        %v4237 = vunpack.c.h.b16 %v3577
        %v4238 = vunpack.c.l.b16 %v3578
        %v4239 = vunpack.c.h.b16 %v3578
        %v4240 = vunpack.c.l.b16 %v3579
        %v4241 = vunpack.c.h.b16 %v3579
        %v4242 = vunpack.c.l.b16 %v3580
        %v4243 = vunpack.c.h.b16 %v3580
        %v4244 = vunpack.c.l.b16 %v3581
        %v4245 = vunpack.c.h.b16 %v3581
        %v4246 = vunpack.c.l.b16 %v3582
        %v4247 = vunpack.c.h.b16 %v3582
        %v4248 = vunpack.c.l.b16 %v3583
        %v4249 = vunpack.c.h.b16 %v3583
        %v4250 = vunpack.c.l.b16 %v3584
        %v4251 = vunpack.c.h.b16 %v3584
        %v4252 = vunpack.c.l.b16 %v3585
        %v4253 = vunpack.c.h.b16 %v3585
        %v4254 = vunpack.c.l.b16 %v3586
        %v4255 = vunpack.c.h.b16 %v3586
        %v4256 = vunpack.c.l.b16 %v3587
        %v4257 = vunpack.c.h.b16 %v3587
        %v4258 = vunpack.c.l.b16 %v3588
        %v4259 = vunpack.c.h.b16 %v3588
        %v4260 = vunpack.c.l.b16 %v3589
        %v4261 = vunpack.c.h.b16 %v3589
        %v4262 = vunpack.c.l.b16 %v3590
        %v4263 = vunpack.c.h.b16 %v3590
        %v4264 = vunpack.c.l.b16 %v3591
        %v4265 = vunpack.c.h.b16 %v3591
        %v4266 = vunpack.c.l.b16 %v3592
        %v4267 = vunpack.c.h.b16 %v3592
        %v4268 = vunpack.c.l.b16 %v3593
        %v4269 = vunpack.c.h.b16 %v3593
        %v4270 = vunpack.c.l.b16 %v3594
        %v4271 = vunpack.c.h.b16 %v3594
        %v4272 = vunpack.c.l.b16 %v3595
        %v4273 = vunpack.c.h.b16 %v3595
        %v4274 = vunpack.c.l.b16 %v3596
        %v4275 = vunpack.c.h.b16 %v3596
        %v4276 = vunpack.c.l.b16 %v3597
        %v4277 = vunpack.c.h.b16 %v3597
        %v4278 = vunpack.c.l.b16 %v3598
        %v4279 = vunpack.c.h.b16 %v3598
        %v4280 = vunpack.c.l.b16 %v3599
        %v4281 = vunpack.c.h.b16 %v3599
        %v4282 = vunpack.c.l.b16 %v3600
        %v4283 = vunpack.c.h.b16 %v3600
        %v4284 = vunpack.c.l.b16 %v3601
        %v4285 = vunpack.c.h.b16 %v3601
        %v4286 = vunpack.c.l.b16 %v3602
        %v4287 = vunpack.c.h.b16 %v3602
        %v4288 = vunpack.c.l.b16 %v3603
        %v4289 = vunpack.c.h.b16 %v3603
        %v4290 = vunpack.c.l.b16 %v3604
        %v4291 = vunpack.c.h.b16 %v3604
        %v4292 = vunpack.c.l.b16 %v3605
        %v4293 = vunpack.c.h.b16 %v3605
        %v4294 = vunpack.c.l.b16 %v3606
        %v4295 = vunpack.c.h.b16 %v3606
        %v4296 = vunpack.c.l.b16 %v3607
        %v4297 = vunpack.c.h.b16 %v3607
        %v4298 = vunpack.c.l.b16 %v3608
        %v4299 = vunpack.c.h.b16 %v3608
        %v4300 = vunpack.c.l.b16 %v3609
        %v4301 = vunpack.c.h.b16 %v3609
        %v4302 = vunpack.c.l.b16 %v3610
        %v4303 = vunpack.c.h.b16 %v3610
        %v4304 = vunpack.c.l.b16 %v3611
        %v4305 = vunpack.c.h.b16 %v3611
        %v4306 = vunpack.c.l.b16 %v3612
        %v4307 = vunpack.c.h.b16 %v3612
        %v4308 = vunpack.c.l.b16 %v3613
        %v4309 = vunpack.c.h.b16 %v3613
        %v4310 = vunpack.c.l.b16 %v3614
        %v4311 = vunpack.c.h.b16 %v3614
        %v4312 = vunpack.c.l.b16 %v3615
        %v4313 = vunpack.c.h.b16 %v3615
        %v4314 = vunpack.c.l.b16 %v3616
        %v4315 = vunpack.c.h.b16 %v3616
        %v4316 = vunpack.c.l.b16 %v3617
        %v4317 = vunpack.c.h.b16 %v3617
        %v4318 = vunpack.c.l.b16 %v3618
        %v4319 = vunpack.c.h.b16 %v3618
        %v4320 = vunpack.c.l.b16 %v3619
        %v4321 = vunpack.c.h.b16 %v3619
        %v4322 = vunpack.c.l.b16 %v3620
        %v4323 = vunpack.c.h.b16 %v3620
        %v4324 = vunpack.c.l.b16 %v3621
        %v4325 = vunpack.c.h.b16 %v3621
        %v4326 = vunpack.c.l.b16 %v3622
        %v4327 = vunpack.c.h.b16 %v3622
        %v4328 = vunpack.c.l.b16 %v3623
        %v4329 = vunpack.c.h.b16 %v3623
        %v4330 = vunpack.c.l.b16 %v3624
        %v4331 = vunpack.c.h.b16 %v3624
        %v4332 = vunpack.c.l.b16 %v3625
        %v4333 = vunpack.c.h.b16 %v3625
        %v4334 = vunpack.c.l.b16 %v3626
        %v4335 = vunpack.c.h.b16 %v3626
        %v4336 = vunpack.c.l.b16 %v3627
        %v4337 = vunpack.c.h.b16 %v3627
        %v4338 = vunpack.c.l.b16 %v3628
        %v4339 = vunpack.c.h.b16 %v3628
        %v4340 = vunpack.c.l.b16 %v3629
        %v4341 = vunpack.c.h.b16 %v3629
        %v4342 = vunpack.c.l.b16 %v3630
        %v4343 = vunpack.c.h.b16 %v3630
        %v4344 = vunpack.c.l.b16 %v3631
        %v4345 = vunpack.c.h.b16 %v3631
        %v4346 = vunpack.c.l.b16 %v3632
        %v4347 = vunpack.c.h.b16 %v3632
        %v4348 = vunpack.c.l.b16 %v3633
        %v4349 = vunpack.c.h.b16 %v3633
        %v4350 = vunpack.c.l.b16 %v3634
        %v4351 = vunpack.c.h.b16 %v3634
        %v4352 = vunpack.c.l.b16 %v3635
        %v4353 = vunpack.c.h.b16 %v3635
        %v4354 = vunpack.c.l.b16 %v3636
        %v4355 = vunpack.c.h.b16 %v3636
        %v4356 = vunpack.c.l.b16 %v3637
        %v4357 = vunpack.c.h.b16 %v3637
        %v4358 = vunpack.c.l.b16 %v3638
        %v4359 = vunpack.c.h.b16 %v3638
        %v4360 = vunpack.c.l.b16 %v3639
        %v4361 = vunpack.c.h.b16 %v3639
        %v4362 = vunpack.c.l.b16 %v3640
        %v4363 = vunpack.c.h.b16 %v3640
        %v4364 = vunpack.c.l.b16 %v3641
        %v4365 = vunpack.c.h.b16 %v3641
        %v4366 = vunpack.c.l.b16 %v3642
        %v4367 = vunpack.c.h.b16 %v3642
        %v4368 = vunpack.c.l.b16 %v3643
        %v4369 = vunpack.c.h.b16 %v3643
        %v4370 = vunpack.c.l.b16 %v3644
        %v4371 = vunpack.c.h.b16 %v3644
        %v4372 = vunpack.c.l.b16 %v3645
        %v4373 = vunpack.c.h.b16 %v3645
        %v4374 = vunpack.c.l.b16 %v3646
        %v4375 = vunpack.c.h.b16 %v3646
        %v4376 = vunpack.c.l.b16 %v3647
        %v4377 = vunpack.c.h.b16 %v3647
        %v4378 = vunpack.c.l.b16 %v3648
        %v4379 = vunpack.c.h.b16 %v3648
        %v4380 = vunpack.c.l.b16 %v3649
        %v4381 = vunpack.c.h.b16 %v3649
        %v4382 = vunpack.c.l.b16 %v3650
        %v4383 = vunpack.c.h.b16 %v3650
        %v4384 = vunpack.c.l.b16 %v3651
        %v4385 = vunpack.c.h.b16 %v3651
        %v4386 = vunpack.c.l.b16 %v3652
        %v4387 = vunpack.c.h.b16 %v3652
        %v4388 = vunpack.c.l.b16 %v3653
        %v4389 = vunpack.c.h.b16 %v3653
        %v4390 = vunpack.c.l.b16 %v3654
        %v4391 = vunpack.c.h.b16 %v3654
        %v4392 = vunpack.c.l.b16 %v3655
        %v4393 = vunpack.c.h.b16 %v3655
        %v4394 = vunpack.c.l.b16 %v3656
        %v4395 = vunpack.c.h.b16 %v3656
        %v4396 = vunpack.c.l.b16 %v3657
        %v4397 = vunpack.c.h.b16 %v3657
        %v4398 = vunpack.c.l.b16 %v3658
        %v4399 = vunpack.c.h.b16 %v3658
        %v4400 = vunpack.c.l.b16 %v3659
        %v4401 = vunpack.c.h.b16 %v3659
        %v4402 = vunpack.c.l.b16 %v3660
        %v4403 = vunpack.c.h.b16 %v3660
        %v4404 = vunpack.c.l.b16 %v3661
        %v4405 = vunpack.c.h.b16 %v3661
        %v4406 = vunpack.c.l.b16 %v3662
        %v4407 = vunpack.c.h.b16 %v3662
        %v4408 = vunpack.c.l.b16 %v3663
        %v4409 = vunpack.c.h.b16 %v3663
        %v4410 = vunpack.c.l.b16 %v3664
        %v4411 = vunpack.c.h.b16 %v3664
        %v4412 = vunpack.c.l.b16 %v3665
        %v4413 = vunpack.c.h.b16 %v3665
        %v4414 = vunpack.c.l.b16 %v3666
        %v4415 = vunpack.c.h.b16 %v3666
        %v4416 = vunpack.c.l.b16 %v3667
        %v4417 = vunpack.c.h.b16 %v3667
        %v4418 = vunpack.c.l.b16 %v3668
        %v4419 = vunpack.c.h.b16 %v3668
        %v4420 = vunpack.c.l.b16 %v3669
        %v4421 = vunpack.c.h.b16 %v3669
        %v4422 = vunpack.c.l.b16 %v3670
        %v4423 = vunpack.c.h.b16 %v3670
        %v4424 = vunpack.c.l.b16 %v3671
        %v4425 = vunpack.c.h.b16 %v3671
        %v4426 = vunpack.c.l.b16 %v3672
        %v4427 = vunpack.c.h.b16 %v3672
        %v4428 = vunpack.c.l.b16 %v3673
        %v4429 = vunpack.c.h.b16 %v3673
        %v4430 = vunpack.c.l.b16 %v3674
        %v4431 = vunpack.c.h.b16 %v3674
        %v4432 = vunpack.c.l.b16 %v3675
        %v4433 = vunpack.c.h.b16 %v3675
        %v4434 = vunpack.c.l.b16 %v3676
        %v4435 = vunpack.c.h.b16 %v3676
        %v4436 = vunpack.c.l.b16 %v3677
        %v4437 = vunpack.c.h.b16 %v3677
        %v4438 = vunpack.c.l.b16 %v3678
        %v4439 = vunpack.c.h.b16 %v3678
        %v4440 = vunpack.c.l.b16 %v3679
        %v4441 = vunpack.c.h.b16 %v3679
        %v4442 = vunpack.c.l.b16 %v3680
        %v4443 = vunpack.c.h.b16 %v3680
        %v4444 = vunpack.c.l.b16 %v3681
        %v4445 = vunpack.c.h.b16 %v3681
        %v4446 = vunpack.c.l.b16 %v3682
        %v4447 = vunpack.c.h.b16 %v3682
        %v4448 = vunpack.c.l.b16 %v3683
        %v4449 = vunpack.c.h.b16 %v3683
        %v4450 = vunpack.c.l.b16 %v3684
        %v4451 = vunpack.c.h.b16 %v3684
        %v4452 = vunpack.c.l.b16 %v3685
        %v4453 = vunpack.c.h.b16 %v3685
        %v4454 = vunpack.c.l.b16 %v3686
        %v4455 = vunpack.c.h.b16 %v3686
        %v4456 = vunpack.c.l.b16 %v3687
        %v4457 = vunpack.c.h.b16 %v3687
        %v4458 = vunpack.c.l.b16 %v3688
        %v4459 = vunpack.c.h.b16 %v3688
        %v4460 = vunpack.c.l.b16 %v3689
        %v4461 = vunpack.c.h.b16 %v3689
        %v4462 = vunpack.c.l.b16 %v3690
        %v4463 = vunpack.c.h.b16 %v3690
        %v4464 = vunpack.c.l.b16 %v3691
        %v4465 = vunpack.c.h.b16 %v3691
        %v4466 = vunpack.c.l.b16 %v3692
        %v4467 = vunpack.c.h.b16 %v3692
        %v4468 = vunpack.c.l.b16 %v3693
        %v4469 = vunpack.c.h.b16 %v3693
        %v4470 = vunpack.c.l.b16 %v3694
        %v4471 = vunpack.c.h.b16 %v3694
        %v4472 = vunpack.c.l.b16 %v3695
        %v4473 = vunpack.c.h.b16 %v3695
        %v4474 = vunpack.c.l.b16 %v3696
        %v4475 = vunpack.c.h.b16 %v3696
        %v4476 = vunpack.c.l.b16 %v3697
        %v4477 = vunpack.c.h.b16 %v3697
        %v4478 = vunpack.c.l.b16 %v3698
        %v4479 = vunpack.c.h.b16 %v3698
        %v4480 = vunpack.c.l.b16 %v3699
        %v4481 = vunpack.c.h.b16 %v3699
        %v4482 = vunpack.c.l.b16 %v3700
        %v4483 = vunpack.c.h.b16 %v3700
        %v4484 = vunpack.c.l.b16 %v3701
        %v4485 = vunpack.c.h.b16 %v3701
        %v4486 = vunpack.c.l.b16 %v3702
        %v4487 = vunpack.c.h.b16 %v3702
        %v4488 = vunpack.c.l.b16 %v3703
        %v4489 = vunpack.c.h.b16 %v3703
        %v4490 = vunpack.c.l.b16 %v3704
        %v4491 = vunpack.c.h.b16 %v3704
        %v4492 = vunpack.c.l.b16 %v3705
        %v4493 = vunpack.c.h.b16 %v3705
        %v4494 = vunpack.c.l.b16 %v3706
        %v4495 = vunpack.c.h.b16 %v3706
        %v4496 = vunpack.c.l.b16 %v3707
        %v4497 = vunpack.c.h.b16 %v3707
        %v4498 = vunpack.c.l.b16 %v3708
        %v4499 = vunpack.c.h.b16 %v3708
        %v4500 = vunpack.c.l.b16 %v3709
        %v4501 = vunpack.c.h.b16 %v3709
        %v4502 = vunpack.c.l.b16 %v3710
        %v4503 = vunpack.c.h.b16 %v3710
        %v4504 = vunpack.c.l.b16 %v3711
        %v4505 = vunpack.c.h.b16 %v3711
        %v4506 = vunpack.c.l.b16 %v3712
        %v4507 = vunpack.c.h.b16 %v3712
        %v4508 = vunpack.c.l.b16 %v3713
        %v4509 = vunpack.c.h.b16 %v3713
        %v4510 = vunpack.c.l.b16 %v3714
        %v4511 = vunpack.c.h.b16 %v3714
        %v4512 = vunpack.c.l.b16 %v3715
        %v4513 = vunpack.c.h.b16 %v3715
        %v4514 = vunpack.c.l.b16 %v3716
        %v4515 = vunpack.c.h.b16 %v3716
        %v4516 = vunpack.c.l.b16 %v3717
        %v4517 = vunpack.c.h.b16 %v3717
        %v4518 = vunpack.c.l.b16 %v3718
        %v4519 = vunpack.c.h.b16 %v3718
        %v4520 = vunpack.c.l.b16 %v3719
        %v4521 = vunpack.c.h.b16 %v3719
        %v4522 = vunpack.c.l.b16 %v3720
        %v4523 = vunpack.c.h.b16 %v3720
        %v4524 = vunpack.c.l.b16 %v3721
        %v4525 = vunpack.c.h.b16 %v3721
        %v4526 = vunpack.c.l.b16 %v3722
        %v4527 = vunpack.c.h.b16 %v3722
        %v4528 = vunpack.c.l.b16 %v3723
        %v4529 = vunpack.c.h.b16 %v3723
        %v4530 = vunpack.c.l.b16 %v3724
        %v4531 = vunpack.c.h.b16 %v3724
        %v4532 = vunpack.c.l.b16 %v3725
        %v4533 = vunpack.c.h.b16 %v3725
        %v4534 = vunpack.c.l.b16 %v3726
        %v4535 = vunpack.c.h.b16 %v3726
        %v4536 = vunpack.c.l.b16 %v3727
        %v4537 = vunpack.c.h.b16 %v3727
        %v4538 = vpack.c.b16 %v4034, %v4026
        %v4539 = vpack.c.b16 %v4035, %v4027
        %v4540 = vpack.c.b16 %v4036, %v4028
        %v4541 = vpack.c.b16 %v4037, %v4029
        %v4542 = vpack.c.b16 %v4038, %v4030
        %v4543 = vpack.c.b16 %v4039, %v4031
        %v4544 = vpack.c.b16 %v4040, %v4032
        %v4545 = vpack.c.b16 %v4041, %v4033
        %v4546 = vpack.c.b16 %v4050, %v4042
        %v4547 = vpack.c.b16 %v4051, %v4043
        %v4548 = vpack.c.b16 %v4052, %v4044
        %v4549 = vpack.c.b16 %v4053, %v4045
        %v4550 = vpack.c.b16 %v4054, %v4046
        %v4551 = vpack.c.b16 %v4055, %v4047
        %v4552 = vpack.c.b16 %v4056, %v4048
        %v4553 = vpack.c.b16 %v4057, %v4049
        %v4554 = vpack.c.b16 %v4066, %v4058
        %v4555 = vpack.c.b16 %v4067, %v4059
        %v4556 = vpack.c.b16 %v4068, %v4060
        %v4557 = vpack.c.b16 %v4069, %v4061
        %v4558 = vpack.c.b16 %v4070, %v4062
        %v4559 = vpack.c.b16 %v4071, %v4063
        %v4560 = vpack.c.b16 %v4072, %v4064
        %v4561 = vpack.c.b16 %v4073, %v4065
        %v4562 = vpack.c.b16 %v4082, %v4074
        %v4563 = vpack.c.b16 %v4083, %v4075
        %v4564 = vpack.c.b16 %v4084, %v4076
        %v4565 = vpack.c.b16 %v4085, %v4077
        %v4566 = vpack.c.b16 %v4086, %v4078
        %v4567 = vpack.c.b16 %v4087, %v4079
        %v4568 = vpack.c.b16 %v4088, %v4080
        %v4569 = vpack.c.b16 %v4089, %v4081
        %v4570 = vpack.c.b16 %v4098, %v4090
        %v4571 = vpack.c.b16 %v4099, %v4091
        %v4572 = vpack.c.b16 %v4100, %v4092
        %v4573 = vpack.c.b16 %v4101, %v4093
        %v4574 = vpack.c.b16 %v4102, %v4094
        %v4575 = vpack.c.b16 %v4103, %v4095
        %v4576 = vpack.c.b16 %v4104, %v4096
        %v4577 = vpack.c.b16 %v4105, %v4097
        %v4578 = vpack.c.b16 %v4114, %v4106
        %v4579 = vpack.c.b16 %v4115, %v4107
        %v4580 = vpack.c.b16 %v4116, %v4108
        %v4581 = vpack.c.b16 %v4117, %v4109
        %v4582 = vpack.c.b16 %v4118, %v4110
        %v4583 = vpack.c.b16 %v4119, %v4111
        %v4584 = vpack.c.b16 %v4120, %v4112
        %v4585 = vpack.c.b16 %v4121, %v4113
        %v4586 = vpack.c.b16 %v4130, %v4122
        %v4587 = vpack.c.b16 %v4131, %v4123
        %v4588 = vpack.c.b16 %v4132, %v4124
        %v4589 = vpack.c.b16 %v4133, %v4125
        %v4590 = vpack.c.b16 %v4134, %v4126
        %v4591 = vpack.c.b16 %v4135, %v4127
        %v4592 = vpack.c.b16 %v4136, %v4128
        %v4593 = vpack.c.b16 %v4137, %v4129
        %v4594 = vpack.c.b16 %v4146, %v4138
        %v4595 = vpack.c.b16 %v4147, %v4139
        %v4596 = vpack.c.b16 %v4148, %v4140
        %v4597 = vpack.c.b16 %v4149, %v4141
        %v4598 = vpack.c.b16 %v4150, %v4142
        %v4599 = vpack.c.b16 %v4151, %v4143
        %v4600 = vpack.c.b16 %v4152, %v4144
        %v4601 = vpack.c.b16 %v4153, %v4145
        %v4602 = vpack.c.b16 %v4162, %v4154
        %v4603 = vpack.c.b16 %v4163, %v4155
        %v4604 = vpack.c.b16 %v4164, %v4156
        %v4605 = vpack.c.b16 %v4165, %v4157
        %v4606 = vpack.c.b16 %v4166, %v4158
        %v4607 = vpack.c.b16 %v4167, %v4159
        %v4608 = vpack.c.b16 %v4168, %v4160
        %v4609 = vpack.c.b16 %v4169, %v4161
        %v4610 = vpack.c.b16 %v4178, %v4170
        %v4611 = vpack.c.b16 %v4179, %v4171
        %v4612 = vpack.c.b16 %v4180, %v4172
        %v4613 = vpack.c.b16 %v4181, %v4173
        %v4614 = vpack.c.b16 %v4182, %v4174
        %v4615 = vpack.c.b16 %v4183, %v4175
        %v4616 = vpack.c.b16 %v4184, %v4176
        %v4617 = vpack.c.b16 %v4185, %v4177
        %v4618 = vpack.c.b16 %v4194, %v4186
        %v4619 = vpack.c.b16 %v4195, %v4187
        %v4620 = vpack.c.b16 %v4196, %v4188
        %v4621 = vpack.c.b16 %v4197, %v4189
        %v4622 = vpack.c.b16 %v4198, %v4190
        %v4623 = vpack.c.b16 %v4199, %v4191
        %v4624 = vpack.c.b16 %v4200, %v4192
        %v4625 = vpack.c.b16 %v4201, %v4193
        %v4626 = vpack.c.b16 %v4210, %v4202
        %v4627 = vpack.c.b16 %v4211, %v4203
        %v4628 = vpack.c.b16 %v4212, %v4204
        %v4629 = vpack.c.b16 %v4213, %v4205
        %v4630 = vpack.c.b16 %v4214, %v4206
        %v4631 = vpack.c.b16 %v4215, %v4207
        %v4632 = vpack.c.b16 %v4216, %v4208
        %v4633 = vpack.c.b16 %v4217, %v4209
        %v4634 = vpack.c.b16 %v4226, %v4218
        %v4635 = vpack.c.b16 %v4227, %v4219
        %v4636 = vpack.c.b16 %v4228, %v4220
        %v4637 = vpack.c.b16 %v4229, %v4221
        %v4638 = vpack.c.b16 %v4230, %v4222
        %v4639 = vpack.c.b16 %v4231, %v4223
        %v4640 = vpack.c.b16 %v4232, %v4224
        %v4641 = vpack.c.b16 %v4233, %v4225
        %v4642 = vpack.c.b16 %v4242, %v4234
        %v4643 = vpack.c.b16 %v4243, %v4235
        %v4644 = vpack.c.b16 %v4244, %v4236
        %v4645 = vpack.c.b16 %v4245, %v4237
        %v4646 = vpack.c.b16 %v4246, %v4238
        %v4647 = vpack.c.b16 %v4247, %v4239
        %v4648 = vpack.c.b16 %v4248, %v4240
        %v4649 = vpack.c.b16 %v4249, %v4241
        %v4650 = vpack.c.b16 %v4258, %v4250
        %v4651 = vpack.c.b16 %v4259, %v4251
        %v4652 = vpack.c.b16 %v4260, %v4252
        %v4653 = vpack.c.b16 %v4261, %v4253
        %v4654 = vpack.c.b16 %v4262, %v4254
        %v4655 = vpack.c.b16 %v4263, %v4255
        %v4656 = vpack.c.b16 %v4264, %v4256
        %v4657 = vpack.c.b16 %v4265, %v4257
        %v4658 = vpack.c.b16 %v4274, %v4266
        %v4659 = vpack.c.b16 %v4275, %v4267
        %v4660 = vpack.c.b16 %v4276, %v4268
        %v4661 = vpack.c.b16 %v4277, %v4269
        %v4662 = vpack.c.b16 %v4278, %v4270
        %v4663 = vpack.c.b16 %v4279, %v4271
        %v4664 = vpack.c.b16 %v4280, %v4272
        %v4665 = vpack.c.b16 %v4281, %v4273
        %v4666 = vpack.c.b16 %v4290, %v4282
        %v4667 = vpack.c.b16 %v4291, %v4283
        %v4668 = vpack.c.b16 %v4292, %v4284
        %v4669 = vpack.c.b16 %v4293, %v4285
        %v4670 = vpack.c.b16 %v4294, %v4286
        %v4671 = vpack.c.b16 %v4295, %v4287
        %v4672 = vpack.c.b16 %v4296, %v4288
        %v4673 = vpack.c.b16 %v4297, %v4289
        %v4674 = vpack.c.b16 %v4306, %v4298
        %v4675 = vpack.c.b16 %v4307, %v4299
        %v4676 = vpack.c.b16 %v4308, %v4300
        %v4677 = vpack.c.b16 %v4309, %v4301
        %v4678 = vpack.c.b16 %v4310, %v4302
        %v4679 = vpack.c.b16 %v4311, %v4303
        %v4680 = vpack.c.b16 %v4312, %v4304
        %v4681 = vpack.c.b16 %v4313, %v4305
        %v4682 = vpack.c.b16 %v4322, %v4314
        %v4683 = vpack.c.b16 %v4323, %v4315
        %v4684 = vpack.c.b16 %v4324, %v4316
        %v4685 = vpack.c.b16 %v4325, %v4317
        %v4686 = vpack.c.b16 %v4326, %v4318
        %v4687 = vpack.c.b16 %v4327, %v4319
        %v4688 = vpack.c.b16 %v4328, %v4320
        %v4689 = vpack.c.b16 %v4329, %v4321
        %v4690 = vpack.c.b16 %v4338, %v4330
        %v4691 = vpack.c.b16 %v4339, %v4331
        %v4692 = vpack.c.b16 %v4340, %v4332
        %v4693 = vpack.c.b16 %v4341, %v4333
        %v4694 = vpack.c.b16 %v4342, %v4334
        %v4695 = vpack.c.b16 %v4343, %v4335
        %v4696 = vpack.c.b16 %v4344, %v4336
        %v4697 = vpack.c.b16 %v4345, %v4337
        %v4698 = vpack.c.b16 %v4354, %v4346
        %v4699 = vpack.c.b16 %v4355, %v4347
        %v4700 = vpack.c.b16 %v4356, %v4348
        %v4701 = vpack.c.b16 %v4357, %v4349
        %v4702 = vpack.c.b16 %v4358, %v4350
        %v4703 = vpack.c.b16 %v4359, %v4351
        %v4704 = vpack.c.b16 %v4360, %v4352
        %v4705 = vpack.c.b16 %v4361, %v4353
        %v4706 = vpack.c.b16 %v4370, %v4362
        %v4707 = vpack.c.b16 %v4371, %v4363
        %v4708 = vpack.c.b16 %v4372, %v4364
        %v4709 = vpack.c.b16 %v4373, %v4365
        %v4710 = vpack.c.b16 %v4374, %v4366
        %v4711 = vpack.c.b16 %v4375, %v4367
        %v4712 = vpack.c.b16 %v4376, %v4368
        %v4713 = vpack.c.b16 %v4377, %v4369
        %v4714 = vpack.c.b16 %v4386, %v4378
        %v4715 = vpack.c.b16 %v4387, %v4379
        %v4716 = vpack.c.b16 %v4388, %v4380
        %v4717 = vpack.c.b16 %v4389, %v4381
        %v4718 = vpack.c.b16 %v4390, %v4382
        %v4719 = vpack.c.b16 %v4391, %v4383
        %v4720 = vpack.c.b16 %v4392, %v4384
        %v4721 = vpack.c.b16 %v4393, %v4385
        %v4722 = vpack.c.b16 %v4402, %v4394
        %v4723 = vpack.c.b16 %v4403, %v4395
        %v4724 = vpack.c.b16 %v4404, %v4396
        %v4725 = vpack.c.b16 %v4405, %v4397
        %v4726 = vpack.c.b16 %v4406, %v4398
        %v4727 = vpack.c.b16 %v4407, %v4399
        %v4728 = vpack.c.b16 %v4408, %v4400
        %v4729 = vpack.c.b16 %v4409, %v4401
        %v4730 = vpack.c.b16 %v4418, %v4410
        %v4731 = vpack.c.b16 %v4419, %v4411
        %v4732 = vpack.c.b16 %v4420, %v4412
        %v4733 = vpack.c.b16 %v4421, %v4413
        %v4734 = vpack.c.b16 %v4422, %v4414
        %v4735 = vpack.c.b16 %v4423, %v4415
        %v4736 = vpack.c.b16 %v4424, %v4416
        %v4737 = vpack.c.b16 %v4425, %v4417
        %v4738 = vpack.c.b16 %v4434, %v4426
        %v4739 = vpack.c.b16 %v4435, %v4427
        %v4740 = vpack.c.b16 %v4436, %v4428
        %v4741 = vpack.c.b16 %v4437, %v4429
        %v4742 = vpack.c.b16 %v4438, %v4430
        %v4743 = vpack.c.b16 %v4439, %v4431
        %v4744 = vpack.c.b16 %v4440, %v4432
        %v4745 = vpack.c.b16 %v4441, %v4433
        %v4746 = vpack.c.b16 %v4450, %v4442
        %v4747 = vpack.c.b16 %v4451, %v4443
        %v4748 = vpack.c.b16 %v4452, %v4444
        %v4749 = vpack.c.b16 %v4453, %v4445
        %v4750 = vpack.c.b16 %v4454, %v4446
        %v4751 = vpack.c.b16 %v4455, %v4447
        %v4752 = vpack.c.b16 %v4456, %v4448
        %v4753 = vpack.c.b16 %v4457, %v4449
        %v4754 = vpack.c.b16 %v4466, %v4458
        %v4755 = vpack.c.b16 %v4467, %v4459
        %v4756 = vpack.c.b16 %v4468, %v4460
        %v4757 = vpack.c.b16 %v4469, %v4461
        %v4758 = vpack.c.b16 %v4470, %v4462
        %v4759 = vpack.c.b16 %v4471, %v4463
        %v4760 = vpack.c.b16 %v4472, %v4464
        %v4761 = vpack.c.b16 %v4473, %v4465
        %v4762 = vpack.c.b16 %v4482, %v4474
        %v4763 = vpack.c.b16 %v4483, %v4475
        %v4764 = vpack.c.b16 %v4484, %v4476
        %v4765 = vpack.c.b16 %v4485, %v4477
        %v4766 = vpack.c.b16 %v4486, %v4478
        %v4767 = vpack.c.b16 %v4487, %v4479
        %v4768 = vpack.c.b16 %v4488, %v4480
        %v4769 = vpack.c.b16 %v4489, %v4481
        %v4770 = vpack.c.b16 %v4498, %v4490
        %v4771 = vpack.c.b16 %v4499, %v4491
        %v4772 = vpack.c.b16 %v4500, %v4492
        %v4773 = vpack.c.b16 %v4501, %v4493
        %v4774 = vpack.c.b16 %v4502, %v4494
        %v4775 = vpack.c.b16 %v4503, %v4495
        %v4776 = vpack.c.b16 %v4504, %v4496
        %v4777 = vpack.c.b16 %v4505, %v4497
        %v4778 = vpack.c.b16 %v4514, %v4506
        %v4779 = vpack.c.b16 %v4515, %v4507
        %v4780 = vpack.c.b16 %v4516, %v4508
        %v4781 = vpack.c.b16 %v4517, %v4509
        %v4782 = vpack.c.b16 %v4518, %v4510
        %v4783 = vpack.c.b16 %v4519, %v4511
        %v4784 = vpack.c.b16 %v4520, %v4512
        %v4785 = vpack.c.b16 %v4521, %v4513
        %v4786 = vpack.c.b16 %v4530, %v4522
        %v4787 = vpack.c.b16 %v4531, %v4523
        %v4788 = vpack.c.b16 %v4532, %v4524
        %v4789 = vpack.c.b16 %v4533, %v4525
        %v4790 = vpack.c.b16 %v4534, %v4526
        %v4791 = vpack.c.b16 %v4535, %v4527
        %v4792 = vpack.c.b16 %v4536, %v4528
        %v4793 = vpack.c.b16 %v4537, %v4529
        %5050 = vmatprep.subr.bf16.mxu0 %v4539
        %5051 = vmatpush1.bf16.msra.mxu0 %v4538
        %5052 = vmatprep.subr.bf16.mxu0 %v4547
        %5053 = vmatpush1.bf16.msra.mxu0 %v4546
        %5054 = vmatprep.subr.bf16.mxu0 %v4555
        %5055 = vmatpush1.bf16.msra.mxu0 %v4554
        %5056 = vmatprep.subr.bf16.mxu0 %v4563
        %5057 = vmatpush1.bf16.msra.mxu0 %v4562
        %5058 = vmatprep.subr.bf16.mxu0 %v4571
        %5059 = vmatpush1.bf16.msra.mxu0 %v4570
        %5060 = vmatprep.subr.bf16.mxu0 %v4579
        %5061 = vmatpush1.bf16.msra.mxu0 %v4578
        %5062 = vmatprep.subr.bf16.mxu0 %v4587
        %5063 = vmatpush1.bf16.msra.mxu0 %v4586
        %5064 = vmatprep.subr.bf16.mxu0 %v4595
        %5065 = vmatpush1.bf16.msra.mxu0 %v4594
        %5066 = vmatprep.subr.bf16.mxu0 %v4603
        %5067 = vmatpush1.bf16.msra.mxu0 %v4602
        %5068 = vmatprep.subr.bf16.mxu0 %v4611
        %5069 = vmatpush1.bf16.msra.mxu0 %v4610
        %5070 = vmatprep.subr.bf16.mxu0 %v4619
        %5071 = vmatpush1.bf16.msra.mxu0 %v4618
        %5072 = vmatprep.subr.bf16.mxu0 %v4627
        %5073 = vmatpush1.bf16.msra.mxu0 %v4626
        %5074 = vmatprep.subr.bf16.mxu0 %v4635
        %5075 = vmatpush1.bf16.msra.mxu0 %v4634
        %5076 = vmatprep.subr.bf16.mxu0 %v4643
        %5077 = vmatpush1.bf16.msra.mxu0 %v4642
        %5078 = vmatprep.subr.bf16.mxu0 %v4651
        %5079 = vmatpush1.bf16.msra.mxu0 %v4650
        %5080 = vmatprep.subr.bf16.mxu0 %v4659
        %5081 = vmatpush1.bf16.msra.mxu0 %v4658
        %5082 = vmatprep.mubr.bf16.mxu0 %v3469
        %5083 = vmatmul.mubr.bf16.gmra.mrb[0].mxu0 %v3468
        %v5084 = vpop.f32.mrb[0].mxu0
        %v5085 = vadd.f32 %v3733, %v5084
        %v5086 = vpop.f32.mrb[0].mxu0
        %v5087 = vadd.f32 %v3737, %v5086
        %v5088 = vpop.f32.mrb[0].mxu0
        %v5089 = vpop.f32.mrb[0].mxu0
        %5090 = vdwg.mxu0
        %5091 = vmatprep.subr.bf16.mxu0 %v4667
        %5092 = vmatpush1.bf16.msra.mxu0 %v4666
        %5093 = vmatprep.subr.bf16.mxu0 %v4675
        %5094 = vmatpush1.bf16.msra.mxu0 %v4674
        %5095 = vmatprep.subr.bf16.mxu0 %v4683
        %5096 = vmatpush1.bf16.msra.mxu0 %v4682
        %5097 = vmatprep.subr.bf16.mxu0 %v4691
        %5098 = vmatpush1.bf16.msra.mxu0 %v4690
        %5099 = vmatprep.subr.bf16.mxu0 %v4699
        %5100 = vmatpush1.bf16.msra.mxu0 %v4698
        %5101 = vmatprep.subr.bf16.mxu0 %v4707
        %5102 = vmatpush1.bf16.msra.mxu0 %v4706
        %5103 = vmatprep.subr.bf16.mxu0 %v4715
        %5104 = vmatpush1.bf16.msra.mxu0 %v4714
        %5105 = vmatprep.subr.bf16.mxu0 %v4723
        %5106 = vmatpush1.bf16.msra.mxu0 %v4722
        %5107 = vmatprep.subr.bf16.mxu0 %v4731
        %5108 = vmatpush1.bf16.msra.mxu0 %v4730
        %5109 = vmatprep.subr.bf16.mxu0 %v4739
        %5110 = vmatpush1.bf16.msra.mxu0 %v4738
        %5111 = vmatprep.subr.bf16.mxu0 %v4747
        %5112 = vmatpush1.bf16.msra.mxu0 %v4746
        %5113 = vmatprep.subr.bf16.mxu0 %v4755
        %5114 = vmatpush1.bf16.msra.mxu0 %v4754
        %5115 = vmatprep.subr.bf16.mxu0 %v4763
        %5116 = vmatpush1.bf16.msra.mxu0 %v4762
        %5117 = vmatprep.subr.bf16.mxu0 %v4771
        %5118 = vmatpush1.bf16.msra.mxu0 %v4770
        %5119 = vmatprep.subr.bf16.mxu0 %v4779
        %5120 = vmatpush1.bf16.msra.mxu0 %v4778
        %5121 = vmatprep.subr.bf16.mxu0 %v4787
        %5122 = vmatpush1.bf16.msra.mxu0 %v4786
        %5123 = vmatprep.mubr.bf16.mxu0 %v3471
        %5124 = vmatmul.mubr.bf16.gmra.mrb[0].mxu0 %v3470
        %v5125 = vpop.f32.mrb[0].mxu0
        %v5126 = vadd.f32 %v5085, %v5125
        %v5127 = vpop.f32.mrb[0].mxu0
        %v5128 = vadd.f32 %v5087, %v5127
        %v5129 = vpop.f32.mrb[0].mxu0
        %v5130 = vpop.f32.mrb[0].mxu0
        %5131 = vdwg.mxu0
        %5132 = vmatprep.subr.bf16.mxu0 %v4541
        %5133 = vmatpush1.bf16.msra.mxu0 %v4540
        %5134 = vmatprep.subr.bf16.mxu0 %v4549
        %5135 = vmatpush1.bf16.msra.mxu0 %v4548
        %5136 = vmatprep.subr.bf16.mxu0 %v4557
        %5137 = vmatpush1.bf16.msra.mxu0 %v4556
        %5138 = vmatprep.subr.bf16.mxu0 %v4565
        %5139 = vmatpush1.bf16.msra.mxu0 %v4564
        %5140 = vmatprep.subr.bf16.mxu0 %v4573
        %5141 = vmatpush1.bf16.msra.mxu0 %v4572
        %5142 = vmatprep.subr.bf16.mxu0 %v4581
        %5143 = vmatpush1.bf16.msra.mxu0 %v4580
        %5144 = vmatprep.subr.bf16.mxu0 %v4589
        %5145 = vmatpush1.bf16.msra.mxu0 %v4588
        %5146 = vmatprep.subr.bf16.mxu0 %v4597
        %5147 = vmatpush1.bf16.msra.mxu0 %v4596
        %5148 = vmatprep.subr.bf16.mxu0 %v4605
        %5149 = vmatpush1.bf16.msra.mxu0 %v4604
        %5150 = vmatprep.subr.bf16.mxu0 %v4613
        %5151 = vmatpush1.bf16.msra.mxu0 %v4612
        %5152 = vmatprep.subr.bf16.mxu0 %v4621
        %5153 = vmatpush1.bf16.msra.mxu0 %v4620
        %5154 = vmatprep.subr.bf16.mxu0 %v4629
        %5155 = vmatpush1.bf16.msra.mxu0 %v4628
        %5156 = vmatprep.subr.bf16.mxu0 %v4637
        %5157 = vmatpush1.bf16.msra.mxu0 %v4636
        %5158 = vmatprep.subr.bf16.mxu0 %v4645
        %5159 = vmatpush1.bf16.msra.mxu0 %v4644
        %5160 = vmatprep.subr.bf16.mxu0 %v4653
        %5161 = vmatpush1.bf16.msra.mxu0 %v4652
        %5162 = vmatprep.subr.bf16.mxu0 %v4661
        %5163 = vmatpush1.bf16.msra.mxu0 %v4660
        %5164 = vmatprep.mubr.bf16.mxu0 %v3469
        %5165 = vmatmul.mubr.bf16.gmra.mrb[0].mxu0 %v3468
        %v5166 = vpop.f32.mrb[0].mxu0
        %v5167 = vadd.f32 %v3741, %v5166
        %v5168 = vpop.f32.mrb[0].mxu0
        %v5169 = vadd.f32 %v3745, %v5168
        %v5170 = vpop.f32.mrb[0].mxu0
        %v5171 = vpop.f32.mrb[0].mxu0
        %5172 = vdwg.mxu0
        %5173 = vmatprep.subr.bf16.mxu0 %v4669
        %5174 = vmatpush1.bf16.msra.mxu0 %v4668
        %5175 = vmatprep.subr.bf16.mxu0 %v4677
        %5176 = vmatpush1.bf16.msra.mxu0 %v4676
        %5177 = vmatprep.subr.bf16.mxu0 %v4685
        %5178 = vmatpush1.bf16.msra.mxu0 %v4684
        %5179 = vmatprep.subr.bf16.mxu0 %v4693
        %5180 = vmatpush1.bf16.msra.mxu0 %v4692
        %5181 = vmatprep.subr.bf16.mxu0 %v4701
        %5182 = vmatpush1.bf16.msra.mxu0 %v4700
        %5183 = vmatprep.subr.bf16.mxu0 %v4709
        %5184 = vmatpush1.bf16.msra.mxu0 %v4708
        %5185 = vmatprep.subr.bf16.mxu0 %v4717
        %5186 = vmatpush1.bf16.msra.mxu0 %v4716
        %5187 = vmatprep.subr.bf16.mxu0 %v4725
        %5188 = vmatpush1.bf16.msra.mxu0 %v4724
        %5189 = vmatprep.subr.bf16.mxu0 %v4733
        %5190 = vmatpush1.bf16.msra.mxu0 %v4732
        %5191 = vmatprep.subr.bf16.mxu0 %v4741
        %5192 = vmatpush1.bf16.msra.mxu0 %v4740
        %5193 = vmatprep.subr.bf16.mxu0 %v4749
        %5194 = vmatpush1.bf16.msra.mxu0 %v4748
        %5195 = vmatprep.subr.bf16.mxu0 %v4757
        %5196 = vmatpush1.bf16.msra.mxu0 %v4756
        %5197 = vmatprep.subr.bf16.mxu0 %v4765
        %5198 = vmatpush1.bf16.msra.mxu0 %v4764
        %5199 = vmatprep.subr.bf16.mxu0 %v4773
        %5200 = vmatpush1.bf16.msra.mxu0 %v4772
        %5201 = vmatprep.subr.bf16.mxu0 %v4781
        %5202 = vmatpush1.bf16.msra.mxu0 %v4780
        %5203 = vmatprep.subr.bf16.mxu0 %v4789
        %5204 = vmatpush1.bf16.msra.mxu0 %v4788
        %5205 = vmatprep.mubr.bf16.mxu0 %v3471
        %5206 = vmatmul.mubr.bf16.gmra.mrb[0].mxu0 %v3470
        %v5207 = vpop.f32.mrb[0].mxu0
        %v5208 = vadd.f32 %v5167, %v5207
        %v5209 = vpop.f32.mrb[0].mxu0
        %v5210 = vadd.f32 %v5169, %v5209
        %v5211 = vpop.f32.mrb[0].mxu0
        %v5212 = vpop.f32.mrb[0].mxu0
        %5213 = vdwg.mxu0
        %5214 = vmatprep.subr.bf16.mxu0 %v4543
        %5215 = vmatpush1.bf16.msra.mxu0 %v4542
        %5216 = vmatprep.subr.bf16.mxu0 %v4551
        %5217 = vmatpush1.bf16.msra.mxu0 %v4550
        %5218 = vmatprep.subr.bf16.mxu0 %v4559
        %5219 = vmatpush1.bf16.msra.mxu0 %v4558
        %5220 = vmatprep.subr.bf16.mxu0 %v4567
        %5221 = vmatpush1.bf16.msra.mxu0 %v4566
        %5222 = vmatprep.subr.bf16.mxu0 %v4575
        %5223 = vmatpush1.bf16.msra.mxu0 %v4574
        %5224 = vmatprep.subr.bf16.mxu0 %v4583
        %5225 = vmatpush1.bf16.msra.mxu0 %v4582
        %5226 = vmatprep.subr.bf16.mxu0 %v4591
        %5227 = vmatpush1.bf16.msra.mxu0 %v4590
        %5228 = vmatprep.subr.bf16.mxu0 %v4599
        %5229 = vmatpush1.bf16.msra.mxu0 %v4598
        %5230 = vmatprep.subr.bf16.mxu0 %v4607
        %5231 = vmatpush1.bf16.msra.mxu0 %v4606
        %5232 = vmatprep.subr.bf16.mxu0 %v4615
        %5233 = vmatpush1.bf16.msra.mxu0 %v4614
        %5234 = vmatprep.subr.bf16.mxu0 %v4623
        %5235 = vmatpush1.bf16.msra.mxu0 %v4622
        %5236 = vmatprep.subr.bf16.mxu0 %v4631
        %5237 = vmatpush1.bf16.msra.mxu0 %v4630
        %5238 = vmatprep.subr.bf16.mxu0 %v4639
        %5239 = vmatpush1.bf16.msra.mxu0 %v4638
        %5240 = vmatprep.subr.bf16.mxu0 %v4647
        %5241 = vmatpush1.bf16.msra.mxu0 %v4646
        %5242 = vmatprep.subr.bf16.mxu0 %v4655
        %5243 = vmatpush1.bf16.msra.mxu0 %v4654
        %5244 = vmatprep.subr.bf16.mxu0 %v4663
        %5245 = vmatpush1.bf16.msra.mxu0 %v4662
        %5246 = vmatprep.mubr.bf16.mxu0 %v3469
        %5247 = vmatmul.mubr.bf16.gmra.mrb[0].mxu0 %v3468
        %v5248 = vpop.f32.mrb[0].mxu0
        %v5249 = vadd.f32 %v3749, %v5248
        %v5250 = vpop.f32.mrb[0].mxu0
        %v5251 = vadd.f32 %v3753, %v5250
        %v5252 = vpop.f32.mrb[0].mxu0
        %v5253 = vpop.f32.mrb[0].mxu0
        %5254 = vdwg.mxu0
        %5255 = vmatprep.subr.bf16.mxu0 %v4671
        %5256 = vmatpush1.bf16.msra.mxu0 %v4670
        %5257 = vmatprep.subr.bf16.mxu0 %v4679
        %5258 = vmatpush1.bf16.msra.mxu0 %v4678
        %5259 = vmatprep.subr.bf16.mxu0 %v4687
        %5260 = vmatpush1.bf16.msra.mxu0 %v4686
        %5261 = vmatprep.subr.bf16.mxu0 %v4695
        %5262 = vmatpush1.bf16.msra.mxu0 %v4694
        %5263 = vmatprep.subr.bf16.mxu0 %v4703
        %5264 = vmatpush1.bf16.msra.mxu0 %v4702
        %5265 = vmatprep.subr.bf16.mxu0 %v4711
        %5266 = vmatpush1.bf16.msra.mxu0 %v4710
        %5267 = vmatprep.subr.bf16.mxu0 %v4719
        %5268 = vmatpush1.bf16.msra.mxu0 %v4718
        %5269 = vmatprep.subr.bf16.mxu0 %v4727
        %5270 = vmatpush1.bf16.msra.mxu0 %v4726
        %5271 = vmatprep.subr.bf16.mxu0 %v4735
        %5272 = vmatpush1.bf16.msra.mxu0 %v4734
        %5273 = vmatprep.subr.bf16.mxu0 %v4743
        %5274 = vmatpush1.bf16.msra.mxu0 %v4742
        %5275 = vmatprep.subr.bf16.mxu0 %v4751
        %5276 = vmatpush1.bf16.msra.mxu0 %v4750
        %5277 = vmatprep.subr.bf16.mxu0 %v4759
        %5278 = vmatpush1.bf16.msra.mxu0 %v4758
        %5279 = vmatprep.subr.bf16.mxu0 %v4767
        %5280 = vmatpush1.bf16.msra.mxu0 %v4766
        %5281 = vmatprep.subr.bf16.mxu0 %v4775
        %5282 = vmatpush1.bf16.msra.mxu0 %v4774
        %5283 = vmatprep.subr.bf16.mxu0 %v4783
        %5284 = vmatpush1.bf16.msra.mxu0 %v4782
        %5285 = vmatprep.subr.bf16.mxu0 %v4791
        %5286 = vmatpush1.bf16.msra.mxu0 %v4790
        %5287 = vmatprep.mubr.bf16.mxu0 %v3471
        %5288 = vmatmul.mubr.bf16.gmra.mrb[0].mxu0 %v3470
        %v5289 = vpop.f32.mrb[0].mxu0
        %v5290 = vadd.f32 %v5249, %v5289
        %v5291 = vpop.f32.mrb[0].mxu0
        %v5292 = vadd.f32 %v5251, %v5291
        %v5293 = vpop.f32.mrb[0].mxu0
        %v5294 = vpop.f32.mrb[0].mxu0
        %5295 = vdwg.mxu0
        %5296 = vmatprep.subr.bf16.mxu0 %v4545
        %5297 = vmatpush1.bf16.msra.mxu0 %v4544
        %5298 = vmatprep.subr.bf16.mxu0 %v4553
        %5299 = vmatpush1.bf16.msra.mxu0 %v4552
        %5300 = vmatprep.subr.bf16.mxu0 %v4561
        %5301 = vmatpush1.bf16.msra.mxu0 %v4560
        %5302 = vmatprep.subr.bf16.mxu0 %v4569
        %5303 = vmatpush1.bf16.msra.mxu0 %v4568
        %5304 = vmatprep.subr.bf16.mxu0 %v4577
        %5305 = vmatpush1.bf16.msra.mxu0 %v4576
        %5306 = vmatprep.subr.bf16.mxu0 %v4585
        %5307 = vmatpush1.bf16.msra.mxu0 %v4584
        %5308 = vmatprep.subr.bf16.mxu0 %v4593
        %5309 = vmatpush1.bf16.msra.mxu0 %v4592
        %5310 = vmatprep.subr.bf16.mxu0 %v4601
        %5311 = vmatpush1.bf16.msra.mxu0 %v4600
        %5312 = vmatprep.subr.bf16.mxu0 %v4609
        %5313 = vmatpush1.bf16.msra.mxu0 %v4608
        %5314 = vmatprep.subr.bf16.mxu0 %v4617
        %5315 = vmatpush1.bf16.msra.mxu0 %v4616
        %5316 = vmatprep.subr.bf16.mxu0 %v4625
        %5317 = vmatpush1.bf16.msra.mxu0 %v4624
        %5318 = vmatprep.subr.bf16.mxu0 %v4633
        %5319 = vmatpush1.bf16.msra.mxu0 %v4632
        %5320 = vmatprep.subr.bf16.mxu0 %v4641
        %5321 = vmatpush1.bf16.msra.mxu0 %v4640
        %5322 = vmatprep.subr.bf16.mxu0 %v4649
        %5323 = vmatpush1.bf16.msra.mxu0 %v4648
        %5324 = vmatprep.subr.bf16.mxu0 %v4657
        %5325 = vmatpush1.bf16.msra.mxu0 %v4656
        %5326 = vmatprep.subr.bf16.mxu0 %v4665
        %5327 = vmatpush1.bf16.msra.mxu0 %v4664
        %5328 = vmatprep.mubr.bf16.mxu0 %v3469
        %5329 = vmatmul.mubr.bf16.gmra.mrb[0].mxu0 %v3468
        %v5330 = vpop.f32.mrb[0].mxu0
        %v5331 = vadd.f32 %v3757, %v5330
        %v5332 = vpop.f32.mrb[0].mxu0
        %v5333 = vadd.f32 %v3761, %v5332
        %v5334 = vpop.f32.mrb[0].mxu0
        %v5335 = vpop.f32.mrb[0].mxu0
        %5336 = vdwg.mxu0
        %5337 = vmatprep.subr.bf16.mxu0 %v4673
        %5338 = vmatpush1.bf16.msra.mxu0 %v4672
        %5339 = vmatprep.subr.bf16.mxu0 %v4681
        %5340 = vmatpush1.bf16.msra.mxu0 %v4680
        %5341 = vmatprep.subr.bf16.mxu0 %v4689
        %5342 = vmatpush1.bf16.msra.mxu0 %v4688
        %5343 = vmatprep.subr.bf16.mxu0 %v4697
        %5344 = vmatpush1.bf16.msra.mxu0 %v4696
        %5345 = vmatprep.subr.bf16.mxu0 %v4705
        %5346 = vmatpush1.bf16.msra.mxu0 %v4704
        %5347 = vmatprep.subr.bf16.mxu0 %v4713
        %5348 = vmatpush1.bf16.msra.mxu0 %v4712
        %5349 = vmatprep.subr.bf16.mxu0 %v4721
        %5350 = vmatpush1.bf16.msra.mxu0 %v4720
        %5351 = vmatprep.subr.bf16.mxu0 %v4729
        %5352 = vmatpush1.bf16.msra.mxu0 %v4728
        %5353 = vmatprep.subr.bf16.mxu0 %v4737
        %5354 = vmatpush1.bf16.msra.mxu0 %v4736
        %5355 = vmatprep.subr.bf16.mxu0 %v4745
        %5356 = vmatpush1.bf16.msra.mxu0 %v4744
        %5357 = vmatprep.subr.bf16.mxu0 %v4753
        %5358 = vmatpush1.bf16.msra.mxu0 %v4752
        %5359 = vmatprep.subr.bf16.mxu0 %v4761
        %5360 = vmatpush1.bf16.msra.mxu0 %v4760
        %5361 = vmatprep.subr.bf16.mxu0 %v4769
        %5362 = vmatpush1.bf16.msra.mxu0 %v4768
        %5363 = vmatprep.subr.bf16.mxu0 %v4777
        %5364 = vmatpush1.bf16.msra.mxu0 %v4776
        %5365 = vmatprep.subr.bf16.mxu0 %v4785
        %5366 = vmatpush1.bf16.msra.mxu0 %v4784
        %5367 = vmatprep.subr.bf16.mxu0 %v4793
        %5368 = vmatpush1.bf16.msra.mxu0 %v4792
        %5369 = vmatprep.mubr.bf16.mxu0 %v3471
        %5370 = vmatmul.mubr.bf16.gmra.mrb[0].mxu0 %v3470
        %v5371 = vpop.f32.mrb[0].mxu0
        %v5372 = vadd.f32 %v5331, %v5371
        %v5373 = vpop.f32.mrb[0].mxu0
        %v5374 = vadd.f32 %v5333, %v5373
        %v5375 = vpop.f32.mrb[0].mxu0
        %v5376 = vpop.f32.mrb[0].mxu0
        %5377 = vdwg.mxu0
        %v5378 = vmax.f32 %v5126, 0.0
        %v5379 = vmax.f32 %v5128, 0.0
        %v5380 = vmax.f32 %v5208, 0.0
        %v5381 = vmax.f32 %v5210, 0.0
        %v5382 = vmax.f32 %v5290, 0.0
        %v5383 = vmax.f32 %v5292, 0.0
        %v5384 = vmax.f32 %v5372, 0.0
        %v5385 = vmax.f32 %v5374, 0.0
        %v5386 = vpack.c.bf16 %v5378, %v5378
        %v5387 = vpack.c.bf16 %v5379, %v5379
        %v5388 = vpack.c.bf16 %v5380, %v5380
        %v5389 = vpack.c.bf16 %v5381, %v5381
        %v5390 = vpack.c.bf16 %v5382, %v5382
        %v5391 = vpack.c.bf16 %v5383, %v5383
        %v5392 = vpack.c.bf16 %v5384, %v5384
        %v5393 = vpack.c.bf16 %v5385, %v5385
        %v5394 = vld [vmem:[%s568] sm:$0xf]
        %v5395 = vld [vmem:[%s568 + $0x4] sm:$0xf]
        %v5396 = vld [vmem:[%s568 + $0x8] sm:$0xf]
        %v5397 = vld [vmem:[%s568 + $0xc] sm:$0xf]
        %v5398 = vld [vmem:[%s568 + $0x10] sm:$0xf]
        %v5399 = vld [vmem:[%s568 + $0x14] sm:$0xf]
        %v5400 = vld [vmem:[%s568 + $0x18] sm:$0xf]
        %v5401 = vld [vmem:[%s568 + $0x1c] sm:$0xf]
        %v5402 = vld [vmem:[%s568 + $0x20] sm:$0xf]
        %v5403 = vld [vmem:[%s568 + $0x24] sm:$0xf]
        %v5404 = vld [vmem:[%s568 + $0x28] sm:$0xf]
        %v5405 = vld [vmem:[%s568 + $0x2c] sm:$0xf]
        %v5406 = vld [vmem:[%s568 + $0x30] sm:$0xf]
        %v5407 = vld [vmem:[%s568 + $0x34] sm:$0xf]
        %v5408 = vld [vmem:[%s568 + $0x38] sm:$0xf]
        %v5409 = vld [vmem:[%s568 + $0x3c] sm:$0xf]
        %v5410 = vld [vmem:[%s568 + $0x40] sm:$0xf]
        %v5411 = vld [vmem:[%s568 + $0x44] sm:$0xf]
        %v5412 = vld [vmem:[%s568 + $0x48] sm:$0xf]
        %v5413 = vld [vmem:[%s568 + $0x4c] sm:$0xf]
        %v5414 = vld [vmem:[%s568 + $0x50] sm:$0xf]
        %v5415 = vld [vmem:[%s568 + $0x54] sm:$0xf]
        %v5416 = vld [vmem:[%s568 + $0x58] sm:$0xf]
        %v5417 = vld [vmem:[%s568 + $0x5c] sm:$0xf]
        %v5418 = vld [vmem:[%s568 + $0x60] sm:$0xf]
        %v5419 = vld [vmem:[%s568 + $0x64] sm:$0xf]
        %v5420 = vld [vmem:[%s568 + $0x68] sm:$0xf]
        %v5421 = vld [vmem:[%s568 + $0x6c] sm:$0xf]
        %v5422 = vld [vmem:[%s568 + $0x70] sm:$0xf]
        %v5423 = vld [vmem:[%s568 + $0x74] sm:$0xf]
        %v5424 = vld [vmem:[%s568 + $0x78] sm:$0xf]
        %v5425 = vld [vmem:[%s568 + $0x7c] sm:$0xf]
        %v5426 = vld [vmem:[%s568 + $0x80] sm:$0xf]
        %v5427 = vld [vmem:[%s568 + $0x84] sm:$0xf]
        %v5428 = vld [vmem:[%s568 + $0x88] sm:$0xf]
        %v5429 = vld [vmem:[%s568 + $0x8c] sm:$0xf]
        %v5430 = vld [vmem:[%s568 + $0x90] sm:$0xf]
        %v5431 = vld [vmem:[%s568 + $0x94] sm:$0xf]
        %v5432 = vld [vmem:[%s568 + $0x98] sm:$0xf]
        %v5433 = vld [vmem:[%s568 + $0x9c] sm:$0xf]
        %v5434 = vld [vmem:[%s568 + $0xa0] sm:$0xf]
        %v5435 = vld [vmem:[%s568 + $0xa4] sm:$0xf]
        %v5436 = vld [vmem:[%s568 + $0xa8] sm:$0xf]
        %v5437 = vld [vmem:[%s568 + $0xac] sm:$0xf]
        %v5438 = vld [vmem:[%s568 + $0xb0] sm:$0xf]
        %v5439 = vld [vmem:[%s568 + $0xb4] sm:$0xf]
        %v5440 = vld [vmem:[%s568 + $0xb8] sm:$0xf]
        %v5441 = vld [vmem:[%s568 + $0xbc] sm:$0xf]
        %v5442 = vld [vmem:[%s568 + $0xc0] sm:$0xf]
        %v5443 = vld [vmem:[%s568 + $0xc4] sm:$0xf]
        %v5444 = vld [vmem:[%s568 + $0xc8] sm:$0xf]
        %v5445 = vld [vmem:[%s568 + $0xcc] sm:$0xf]
        %v5446 = vld [vmem:[%s568 + $0xd0] sm:$0xf]
        %v5447 = vld [vmem:[%s568 + $0xd4] sm:$0xf]
        %v5448 = vld [vmem:[%s568 + $0xd8] sm:$0xf]
        %v5449 = vld [vmem:[%s568 + $0xdc] sm:$0xf]
        %v5450 = vld [vmem:[%s568 + $0xe0] sm:$0xf]
        %v5451 = vld [vmem:[%s568 + $0xe4] sm:$0xf]
        %v5452 = vld [vmem:[%s568 + $0xe8] sm:$0xf]
        %v5453 = vld [vmem:[%s568 + $0xec] sm:$0xf]
        %v5454 = vld [vmem:[%s568 + $0xf0] sm:$0xf]
        %v5455 = vld [vmem:[%s568 + $0xf4] sm:$0xf]
        %v5456 = vld [vmem:[%s568 + $0xf8] sm:$0xf]
        %v5457 = vld [vmem:[%s568 + $0xfc] sm:$0xf]
        %v5458 = vld [vmem:[%s568 + $0x100] sm:$0xf]
        %v5459 = vld [vmem:[%s568 + $0x104] sm:$0xf]
        %v5460 = vld [vmem:[%s568 + $0x108] sm:$0xf]
        %v5461 = vld [vmem:[%s568 + $0x10c] sm:$0xf]
        %v5462 = vld [vmem:[%s568 + $0x110] sm:$0xf]
        %v5463 = vld [vmem:[%s568 + $0x114] sm:$0xf]
        %v5464 = vld [vmem:[%s568 + $0x118] sm:$0xf]
        %v5465 = vld [vmem:[%s568 + $0x11c] sm:$0xf]
        %v5466 = vld [vmem:[%s568 + $0x120] sm:$0xf]
        %v5467 = vld [vmem:[%s568 + $0x124] sm:$0xf]
        %v5468 = vld [vmem:[%s568 + $0x128] sm:$0xf]
        %v5469 = vld [vmem:[%s568 + $0x12c] sm:$0xf]
        %v5470 = vld [vmem:[%s568 + $0x130] sm:$0xf]
        %v5471 = vld [vmem:[%s568 + $0x134] sm:$0xf]
        %v5472 = vld [vmem:[%s568 + $0x138] sm:$0xf]
        %v5473 = vld [vmem:[%s568 + $0x13c] sm:$0xf]
        %v5474 = vld [vmem:[%s568 + $0x140] sm:$0xf]
        %v5475 = vld [vmem:[%s568 + $0x144] sm:$0xf]
        %v5476 = vld [vmem:[%s568 + $0x148] sm:$0xf]
        %v5477 = vld [vmem:[%s568 + $0x14c] sm:$0xf]
        %v5478 = vld [vmem:[%s568 + $0x150] sm:$0xf]
        %v5479 = vld [vmem:[%s568 + $0x154] sm:$0xf]
        %v5480 = vld [vmem:[%s568 + $0x158] sm:$0xf]
        %v5481 = vld [vmem:[%s568 + $0x15c] sm:$0xf]
        %v5482 = vld [vmem:[%s568 + $0x160] sm:$0xf]
        %v5483 = vld [vmem:[%s568 + $0x164] sm:$0xf]
        %v5484 = vld [vmem:[%s568 + $0x168] sm:$0xf]
        %v5485 = vld [vmem:[%s568 + $0x16c] sm:$0xf]
        %v5486 = vld [vmem:[%s568 + $0x170] sm:$0xf]
        %v5487 = vld [vmem:[%s568 + $0x174] sm:$0xf]
        %v5488 = vld [vmem:[%s568 + $0x178] sm:$0xf]
        %v5489 = vld [vmem:[%s568 + $0x17c] sm:$0xf]
        %v5490 = vld [vmem:[%s568 + $0x180] sm:$0xf]
        %v5491 = vld [vmem:[%s568 + $0x184] sm:$0xf]
        %v5492 = vld [vmem:[%s568 + $0x188] sm:$0xf]
        %v5493 = vld [vmem:[%s568 + $0x18c] sm:$0xf]
        %v5494 = vld [vmem:[%s568 + $0x190] sm:$0xf]
        %v5495 = vld [vmem:[%s568 + $0x194] sm:$0xf]
        %v5496 = vld [vmem:[%s568 + $0x198] sm:$0xf]
        %v5497 = vld [vmem:[%s568 + $0x19c] sm:$0xf]
        %v5498 = vld [vmem:[%s568 + $0x1a0] sm:$0xf]
        %v5499 = vld [vmem:[%s568 + $0x1a4] sm:$0xf]
        %v5500 = vld [vmem:[%s568 + $0x1a8] sm:$0xf]
        %v5501 = vld [vmem:[%s568 + $0x1ac] sm:$0xf]
        %v5502 = vld [vmem:[%s568 + $0x1b0] sm:$0xf]
        %v5503 = vld [vmem:[%s568 + $0x1b4] sm:$0xf]
        %v5504 = vld [vmem:[%s568 + $0x1b8] sm:$0xf]
        %v5505 = vld [vmem:[%s568 + $0x1bc] sm:$0xf]
        %v5506 = vld [vmem:[%s568 + $0x1c0] sm:$0xf]
        %v5507 = vld [vmem:[%s568 + $0x1c4] sm:$0xf]
        %v5508 = vld [vmem:[%s568 + $0x1c8] sm:$0xf]
        %v5509 = vld [vmem:[%s568 + $0x1cc] sm:$0xf]
        %v5510 = vld [vmem:[%s568 + $0x1d0] sm:$0xf]
        %v5511 = vld [vmem:[%s568 + $0x1d4] sm:$0xf]
        %v5512 = vld [vmem:[%s568 + $0x1d8] sm:$0xf]
        %v5513 = vld [vmem:[%s568 + $0x1dc] sm:$0xf]
        %v5514 = vld [vmem:[%s568 + $0x1e0] sm:$0xf]
        %v5515 = vld [vmem:[%s568 + $0x1e4] sm:$0xf]
        %v5516 = vld [vmem:[%s568 + $0x1e8] sm:$0xf]
        %v5517 = vld [vmem:[%s568 + $0x1ec] sm:$0xf]
        %v5518 = vld [vmem:[%s568 + $0x1f0] sm:$0xf]
        %v5519 = vld [vmem:[%s568 + $0x1f4] sm:$0xf]
        %v5520 = vld [vmem:[%s568 + $0x1f8] sm:$0xf]
        %v5521 = vld [vmem:[%s568 + $0x1fc] sm:$0xf]
        %v5522 = vld [vmem:[%s491] sm:$0x1]
        %v5524 = vlaneseq
        %v5525 = vshrl.u32 %v5524, 7
        %v5526 = vsub.s32 0, %v5525
        %v5527 = vrot.slane %v5522, %v5526
        %v5657 = vunpack.c.l.b16 %v5394
        %v5658 = vunpack.c.l.b16 %v5395
        %v5659 = vunpack.c.l.b16 %v5396
        %v5660 = vunpack.c.l.b16 %v5397
        %v5661 = vunpack.c.l.b16 %v5398
        %v5662 = vunpack.c.l.b16 %v5399
        %v5663 = vunpack.c.l.b16 %v5400
        %v5664 = vunpack.c.l.b16 %v5401
        %v5665 = vunpack.c.l.b16 %v5402
        %v5666 = vunpack.c.l.b16 %v5403
        %v5667 = vunpack.c.l.b16 %v5404
        %v5668 = vunpack.c.l.b16 %v5405
        %v5669 = vunpack.c.l.b16 %v5406
        %v5670 = vunpack.c.l.b16 %v5407
        %v5671 = vunpack.c.l.b16 %v5408
        %v5672 = vunpack.c.l.b16 %v5409
        %v5673 = vunpack.c.l.b16 %v5410
        %v5674 = vunpack.c.l.b16 %v5411
        %v5675 = vunpack.c.l.b16 %v5412
        %v5676 = vunpack.c.l.b16 %v5413
        %v5677 = vunpack.c.l.b16 %v5414
        %v5678 = vunpack.c.l.b16 %v5415
        %v5679 = vunpack.c.l.b16 %v5416
        %v5680 = vunpack.c.l.b16 %v5417
        %v5681 = vunpack.c.l.b16 %v5418
        %v5682 = vunpack.c.l.b16 %v5419
        %v5683 = vunpack.c.l.b16 %v5420
        %v5684 = vunpack.c.l.b16 %v5421
        %v5685 = vunpack.c.l.b16 %v5422
        %v5686 = vunpack.c.l.b16 %v5423
        %v5687 = vunpack.c.l.b16 %v5424
        %v5688 = vunpack.c.l.b16 %v5425
        %v5689 = vunpack.c.l.b16 %v5426
        %v5690 = vunpack.c.l.b16 %v5427
        %v5691 = vunpack.c.l.b16 %v5428
        %v5692 = vunpack.c.l.b16 %v5429
        %v5693 = vunpack.c.l.b16 %v5430
        %v5694 = vunpack.c.l.b16 %v5431
        %v5695 = vunpack.c.l.b16 %v5432
        %v5696 = vunpack.c.l.b16 %v5433
        %v5697 = vunpack.c.l.b16 %v5434
        %v5698 = vunpack.c.l.b16 %v5435
        %v5699 = vunpack.c.l.b16 %v5436
        %v5700 = vunpack.c.l.b16 %v5437
        %v5701 = vunpack.c.l.b16 %v5438
        %v5702 = vunpack.c.l.b16 %v5439
        %v5703 = vunpack.c.l.b16 %v5440
        %v5704 = vunpack.c.l.b16 %v5441
        %v5705 = vunpack.c.l.b16 %v5442
        %v5706 = vunpack.c.l.b16 %v5443
        %v5707 = vunpack.c.l.b16 %v5444
        %v5708 = vunpack.c.l.b16 %v5445
        %v5709 = vunpack.c.l.b16 %v5446
        %v5710 = vunpack.c.l.b16 %v5447
        %v5711 = vunpack.c.l.b16 %v5448
        %v5712 = vunpack.c.l.b16 %v5449
        %v5713 = vunpack.c.l.b16 %v5450
        %v5714 = vunpack.c.l.b16 %v5451
        %v5715 = vunpack.c.l.b16 %v5452
        %v5716 = vunpack.c.l.b16 %v5453
        %v5717 = vunpack.c.l.b16 %v5454
        %v5718 = vunpack.c.l.b16 %v5455
        %v5719 = vunpack.c.l.b16 %v5456
        %v5720 = vunpack.c.l.b16 %v5457
        %v5721 = vunpack.c.l.b16 %v5458
        %v5722 = vunpack.c.l.b16 %v5459
        %v5723 = vunpack.c.l.b16 %v5460
        %v5724 = vunpack.c.l.b16 %v5461
        %v5725 = vunpack.c.l.b16 %v5462
        %v5726 = vunpack.c.l.b16 %v5463
        %v5727 = vunpack.c.l.b16 %v5464
        %v5728 = vunpack.c.l.b16 %v5465
        %v5729 = vunpack.c.l.b16 %v5466
        %v5730 = vunpack.c.l.b16 %v5467
        %v5731 = vunpack.c.l.b16 %v5468
        %v5732 = vunpack.c.l.b16 %v5469
        %v5733 = vunpack.c.l.b16 %v5470
        %v5734 = vunpack.c.l.b16 %v5471
        %v5735 = vunpack.c.l.b16 %v5472
        %v5736 = vunpack.c.l.b16 %v5473
        %v5737 = vunpack.c.l.b16 %v5474
        %v5738 = vunpack.c.l.b16 %v5475
        %v5739 = vunpack.c.l.b16 %v5476
        %v5740 = vunpack.c.l.b16 %v5477
        %v5741 = vunpack.c.l.b16 %v5478
        %v5742 = vunpack.c.l.b16 %v5479
        %v5743 = vunpack.c.l.b16 %v5480
        %v5744 = vunpack.c.l.b16 %v5481
        %v5745 = vunpack.c.l.b16 %v5482
        %v5746 = vunpack.c.l.b16 %v5483
        %v5747 = vunpack.c.l.b16 %v5484
        %v5748 = vunpack.c.l.b16 %v5485
        %v5749 = vunpack.c.l.b16 %v5486
        %v5750 = vunpack.c.l.b16 %v5487
        %v5751 = vunpack.c.l.b16 %v5488
        %v5752 = vunpack.c.l.b16 %v5489
        %v5753 = vunpack.c.l.b16 %v5490
        %v5754 = vunpack.c.l.b16 %v5491
        %v5755 = vunpack.c.l.b16 %v5492
        %v5756 = vunpack.c.l.b16 %v5493
        %v5757 = vunpack.c.l.b16 %v5494
        %v5758 = vunpack.c.l.b16 %v5495
        %v5759 = vunpack.c.l.b16 %v5496
        %v5760 = vunpack.c.l.b16 %v5497
        %v5761 = vunpack.c.l.b16 %v5498
        %v5762 = vunpack.c.l.b16 %v5499
        %v5763 = vunpack.c.l.b16 %v5500
        %v5764 = vunpack.c.l.b16 %v5501
        %v5765 = vunpack.c.l.b16 %v5502
        %v5766 = vunpack.c.l.b16 %v5503
        %v5767 = vunpack.c.l.b16 %v5504
        %v5768 = vunpack.c.l.b16 %v5505
        %v5769 = vunpack.c.l.b16 %v5506
        %v5770 = vunpack.c.l.b16 %v5507
        %v5771 = vunpack.c.l.b16 %v5508
        %v5772 = vunpack.c.l.b16 %v5509
        %v5773 = vunpack.c.l.b16 %v5510
        %v5774 = vunpack.c.l.b16 %v5511
        %v5775 = vunpack.c.l.b16 %v5512
        %v5776 = vunpack.c.l.b16 %v5513
        %v5777 = vunpack.c.l.b16 %v5514
        %v5778 = vunpack.c.l.b16 %v5515
        %v5779 = vunpack.c.l.b16 %v5516
        %v5780 = vunpack.c.l.b16 %v5517
        %v5781 = vunpack.c.l.b16 %v5518
        %v5782 = vunpack.c.l.b16 %v5519
        %v5783 = vunpack.c.l.b16 %v5520
        %v5784 = vunpack.c.l.b16 %v5521
        %v5785 = vpack.c.b16 %v5658, %v5657
        %v5786 = vpack.c.b16 %v5660, %v5659
        %v5787 = vpack.c.b16 %v5662, %v5661
        %v5788 = vpack.c.b16 %v5664, %v5663
        %v5789 = vpack.c.b16 %v5666, %v5665
        %v5790 = vpack.c.b16 %v5668, %v5667
        %v5791 = vpack.c.b16 %v5670, %v5669
        %v5792 = vpack.c.b16 %v5672, %v5671
        %v5793 = vpack.c.b16 %v5674, %v5673
        %v5794 = vpack.c.b16 %v5676, %v5675
        %v5795 = vpack.c.b16 %v5678, %v5677
        %v5796 = vpack.c.b16 %v5680, %v5679
        %v5797 = vpack.c.b16 %v5682, %v5681
        %v5798 = vpack.c.b16 %v5684, %v5683
        %v5799 = vpack.c.b16 %v5686, %v5685
        %v5800 = vpack.c.b16 %v5688, %v5687
        %v5801 = vpack.c.b16 %v5690, %v5689
        %v5802 = vpack.c.b16 %v5692, %v5691
        %v5803 = vpack.c.b16 %v5694, %v5693
        %v5804 = vpack.c.b16 %v5696, %v5695
        %v5805 = vpack.c.b16 %v5698, %v5697
        %v5806 = vpack.c.b16 %v5700, %v5699
        %v5807 = vpack.c.b16 %v5702, %v5701
        %v5808 = vpack.c.b16 %v5704, %v5703
        %v5809 = vpack.c.b16 %v5706, %v5705
        %v5810 = vpack.c.b16 %v5708, %v5707
        %v5811 = vpack.c.b16 %v5710, %v5709
        %v5812 = vpack.c.b16 %v5712, %v5711
        %v5813 = vpack.c.b16 %v5714, %v5713
        %v5814 = vpack.c.b16 %v5716, %v5715
        %v5815 = vpack.c.b16 %v5718, %v5717
        %v5816 = vpack.c.b16 %v5720, %v5719
        %v5817 = vpack.c.b16 %v5722, %v5721
        %v5818 = vpack.c.b16 %v5724, %v5723
        %v5819 = vpack.c.b16 %v5726, %v5725
        %v5820 = vpack.c.b16 %v5728, %v5727
        %v5821 = vpack.c.b16 %v5730, %v5729
        %v5822 = vpack.c.b16 %v5732, %v5731
        %v5823 = vpack.c.b16 %v5734, %v5733
        %v5824 = vpack.c.b16 %v5736, %v5735
        %v5825 = vpack.c.b16 %v5738, %v5737
        %v5826 = vpack.c.b16 %v5740, %v5739
        %v5827 = vpack.c.b16 %v5742, %v5741
        %v5828 = vpack.c.b16 %v5744, %v5743
        %v5829 = vpack.c.b16 %v5746, %v5745
        %v5830 = vpack.c.b16 %v5748, %v5747
        %v5831 = vpack.c.b16 %v5750, %v5749
        %v5832 = vpack.c.b16 %v5752, %v5751
        %v5833 = vpack.c.b16 %v5754, %v5753
        %v5834 = vpack.c.b16 %v5756, %v5755
        %v5835 = vpack.c.b16 %v5758, %v5757
        %v5836 = vpack.c.b16 %v5760, %v5759
        %v5837 = vpack.c.b16 %v5762, %v5761
        %v5838 = vpack.c.b16 %v5764, %v5763
        %v5839 = vpack.c.b16 %v5766, %v5765
        %v5840 = vpack.c.b16 %v5768, %v5767
        %v5841 = vpack.c.b16 %v5770, %v5769
        %v5842 = vpack.c.b16 %v5772, %v5771
        %v5843 = vpack.c.b16 %v5774, %v5773
        %v5844 = vpack.c.b16 %v5776, %v5775
        %v5845 = vpack.c.b16 %v5778, %v5777
        %v5846 = vpack.c.b16 %v5780, %v5779
        %v5847 = vpack.c.b16 %v5782, %v5781
        %v5848 = vpack.c.b16 %v5784, %v5783
        %5913 = vmatprep.subr.bf16.mxu0 0
        %5914 = vmatpush1.bf16.msra.mxu0 %v5785
        %5915 = vmatprep.subr.bf16.mxu0 0
        %5916 = vmatpush1.bf16.msra.mxu0 %v5786
        %5917 = vmatprep.subr.bf16.mxu0 0
        %5918 = vmatpush1.bf16.msra.mxu0 %v5787
        %5919 = vmatprep.subr.bf16.mxu0 0
        %5920 = vmatpush1.bf16.msra.mxu0 %v5788
        %5921 = vmatprep.subr.bf16.mxu0 0
        %5922 = vmatpush1.bf16.msra.mxu0 %v5789
        %5923 = vmatprep.subr.bf16.mxu0 0
        %5924 = vmatpush1.bf16.msra.mxu0 %v5790
        %5925 = vmatprep.subr.bf16.mxu0 0
        %5926 = vmatpush1.bf16.msra.mxu0 %v5791
        %5927 = vmatprep.subr.bf16.mxu0 0
        %5928 = vmatpush1.bf16.msra.mxu0 %v5792
        %5929 = vmatprep.subr.bf16.mxu0 0
        %5930 = vmatpush1.bf16.msra.mxu0 %v5793
        %5931 = vmatprep.subr.bf16.mxu0 0
        %5932 = vmatpush1.bf16.msra.mxu0 %v5794
        %5933 = vmatprep.subr.bf16.mxu0 0
        %5934 = vmatpush1.bf16.msra.mxu0 %v5795
        %5935 = vmatprep.subr.bf16.mxu0 0
        %5936 = vmatpush1.bf16.msra.mxu0 %v5796
        %5937 = vmatprep.subr.bf16.mxu0 0
        %5938 = vmatpush1.bf16.msra.mxu0 %v5797
        %5939 = vmatprep.subr.bf16.mxu0 0
        %5940 = vmatpush1.bf16.msra.mxu0 %v5798
        %5941 = vmatprep.subr.bf16.mxu0 0
        %5942 = vmatpush1.bf16.msra.mxu0 %v5799
        %5943 = vmatprep.subr.bf16.mxu0 0
        %5944 = vmatpush1.bf16.msra.mxu0 %v5800
        %5945 = vmatprep.mubr.bf16.mxu0 %v5387
        %5946 = vmatmul.mubr.bf16.gmra.mrb[0].mxu0 %v5386
        %v5947 = vpop.f32.mrb[0].mxu0
        %v5948 = vadd.f32 %v5527, %v5947
        %v5949 = vpop.f32.mrb[0].mxu0
        %v5950 = vpop.f32.mrb[0].mxu0
        %v5951 = vpop.f32.mrb[0].mxu0
        %5952 = vdwg.mxu0
        %5953 = vmatprep.subr.bf16.mxu0 0
        %5954 = vmatpush1.bf16.msra.mxu0 %v5801
        %5955 = vmatprep.subr.bf16.mxu0 0
        %5956 = vmatpush1.bf16.msra.mxu0 %v5802
        %5957 = vmatprep.subr.bf16.mxu0 0
        %5958 = vmatpush1.bf16.msra.mxu0 %v5803
        %5959 = vmatprep.subr.bf16.mxu0 0
        %5960 = vmatpush1.bf16.msra.mxu0 %v5804
        %5961 = vmatprep.subr.bf16.mxu0 0
        %5962 = vmatpush1.bf16.msra.mxu0 %v5805
        %5963 = vmatprep.subr.bf16.mxu0 0
        %5964 = vmatpush1.bf16.msra.mxu0 %v5806
        %5965 = vmatprep.subr.bf16.mxu0 0
        %5966 = vmatpush1.bf16.msra.mxu0 %v5807
        %5967 = vmatprep.subr.bf16.mxu0 0
        %5968 = vmatpush1.bf16.msra.mxu0 %v5808
        %5969 = vmatprep.subr.bf16.mxu0 0
        %5970 = vmatpush1.bf16.msra.mxu0 %v5809
        %5971 = vmatprep.subr.bf16.mxu0 0
        %5972 = vmatpush1.bf16.msra.mxu0 %v5810
        %5973 = vmatprep.subr.bf16.mxu0 0
        %5974 = vmatpush1.bf16.msra.mxu0 %v5811
        %5975 = vmatprep.subr.bf16.mxu0 0
        %5976 = vmatpush1.bf16.msra.mxu0 %v5812
        %5977 = vmatprep.subr.bf16.mxu0 0
        %5978 = vmatpush1.bf16.msra.mxu0 %v5813
        %5979 = vmatprep.subr.bf16.mxu0 0
        %5980 = vmatpush1.bf16.msra.mxu0 %v5814
        %5981 = vmatprep.subr.bf16.mxu0 0
        %5982 = vmatpush1.bf16.msra.mxu0 %v5815
        %5983 = vmatprep.subr.bf16.mxu0 0
        %5984 = vmatpush1.bf16.msra.mxu0 %v5816
        %5985 = vmatprep.mubr.bf16.mxu0 %v5389
        %5986 = vmatmul.mubr.bf16.gmra.mrb[0].mxu0 %v5388
        %v5987 = vpop.f32.mrb[0].mxu0
        %v5988 = vadd.f32 %v5948, %v5987
        %v5989 = vpop.f32.mrb[0].mxu0
        %v5990 = vpop.f32.mrb[0].mxu0
        %v5991 = vpop.f32.mrb[0].mxu0
        %5992 = vdwg.mxu0
        %5993 = vmatprep.subr.bf16.mxu0 0
        %5994 = vmatpush1.bf16.msra.mxu0 %v5817
        %5995 = vmatprep.subr.bf16.mxu0 0
        %5996 = vmatpush1.bf16.msra.mxu0 %v5818
        %5997 = vmatprep.subr.bf16.mxu0 0
        %5998 = vmatpush1.bf16.msra.mxu0 %v5819
        %5999 = vmatprep.subr.bf16.mxu0 0
        %6000 = vmatpush1.bf16.msra.mxu0 %v5820
        %6001 = vmatprep.subr.bf16.mxu0 0
        %6002 = vmatpush1.bf16.msra.mxu0 %v5821
        %6003 = vmatprep.subr.bf16.mxu0 0
        %6004 = vmatpush1.bf16.msra.mxu0 %v5822
        %6005 = vmatprep.subr.bf16.mxu0 0
        %6006 = vmatpush1.bf16.msra.mxu0 %v5823
        %6007 = vmatprep.subr.bf16.mxu0 0
        %6008 = vmatpush1.bf16.msra.mxu0 %v5824
        %6009 = vmatprep.subr.bf16.mxu0 0
        %6010 = vmatpush1.bf16.msra.mxu0 %v5825
        %6011 = vmatprep.subr.bf16.mxu0 0
        %6012 = vmatpush1.bf16.msra.mxu0 %v5826
        %6013 = vmatprep.subr.bf16.mxu0 0
        %6014 = vmatpush1.bf16.msra.mxu0 %v5827
        %6015 = vmatprep.subr.bf16.mxu0 0
        %6016 = vmatpush1.bf16.msra.mxu0 %v5828
        %6017 = vmatprep.subr.bf16.mxu0 0
        %6018 = vmatpush1.bf16.msra.mxu0 %v5829
        %6019 = vmatprep.subr.bf16.mxu0 0
        %6020 = vmatpush1.bf16.msra.mxu0 %v5830
        %6021 = vmatprep.subr.bf16.mxu0 0
        %6022 = vmatpush1.bf16.msra.mxu0 %v5831
        %6023 = vmatprep.subr.bf16.mxu0 0
        %6024 = vmatpush1.bf16.msra.mxu0 %v5832
        %6025 = vmatprep.mubr.bf16.mxu0 %v5391
        %6026 = vmatmul.mubr.bf16.gmra.mrb[0].mxu0 %v5390
        %v6027 = vpop.f32.mrb[0].mxu0
        %v6028 = vadd.f32 %v5988, %v6027
        %v6029 = vpop.f32.mrb[0].mxu0
        %v6030 = vpop.f32.mrb[0].mxu0
        %v6031 = vpop.f32.mrb[0].mxu0
        %6032 = vdwg.mxu0
        %6033 = vmatprep.subr.bf16.mxu0 0
        %6034 = vmatpush1.bf16.msra.mxu0 %v5833
        %6035 = vmatprep.subr.bf16.mxu0 0
        %6036 = vmatpush1.bf16.msra.mxu0 %v5834
        %6037 = vmatprep.subr.bf16.mxu0 0
        %6038 = vmatpush1.bf16.msra.mxu0 %v5835
        %6039 = vmatprep.subr.bf16.mxu0 0
        %6040 = vmatpush1.bf16.msra.mxu0 %v5836
        %6041 = vmatprep.subr.bf16.mxu0 0
        %6042 = vmatpush1.bf16.msra.mxu0 %v5837
        %6043 = vmatprep.subr.bf16.mxu0 0
        %6044 = vmatpush1.bf16.msra.mxu0 %v5838
        %6045 = vmatprep.subr.bf16.mxu0 0
        %6046 = vmatpush1.bf16.msra.mxu0 %v5839
        %6047 = vmatprep.subr.bf16.mxu0 0
        %6048 = vmatpush1.bf16.msra.mxu0 %v5840
        %6049 = vmatprep.subr.bf16.mxu0 0
        %6050 = vmatpush1.bf16.msra.mxu0 %v5841
        %6051 = vmatprep.subr.bf16.mxu0 0
        %6052 = vmatpush1.bf16.msra.mxu0 %v5842
        %6053 = vmatprep.subr.bf16.mxu0 0
        %6054 = vmatpush1.bf16.msra.mxu0 %v5843
        %6055 = vmatprep.subr.bf16.mxu0 0
        %6056 = vmatpush1.bf16.msra.mxu0 %v5844
        %6057 = vmatprep.subr.bf16.mxu0 0
        %6058 = vmatpush1.bf16.msra.mxu0 %v5845
        %6059 = vmatprep.subr.bf16.mxu0 0
        %6060 = vmatpush1.bf16.msra.mxu0 %v5846
        %6061 = vmatprep.subr.bf16.mxu0 0
        %6062 = vmatpush1.bf16.msra.mxu0 %v5847
        %6063 = vmatprep.subr.bf16.mxu0 0
        %6064 = vmatpush1.bf16.msra.mxu0 %v5848
        %6065 = vmatprep.mubr.bf16.mxu0 %v5393
        %6066 = vmatmul.mubr.bf16.gmra.mrb[0].mxu0 %v5392
        %v6067 = vpop.f32.mrb[0].mxu0
        %v6068 = vadd.f32 %v6028, %v6067
        %v6069 = vpop.f32.mrb[0].mxu0
        %v6070 = vpop.f32.mrb[0].mxu0
        %v6071 = vpop.f32.mrb[0].mxu0
        %6072 = vdwg.mxu0
        %vm6073 = vcmask 254976
        %6074 = vst.msk [vmem:[%s572] sm:$0x3] %vm6073, %v6068
        %p6075 = scmp.lt.s32.totalorder %s32, 1
        %s6076 = scalar_select %p6075, %s32, 1
        %s6077 = smul.addr %s6076, 2
        %s6078 = scalar_lea.vmem %s9, %s6077
        // Predicated region
        $region81: #{model_encdec_re_forward.3} parent=55 // pred_check
          %p6079 = pneg %p279
        $region82: #{model_encdec_re_forward.3} parent=55 // pred_check_branch
          %6081 = sbr.rel (%p6079) target = $region84
        $region83: #{model_encdec_re_forward.3} parent=55 // pred_region
          _
        $region84: #{model_encdec_re_forward.3} parent=55 // pred_fallthru
          _
      $region56: #{model_encdec_re_forward.3} parent=5 // pred_fallthru
        _
      %p6082 = scmp.le.s32.totalorder 2, %s27
      // Predicated region
      $region85: #{model_encdec_re_forward.3} parent=5 // pred_check
        %p6083 = pneg %p6082
      $region86: #{model_encdec_re_forward.3} parent=5 // pred_check_branch
        %6085 = sbr.rel (%p6083) target = $region88
      $region87: #{model_encdec_re_forward.3} parent=5 // pred_region
        %s6086 = ssub.s32 %s27, 2
        // Predicated region
        $region89: #{model_encdec_re_forward.3} parent=87 // pred_check
          %p6087 = pneg %p285
        $region90: #{model_encdec_re_forward.3} parent=87 // pred_check_branch
          %6089 = sbr.rel (%p6087) target = $region92
        $region91: #{model_encdec_re_forward.3} parent=87 // pred_region
          %p6090 = scmp.lt.s32.totalorder %s33, 1
          %s6091 = scalar_select %p6090, %s33, 1
          %s6092 = smul.addr %s6091, 2
          %s6093 = scalar_lea.vmem %s9, %s6092
        $region92: #{model_encdec_re_forward.3} parent=87 // pred_fallthru
          _
      $region88: #{model_encdec_re_forward.3} parent=5 // pred_fallthru
        _
    $region6: #{model_encdec_re_forward.3} parent=1 // loop_footer
      %s31 = sadd.s32 1, %s27
    $region7: #{model_encdec_re_forward.3} parent=1 // loop_footer_branch
      %26 = sbr.rel target = $region3
    $region8: #{model_encdec_re_forward.3} parent=1 // loop_exit
      _
    %6094 = vsyncpa [#allocation3], 1
    %s6095 = scalar_lea.sflag [#allocation3], 1
    %6096 = vsyncpa %s6095, 1
    %6097 = vsyncpa [#allocation5], 1
    %s6098 = scalar_lea.sflag [#allocation5], 1
    %6099 = vsyncpa %s6098, 1
    %6100 = vsyncpa [#allocation8], 1
    %s6101 = scalar_lea.sflag [#allocation8], 1
    %6102 = vsyncpa %s6101, 1
    %6103 = vsyncpa [#allocation11], 1
    %s6104 = scalar_lea.sflag [#allocation11], 1
    %6105 = vsyncpa %s6104, 1

</llo_original>
